<compile_context>
chip_gen: v5e
topology: v5e:2x2
jax: 0.10.0
libtpu: 0.0.40
codegen_flags: <defaults>
</compile_context>

<pallas_src>
import functools

import jax
import jax.numpy as jnp
from jax import lax
from jax.experimental import pallas as pl
from jax.experimental.pallas import tpu as pltpu

# ----------------------- static geometry (28x28x3 input => 64*12*12 = 9216) -----------------------
H = W = 28
C_IN = 3
K1 = 9 * C_IN          # conv1 contraction after tap packing (27)
K1_PAD = 32            # pad 27 -> 32 lanes
K2 = 9 * 32            # conv2 contraction after tap concatenation (288)
P1 = 768               # conv1 output rows / packed-input rows (needs >= 730), 6 chunks of 128
P2 = 672               # conv2 output rows (needs >= 668), 6 chunks of 112
X_ROWS = 832           # padded flattened-input rows before tap shifting (needs >= P1 + 58)
C1_CHUNK = 128
C2_CHUNK = 112
TAP_OFFS = tuple(W * di + dj for di in range(3) for dj in range(3))   # 9 row-offset taps


# --------------------------------------- Pallas kernels -------------------------------------------

def _fused_conv_pool_kernel(x_ref, w1_ref, b1_ref, w2_ref, b2_ref, o_ref,
                            y1_ref, y2_ref, *, b_blk):
    """Per grid step: b_blk images of conv1+ReLU -> conv2+ReLU -> 2x2 maxpool, VMEM resident.

    x_ref : (b_blk, P1, 32)  tap-packed input: lane 3*t+c of row p holds x[h+di, w+dj, c], t=3*di+dj
    w1_ref: (32, 32)         folded conv1 matrix (rows 3*t+c, zero-padded 27 -> 32)
    b1_ref: (1, 32)
    w2_ref: (288, 64)        tap-concatenated conv2 matrix (rows 32*t+ci)
    b2_ref: (1, 64)
    o_ref : (b_blk, 72, 128) pooled output, lane-dense: row 6*hp+j packs pooled row (hp, 2j) in
                             lanes 0:64 and (hp, 2j+1) in lanes 64:128 (same flat element order)
    y1_ref: (P1, 32)         conv1 activations (VMEM scratch, never hits HBM)
    y2_ref: (P2, 64)         conv2 activations (VMEM scratch, never hits HBM)
    """
    # hoisted bias reads/broadcasts (chunk loops below are Python-unrolled at trace time)
    b1 = jnp.broadcast_to(b1_ref[...], (C1_CHUNK, 32))
    b2 = jnp.broadcast_to(b2_ref[...], (C2_CHUNK, 64))

    for b in range(b_blk):
        # ---- conv1 + bias + ReLU: one (128, 32) @ (32, 32) matmul per chunk
        for ci in range(P1 // C1_CHUNK):
            r0 = ci * C1_CHUNK
            acc = jnp.dot(x_ref[b, r0:r0 + C1_CHUNK, :], w1_ref[...],
                          preferred_element_type=jnp.float32)
            y1_ref[r0:r0 + C1_CHUNK, :] = jnp.maximum(acc + b1, 0.0)

        # ---- conv2 + bias + ReLU: lane-concat the 9 shifted y1 slices -> one K=288 matmul/chunk
        for cj in range(P2 // C2_CHUNK):
            r0 = cj * C2_CHUNK
            lhs = jnp.concatenate(
                [y1_ref[r0 + off: r0 + off + C2_CHUNK, :] for off in TAP_OFFS], axis=1)
            acc = jnp.dot(lhs, w2_ref[...], preferred_element_type=jnp.float32)
            y2_ref[r0:r0 + C2_CHUNK, :] = jnp.maximum(acc + b2, 0.0)

        # ---- 2x2 max pool, packed lane-dense:
        # pooled(hp, wp) = max over y2 rows 56*hp + 2*wp + {0, 1, 28, 29}
        # out row 6*hp + j = [pooled(hp, 2j) | pooled(hp, 2j+1)]   (128 lanes)
        for hp in range(12):
            base = 56 * hp

            def window_max(s):
                return jnp.maximum(
                    jnp.maximum(y2_ref[pl.ds(base + s, 6, stride=4), :],
                                y2_ref[pl.ds(base + s + 1, 6, stride=4), :]),
                    jnp.maximum(y2_ref[pl.ds(base + s + 28, 6, stride=4), :],
                                y2_ref[pl.ds(base + s + 29, 6, stride=4), :]))

            o_ref[b, 6 * hp:6 * hp + 6, :] = jnp.concatenate(
                [window_max(0), window_max(2)], axis=1)


def _fc1_kernel(x_ref, w_ref, b_ref, o_ref, acc_ref):
    """K-tiled (M, 9216) @ (9216, 128) + bias; bf16 operands into the MXU, f32 accumulation."""
    k = pl.program_id(0)

    @pl.when(k == 0)
    def _init():
        acc_ref[...] = jnp.zeros_like(acc_ref)

    acc_ref[...] += jnp.dot(x_ref[...].astype(jnp.bfloat16), w_ref[...],
                            preferred_element_type=jnp.float32)

    @pl.when(k == pl.num_programs(0) - 1)
    def _finalize():
        o_ref[...] = acc_ref[...] + b_ref[...]


# ------------------------------------------ wrappers ----------------------------------------------

def fused_conv_relu_pool(x0, w1c, b1, w2c, b2, *, b_blk=None):
    """x0: (N, P1, 32) tap-packed input -> pooled (N, 72, 128) lane-dense output."""
    n = x0.shape[0]
    if b_blk is None:
        b_blk = 1
        for cand in (8, 4, 2):          # amortize per-step overhead, but keep >= 2 grid steps
            if n % cand == 0 and n // cand >= 2:   # so v7x's two TensorCores both get work
                b_blk = cand
                break
    assert n % b_blk == 0
    kernel = functools.partial(_fused_conv_pool_kernel, b_blk=b_blk)
    return pl.pallas_call(
        kernel,
        out_shape=jax.ShapeDtypeStruct((n, 72, 128), jnp.float32),
        grid=(n // b_blk,),
        in_specs=[
            pl.BlockSpec((b_blk, P1, K1_PAD), lambda i: (i, 0, 0)),
            pl.BlockSpec((K1_PAD, 32), lambda i: (0, 0)),
            pl.BlockSpec((1, 32), lambda i: (0, 0)),
            pl.BlockSpec((K2, 64), lambda i: (0, 0)),
            pl.BlockSpec((1, 64), lambda i: (0, 0)),
        ],
        out_specs=pl.BlockSpec((b_blk, 72, 128), lambda i: (i, 0, 0)),
        scratch_shapes=[
            pltpu.VMEM((P1, 32), jnp.float32),
            pltpu.VMEM((P2, 64), jnp.float32),
        ],
        compiler_params=pltpu.CompilerParams(
            dimension_semantics=("parallel",),
            vmem_limit_bytes=32 * 1024 * 1024),
    )(x0, w1c, b1, w2c, b2)


def fc1_matmul(x, w, b, *, tk=4608):
    """x: (M, 9216) f32, w: (9216, 128) bf16 (pre-permuted/transposed at init), b: (1, 128) f32."""
    m, kdim = x.shape
    nout = w.shape[1]
    nk = kdim // tk
    return pl.pallas_call(
        _fc1_kernel,
        out_shape=jax.ShapeDtypeStruct((m, nout), jnp.float32),
        grid=(nk,),
        in_specs=[
            pl.BlockSpec((m, tk), lambda k: (0, k)),
            pl.BlockSpec((tk, nout), lambda k: (k, 0)),
            pl.BlockSpec((1, nout), lambda k: (0, 0)),
        ],
        out_specs=pl.BlockSpec((m, nout), lambda k: (0, 0)),
        scratch_shapes=[pltpu.VMEM((m, nout), jnp.float32)],
        compiler_params=pltpu.CompilerParams(
            dimension_semantics=("arbitrary",),
            vmem_limit_bytes=32 * 1024 * 1024),
    )(x, w, b)


# --------------------------------- params (all reshapes hoisted) ----------------------------------

def init_params(key):
    ks = jax.random.split(key, 6)

    def u(k, shape, fan_in):
        bound = 1.0 / jnp.sqrt(fan_in)
        return jax.random.uniform(k, shape, jnp.float32, -bound, bound)

    return {
        "w1":    u(ks[0], (32, 3, 3, 3),   3 * 3 * 3),
        "b1":    u(ks[1], (32,),           3 * 3 * 3),
        "w2":    u(ks[2], (64, 32, 3, 3),  32 * 3 * 3),
        "b2":    u(ks[3], (64,),           32 * 3 * 3),
        "w_fc1": u(ks[4], (128, 9216),     9216),
        "b_fc1": u(ks[5], (128,),          9216),
    }


def prepare_params(params):
    """One-time conversion of PyTorch-layout params into matmul-ready kernel layouts."""
    # conv1: (O, I, kh, kw) -> folded (3*t + c, O) matrix, K zero-padded 27 -> 32.
    w1c = jnp.transpose(params["w1"], (2, 3, 1, 0)).reshape(K1, 32)
    w1c = jnp.pad(w1c, ((0, K1_PAD - K1), (0, 0)))
    # conv2: (O, I, kh, kw) -> tap-concatenated (32*t + ci, O) matrix, shape (288, 64).
    w2c = jnp.transpose(params["w2"], (2, 3, 1, 0)).reshape(K2, 64)
    # fc1: transpose AND permute columns so it consumes the NHWC (hp, wp, c) flatten directly,
    # matching PyTorch's x.view(-1, 9216) on the NCHW pooled tensor.  Stored in bf16 to halve the
    # weight DMA; accumulation stays f32 in-kernel.
    wfc = jnp.transpose(params["w_fc1"].reshape(128, 64, 12, 12), (2, 3, 1, 0)).reshape(9216, 128)
    return {
        "w1c": w1c, "b1": params["b1"].reshape(1, 32),
        "w2c": w2c, "b2": params["b2"].reshape(1, 64),
        "wfc": wfc.astype(jnp.bfloat16), "bfc": params["b_fc1"].reshape(1, 128),
    }


# ------------------------------------------- forward ----------------------------------------------

def net2layer_forward(x_nchw, p):
    n = x_nchw.shape[0]
    # NCHW -> flattened (p = 28*h + w, c), then pack the 9 conv1 taps along the channel axis
    # (im2col over taps): lane 3*t + c of row p holds x[h + di, w + dj, c].
    xf = jnp.transpose(x_nchw, (0, 2, 3, 1)).reshape(n, H * W, C_IN)
    xf = jnp.pad(xf, ((0, 0), (0, X_ROWS - H * W), (0, 0)))
    x0 = jnp.concatenate([xf[:, off:off + P1, :] for off in TAP_OFFS], axis=2)   # (n, P1, 27)
    x0 = jnp.pad(x0, ((0, 0), (0, 0), (0, K1_PAD - K1)))                          # (n, P1, 32)

    pooled = fused_conv_relu_pool(x0, p["w1c"], p["b1"], p["w2c"], p["b2"])       # (n, 72, 128)
    # TODO(synk): Dropout2d training-mode channel masking not implemented (eval/identity).
    flat = pooled.reshape(n, 9216)        # NHWC (hp, wp, c) order; fc1 weight pre-permuted to match

    m_pad = max(8, ((n + 7) // 8) * 8)    # pad M so fc1's MXU pushes are not sublane-masked
    flat = jnp.pad(flat, ((0, m_pad - n), (0, 0)))
    return fc1_matmul(flat, p["wfc"], p["bfc"])[:n]                               # (n, 128)


# -------------------------------- pure-JAX reference (for checking) -------------------------------

def reference_forward(x, params):
    hi = lax.Precision.HIGHEST
    y = lax.conv_general_dilated(x, params["w1"], (1, 1), "VALID",
                                 dimension_numbers=("NCHW", "OIHW", "NCHW"), precision=hi)
    y = jnp.maximum(y + params["b1"].reshape(1, -1, 1, 1), 0.0)
    y = lax.conv_general_dilated(y, params["w2"], (1, 1), "VALID",
                                 dimension_numbers=("NCHW", "OIHW", "NCHW"), precision=hi)
    y = jnp.maximum(y + params["b2"].reshape(1, -1, 1, 1), 0.0)
    n, c, h, w = y.shape
    y = y.reshape(n, c, h // 2, 2, w // 2, 2).max(axis=(3, 5))     # max_pool2d(2)
    flat = y.reshape(n, 9216)                                      # NCHW flatten (x.view)
    return jnp.dot(flat, params["w_fc1"].T, precision=hi) + params["b_fc1"]


if __name__ == "__main__":
    key = jax.random.PRNGKey(0)
    k_x, k_p = jax.random.split(key)
    # Input consistent with the module: 3 input channels, 28x28 so that 64*12*12 == 9216.
    x = jax.random.normal(k_x, (2, 3, 28, 28), dtype=jnp.float32)   # NCHW like PyTorch
    params = init_params(k_p)
    prep = prepare_params(params)          # weight reshapes / transposes / bf16 cast done ONCE here

    fwd = jax.jit(net2layer_forward)
    fea = jax.block_until_ready(fwd(x, prep))
    assert fea.shape == (2, 128), fea.shape

    ref = reference_forward(x, params)
    max_err = float(jnp.max(jnp.abs(fea - ref)))
    assert bool(jnp.allclose(fea, ref, atol=2e-3, rtol=2e-3)), max_err
    print("KERNEL_OK")
</pallas_src>

<mosaic_0001>
module attributes {stable_mosaic.version = 11 : i64} {
  func.func @_fc1_kernel(%arg0: i32, %arg1: memref<8x4608xf32, #tpu.memory_space<vmem>>, %arg2: memref<4608x128xbf16, #tpu.memory_space<vmem>>, %arg3: memref<1x128xf32, #tpu.memory_space<vmem>>, %arg4: memref<8x128xf32, #tpu.memory_space<vmem>>, %arg5: memref<8x128xf32, #tpu.memory_space<vmem>>) attributes {dimension_semantics = [#tpu.dimension_semantics<arbitrary>], iteration_bounds = array<i64: 2>, scalar_prefetch = 0 : i64, scratch_operands = 1 : i64, tpu.core_type = #tpu.core_type<tc>, window_params = [{transform_indices = @transform_0, window_bounds = array<i64: 8, 4608>}, {transform_indices = @transform_1, window_bounds = array<i64: 4608, 128>}, {pipeline_mode = #tpu.pipeline_mode<synchronous>, transform_indices = @transform_2, window_bounds = array<i64: 1, 128>}, {pipeline_mode = #tpu.pipeline_mode<synchronous>, transform_indices = @transform_3, window_bounds = array<i64: 8, 128>}]} {
    %c0_i32 = arith.constant 0 : i32
    %0 = arith.cmpi eq, %arg0, %c0_i32 : i32
    %1 = arith.extui %0 : i1 to i32
    %c0_i32_0 = arith.constant 0 : i32
    %2 = arith.cmpi ne, %1, %c0_i32_0 : i32
    scf.if %2 {
      %cst_9 = arith.constant 0.000000e+00 : f32
      %13 = vector.broadcast %cst_9 : f32 to vector<8x128xf32>
      %c0_10 = arith.constant 0 : index
      %c0_11 = arith.constant 0 : index
      %14 = vector.load %arg5[%c0_10, %c0_11] : memref<8x128xf32, #tpu.memory_space<vmem>>, vector<8x128xf32>
      tpu.vector_store %arg5[%c0_10, %c0_11], %13 {strides = array<i32>} : memref<8x128xf32, #tpu.memory_space<vmem>>, vector<8x128xf32>,
    } else {
    }
    %c0 = arith.constant 0 : index
    %c0_1 = arith.constant 0 : index
    %3 = vector.load %arg5[%c0, %c0_1] : memref<8x128xf32, #tpu.memory_space<vmem>>, vector<8x128xf32>
    %c0_2 = arith.constant 0 : index
    %c0_3 = arith.constant 0 : index
    %4 = vector.load %arg1[%c0_2, %c0_3] : memref<8x4608xf32, #tpu.memory_space<vmem>>, vector<8x4608xf32>
    %5 = arith.truncf %4 : vector<8x4608xf32> to vector<8x4608xbf16>
    %c0_4 = arith.constant 0 : index
    %c0_5 = arith.constant 0 : index
    %6 = vector.load %arg2[%c0_4, %c0_5] : memref<4608x128xbf16, #tpu.memory_space<vmem>>, vector<4608x128xbf16>
    %cst = arith.constant dense<0.000000e+00> : vector<8x128xf32>
    %7 = tpu.matmul %5, %6, %cst {dimension_numbers = #tpu.dot_dimension_numbers<[1], [0], [0], [1], [0, 0, 1, 1], [], []>} : vector<8x4608xbf16>, vector<4608x128xbf16>, vector<8x128xf32> -> vector<8x128xf32>
    %8 = arith.addf %3, %7 : vector<8x128xf32>
    %c0_6 = arith.constant 0 : index
    %c0_7 = arith.constant 0 : index
    %9 = vector.load %arg5[%c0_6, %c0_7] : memref<8x128xf32, #tpu.memory_space<vmem>>, vector<8x128xf32>
    tpu.vector_store %arg5[%c0_6, %c0_7], %8 {strides = array<i32>} : memref<8x128xf32, #tpu.memory_space<vmem>>, vector<8x128xf32>,
    %c1_i32 = arith.constant 1 : i32
    %10 = arith.cmpi eq, %arg0, %c1_i32 : i32
    %11 = arith.extui %10 : i1 to i32
    %c0_i32_8 = arith.constant 0 : i32
    %12 = arith.cmpi ne, %11, %c0_i32_8 : i32
    scf.if %12 {
      %c0_9 = arith.constant 0 : index
      %c0_10 = arith.constant 0 : index
      %13 = vector.load %arg5[%c0_9, %c0_10] : memref<8x128xf32, #tpu.memory_space<vmem>>, vector<8x128xf32>
      %c0_11 = arith.constant 0 : index
      %c0_12 = arith.constant 0 : index
      %14 = vector.load %arg3[%c0_11, %c0_12] : memref<1x128xf32, #tpu.memory_space<vmem>>, vector<1x128xf32>
      %15 = vector.broadcast %14 : vector<1x128xf32> to vector<8x128xf32>
      %16 = arith.addf %13, %15 : vector<8x128xf32>
      %c0_13 = arith.constant 0 : index
      %c0_14 = arith.constant 0 : index
      %17 = vector.load %arg4[%c0_13, %c0_14] : memref<8x128xf32, #tpu.memory_space<vmem>>, vector<8x128xf32>
      tpu.vector_store %arg4[%c0_13, %c0_14], %16 {strides = array<i32>} : memref<8x128xf32, #tpu.memory_space<vmem>>, vector<8x128xf32>,
    } else {
    }
    return
  }
  func.func @transform_0(%arg0: i32) -> (i32, i32) {
    %c0_i32 = arith.constant 0 : i32
    %c0_i32_0 = arith.constant 0 : i32
    return %c0_i32, %arg0 : i32, i32
  }
  func.func @transform_1(%arg0: i32) -> (i32, i32) {
    %c0_i32 = arith.constant 0 : i32
    %c0_i32_0 = arith.constant 0 : i32
    return %arg0, %c0_i32 : i32, i32
  }
  func.func @transform_2(%arg0: i32) -> (i32, i32) {
    %c0_i32 = arith.constant 0 : i32
    %c0_i32_0 = arith.constant 0 : i32
    %c0_i32_1 = arith.constant 0 : i32
    return %c0_i32, %c0_i32_0 : i32, i32
  }
  func.func @transform_3(%arg0: i32) -> (i32, i32) {
    %c0_i32 = arith.constant 0 : i32
    %c0_i32_0 = arith.constant 0 : i32
    %c0_i32_1 = arith.constant 0 : i32
    return %c0_i32, %c0_i32_0 : i32, i32
  }
}

module attributes {stable_mosaic.version = 11 : i64} {
  func.func @_fused_conv_pool_kernel(%arg0: i32, %arg1: memref<1x768x32xf32, #tpu.memory_space<vmem>>, %arg2: memref<32x32xf32, #tpu.memory_space<vmem>>, %arg3: memref<1x32xf32, #tpu.memory_space<vmem>>, %arg4: memref<288x64xf32, #tpu.memory_space<vmem>>, %arg5: memref<1x64xf32, #tpu.memory_space<vmem>>, %arg6: memref<1x72x128xf32, #tpu.memory_space<vmem>>, %arg7: memref<768x32xf32, #tpu.memory_space<vmem>>, %arg8: memref<672x64xf32, #tpu.memory_space<vmem>>) attributes {dimension_semantics = [#tpu.dimension_semantics<parallel>], iteration_bounds = array<i64: 2>, scalar_prefetch = 0 : i64, scratch_operands = 2 : i64, tpu.core_type = #tpu.core_type<tc>, window_params = [{transform_indices = @transform_0, window_bounds = array<i64: 1, 768, 32>}, {pipeline_mode = #tpu.pipeline_mode<synchronous>, transform_indices = @transform_1, window_bounds = array<i64: 32, 32>}, {pipeline_mode = #tpu.pipeline_mode<synchronous>, transform_indices = @transform_2, window_bounds = array<i64: 1, 32>}, {pipeline_mode = #tpu.pipeline_mode<synchronous>, transform_indices = @transform_3, window_bounds = array<i64: 288, 64>}, {pipeline_mode = #tpu.pipeline_mode<synchronous>, transform_indices = @transform_4, window_bounds = array<i64: 1, 64>}, {transform_indices = @transform_5, window_bounds = array<i64: 1, 72, 128>}]} {
    %c0 = arith.constant 0 : index
    %c0_0 = arith.constant 0 : index
    %0 = vector.load %arg3[%c0, %c0_0] : memref<1x32xf32, #tpu.memory_space<vmem>>, vector<1x32xf32>
    %1 = vector.shape_cast %0 : vector<1x32xf32> to vector<1x32xf32>
    %2 = vector.broadcast %1 : vector<1x32xf32> to vector<128x32xf32>
    %c0_1 = arith.constant 0 : index
    %c0_2 = arith.constant 0 : index
    %3 = vector.load %arg5[%c0_1, %c0_2] : memref<1x64xf32, #tpu.memory_space<vmem>>, vector<1x64xf32>
    %4 = vector.shape_cast %3 : vector<1x64xf32> to vector<1x64xf32>
    %5 = vector.broadcast %4 : vector<1x64xf32> to vector<112x64xf32>
    %c0_3 = arith.constant 0 : index
    %c0_4 = arith.constant 0 : index
    %c0_5 = arith.constant 0 : index
    %6 = vector.load %arg1[%c0_3, %c0_4, %c0_5] : memref<1x768x32xf32, #tpu.memory_space<vmem>>, vector<1x128x32xf32>
    %7 = vector.shape_cast %6 : vector<1x128x32xf32> to vector<128x32xf32>
    %c0_6 = arith.constant 0 : index
    %c0_7 = arith.constant 0 : index
    %8 = vector.load %arg2[%c0_6, %c0_7] : memref<32x32xf32, #tpu.memory_space<vmem>>, vector<32x32xf32>
    %cst = arith.constant dense<0.000000e+00> : vector<128x32xf32>
    %9 = tpu.matmul %7, %8, %cst {dimension_numbers = #tpu.dot_dimension_numbers<[1], [0], [0], [1], [0, 0, 1, 1], [], []>} : vector<128x32xf32>, vector<32x32xf32>, vector<128x32xf32> -> vector<128x32xf32>
    %10 = arith.addf %9, %2 : vector<128x32xf32>
    %cst_8 = arith.constant 0.000000e+00 : f32
    %11 = vector.broadcast %cst_8 : f32 to vector<128x32xf32>
    %12 = arith.maximumf %10, %11 : vector<128x32xf32>
    %c0_9 = arith.constant 0 : index
    %c0_10 = arith.constant 0 : index
    %13 = vector.load %arg7[%c0_9, %c0_10] : memref<768x32xf32, #tpu.memory_space<vmem>>, vector<128x32xf32>
    tpu.vector_store %arg7[%c0_9, %c0_10], %12 {strides = array<i32>} : memref<768x32xf32, #tpu.memory_space<vmem>>, vector<128x32xf32>,
    %c0_11 = arith.constant 0 : index
    %c128 = arith.constant 128 : index
    %c0_12 = arith.constant 0 : index
    %14 = vector.load %arg1[%c0_11, %c128, %c0_12] : memref<1x768x32xf32, #tpu.memory_space<vmem>>, vector<1x128x32xf32>
    %15 = vector.shape_cast %14 : vector<1x128x32xf32> to vector<128x32xf32>
    %c0_13 = arith.constant 0 : index
    %c0_14 = arith.constant 0 : index
    %16 = vector.load %arg2[%c0_13, %c0_14] : memref<32x32xf32, #tpu.memory_space<vmem>>, vector<32x32xf32>
    %cst_15 = arith.constant dense<0.000000e+00> : vector<128x32xf32>
    %17 = tpu.matmul %15, %16, %cst_15 {dimension_numbers = #tpu.dot_dimension_numbers<[1], [0], [0], [1], [0, 0, 1, 1], [], []>} : vector<128x32xf32>, vector<32x32xf32>, vector<128x32xf32> -> vector<128x32xf32>
    %18 = arith.addf %17, %2 : vector<128x32xf32>
    %cst_16 = arith.constant 0.000000e+00 : f32
    %19 = vector.broadcast %cst_16 : f32 to vector<128x32xf32>
    %20 = arith.maximumf %18, %19 : vector<128x32xf32>
    %c128_17 = arith.constant 128 : index
    %c0_18 = arith.constant 0 : index
    %21 = vector.load %arg7[%c128_17, %c0_18] : memref<768x32xf32, #tpu.memory_space<vmem>>, vector<128x32xf32>
    tpu.vector_store %arg7[%c128_17, %c0_18], %20 {strides = array<i32>} : memref<768x32xf32, #tpu.memory_space<vmem>>, vector<128x32xf32>,
    %c0_19 = arith.constant 0 : index
    %c256 = arith.constant 256 : index
    %c0_20 = arith.constant 0 : index
    %22 = vector.load %arg1[%c0_19, %c256, %c0_20] : memref<1x768x32xf32, #tpu.memory_space<vmem>>, vector<1x128x32xf32>
    %23 = vector.shape_cast %22 : vector<1x128x32xf32> to vector<128x32xf32>
    %c0_21 = arith.constant 0 : index
    %c0_22 = arith.constant 0 : index
    %24 = vector.load %arg2[%c0_21, %c0_22] : memref<32x32xf32, #tpu.memory_space<vmem>>, vector<32x32xf32>
    %cst_23 = arith.constant dense<0.000000e+00> : vector<128x32xf32>
    %25 = tpu.matmul %23, %24, %cst_23 {dimension_numbers = #tpu.dot_dimension_numbers<[1], [0], [0], [1], [0, 0, 1, 1], [], []>} : vector<128x32xf32>, vector<32x32xf32>, vector<128x32xf32> -> vector<128x32xf32>
    %26 = arith.addf %25, %2 : vector<128x32xf32>
    %cst_24 = arith.constant 0.000000e+00 : f32
    %27 = vector.broadcast %cst_24 : f32 to vector<128x32xf32>
    %28 = arith.maximumf %26, %27 : vector<128x32xf32>
    %c256_25 = arith.constant 256 : index
    %c0_26 = arith.constant 0 : index
    %29 = vector.load %arg7[%c256_25, %c0_26] : memref<768x32xf32, #tpu.memory_space<vmem>>, vector<128x32xf32>
    tpu.vector_store %arg7[%c256_25, %c0_26], %28 {strides = array<i32>} : memref<768x32xf32, #tpu.memory_space<vmem>>, vector<128x32xf32>,
    %c0_27 = arith.constant 0 : index
    %c384 = arith.constant 384 : index
    %c0_28 = arith.constant 0 : index
    %30 = vector.load %arg1[%c0_27, %c384, %c0_28] : memref<1x768x32xf32, #tpu.memory_space<vmem>>, vector<1x128x32xf32>
    %31 = vector.shape_cast %30 : vector<1x128x32xf32> to vector<128x32xf32>
    %c0_29 = arith.constant 0 : index
    %c0_30 = arith.constant 0 : index
    %32 = vector.load %arg2[%c0_29, %c0_30] : memref<32x32xf32, #tpu.memory_space<vmem>>, vector<32x32xf32>
    %cst_31 = arith.constant dense<0.000000e+00> : vector<128x32xf32>
    %33 = tpu.matmul %31, %32, %cst_31 {dimension_numbers = #tpu.dot_dimension_numbers<[1], [0], [0], [1], [0, 0, 1, 1], [], []>} : vector<128x32xf32>, vector<32x32xf32>, vector<128x32xf32> -> vector<128x32xf32>
    %34 = arith.addf %33, %2 : vector<128x32xf32>
    %cst_32 = arith.constant 0.000000e+00 : f32
    %35 = vector.broadcast %cst_32 : f32 to vector<128x32xf32>
    %36 = arith.maximumf %34, %35 : vector<128x32xf32>
    %c384_33 = arith.constant 384 : index
    %c0_34 = arith.constant 0 : index
    %37 = vector.load %arg7[%c384_33, %c0_34] : memref<768x32xf32, #tpu.memory_space<vmem>>, vector<128x32xf32>
    tpu.vector_store %arg7[%c384_33, %c0_34], %36 {strides = array<i32>} : memref<768x32xf32, #tpu.memory_space<vmem>>, vector<128x32xf32>,
    %c0_35 = arith.constant 0 : index
    %c512 = arith.constant 512 : index
    %c0_36 = arith.constant 0 : index
    %38 = vector.load %arg1[%c0_35, %c512, %c0_36] : memref<1x768x32xf32, #tpu.memory_space<vmem>>, vector<1x128x32xf32>
    %39 = vector.shape_cast %38 : vector<1x128x32xf32> to vector<128x32xf32>
    %c0_37 = arith.constant 0 : index
    %c0_38 = arith.constant 0 : index
    %40 = vector.load %arg2[%c0_37, %c0_38] : memref<32x32xf32, #tpu.memory_space<vmem>>, vector<32x32xf32>
    %cst_39 = arith.constant dense<0.000000e+00> : vector<128x32xf32>
    %41 = tpu.matmul %39, %40, %cst_39 {dimension_numbers = #tpu.dot_dimension_numbers<[1], [0], [0], [1], [0, 0, 1, 1], [], []>} : vector<128x32xf32>, vector<32x32xf32>, vector<128x32xf32> -> vector<128x32xf32>
    %42 = arith.addf %41, %2 : vector<128x32xf32>
    %cst_40 = arith.constant 0.000000e+00 : f32
    %43 = vector.broadcast %cst_40 : f32 to vector<128x32xf32>
    %44 = arith.maximumf %42, %43 : vector<128x32xf32>
    %c512_41 = arith.constant 512 : index
    %c0_42 = arith.constant 0 : index
    %45 = vector.load %arg7[%c512_41, %c0_42] : memref<768x32xf32, #tpu.memory_space<vmem>>, vector<128x32xf32>
    tpu.vector_store %arg7[%c512_41, %c0_42], %44 {strides = array<i32>} : memref<768x32xf32, #tpu.memory_space<vmem>>, vector<128x32xf32>,
    %c0_43 = arith.constant 0 : index
    %c640 = arith.constant 640 : index
    %c0_44 = arith.constant 0 : index
    %46 = vector.load %arg1[%c0_43, %c640, %c0_44] : memref<1x768x32xf32, #tpu.memory_space<vmem>>, vector<1x128x32xf32>
    %47 = vector.shape_cast %46 : vector<1x128x32xf32> to vector<128x32xf32>
    %c0_45 = arith.constant 0 : index
    %c0_46 = arith.constant 0 : index
    %48 = vector.load %arg2[%c0_45, %c0_46] : memref<32x32xf32, #tpu.memory_space<vmem>>, vector<32x32xf32>
    %cst_47 = arith.constant dense<0.000000e+00> : vector<128x32xf32>
    %49 = tpu.matmul %47, %48, %cst_47 {dimension_numbers = #tpu.dot_dimension_numbers<[1], [0], [0], [1], [0, 0, 1, 1], [], []>} : vector<128x32xf32>, vector<32x32xf32>, vector<128x32xf32> -> vector<128x32xf32>
    %50 = arith.addf %49, %2 : vector<128x32xf32>
    %cst_48 = arith.constant 0.000000e+00 : f32
    %51 = vector.broadcast %cst_48 : f32 to vector<128x32xf32>
    %52 = arith.maximumf %50, %51 : vector<128x32xf32>
    %c640_49 = arith.constant 640 : index
    %c0_50 = arith.constant 0 : index
    %53 = vector.load %arg7[%c640_49, %c0_50] : memref<768x32xf32, #tpu.memory_space<vmem>>, vector<128x32xf32>
    tpu.vector_store %arg7[%c640_49, %c0_50], %52 {strides = array<i32>} : memref<768x32xf32, #tpu.memory_space<vmem>>, vector<128x32xf32>,
    %c0_51 = arith.constant 0 : index
    %c0_52 = arith.constant 0 : index
    %54 = vector.load %arg7[%c0_51, %c0_52] : memref<768x32xf32, #tpu.memory_space<vmem>>, vector<112x32xf32>
    %c1 = arith.constant 1 : index
    %c0_53 = arith.constant 0 : index
    %55 = vector.load %arg7[%c1, %c0_53] : memref<768x32xf32, #tpu.memory_space<vmem>>, vector<112x32xf32>
    %c2 = arith.constant 2 : index
    %c0_54 = arith.constant 0 : index
    %56 = vector.load %arg7[%c2, %c0_54] : memref<768x32xf32, #tpu.memory_space<vmem>>, vector<112x32xf32>
    %c28 = arith.constant 28 : index
    %c0_55 = arith.constant 0 : index
    %57 = vector.load %arg7[%c28, %c0_55] : memref<768x32xf32, #tpu.memory_space<vmem>>, vector<112x32xf32>
    %c29 = arith.constant 29 : index
    %c0_56 = arith.constant 0 : index
    %58 = vector.load %arg7[%c29, %c0_56] : memref<768x32xf32, #tpu.memory_space<vmem>>, vector<112x32xf32>
    %c30 = arith.constant 30 : index
    %c0_57 = arith.constant 0 : index
    %59 = vector.load %arg7[%c30, %c0_57] : memref<768x32xf32, #tpu.memory_space<vmem>>, vector<112x32xf32>
    %c56 = arith.constant 56 : index
    %c0_58 = arith.constant 0 : index
    %60 = vector.load %arg7[%c56, %c0_58] : memref<768x32xf32, #tpu.memory_space<vmem>>, vector<112x32xf32>
    %c57 = arith.constant 57 : index
    %c0_59 = arith.constant 0 : index
    %61 = vector.load %arg7[%c57, %c0_59] : memref<768x32xf32, #tpu.memory_space<vmem>>, vector<112x32xf32>
    %c58 = arith.constant 58 : index
    %c0_60 = arith.constant 0 : index
    %62 = vector.load %arg7[%c58, %c0_60] : memref<768x32xf32, #tpu.memory_space<vmem>>, vector<112x32xf32>
    %63 = tpu.concatenate %54, %55, %56, %57, %58, %59, %60, %61, %62 in 1 : vector<112x32xf32>, vector<112x32xf32>, vector<112x32xf32>, vector<112x32xf32>, vector<112x32xf32>, vector<112x32xf32>, vector<112x32xf32>, vector<112x32xf32>, vector<112x32xf32> -> vector<112x288xf32>
    %c0_61 = arith.constant 0 : index
    %c0_62 = arith.constant 0 : index
    %64 = vector.load %arg4[%c0_61, %c0_62] : memref<288x64xf32, #tpu.memory_space<vmem>>, vector<288x64xf32>
    %cst_63 = arith.constant dense<0.000000e+00> : vector<112x64xf32>
    %65 = tpu.matmul %63, %64, %cst_63 {dimension_numbers = #tpu.dot_dimension_numbers<[1], [0], [0], [1], [0, 0, 1, 1], [], []>} : vector<112x288xf32>, vector<288x64xf32>, vector<112x64xf32> -> vector<112x64xf32>
    %66 = arith.addf %65, %5 : vector<112x64xf32>
    %cst_64 = arith.constant 0.000000e+00 : f32
    %67 = vector.broadcast %cst_64 : f32 to vector<112x64xf32>
    %68 = arith.maximumf %66, %67 : vector<112x64xf32>
    %c0_65 = arith.constant 0 : index
    %c0_66 = arith.constant 0 : index
    %69 = vector.load %arg8[%c0_65, %c0_66] : memref<672x64xf32, #tpu.memory_space<vmem>>, vector<112x64xf32>
    tpu.vector_store %arg8[%c0_65, %c0_66], %68 {strides = array<i32>} : memref<672x64xf32, #tpu.memory_space<vmem>>, vector<112x64xf32>,
    %c112 = arith.constant 112 : index
    %c0_67 = arith.constant 0 : index
    %70 = vector.load %arg7[%c112, %c0_67] : memref<768x32xf32, #tpu.memory_space<vmem>>, vector<112x32xf32>
    %c113 = arith.constant 113 : index
    %c0_68 = arith.constant 0 : index
    %71 = vector.load %arg7[%c113, %c0_68] : memref<768x32xf32, #tpu.memory_space<vmem>>, vector<112x32xf32>
    %c114 = arith.constant 114 : index
    %c0_69 = arith.constant 0 : index
    %72 = vector.load %arg7[%c114, %c0_69] : memref<768x32xf32, #tpu.memory_space<vmem>>, vector<112x32xf32>
    %c140 = arith.constant 140 : index
    %c0_70 = arith.constant 0 : index
    %73 = vector.load %arg7[%c140, %c0_70] : memref<768x32xf32, #tpu.memory_space<vmem>>, vector<112x32xf32>
    %c141 = arith.constant 141 : index
    %c0_71 = arith.constant 0 : index
    %74 = vector.load %arg7[%c141, %c0_71] : memref<768x32xf32, #tpu.memory_space<vmem>>, vector<112x32xf32>
    %c142 = arith.constant 142 : index
    %c0_72 = arith.constant 0 : index
    %75 = vector.load %arg7[%c142, %c0_72] : memref<768x32xf32, #tpu.memory_space<vmem>>, vector<112x32xf32>
    %c168 = arith.constant 168 : index
    %c0_73 = arith.constant 0 : index
    %76 = vector.load %arg7[%c168, %c0_73] : memref<768x32xf32, #tpu.memory_space<vmem>>, vector<112x32xf32>
    %c169 = arith.constant 169 : index
    %c0_74 = arith.constant 0 : index
    %77 = vector.load %arg7[%c169, %c0_74] : memref<768x32xf32, #tpu.memory_space<vmem>>, vector<112x32xf32>
    %c170 = arith.constant 170 : index
    %c0_75 = arith.constant 0 : index
    %78 = vector.load %arg7[%c170, %c0_75] : memref<768x32xf32, #tpu.memory_space<vmem>>, vector<112x32xf32>
    %79 = tpu.concatenate %70, %71, %72, %73, %74, %75, %76, %77, %78 in 1 : vector<112x32xf32>, vector<112x32xf32>, vector<112x32xf32>, vector<112x32xf32>, vector<112x32xf32>, vector<112x32xf32>, vector<112x32xf32>, vector<112x32xf32>, vector<112x32xf32> -> vector<112x288xf32>
    %c0_76 = arith.constant 0 : index
    %c0_77 = arith.constant 0 : index
    %80 = vector.load %arg4[%c0_76, %c0_77] : memref<288x64xf32, #tpu.memory_space<vmem>>, vector<288x64xf32>
    %cst_78 = arith.constant dense<0.000000e+00> : vector<112x64xf32>
    %81 = tpu.matmul %79, %80, %cst_78 {dimension_numbers = #tpu.dot_dimension_numbers<[1], [0], [0], [1], [0, 0, 1, 1], [], []>} : vector<112x288xf32>, vector<288x64xf32>, vector<112x64xf32> -> vector<112x64xf32>
    %82 = arith.addf %81, %5 : vector<112x64xf32>
    %cst_79 = arith.constant 0.000000e+00 : f32
    %83 = vector.broadcast %cst_79 : f32 to vector<112x64xf32>
    %84 = arith.maximumf %82, %83 : vector<112x64xf32>
    %c112_80 = arith.constant 112 : index
    %c0_81 = arith.constant 0 : index
    %85 = vector.load %arg8[%c112_80, %c0_81] : memref<672x64xf32, #tpu.memory_space<vmem>>, vector<112x64xf32>
    tpu.vector_store %arg8[%c112_80, %c0_81], %84 {strides = array<i32>} : memref<672x64xf32, #tpu.memory_space<vmem>>, vector<112x64xf32>,
    %c224 = arith.constant 224 : index
    %c0_82 = arith.constant 0 : index
    %86 = vector.load %arg7[%c224, %c0_82] : memref<768x32xf32, #tpu.memory_space<vmem>>, vector<112x32xf32>
    %c225 = arith.constant 225 : index
    %c0_83 = arith.constant 0 : index
    %87 = vector.load %arg7[%c225, %c0_83] : memref<768x32xf32, #tpu.memory_space<vmem>>, vector<112x32xf32>
    %c226 = arith.constant 226 : index
    %c0_84 = arith.constant 0 : index
    %88 = vector.load %arg7[%c226, %c0_84] : memref<768x32xf32, #tpu.memory_space<vmem>>, vector<112x32xf32>
    %c252 = arith.constant 252 : index
    %c0_85 = arith.constant 0 : index
    %89 = vector.load %arg7[%c252, %c0_85] : memref<768x32xf32, #tpu.memory_space<vmem>>, vector<112x32xf32>
    %c253 = arith.constant 253 : index
    %c0_86 = arith.constant 0 : index
    %90 = vector.load %arg7[%c253, %c0_86] : memref<768x32xf32, #tpu.memory_space<vmem>>, vector<112x32xf32>
    %c254 = arith.constant 254 : index
    %c0_87 = arith.constant 0 : index
    %91 = vector.load %arg7[%c254, %c0_87] : memref<768x32xf32, #tpu.memory_space<vmem>>, vector<112x32xf32>
    %c280 = arith.constant 280 : index
    %c0_88 = arith.constant 0 : index
    %92 = vector.load %arg7[%c280, %c0_88] : memref<768x32xf32, #tpu.memory_space<vmem>>, vector<112x32xf32>
    %c281 = arith.constant 281 : index
    %c0_89 = arith.constant 0 : index
    %93 = vector.load %arg7[%c281, %c0_89] : memref<768x32xf32, #tpu.memory_space<vmem>>, vector<112x32xf32>
    %c282 = arith.constant 282 : index
    %c0_90 = arith.constant 0 : index
    %94 = vector.load %arg7[%c282, %c0_90] : memref<768x32xf32, #tpu.memory_space<vmem>>, vector<112x32xf32>
    %95 = tpu.concatenate %86, %87, %88, %89, %90, %91, %92, %93, %94 in 1 : vector<112x32xf32>, vector<112x32xf32>, vector<112x32xf32>, vector<112x32xf32>, vector<112x32xf32>, vector<112x32xf32>, vector<112x32xf32>, vector<112x32xf32>, vector<112x32xf32> -> vector<112x288xf32>
    %c0_91 = arith.constant 0 : index
    %c0_92 = arith.constant 0 : index
    %96 = vector.load %arg4[%c0_91, %c0_92] : memref<288x64xf32, #tpu.memory_space<vmem>>, vector<288x64xf32>
    %cst_93 = arith.constant dense<0.000000e+00> : vector<112x64xf32>
    %97 = tpu.matmul %95, %96, %cst_93 {dimension_numbers = #tpu.dot_dimension_numbers<[1], [0], [0], [1], [0, 0, 1, 1], [], []>} : vector<112x288xf32>, vector<288x64xf32>, vector<112x64xf32> -> vector<112x64xf32>
    %98 = arith.addf %97, %5 : vector<112x64xf32>
    %cst_94 = arith.constant 0.000000e+00 : f32
    %99 = vector.broadcast %cst_94 : f32 to vector<112x64xf32>
    %100 = arith.maximumf %98, %99 : vector<112x64xf32>
    %c224_95 = arith.constant 224 : index
    %c0_96 = arith.constant 0 : index
    %101 = vector.load %arg8[%c224_95, %c0_96] : memref<672x64xf32, #tpu.memory_space<vmem>>, vector<112x64xf32>
    tpu.vector_store %arg8[%c224_95, %c0_96], %100 {strides = array<i32>} : memref<672x64xf32, #tpu.memory_space<vmem>>, vector<112x64xf32>,
    %c336 = arith.constant 336 : index
    %c0_97 = arith.constant 0 : index
    %102 = vector.load %arg7[%c336, %c0_97] : memref<768x32xf32, #tpu.memory_space<vmem>>, vector<112x32xf32>
    %c337 = arith.constant 337 : index
    %c0_98 = arith.constant 0 : index
    %103 = vector.load %arg7[%c337, %c0_98] : memref<768x32xf32, #tpu.memory_space<vmem>>, vector<112x32xf32>
    %c338 = arith.constant 338 : index
    %c0_99 = arith.constant 0 : index
    %104 = vector.load %arg7[%c338, %c0_99] : memref<768x32xf32, #tpu.memory_space<vmem>>, vector<112x32xf32>
    %c364 = arith.constant 364 : index
    %c0_100 = arith.constant 0 : index
    %105 = vector.load %arg7[%c364, %c0_100] : memref<768x32xf32, #tpu.memory_space<vmem>>, vector<112x32xf32>
    %c365 = arith.constant 365 : index
    %c0_101 = arith.constant 0 : index
    %106 = vector.load %arg7[%c365, %c0_101] : memref<768x32xf32, #tpu.memory_space<vmem>>, vector<112x32xf32>
    %c366 = arith.constant 366 : index
    %c0_102 = arith.constant 0 : index
    %107 = vector.load %arg7[%c366, %c0_102] : memref<768x32xf32, #tpu.memory_space<vmem>>, vector<112x32xf32>
    %c392 = arith.constant 392 : index
    %c0_103 = arith.constant 0 : index
    %108 = vector.load %arg7[%c392, %c0_103] : memref<768x32xf32, #tpu.memory_space<vmem>>, vector<112x32xf32>
    %c393 = arith.constant 393 : index
    %c0_104 = arith.constant 0 : index
    %109 = vector.load %arg7[%c393, %c0_104] : memref<768x32xf32, #tpu.memory_space<vmem>>, vector<112x32xf32>
    %c394 = arith.constant 394 : index
    %c0_105 = arith.constant 0 : index
    %110 = vector.load %arg7[%c394, %c0_105] : memref<768x32xf32, #tpu.memory_space<vmem>>, vector<112x32xf32>
    %111 = tpu.concatenate %102, %103, %104, %105, %106, %107, %108, %109, %110 in 1 : vector<112x32xf32>, vector<112x32xf32>, vector<112x32xf32>, vector<112x32xf32>, vector<112x32xf32>, vector<112x32xf32>, vector<112x32xf32>, vector<112x32xf32>, vector<112x32xf32> -> vector<112x288xf32>
    %c0_106 = arith.constant 0 : index
    %c0_107 = arith.constant 0 : index
    %112 = vector.load %arg4[%c0_106, %c0_107] : memref<288x64xf32, #tpu.memory_space<vmem>>, vector<288x64xf32>
    %cst_108 = arith.constant dense<0.000000e+00> : vector<112x64xf32>
    %113 = tpu.matmul %111, %112, %cst_108 {dimension_numbers = #tpu.dot_dimension_numbers<[1], [0], [0], [1], [0, 0, 1, 1], [], []>} : vector<112x288xf32>, vector<288x64xf32>, vector<112x64xf32> -> vector<112x64xf32>
    %114 = arith.addf %113, %5 : vector<112x64xf32>
    %cst_109 = arith.constant 0.000000e+00 : f32
    %115 = vector.broadcast %cst_109 : f32 to vector<112x64xf32>
    %116 = arith.maximumf %114, %115 : vector<112x64xf32>
    %c336_110 = arith.constant 336 : index
    %c0_111 = arith.constant 0 : index
    %117 = vector.load %arg8[%c336_110, %c0_111] : memref<672x64xf32, #tpu.memory_space<vmem>>, vector<112x64xf32>
    tpu.vector_store %arg8[%c336_110, %c0_111], %116 {strides = array<i32>} : memref<672x64xf32, #tpu.memory_space<vmem>>, vector<112x64xf32>,
    %c448 = arith.constant 448 : index
    %c0_112 = arith.constant 0 : index
    %118 = vector.load %arg7[%c448, %c0_112] : memref<768x32xf32, #tpu.memory_space<vmem>>, vector<112x32xf32>
    %c449 = arith.constant 449 : index
    %c0_113 = arith.constant 0 : index
    %119 = vector.load %arg7[%c449, %c0_113] : memref<768x32xf32, #tpu.memory_space<vmem>>, vector<112x32xf32>
    %c450 = arith.constant 450 : index
    %c0_114 = arith.constant 0 : index
    %120 = vector.load %arg7[%c450, %c0_114] : memref<768x32xf32, #tpu.memory_space<vmem>>, vector<112x32xf32>
    %c476 = arith.constant 476 : index
    %c0_115 = arith.constant 0 : index
    %121 = vector.load %arg7[%c476, %c0_115] : memref<768x32xf32, #tpu.memory_space<vmem>>, vector<112x32xf32>
    %c477 = arith.constant 477 : index
    %c0_116 = arith.constant 0 : index
    %122 = vector.load %arg7[%c477, %c0_116] : memref<768x32xf32, #tpu.memory_space<vmem>>, vector<112x32xf32>
    %c478 = arith.constant 478 : index
    %c0_117 = arith.constant 0 : index
    %123 = vector.load %arg7[%c478, %c0_117] : memref<768x32xf32, #tpu.memory_space<vmem>>, vector<112x32xf32>
    %c504 = arith.constant 504 : index
    %c0_118 = arith.constant 0 : index
    %124 = vector.load %arg7[%c504, %c0_118] : memref<768x32xf32, #tpu.memory_space<vmem>>, vector<112x32xf32>
    %c505 = arith.constant 505 : index
    %c0_119 = arith.constant 0 : index
    %125 = vector.load %arg7[%c505, %c0_119] : memref<768x32xf32, #tpu.memory_space<vmem>>, vector<112x32xf32>
    %c506 = arith.constant 506 : index
    %c0_120 = arith.constant 0 : index
    %126 = vector.load %arg7[%c506, %c0_120] : memref<768x32xf32, #tpu.memory_space<vmem>>, vector<112x32xf32>
    %127 = tpu.concatenate %118, %119, %120, %121, %122, %123, %124, %125, %126 in 1 : vector<112x32xf32>, vector<112x32xf32>, vector<112x32xf32>, vector<112x32xf32>, vector<112x32xf32>, vector<112x32xf32>, vector<112x32xf32>, vector<112x32xf32>, vector<112x32xf32> -> vector<112x288xf32>
    %c0_121 = arith.constant 0 : index
    %c0_122 = arith.constant 0 : index
    %128 = vector.load %arg4[%c0_121, %c0_122] : memref<288x64xf32, #tpu.memory_space<vmem>>, vector<288x64xf32>
    %cst_123 = arith.constant dense<0.000000e+00> : vector<112x64xf32>
    %129 = tpu.matmul %127, %128, %cst_123 {dimension_numbers = #tpu.dot_dimension_numbers<[1], [0], [0], [1], [0, 0, 1, 1], [], []>} : vector<112x288xf32>, vector<288x64xf32>, vector<112x64xf32> -> vector<112x64xf32>
    %130 = arith.addf %129, %5 : vector<112x64xf32>
    %cst_124 = arith.constant 0.000000e+00 : f32
    %131 = vector.broadcast %cst_124 : f32 to vector<112x64xf32>
    %132 = arith.maximumf %130, %131 : vector<112x64xf32>
    %c448_125 = arith.constant 448 : index
    %c0_126 = arith.constant 0 : index
    %133 = vector.load %arg8[%c448_125, %c0_126] : memref<672x64xf32, #tpu.memory_space<vmem>>, vector<112x64xf32>
    tpu.vector_store %arg8[%c448_125, %c0_126], %132 {strides = array<i32>} : memref<672x64xf32, #tpu.memory_space<vmem>>, vector<112x64xf32>,
    %c560 = arith.constant 560 : index
    %c0_127 = arith.constant 0 : index
    %134 = vector.load %arg7[%c560, %c0_127] : memref<768x32xf32, #tpu.memory_space<vmem>>, vector<112x32xf32>
    %c561 = arith.constant 561 : index
    %c0_128 = arith.constant 0 : index
    %135 = vector.load %arg7[%c561, %c0_128] : memref<768x32xf32, #tpu.memory_space<vmem>>, vector<112x32xf32>
    %c562 = arith.constant 562 : index
    %c0_129 = arith.constant 0 : index
    %136 = vector.load %arg7[%c562, %c0_129] : memref<768x32xf32, #tpu.memory_space<vmem>>, vector<112x32xf32>
    %c588 = arith.constant 588 : index
    %c0_130 = arith.constant 0 : index
    %137 = vector.load %arg7[%c588, %c0_130] : memref<768x32xf32, #tpu.memory_space<vmem>>, vector<112x32xf32>
    %c589 = arith.constant 589 : index
    %c0_131 = arith.constant 0 : index
    %138 = vector.load %arg7[%c589, %c0_131] : memref<768x32xf32, #tpu.memory_space<vmem>>, vector<112x32xf32>
    %c590 = arith.constant 590 : index
    %c0_132 = arith.constant 0 : index
    %139 = vector.load %arg7[%c590, %c0_132] : memref<768x32xf32, #tpu.memory_space<vmem>>, vector<112x32xf32>
    %c616 = arith.constant 616 : index
    %c0_133 = arith.constant 0 : index
    %140 = vector.load %arg7[%c616, %c0_133] : memref<768x32xf32, #tpu.memory_space<vmem>>, vector<112x32xf32>
    %c617 = arith.constant 617 : index
    %c0_134 = arith.constant 0 : index
    %141 = vector.load %arg7[%c617, %c0_134] : memref<768x32xf32, #tpu.memory_space<vmem>>, vector<112x32xf32>
    %c618 = arith.constant 618 : index
    %c0_135 = arith.constant 0 : index
    %142 = vector.load %arg7[%c618, %c0_135] : memref<768x32xf32, #tpu.memory_space<vmem>>, vector<112x32xf32>
    %143 = tpu.concatenate %134, %135, %136, %137, %138, %139, %140, %141, %142 in 1 : vector<112x32xf32>, vector<112x32xf32>, vector<112x32xf32>, vector<112x32xf32>, vector<112x32xf32>, vector<112x32xf32>, vector<112x32xf32>, vector<112x32xf32>, vector<112x32xf32> -> vector<112x288xf32>
    %c0_136 = arith.constant 0 : index
    %c0_137 = arith.constant 0 : index
    %144 = vector.load %arg4[%c0_136, %c0_137] : memref<288x64xf32, #tpu.memory_space<vmem>>, vector<288x64xf32>
    %cst_138 = arith.constant dense<0.000000e+00> : vector<112x64xf32>
    %145 = tpu.matmul %143, %144, %cst_138 {dimension_numbers = #tpu.dot_dimension_numbers<[1], [0], [0], [1], [0, 0, 1, 1], [], []>} : vector<112x288xf32>, vector<288x64xf32>, vector<112x64xf32> -> vector<112x64xf32>
    %146 = arith.addf %145, %5 : vector<112x64xf32>
    %cst_139 = arith.constant 0.000000e+00 : f32
    %147 = vector.broadcast %cst_139 : f32 to vector<112x64xf32>
    %148 = arith.maximumf %146, %147 : vector<112x64xf32>
    %c560_140 = arith.constant 560 : index
    %c0_141 = arith.constant 0 : index
    %149 = vector.load %arg8[%c560_140, %c0_141] : memref<672x64xf32, #tpu.memory_space<vmem>>, vector<112x64xf32>
    tpu.vector_store %arg8[%c560_140, %c0_141], %148 {strides = array<i32>} : memref<672x64xf32, #tpu.memory_space<vmem>>, vector<112x64xf32>,
    %c0_142 = arith.constant 0 : index
    %c0_143 = arith.constant 0 : index
    %150 = tpu.strided_load %arg8[%c0_142, %c0_143] {strides = array<i32: 4, 1>} : memref<672x64xf32, #tpu.memory_space<vmem>>, vector<6x64xf32>
    %c1_144 = arith.constant 1 : index
    %c0_145 = arith.constant 0 : index
    %151 = tpu.strided_load %arg8[%c1_144, %c0_145] {strides = array<i32: 4, 1>} : memref<672x64xf32, #tpu.memory_space<vmem>>, vector<6x64xf32>
    %152 = arith.maximumf %150, %151 : vector<6x64xf32>
    %c28_146 = arith.constant 28 : index
    %c0_147 = arith.constant 0 : index
    %153 = tpu.strided_load %arg8[%c28_146, %c0_147] {strides = array<i32: 4, 1>} : memref<672x64xf32, #tpu.memory_space<vmem>>, vector<6x64xf32>
    %c29_148 = arith.constant 29 : index
    %c0_149 = arith.constant 0 : index
    %154 = tpu.strided_load %arg8[%c29_148, %c0_149] {strides = array<i32: 4, 1>} : memref<672x64xf32, #tpu.memory_space<vmem>>, vector<6x64xf32>
    %155 = arith.maximumf %153, %154 : vector<6x64xf32>
    %156 = arith.maximumf %152, %155 : vector<6x64xf32>
    %c2_150 = arith.constant 2 : index
    %c0_151 = arith.constant 0 : index
    %157 = tpu.strided_load %arg8[%c2_150, %c0_151] {strides = array<i32: 4, 1>} : memref<672x64xf32, #tpu.memory_space<vmem>>, vector<6x64xf32>
    %c3 = arith.constant 3 : index
    %c0_152 = arith.constant 0 : index
    %158 = tpu.strided_load %arg8[%c3, %c0_152] {strides = array<i32: 4, 1>} : memref<672x64xf32, #tpu.memory_space<vmem>>, vector<6x64xf32>
    %159 = arith.maximumf %157, %158 : vector<6x64xf32>
    %c30_153 = arith.constant 30 : index
    %c0_154 = arith.constant 0 : index
    %160 = tpu.strided_load %arg8[%c30_153, %c0_154] {strides = array<i32: 4, 1>} : memref<672x64xf32, #tpu.memory_space<vmem>>, vector<6x64xf32>
    %c31 = arith.constant 31 : index
    %c0_155 = arith.constant 0 : index
    %161 = tpu.strided_load %arg8[%c31, %c0_155] {strides = array<i32: 4, 1>} : memref<672x64xf32, #tpu.memory_space<vmem>>, vector<6x64xf32>
    %162 = arith.maximumf %160, %161 : vector<6x64xf32>
    %163 = arith.maximumf %159, %162 : vector<6x64xf32>
    %164 = tpu.concatenate %156, %163 in 1 : vector<6x64xf32>, vector<6x64xf32> -> vector<6x128xf32>
    %c0_156 = arith.constant 0 : index
    %c0_157 = arith.constant 0 : index
    %c0_158 = arith.constant 0 : index
    %165 = vector.load %arg6[%c0_156, %c0_157, %c0_158] : memref<1x72x128xf32, #tpu.memory_space<vmem>>, vector<1x6x128xf32>
    %166 = vector.shape_cast %165 : vector<1x6x128xf32> to vector<6x128xf32>
    %167 = vector.shape_cast %164 : vector<6x128xf32> to vector<1x6x128xf32>
    tpu.vector_store %arg6[%c0_156, %c0_157, %c0_158], %167 {strides = array<i32>} : memref<1x72x128xf32, #tpu.memory_space<vmem>>, vector<1x6x128xf32>,
    %c56_159 = arith.constant 56 : index
    %c0_160 = arith.constant 0 : index
    %168 = tpu.strided_load %arg8[%c56_159, %c0_160] {strides = array<i32: 4, 1>} : memref<672x64xf32, #tpu.memory_space<vmem>>, vector<6x64xf32>
    %c57_161 = arith.constant 57 : index
    %c0_162 = arith.constant 0 : index
    %169 = tpu.strided_load %arg8[%c57_161, %c0_162] {strides = array<i32: 4, 1>} : memref<672x64xf32, #tpu.memory_space<vmem>>, vector<6x64xf32>
    %170 = arith.maximumf %168, %169 : vector<6x64xf32>
    %c84 = arith.constant 84 : index
    %c0_163 = arith.constant 0 : index
    %171 = tpu.strided_load %arg8[%c84, %c0_163] {strides = array<i32: 4, 1>} : memref<672x64xf32, #tpu.memory_space<vmem>>, vector<6x64xf32>
    %c85 = arith.constant 85 : index
    %c0_164 = arith.constant 0 : index
    %172 = tpu.strided_load %arg8[%c85, %c0_164] {strides = array<i32: 4, 1>} : memref<672x64xf32, #tpu.memory_space<vmem>>, vector<6x64xf32>
    %173 = arith.maximumf %171, %172 : vector<6x64xf32>
    %174 = arith.maximumf %170, %173 : vector<6x64xf32>
    %c58_165 = arith.constant 58 : index
    %c0_166 = arith.constant 0 : index
    %175 = tpu.strided_load %arg8[%c58_165, %c0_166] {strides = array<i32: 4, 1>} : memref<672x64xf32, #tpu.memory_space<vmem>>, vector<6x64xf32>
    %c59 = arith.constant 59 : index
    %c0_167 = arith.constant 0 : index
    %176 = tpu.strided_load %arg8[%c59, %c0_167] {strides = array<i32: 4, 1>} : memref<672x64xf32, #tpu.memory_space<vmem>>, vector<6x64xf32>
    %177 = arith.maximumf %175, %176 : vector<6x64xf32>
    %c86 = arith.constant 86 : index
    %c0_168 = arith.constant 0 : index
    %178 = tpu.strided_load %arg8[%c86, %c0_168] {strides = array<i32: 4, 1>} : memref<672x64xf32, #tpu.memory_space<vmem>>, vector<6x64xf32>
    %c87 = arith.constant 87 : index
    %c0_169 = arith.constant 0 : index
    %179 = tpu.strided_load %arg8[%c87, %c0_169] {strides = array<i32: 4, 1>} : memref<672x64xf32, #tpu.memory_space<vmem>>, vector<6x64xf32>
    %180 = arith.maximumf %178, %179 : vector<6x64xf32>
    %181 = arith.maximumf %177, %180 : vector<6x64xf32>
    %182 = tpu.concatenate %174, %181 in 1 : vector<6x64xf32>, vector<6x64xf32> -> vector<6x128xf32>
    %c0_170 = arith.constant 0 : index
    %c6 = arith.constant 6 : index
    %c0_171 = arith.constant 0 : index
    %183 = vector.load %arg6[%c0_170, %c6, %c0_171] : memref<1x72x128xf32, #tpu.memory_space<vmem>>, vector<1x6x128xf32>
    %184 = vector.shape_cast %183 : vector<1x6x128xf32> to vector<6x128xf32>
    %185 = vector.shape_cast %182 : vector<6x128xf32> to vector<1x6x128xf32>
    tpu.vector_store %arg6[%c0_170, %c6, %c0_171], %185 {strides = array<i32>} : memref<1x72x128xf32, #tpu.memory_space<vmem>>, vector<1x6x128xf32>,
    %c112_172 = arith.constant 112 : index
    %c0_173 = arith.constant 0 : index
    %186 = tpu.strided_load %arg8[%c112_172, %c0_173] {strides = array<i32: 4, 1>} : memref<672x64xf32, #tpu.memory_space<vmem>>, vector<6x64xf32>
    %c113_174 = arith.constant 113 : index
    %c0_175 = arith.constant 0 : index
    %187 = tpu.strided_load %arg8[%c113_174, %c0_175] {strides = array<i32: 4, 1>} : memref<672x64xf32, #tpu.memory_space<vmem>>, vector<6x64xf32>
    %188 = arith.maximumf %186, %187 : vector<6x64xf32>
    %c140_176 = arith.constant 140 : index
    %c0_177 = arith.constant 0 : index
    %189 = tpu.strided_load %arg8[%c140_176, %c0_177] {strides = array<i32: 4, 1>} : memref<672x64xf32, #tpu.memory_space<vmem>>, vector<6x64xf32>
    %c141_178 = arith.constant 141 : index
    %c0_179 = arith.constant 0 : index
    %190 = tpu.strided_load %arg8[%c141_178, %c0_179] {strides = array<i32: 4, 1>} : memref<672x64xf32, #tpu.memory_space<vmem>>, vector<6x64xf32>
    %191 = arith.maximumf %189, %190 : vector<6x64xf32>
    %192 = arith.maximumf %188, %191 : vector<6x64xf32>
    %c114_180 = arith.constant 114 : index
    %c0_181 = arith.constant 0 : index
    %193 = tpu.strided_load %arg8[%c114_180, %c0_181] {strides = array<i32: 4, 1>} : memref<672x64xf32, #tpu.memory_space<vmem>>, vector<6x64xf32>
    %c115 = arith.constant 115 : index
    %c0_182 = arith.constant 0 : index
    %194 = tpu.strided_load %arg8[%c115, %c0_182] {strides = array<i32: 4, 1>} : memref<672x64xf32, #tpu.memory_space<vmem>>, vector<6x64xf32>
    %195 = arith.maximumf %193, %194 : vector<6x64xf32>
    %c142_183 = arith.constant 142 : index
    %c0_184 = arith.constant 0 : index
    %196 = tpu.strided_load %arg8[%c142_183, %c0_184] {strides = array<i32: 4, 1>} : memref<672x64xf32, #tpu.memory_space<vmem>>, vector<6x64xf32>
    %c143 = arith.constant 143 : index
    %c0_185 = arith.constant 0 : index
    %197 = tpu.strided_load %arg8[%c143, %c0_185] {strides = array<i32: 4, 1>} : memref<672x64xf32, #tpu.memory_space<vmem>>, vector<6x64xf32>
    %198 = arith.maximumf %196, %197 : vector<6x64xf32>
    %199 = arith.maximumf %195, %198 : vector<6x64xf32>
    %200 = tpu.concatenate %192, %199 in 1 : vector<6x64xf32>, vector<6x64xf32> -> vector<6x128xf32>
    %c0_186 = arith.constant 0 : index
    %c12 = arith.constant 12 : index
    %c0_187 = arith.constant 0 : index
    %201 = vector.load %arg6[%c0_186, %c12, %c0_187] : memref<1x72x128xf32, #tpu.memory_space<vmem>>, vector<1x6x128xf32>
    %202 = vector.shape_cast %201 : vector<1x6x128xf32> to vector<6x128xf32>
    %203 = vector.shape_cast %200 : vector<6x128xf32> to vector<1x6x128xf32>
    tpu.vector_store %arg6[%c0_186, %c12, %c0_187], %203 {strides = array<i32>} : memref<1x72x128xf32, #tpu.memory_space<vmem>>, vector<1x6x128xf32>,
    %c168_188 = arith.constant 168 : index
    %c0_189 = arith.constant 0 : index
    %204 = tpu.strided_load %arg8[%c168_188, %c0_189] {strides = array<i32: 4, 1>} : memref<672x64xf32, #tpu.memory_space<vmem>>, vector<6x64xf32>
    %c169_190 = arith.constant 169 : index
    %c0_191 = arith.constant 0 : index
    %205 = tpu.strided_load %arg8[%c169_190, %c0_191] {strides = array<i32: 4, 1>} : memref<672x64xf32, #tpu.memory_space<vmem>>, vector<6x64xf32>
    %206 = arith.maximumf %204, %205 : vector<6x64xf32>
    %c196 = arith.constant 196 : index
    %c0_192 = arith.constant 0 : index
    %207 = tpu.strided_load %arg8[%c196, %c0_192] {strides = array<i32: 4, 1>} : memref<672x64xf32, #tpu.memory_space<vmem>>, vector<6x64xf32>
    %c197 = arith.constant 197 : index
    %c0_193 = arith.constant 0 : index
    %208 = tpu.strided_load %arg8[%c197, %c0_193] {strides = array<i32: 4, 1>} : memref<672x64xf32, #tpu.memory_space<vmem>>, vector<6x64xf32>
    %209 = arith.maximumf %207, %208 : vector<6x64xf32>
    %210 = arith.maximumf %206, %209 : vector<6x64xf32>
    %c170_194 = arith.constant 170 : index
    %c0_195 = arith.constant 0 : index
    %211 = tpu.strided_load %arg8[%c170_194, %c0_195] {strides = array<i32: 4, 1>} : memref<672x64xf32, #tpu.memory_space<vmem>>, vector<6x64xf32>
    %c171 = arith.constant 171 : index
    %c0_196 = arith.constant 0 : index
    %212 = tpu.strided_load %arg8[%c171, %c0_196] {strides = array<i32: 4, 1>} : memref<672x64xf32, #tpu.memory_space<vmem>>, vector<6x64xf32>
    %213 = arith.maximumf %211, %212 : vector<6x64xf32>
    %c198 = arith.constant 198 : index
    %c0_197 = arith.constant 0 : index
    %214 = tpu.strided_load %arg8[%c198, %c0_197] {strides = array<i32: 4, 1>} : memref<672x64xf32, #tpu.memory_space<vmem>>, vector<6x64xf32>
    %c199 = arith.constant 199 : index
    %c0_198 = arith.constant 0 : index
    %215 = tpu.strided_load %arg8[%c199, %c0_198] {strides = array<i32: 4, 1>} : memref<672x64xf32, #tpu.memory_space<vmem>>, vector<6x64xf32>
    %216 = arith.maximumf %214, %215 : vector<6x64xf32>
    %217 = arith.maximumf %213, %216 : vector<6x64xf32>
    %218 = tpu.concatenate %210, %217 in 1 : vector<6x64xf32>, vector<6x64xf32> -> vector<6x128xf32>
    %c0_199 = arith.constant 0 : index
    %c18 = arith.constant 18 : index
    %c0_200 = arith.constant 0 : index
    %219 = vector.load %arg6[%c0_199, %c18, %c0_200] : memref<1x72x128xf32, #tpu.memory_space<vmem>>, vector<1x6x128xf32>
    %220 = vector.shape_cast %219 : vector<1x6x128xf32> to vector<6x128xf32>
    %221 = vector.shape_cast %218 : vector<6x128xf32> to vector<1x6x128xf32>
    tpu.vector_store %arg6[%c0_199, %c18, %c0_200], %221 {strides = array<i32>} : memref<1x72x128xf32, #tpu.memory_space<vmem>>, vector<1x6x128xf32>,
    %c224_201 = arith.constant 224 : index
    %c0_202 = arith.constant 0 : index
    %222 = tpu.strided_load %arg8[%c224_201, %c0_202] {strides = array<i32: 4, 1>} : memref<672x64xf32, #tpu.memory_space<vmem>>, vector<6x64xf32>
    %c225_203 = arith.constant 225 : index
    %c0_204 = arith.constant 0 : index
    %223 = tpu.strided_load %arg8[%c225_203, %c0_204] {strides = array<i32: 4, 1>} : memref<672x64xf32, #tpu.memory_space<vmem>>, vector<6x64xf32>
    %224 = arith.maximumf %222, %223 : vector<6x64xf32>
    %c252_205 = arith.constant 252 : index
    %c0_206 = arith.constant 0 : index
    %225 = tpu.strided_load %arg8[%c252_205, %c0_206] {strides = array<i32: 4, 1>} : memref<672x64xf32, #tpu.memory_space<vmem>>, vector<6x64xf32>
    %c253_207 = arith.constant 253 : index
    %c0_208 = arith.constant 0 : index
    %226 = tpu.strided_load %arg8[%c253_207, %c0_208] {strides = array<i32: 4, 1>} : memref<672x64xf32, #tpu.memory_space<vmem>>, vector<6x64xf32>
    %227 = arith.maximumf %225, %226 : vector<6x64xf32>
    %228 = arith.maximumf %224, %227 : vector<6x64xf32>
    %c226_209 = arith.constant 226 : index
    %c0_210 = arith.constant 0 : index
    %229 = tpu.strided_load %arg8[%c226_209, %c0_210] {strides = array<i32: 4, 1>} : memref<672x64xf32, #tpu.memory_space<vmem>>, vector<6x64xf32>
    %c227 = arith.constant 227 : index
    %c0_211 = arith.constant 0 : index
    %230 = tpu.strided_load %arg8[%c227, %c0_211] {strides = array<i32: 4, 1>} : memref<672x64xf32, #tpu.memory_space<vmem>>, vector<6x64xf32>
    %231 = arith.maximumf %229, %230 : vector<6x64xf32>
    %c254_212 = arith.constant 254 : index
    %c0_213 = arith.constant 0 : index
    %232 = tpu.strided_load %arg8[%c254_212, %c0_213] {strides = array<i32: 4, 1>} : memref<672x64xf32, #tpu.memory_space<vmem>>, vector<6x64xf32>
    %c255 = arith.constant 255 : index
    %c0_214 = arith.constant 0 : index
    %233 = tpu.strided_load %arg8[%c255, %c0_214] {strides = array<i32: 4, 1>} : memref<672x64xf32, #tpu.memory_space<vmem>>, vector<6x64xf32>
    %234 = arith.maximumf %232, %233 : vector<6x64xf32>
    %235 = arith.maximumf %231, %234 : vector<6x64xf32>
    %236 = tpu.concatenate %228, %235 in 1 : vector<6x64xf32>, vector<6x64xf32> -> vector<6x128xf32>
    %c0_215 = arith.constant 0 : index
    %c24 = arith.constant 24 : index
    %c0_216 = arith.constant 0 : index
    %237 = vector.load %arg6[%c0_215, %c24, %c0_216] : memref<1x72x128xf32, #tpu.memory_space<vmem>>, vector<1x6x128xf32>
    %238 = vector.shape_cast %237 : vector<1x6x128xf32> to vector<6x128xf32>
    %239 = vector.shape_cast %236 : vector<6x128xf32> to vector<1x6x128xf32>
    tpu.vector_store %arg6[%c0_215, %c24, %c0_216], %239 {strides = array<i32>} : memref<1x72x128xf32, #tpu.memory_space<vmem>>, vector<1x6x128xf32>,
    %c280_217 = arith.constant 280 : index
    %c0_218 = arith.constant 0 : index
    %240 = tpu.strided_load %arg8[%c280_217, %c0_218] {strides = array<i32: 4, 1>} : memref<672x64xf32, #tpu.memory_space<vmem>>, vector<6x64xf32>
    %c281_219 = arith.constant 281 : index
    %c0_220 = arith.constant 0 : index
    %241 = tpu.strided_load %arg8[%c281_219, %c0_220] {strides = array<i32: 4, 1>} : memref<672x64xf32, #tpu.memory_space<vmem>>, vector<6x64xf32>
    %242 = arith.maximumf %240, %241 : vector<6x64xf32>
    %c308 = arith.constant 308 : index
    %c0_221 = arith.constant 0 : index
    %243 = tpu.strided_load %arg8[%c308, %c0_221] {strides = array<i32: 4, 1>} : memref<672x64xf32, #tpu.memory_space<vmem>>, vector<6x64xf32>
    %c309 = arith.constant 309 : index
    %c0_222 = arith.constant 0 : index
    %244 = tpu.strided_load %arg8[%c309, %c0_222] {strides = array<i32: 4, 1>} : memref<672x64xf32, #tpu.memory_space<vmem>>, vector<6x64xf32>
    %245 = arith.maximumf %243, %244 : vector<6x64xf32>
    %246 = arith.maximumf %242, %245 : vector<6x64xf32>
    %c282_223 = arith.constant 282 : index
    %c0_224 = arith.constant 0 : index
    %247 = tpu.strided_load %arg8[%c282_223, %c0_224] {strides = array<i32: 4, 1>} : memref<672x64xf32, #tpu.memory_space<vmem>>, vector<6x64xf32>
    %c283 = arith.constant 283 : index
    %c0_225 = arith.constant 0 : index
    %248 = tpu.strided_load %arg8[%c283, %c0_225] {strides = array<i32: 4, 1>} : memref<672x64xf32, #tpu.memory_space<vmem>>, vector<6x64xf32>
    %249 = arith.maximumf %247, %248 : vector<6x64xf32>
    %c310 = arith.constant 310 : index
    %c0_226 = arith.constant 0 : index
    %250 = tpu.strided_load %arg8[%c310, %c0_226] {strides = array<i32: 4, 1>} : memref<672x64xf32, #tpu.memory_space<vmem>>, vector<6x64xf32>
    %c311 = arith.constant 311 : index
    %c0_227 = arith.constant 0 : index
    %251 = tpu.strided_load %arg8[%c311, %c0_227] {strides = array<i32: 4, 1>} : memref<672x64xf32, #tpu.memory_space<vmem>>, vector<6x64xf32>
    %252 = arith.maximumf %250, %251 : vector<6x64xf32>
    %253 = arith.maximumf %249, %252 : vector<6x64xf32>
    %254 = tpu.concatenate %246, %253 in 1 : vector<6x64xf32>, vector<6x64xf32> -> vector<6x128xf32>
    %c0_228 = arith.constant 0 : index
    %c30_229 = arith.constant 30 : index
    %c0_230 = arith.constant 0 : index
    %255 = vector.load %arg6[%c0_228, %c30_229, %c0_230] : memref<1x72x128xf32, #tpu.memory_space<vmem>>, vector<1x6x128xf32>
    %256 = vector.shape_cast %255 : vector<1x6x128xf32> to vector<6x128xf32>
    %257 = vector.shape_cast %254 : vector<6x128xf32> to vector<1x6x128xf32>
    tpu.vector_store %arg6[%c0_228, %c30_229, %c0_230], %257 {strides = array<i32>} : memref<1x72x128xf32, #tpu.memory_space<vmem>>, vector<1x6x128xf32>,
    %c336_231 = arith.constant 336 : index
    %c0_232 = arith.constant 0 : index
    %258 = tpu.strided_load %arg8[%c336_231, %c0_232] {strides = array<i32: 4, 1>} : memref<672x64xf32, #tpu.memory_space<vmem>>, vector<6x64xf32>
    %c337_233 = arith.constant 337 : index
    %c0_234 = arith.constant 0 : index
    %259 = tpu.strided_load %arg8[%c337_233, %c0_234] {strides = array<i32: 4, 1>} : memref<672x64xf32, #tpu.memory_space<vmem>>, vector<6x64xf32>
    %260 = arith.maximumf %258, %259 : vector<6x64xf32>
    %c364_235 = arith.constant 364 : index
    %c0_236 = arith.constant 0 : index
    %261 = tpu.strided_load %arg8[%c364_235, %c0_236] {strides = array<i32: 4, 1>} : memref<672x64xf32, #tpu.memory_space<vmem>>, vector<6x64xf32>
    %c365_237 = arith.constant 365 : index
    %c0_238 = arith.constant 0 : index
    %262 = tpu.strided_load %arg8[%c365_237, %c0_238] {strides = array<i32: 4, 1>} : memref<672x64xf32, #tpu.memory_space<vmem>>, vector<6x64xf32>
    %263 = arith.maximumf %261, %262 : vector<6x64xf32>
    %264 = arith.maximumf %260, %263 : vector<6x64xf32>
    %c338_239 = arith.constant 338 : index
    %c0_240 = arith.constant 0 : index
    %265 = tpu.strided_load %arg8[%c338_239, %c0_240] {strides = array<i32: 4, 1>} : memref<672x64xf32, #tpu.memory_space<vmem>>, vector<6x64xf32>
    %c339 = arith.constant 339 : index
    %c0_241 = arith.constant 0 : index
    %266 = tpu.strided_load %arg8[%c339, %c0_241] {strides = array<i32: 4, 1>} : memref<672x64xf32, #tpu.memory_space<vmem>>, vector<6x64xf32>
    %267 = arith.maximumf %265, %266 : vector<6x64xf32>
    %c366_242 = arith.constant 366 : index
    %c0_243 = arith.constant 0 : index
    %268 = tpu.strided_load %arg8[%c366_242, %c0_243] {strides = array<i32: 4, 1>} : memref<672x64xf32, #tpu.memory_space<vmem>>, vector<6x64xf32>
    %c367 = arith.constant 367 : index
    %c0_244 = arith.constant 0 : index
    %269 = tpu.strided_load %arg8[%c367, %c0_244] {strides = array<i32: 4, 1>} : memref<672x64xf32, #tpu.memory_space<vmem>>, vector<6x64xf32>
    %270 = arith.maximumf %268, %269 : vector<6x64xf32>
    %271 = arith.maximumf %267, %270 : vector<6x64xf32>
    %272 = tpu.concatenate %264, %271 in 1 : vector<6x64xf32>, vector<6x64xf32> -> vector<6x128xf32>
    %c0_245 = arith.constant 0 : index
    %c36 = arith.constant 36 : index
    %c0_246 = arith.constant 0 : index
    %273 = vector.load %arg6[%c0_245, %c36, %c0_246] : memref<1x72x128xf32, #tpu.memory_space<vmem>>, vector<1x6x128xf32>
    %274 = vector.shape_cast %273 : vector<1x6x128xf32> to vector<6x128xf32>
    %275 = vector.shape_cast %272 : vector<6x128xf32> to vector<1x6x128xf32>
    tpu.vector_store %arg6[%c0_245, %c36, %c0_246], %275 {strides = array<i32>} : memref<1x72x128xf32, #tpu.memory_space<vmem>>, vector<1x6x128xf32>,
    %c392_247 = arith.constant 392 : index
    %c0_248 = arith.constant 0 : index
    %276 = tpu.strided_load %arg8[%c392_247, %c0_248] {strides = array<i32: 4, 1>} : memref<672x64xf32, #tpu.memory_space<vmem>>, vector<6x64xf32>
    %c393_249 = arith.constant 393 : index
    %c0_250 = arith.constant 0 : index
    %277 = tpu.strided_load %arg8[%c393_249, %c0_250] {strides = array<i32: 4, 1>} : memref<672x64xf32, #tpu.memory_space<vmem>>, vector<6x64xf32>
    %278 = arith.maximumf %276, %277 : vector<6x64xf32>
    %c420 = arith.constant 420 : index
    %c0_251 = arith.constant 0 : index
    %279 = tpu.strided_load %arg8[%c420, %c0_251] {strides = array<i32: 4, 1>} : memref<672x64xf32, #tpu.memory_space<vmem>>, vector<6x64xf32>
    %c421 = arith.constant 421 : index
    %c0_252 = arith.constant 0 : index
    %280 = tpu.strided_load %arg8[%c421, %c0_252] {strides = array<i32: 4, 1>} : memref<672x64xf32, #tpu.memory_space<vmem>>, vector<6x64xf32>
    %281 = arith.maximumf %279, %280 : vector<6x64xf32>
    %282 = arith.maximumf %278, %281 : vector<6x64xf32>
    %c394_253 = arith.constant 394 : index
    %c0_254 = arith.constant 0 : index
    %283 = tpu.strided_load %arg8[%c394_253, %c0_254] {strides = array<i32: 4, 1>} : memref<672x64xf32, #tpu.memory_space<vmem>>, vector<6x64xf32>
    %c395 = arith.constant 395 : index
    %c0_255 = arith.constant 0 : index
    %284 = tpu.strided_load %arg8[%c395, %c0_255] {strides = array<i32: 4, 1>} : memref<672x64xf32, #tpu.memory_space<vmem>>, vector<6x64xf32>
    %285 = arith.maximumf %283, %284 : vector<6x64xf32>
    %c422 = arith.constant 422 : index
    %c0_256 = arith.constant 0 : index
    %286 = tpu.strided_load %arg8[%c422, %c0_256] {strides = array<i32: 4, 1>} : memref<672x64xf32, #tpu.memory_space<vmem>>, vector<6x64xf32>
    %c423 = arith.constant 423 : index
    %c0_257 = arith.constant 0 : index
    %287 = tpu.strided_load %arg8[%c423, %c0_257] {strides = array<i32: 4, 1>} : memref<672x64xf32, #tpu.memory_space<vmem>>, vector<6x64xf32>
    %288 = arith.maximumf %286, %287 : vector<6x64xf32>
    %289 = arith.maximumf %285, %288 : vector<6x64xf32>
    %290 = tpu.concatenate %282, %289 in 1 : vector<6x64xf32>, vector<6x64xf32> -> vector<6x128xf32>
    %c0_258 = arith.constant 0 : index
    %c42 = arith.constant 42 : index
    %c0_259 = arith.constant 0 : index
    %291 = vector.load %arg6[%c0_258, %c42, %c0_259] : memref<1x72x128xf32, #tpu.memory_space<vmem>>, vector<1x6x128xf32>
    %292 = vector.shape_cast %291 : vector<1x6x128xf32> to vector<6x128xf32>
    %293 = vector.shape_cast %290 : vector<6x128xf32> to vector<1x6x128xf32>
    tpu.vector_store %arg6[%c0_258, %c42, %c0_259], %293 {strides = array<i32>} : memref<1x72x128xf32, #tpu.memory_space<vmem>>, vector<1x6x128xf32>,
    %c448_260 = arith.constant 448 : index
    %c0_261 = arith.constant 0 : index
    %294 = tpu.strided_load %arg8[%c448_260, %c0_261] {strides = array<i32: 4, 1>} : memref<672x64xf32, #tpu.memory_space<vmem>>, vector<6x64xf32>
    %c449_262 = arith.constant 449 : index
    %c0_263 = arith.constant 0 : index
    %295 = tpu.strided_load %arg8[%c449_262, %c0_263] {strides = array<i32: 4, 1>} : memref<672x64xf32, #tpu.memory_space<vmem>>, vector<6x64xf32>
    %296 = arith.maximumf %294, %295 : vector<6x64xf32>
    %c476_264 = arith.constant 476 : index
    %c0_265 = arith.constant 0 : index
    %297 = tpu.strided_load %arg8[%c476_264, %c0_265] {strides = array<i32: 4, 1>} : memref<672x64xf32, #tpu.memory_space<vmem>>, vector<6x64xf32>
    %c477_266 = arith.constant 477 : index
    %c0_267 = arith.constant 0 : index
    %298 = tpu.strided_load %arg8[%c477_266, %c0_267] {strides = array<i32: 4, 1>} : memref<672x64xf32, #tpu.memory_space<vmem>>, vector<6x64xf32>
    %299 = arith.maximumf %297, %298 : vector<6x64xf32>
    %300 = arith.maximumf %296, %299 : vector<6x64xf32>
    %c450_268 = arith.constant 450 : index
    %c0_269 = arith.constant 0 : index
    %301 = tpu.strided_load %arg8[%c450_268, %c0_269] {strides = array<i32: 4, 1>} : memref<672x64xf32, #tpu.memory_space<vmem>>, vector<6x64xf32>
    %c451 = arith.constant 451 : index
    %c0_270 = arith.constant 0 : index
    %302 = tpu.strided_load %arg8[%c451, %c0_270] {strides = array<i32: 4, 1>} : memref<672x64xf32, #tpu.memory_space<vmem>>, vector<6x64xf32>
    %303 = arith.maximumf %301, %302 : vector<6x64xf32>
    %c478_271 = arith.constant 478 : index
    %c0_272 = arith.constant 0 : index
    %304 = tpu.strided_load %arg8[%c478_271, %c0_272] {strides = array<i32: 4, 1>} : memref<672x64xf32, #tpu.memory_space<vmem>>, vector<6x64xf32>
    %c479 = arith.constant 479 : index
    %c0_273 = arith.constant 0 : index
    %305 = tpu.strided_load %arg8[%c479, %c0_273] {strides = array<i32: 4, 1>} : memref<672x64xf32, #tpu.memory_space<vmem>>, vector<6x64xf32>
    %306 = arith.maximumf %304, %305 : vector<6x64xf32>
    %307 = arith.maximumf %303, %306 : vector<6x64xf32>
    %308 = tpu.concatenate %300, %307 in 1 : vector<6x64xf32>, vector<6x64xf32> -> vector<6x128xf32>
    %c0_274 = arith.constant 0 : index
    %c48 = arith.constant 48 : index
    %c0_275 = arith.constant 0 : index
    %309 = vector.load %arg6[%c0_274, %c48, %c0_275] : memref<1x72x128xf32, #tpu.memory_space<vmem>>, vector<1x6x128xf32>
    %310 = vector.shape_cast %309 : vector<1x6x128xf32> to vector<6x128xf32>
    %311 = vector.shape_cast %308 : vector<6x128xf32> to vector<1x6x128xf32>
    tpu.vector_store %arg6[%c0_274, %c48, %c0_275], %311 {strides = array<i32>} : memref<1x72x128xf32, #tpu.memory_space<vmem>>, vector<1x6x128xf32>,
    %c504_276 = arith.constant 504 : index
    %c0_277 = arith.constant 0 : index
    %312 = tpu.strided_load %arg8[%c504_276, %c0_277] {strides = array<i32: 4, 1>} : memref<672x64xf32, #tpu.memory_space<vmem>>, vector<6x64xf32>
    %c505_278 = arith.constant 505 : index
    %c0_279 = arith.constant 0 : index
    %313 = tpu.strided_load %arg8[%c505_278, %c0_279] {strides = array<i32: 4, 1>} : memref<672x64xf32, #tpu.memory_space<vmem>>, vector<6x64xf32>
    %314 = arith.maximumf %312, %313 : vector<6x64xf32>
    %c532 = arith.constant 532 : index
    %c0_280 = arith.constant 0 : index
    %315 = tpu.strided_load %arg8[%c532, %c0_280] {strides = array<i32: 4, 1>} : memref<672x64xf32, #tpu.memory_space<vmem>>, vector<6x64xf32>
    %c533 = arith.constant 533 : index
    %c0_281 = arith.constant 0 : index
    %316 = tpu.strided_load %arg8[%c533, %c0_281] {strides = array<i32: 4, 1>} : memref<672x64xf32, #tpu.memory_space<vmem>>, vector<6x64xf32>
    %317 = arith.maximumf %315, %316 : vector<6x64xf32>
    %318 = arith.maximumf %314, %317 : vector<6x64xf32>
    %c506_282 = arith.constant 506 : index
    %c0_283 = arith.constant 0 : index
    %319 = tpu.strided_load %arg8[%c506_282, %c0_283] {strides = array<i32: 4, 1>} : memref<672x64xf32, #tpu.memory_space<vmem>>, vector<6x64xf32>
    %c507 = arith.constant 507 : index
    %c0_284 = arith.constant 0 : index
    %320 = tpu.strided_load %arg8[%c507, %c0_284] {strides = array<i32: 4, 1>} : memref<672x64xf32, #tpu.memory_space<vmem>>, vector<6x64xf32>
    %321 = arith.maximumf %319, %320 : vector<6x64xf32>
    %c534 = arith.constant 534 : index
    %c0_285 = arith.constant 0 : index
    %322 = tpu.strided_load %arg8[%c534, %c0_285] {strides = array<i32: 4, 1>} : memref<672x64xf32, #tpu.memory_space<vmem>>, vector<6x64xf32>
    %c535 = arith.constant 535 : index
    %c0_286 = arith.constant 0 : index
    %323 = tpu.strided_load %arg8[%c535, %c0_286] {strides = array<i32: 4, 1>} : memref<672x64xf32, #tpu.memory_space<vmem>>, vector<6x64xf32>
    %324 = arith.maximumf %322, %323 : vector<6x64xf32>
    %325 = arith.maximumf %321, %324 : vector<6x64xf32>
    %326 = tpu.concatenate %318, %325 in 1 : vector<6x64xf32>, vector<6x64xf32> -> vector<6x128xf32>
    %c0_287 = arith.constant 0 : index
    %c54 = arith.constant 54 : index
    %c0_288 = arith.constant 0 : index
    %327 = vector.load %arg6[%c0_287, %c54, %c0_288] : memref<1x72x128xf32, #tpu.memory_space<vmem>>, vector<1x6x128xf32>
    %328 = vector.shape_cast %327 : vector<1x6x128xf32> to vector<6x128xf32>
    %329 = vector.shape_cast %326 : vector<6x128xf32> to vector<1x6x128xf32>
    tpu.vector_store %arg6[%c0_287, %c54, %c0_288], %329 {strides = array<i32>} : memref<1x72x128xf32, #tpu.memory_space<vmem>>, vector<1x6x128xf32>,
    %c560_289 = arith.constant 560 : index
    %c0_290 = arith.constant 0 : index
    %330 = tpu.strided_load %arg8[%c560_289, %c0_290] {strides = array<i32: 4, 1>} : memref<672x64xf32, #tpu.memory_space<vmem>>, vector<6x64xf32>
    %c561_291 = arith.constant 561 : index
    %c0_292 = arith.constant 0 : index
    %331 = tpu.strided_load %arg8[%c561_291, %c0_292] {strides = array<i32: 4, 1>} : memref<672x64xf32, #tpu.memory_space<vmem>>, vector<6x64xf32>
    %332 = arith.maximumf %330, %331 : vector<6x64xf32>
    %c588_293 = arith.constant 588 : index
    %c0_294 = arith.constant 0 : index
    %333 = tpu.strided_load %arg8[%c588_293, %c0_294] {strides = array<i32: 4, 1>} : memref<672x64xf32, #tpu.memory_space<vmem>>, vector<6x64xf32>
    %c589_295 = arith.constant 589 : index
    %c0_296 = arith.constant 0 : index
    %334 = tpu.strided_load %arg8[%c589_295, %c0_296] {strides = array<i32: 4, 1>} : memref<672x64xf32, #tpu.memory_space<vmem>>, vector<6x64xf32>
    %335 = arith.maximumf %333, %334 : vector<6x64xf32>
    %336 = arith.maximumf %332, %335 : vector<6x64xf32>
    %c562_297 = arith.constant 562 : index
    %c0_298 = arith.constant 0 : index
    %337 = tpu.strided_load %arg8[%c562_297, %c0_298] {strides = array<i32: 4, 1>} : memref<672x64xf32, #tpu.memory_space<vmem>>, vector<6x64xf32>
    %c563 = arith.constant 563 : index
    %c0_299 = arith.constant 0 : index
    %338 = tpu.strided_load %arg8[%c563, %c0_299] {strides = array<i32: 4, 1>} : memref<672x64xf32, #tpu.memory_space<vmem>>, vector<6x64xf32>
    %339 = arith.maximumf %337, %338 : vector<6x64xf32>
    %c590_300 = arith.constant 590 : index
    %c0_301 = arith.constant 0 : index
    %340 = tpu.strided_load %arg8[%c590_300, %c0_301] {strides = array<i32: 4, 1>} : memref<672x64xf32, #tpu.memory_space<vmem>>, vector<6x64xf32>
    %c591 = arith.constant 591 : index
    %c0_302 = arith.constant 0 : index
    %341 = tpu.strided_load %arg8[%c591, %c0_302] {strides = array<i32: 4, 1>} : memref<672x64xf32, #tpu.memory_space<vmem>>, vector<6x64xf32>
    %342 = arith.maximumf %340, %341 : vector<6x64xf32>
    %343 = arith.maximumf %339, %342 : vector<6x64xf32>
    %344 = tpu.concatenate %336, %343 in 1 : vector<6x64xf32>, vector<6x64xf32> -> vector<6x128xf32>
    %c0_303 = arith.constant 0 : index
    %c60 = arith.constant 60 : index
    %c0_304 = arith.constant 0 : index
    %345 = vector.load %arg6[%c0_303, %c60, %c0_304] : memref<1x72x128xf32, #tpu.memory_space<vmem>>, vector<1x6x128xf32>
    %346 = vector.shape_cast %345 : vector<1x6x128xf32> to vector<6x128xf32>
    %347 = vector.shape_cast %344 : vector<6x128xf32> to vector<1x6x128xf32>
    tpu.vector_store %arg6[%c0_303, %c60, %c0_304], %347 {strides = array<i32>} : memref<1x72x128xf32, #tpu.memory_space<vmem>>, vector<1x6x128xf32>,
    %c616_305 = arith.constant 616 : index
    %c0_306 = arith.constant 0 : index
    %348 = tpu.strided_load %arg8[%c616_305, %c0_306] {strides = array<i32: 4, 1>} : memref<672x64xf32, #tpu.memory_space<vmem>>, vector<6x64xf32>
    %c617_307 = arith.constant 617 : index
    %c0_308 = arith.constant 0 : index
    %349 = tpu.strided_load %arg8[%c617_307, %c0_308] {strides = array<i32: 4, 1>} : memref<672x64xf32, #tpu.memory_space<vmem>>, vector<6x64xf32>
    %350 = arith.maximumf %348, %349 : vector<6x64xf32>
    %c644 = arith.constant 644 : index
    %c0_309 = arith.constant 0 : index
    %351 = tpu.strided_load %arg8[%c644, %c0_309] {strides = array<i32: 4, 1>} : memref<672x64xf32, #tpu.memory_space<vmem>>, vector<6x64xf32>
    %c645 = arith.constant 645 : index
    %c0_310 = arith.constant 0 : index
    %352 = tpu.strided_load %arg8[%c645, %c0_310] {strides = array<i32: 4, 1>} : memref<672x64xf32, #tpu.memory_space<vmem>>, vector<6x64xf32>
    %353 = arith.maximumf %351, %352 : vector<6x64xf32>
    %354 = arith.maximumf %350, %353 : vector<6x64xf32>
    %c618_311 = arith.constant 618 : index
    %c0_312 = arith.constant 0 : index
    %355 = tpu.strided_load %arg8[%c618_311, %c0_312] {strides = array<i32: 4, 1>} : memref<672x64xf32, #tpu.memory_space<vmem>>, vector<6x64xf32>
    %c619 = arith.constant 619 : index
    %c0_313 = arith.constant 0 : index
    %356 = tpu.strided_load %arg8[%c619, %c0_313] {strides = array<i32: 4, 1>} : memref<672x64xf32, #tpu.memory_space<vmem>>, vector<6x64xf32>
    %357 = arith.maximumf %355, %356 : vector<6x64xf32>
    %c646 = arith.constant 646 : index
    %c0_314 = arith.constant 0 : index
    %358 = tpu.strided_load %arg8[%c646, %c0_314] {strides = array<i32: 4, 1>} : memref<672x64xf32, #tpu.memory_space<vmem>>, vector<6x64xf32>
    %c647 = arith.constant 647 : index
    %c0_315 = arith.constant 0 : index
    %359 = tpu.strided_load %arg8[%c647, %c0_315] {strides = array<i32: 4, 1>} : memref<672x64xf32, #tpu.memory_space<vmem>>, vector<6x64xf32>
    %360 = arith.maximumf %358, %359 : vector<6x64xf32>
    %361 = arith.maximumf %357, %360 : vector<6x64xf32>
    %362 = tpu.concatenate %354, %361 in 1 : vector<6x64xf32>, vector<6x64xf32> -> vector<6x128xf32>
    %c0_316 = arith.constant 0 : index
    %c66 = arith.constant 66 : index
    %c0_317 = arith.constant 0 : index
    %363 = vector.load %arg6[%c0_316, %c66, %c0_317] : memref<1x72x128xf32, #tpu.memory_space<vmem>>, vector<1x6x128xf32>
    %364 = vector.shape_cast %363 : vector<1x6x128xf32> to vector<6x128xf32>
    %365 = vector.shape_cast %362 : vector<6x128xf32> to vector<1x6x128xf32>
    tpu.vector_store %arg6[%c0_316, %c66, %c0_317], %365 {strides = array<i32>} : memref<1x72x128xf32, #tpu.memory_space<vmem>>, vector<1x6x128xf32>,
    return
  }
  func.func @transform_0(%arg0: i32) -> (i32, i32, i32) {
    %c0_i32 = arith.constant 0 : i32
    %c0_i32_0 = arith.constant 0 : i32
    %c0_i32_1 = arith.constant 0 : i32
    return %arg0, %c0_i32, %c0_i32_0 : i32, i32, i32
  }
  func.func @transform_1(%arg0: i32) -> (i32, i32) {
    %c0_i32 = arith.constant 0 : i32
    %c0_i32_0 = arith.constant 0 : i32
    %c0_i32_1 = arith.constant 0 : i32
    return %c0_i32, %c0_i32_0 : i32, i32
  }
  func.func @transform_2(%arg0: i32) -> (i32, i32) {
    %c0_i32 = arith.constant 0 : i32
    %c0_i32_0 = arith.constant 0 : i32
    %c0_i32_1 = arith.constant 0 : i32
    return %c0_i32, %c0_i32_0 : i32, i32
  }
  func.func @transform_3(%arg0: i32) -> (i32, i32) {
    %c0_i32 = arith.constant 0 : i32
    %c0_i32_0 = arith.constant 0 : i32
    %c0_i32_1 = arith.constant 0 : i32
    return %c0_i32, %c0_i32_0 : i32, i32
  }
  func.func @transform_4(%arg0: i32) -> (i32, i32) {
    %c0_i32 = arith.constant 0 : i32
    %c0_i32_0 = arith.constant 0 : i32
    %c0_i32_1 = arith.constant 0 : i32
    return %c0_i32, %c0_i32_0 : i32, i32
  }
  func.func @transform_5(%arg0: i32) -> (i32, i32, i32) {
    %c0_i32 = arith.constant 0 : i32
    %c0_i32_0 = arith.constant 0 : i32
    %c0_i32_1 = arith.constant 0 : i32
    return %arg0, %c0_i32, %c0_i32_0 : i32, i32, i32
  }
}

</mosaic_0001>

<llo_original>
// kernel: net2layer_forward.3
$region0: #{net2layer_forward.3}
  #allocation0 [shape = 'u32[]', space=smem, size = 0x4, offset = 0x4, fixed_abs, tag = 'smem constant byte address 0x4 - core index']
  #allocation1 [shape = 'u32[72,128]{1,0:T(1,128)}', space=vmem, size = 0x9000, scoped, tag = 'internal scratch']
  #allocation2 [shape = 'f32[8,128]{1,0:T(8,128)}', space=vmem, size = 0x1000, scoped, tag = 'scratch operand']
  %s0 = inlined_call_operand.vmem [shape: f32[8,9216], index: 0, kind: input, shape index: {}]
  %s1 = inlined_call_operand.vmem [shape: bf16[9216,128], index: 1, kind: input, shape index: {}]
  %s2 = inlined_call_operand.vmem [shape: f32[1,128], index: 2, kind: input, shape index: {}]
  %s3 = inlined_call_operand.vmem [shape: f32[8,128], index: 3, kind: output, shape index: {}]
  %s4 = sld [smem:[#allocation0]]
  $region53: #{net2layer_forward.3} parent=0
    _
  %s6 = ssub.s32 1, %s4
  %s7 = scalar_select 0, %s6, %s4
  loop: start=0, step=1, limit=4
  $region2: #{net2layer_forward.3} parent=0 // loop_pre_header
    _
  $region3: #{net2layer_forward.3} parent=0 // loop_header
    %s9 = sphi 0, %s13
    %p10 = scmp.ge.s32.totalorder %s9, 4
    %s19 = sphi 0, %s21
    %s22 = sphi 0, %s19
    %s23 = sphi 0, %s22
    %s39 = sphi 0, %s23
    %s45 = sphi 0, %s47
    %s48 = sphi 0, %s45
    %s49 = sphi 0, %s48
    %s65 = sphi 0, %s49
    %s69 = sphi 0, %s69
    %s71 = sphi 0, %s69
    %s72 = sphi 0, %s71
    %s86 = sphi 0, %s72
    %s90 = sphi 0, %s90
    %s92 = sphi 0, %s90
    %s93 = sphi 0, %s92
    %s107 = sphi 0, %s93
  $region4: #{net2layer_forward.3} parent=0 // loop_header_branch
    %12 = sbr.rel (%p10) target = $region8
  $region5: #{net2layer_forward.3} parent=0 // loop_body
    %s14 = ssub.s32 %s9, 1
    %s15 = ssub.s32 %s9, 2
    %s16 = sadd.s32 %s9, 1
    %s17 = ssub.s32 %s9, %s16
    %p18 = scmp.eq.s32.totalorder %s17, 0
    %s20 = sadd.s32 %s19, 1
    %s21 = scalar_select %p18, %s19, %s20
    %p24 = pneg %p18
    %p25 = scmp.eq.s32.totalorder %s9, 1
    %p26 = por %p24, %p25
    %p27 = scmp.ne.s32.totalorder %s19, %s22
    %p28 = scmp.eq.s32.totalorder %s9, 0
    %p29 = por %p27, %p28
    %p30 = scmp.ne.s32.totalorder %s19, %s22
    %p31 = scmp.eq.s32.totalorder %s14, 1
    %p32 = por %p30, %p31
    %p33 = scmp.ne.s32.totalorder %s22, %s23
    %p34 = scmp.eq.s32.totalorder %s14, 0
    %p35 = por %p33, %p34
    %p36 = scmp.ne.s32.totalorder %s22, %s23
    %p37 = scmp.eq.s32.totalorder %s15, 1
    %p38 = por %p36, %p37
    %p40 = scmp.ne.s32.totalorder %s23, %s39
    %p41 = scmp.eq.s32.totalorder %s15, 0
    %p42 = por %p40, %p41
    %s43 = ssub.s32 %s9, %s16
    %p44 = scmp.eq.s32.totalorder %s43, 0
    %s46 = sadd.s32 %s45, 1
    %s47 = scalar_select %p44, %s45, %s46
    %p50 = pneg %p44
    %p51 = scmp.eq.s32.totalorder %s9, 1
    %p52 = por %p50, %p51
    %p53 = scmp.ne.s32.totalorder %s45, %s48
    %p54 = scmp.eq.s32.totalorder %s9, 0
    %p55 = por %p53, %p54
    %p56 = scmp.ne.s32.totalorder %s45, %s48
    %p57 = scmp.eq.s32.totalorder %s14, 1
    %p58 = por %p56, %p57
    %p59 = scmp.ne.s32.totalorder %s48, %s49
    %p60 = scmp.eq.s32.totalorder %s14, 0
    %p61 = por %p59, %p60
    %p62 = scmp.ne.s32.totalorder %s48, %s49
    %p63 = scmp.eq.s32.totalorder %s15, 1
    %p64 = por %p62, %p63
    %p66 = scmp.ne.s32.totalorder %s49, %s65
    %p67 = scmp.eq.s32.totalorder %s15, 0
    %p68 = por %p66, %p67
    %s70 = sadd.s32 %s69, 1
    %p73 = scmp.eq.s32.totalorder %s9, 1
    %p74 = scmp.ne.s32.totalorder %s69, %s71
    %p75 = scmp.eq.s32.totalorder %s9, 0
    %p76 = por %p74, %p75
    %p77 = scmp.ne.s32.totalorder %s69, %s71
    %p78 = scmp.eq.s32.totalorder %s14, 1
    %p79 = por %p77, %p78
    %p80 = scmp.ne.s32.totalorder %s71, %s72
    %p81 = scmp.eq.s32.totalorder %s14, 0
    %p82 = por %p80, %p81
    %p83 = scmp.ne.s32.totalorder %s71, %s72
    %p84 = scmp.eq.s32.totalorder %s15, 1
    %p85 = por %p83, %p84
    %p87 = scmp.ne.s32.totalorder %s72, %s86
    %p88 = scmp.eq.s32.totalorder %s15, 0
    %p89 = por %p87, %p88
    %s91 = sadd.s32 %s90, 1
    %p94 = scmp.eq.s32.totalorder %s9, 1
    %p95 = scmp.ne.s32.totalorder %s90, %s92
    %p96 = scmp.eq.s32.totalorder %s9, 0
    %p97 = por %p95, %p96
    %p98 = scmp.ne.s32.totalorder %s90, %s92
    %p99 = scmp.eq.s32.totalorder %s14, 1
    %p100 = por %p98, %p99
    %p101 = scmp.ne.s32.totalorder %s92, %s93
    %p102 = scmp.eq.s32.totalorder %s14, 0
    %p103 = por %p101, %p102
    %p104 = scmp.ne.s32.totalorder %s92, %s93
    %p105 = scmp.eq.s32.totalorder %s15, 1
    %p106 = por %p104, %p105
    %p108 = scmp.ne.s32.totalorder %s93, %s107
    %p109 = scmp.eq.s32.totalorder %s15, 0
    %p110 = por %p108, %p109
    %p111 = scmp.le.s32.totalorder 1, %s9
    %p112 = scmp.lt.s32.totalorder %s9, 3
    %p113 = pnand %p111, %p112
    %p114 = pneg %p113
    // Predicated region
    $region9: #{net2layer_forward.3} parent=5 // pred_check
      _
    $region10: #{net2layer_forward.3} parent=5 // pred_check_branch
      %116 = sbr.rel (%p113) target = $region12
    $region11: #{net2layer_forward.3} parent=5 // pred_region
      %s117 = ssub.s32 %s9, 1
      // Predicated region
      $region13: #{net2layer_forward.3} parent=11 // pred_check
        %p118 = pneg %p82
      $region14: #{net2layer_forward.3} parent=11 // pred_check_branch
        %120 = sbr.rel (%p118) target = $region16
      $region15: #{net2layer_forward.3} parent=11 // pred_region
        _
      $region16: #{net2layer_forward.3} parent=11 // pred_fallthru
        _
    $region12: #{net2layer_forward.3} parent=5 // pred_fallthru
      _
    %p121 = scmp.lt.s32.totalorder %s9, 2
    // Predicated region
    $region17: #{net2layer_forward.3} parent=5 // pred_check
      %p122 = pneg %p121
    $region18: #{net2layer_forward.3} parent=5 // pred_check_branch
      %124 = sbr.rel (%p122) target = $region20
    $region19: #{net2layer_forward.3} parent=5 // pred_region
      // Predicated region
      $region21: #{net2layer_forward.3} parent=19 // pred_check
        %p125 = pneg %p29
      $region22: #{net2layer_forward.3} parent=19 // pred_check_branch
        %127 = sbr.rel (%p125) target = $region24
      $region23: #{net2layer_forward.3} parent=19 // pred_region
        %s128 = smul.u32 36, %s9
        %p129 = scmp.lt.s32.totalorder %s128, 71
        %s130 = scalar_select %p129, %s128, 71
        %s131 = smul.addr %s130, 8
        %s132 = scalar_lea.vmem %s0, %s131
        %s133 = smul.u32 36, %s9
      $region24: #{net2layer_forward.3} parent=19 // pred_fallthru
        _
      // Predicated region
      $region25: #{net2layer_forward.3} parent=19 // pred_check
        %p134 = pneg %p55
      $region26: #{net2layer_forward.3} parent=19 // pred_check_branch
        %136 = sbr.rel (%p134) target = $region28
      $region27: #{net2layer_forward.3} parent=19 // pred_region
        %s137 = smul.u32 576, %s9
        %p138 = scmp.lt.s32.totalorder %s137, 1151
        %s139 = scalar_select %p138, %s137, 1151
        %s140 = smul.addr %s139, 4
        %s141 = scalar_lea.vmem %s1, %s140
        %s142 = smul.u32 576, %s9
      $region28: #{net2layer_forward.3} parent=19 // pred_fallthru
        _
    $region20: #{net2layer_forward.3} parent=5 // pred_fallthru
      _
    %p143 = scmp.le.s32.totalorder 1, %s9
    %p144 = scmp.lt.s32.totalorder %s9, 3
    %p145 = pnand %p143, %p144
    %p146 = pneg %p145
    // Predicated region
    $region29: #{net2layer_forward.3} parent=5 // pred_check
      _
    $region30: #{net2layer_forward.3} parent=5 // pred_check_branch
      %148 = sbr.rel (%p145) target = $region32
    $region31: #{net2layer_forward.3} parent=5 // pred_region
      %s149 = ssub.s32 %s9, 1
      %s150 = smul.u32 36, %s14
      %p151 = scmp.lt.s32.totalorder %s150, 71
      %s152 = scalar_select %p151, %s150, 71
      %s153 = smul.addr %s152, 8
      %s154 = scalar_lea.vmem %s0, %s153
      %p155 = pneg %p35
      %p156 = pneg %p32
      %s157 = smul.u32 576, %s14
      %p158 = scmp.lt.s32.totalorder %s157, 1151
      %s159 = scalar_select %p158, %s157, 1151
      %s160 = smul.addr %s159, 4
      %s161 = scalar_lea.vmem %s1, %s160
      %p162 = pneg %p61
      %p163 = pneg %p58
      %p164 = pneg %p82
      %p165 = pneg %p79
      %p166 = pneg %p103
      %p167 = pneg %p100
      %s168 = smul.u32 36, %s14
      %p169 = scmp.lt.s32.totalorder %s168, 71
      %s170 = scalar_select %p169, %s168, 71
      %s171 = smul.addr %s170, 8
      %s172 = scalar_lea.vmem %s0, %s171
      %s173 = smul.u32 36, %s14
      %s174 = smul.u32 576, %s14
      %p175 = scmp.lt.s32.totalorder %s174, 1151
      %s176 = scalar_select %p175, %s174, 1151
      %s177 = smul.addr %s176, 4
      %s178 = scalar_lea.vmem %s1, %s177
      %s179 = smul.u32 576, %s14
      %p180 = scmp.eq.s32.totalorder %s14, 0
      // Predicated region
      $region33: #{net2layer_forward.3} parent=31 // pred_check
        %p181 = pneg %p180
      $region34: #{net2layer_forward.3} parent=31 // pred_check_branch
        %183 = sbr.rel (%p181) target = $region36
      $region35: #{net2layer_forward.3} parent=31 // pred_region
        %184 = vst [vmem:[#allocation2] sm:$0xff] 0.0
      $region36: #{net2layer_forward.3} parent=31 // pred_fallthru
        _
      %v185 = vld [vmem:[#allocation2] sm:$0xff]
      %v186 = vld [vmem:[%s172] sm:$0xff]
      %v187 = vld [vmem:[%s172 + $0x8] sm:$0xff]
      %v188 = vld [vmem:[%s172 + $0x10] sm:$0xff]
      %v189 = vld [vmem:[%s172 + $0x18] sm:$0xff]
      %v190 = vld [vmem:[%s172 + $0x20] sm:$0xff]
      %v191 = vld [vmem:[%s172 + $0x28] sm:$0xff]
      %v192 = vld [vmem:[%s172 + $0x30] sm:$0xff]
      %v193 = vld [vmem:[%s172 + $0x38] sm:$0xff]
      %v194 = vld [vmem:[%s172 + $0x40] sm:$0xff]
      %v195 = vld [vmem:[%s172 + $0x48] sm:$0xff]
      %v196 = vld [vmem:[%s172 + $0x50] sm:$0xff]
      %v197 = vld [vmem:[%s172 + $0x58] sm:$0xff]
      %v198 = vld [vmem:[%s172 + $0x60] sm:$0xff]
      %v199 = vld [vmem:[%s172 + $0x68] sm:$0xff]
      %v200 = vld [vmem:[%s172 + $0x70] sm:$0xff]
      %v201 = vld [vmem:[%s172 + $0x78] sm:$0xff]
      %v202 = vld [vmem:[%s172 + $0x80] sm:$0xff]
      %v203 = vld [vmem:[%s172 + $0x88] sm:$0xff]
      %v204 = vld [vmem:[%s172 + $0x90] sm:$0xff]
      %v205 = vld [vmem:[%s172 + $0x98] sm:$0xff]
      %v206 = vld [vmem:[%s172 + $0xa0] sm:$0xff]
      %v207 = vld [vmem:[%s172 + $0xa8] sm:$0xff]
      %v208 = vld [vmem:[%s172 + $0xb0] sm:$0xff]
      %v209 = vld [vmem:[%s172 + $0xb8] sm:$0xff]
      %v210 = vld [vmem:[%s172 + $0xc0] sm:$0xff]
      %v211 = vld [vmem:[%s172 + $0xc8] sm:$0xff]
      %v212 = vld [vmem:[%s172 + $0xd0] sm:$0xff]
      %v213 = vld [vmem:[%s172 + $0xd8] sm:$0xff]
      %v214 = vld [vmem:[%s172 + $0xe0] sm:$0xff]
      %v215 = vld [vmem:[%s172 + $0xe8] sm:$0xff]
      %v216 = vld [vmem:[%s172 + $0xf0] sm:$0xff]
      %v217 = vld [vmem:[%s172 + $0xf8] sm:$0xff]
      %v218 = vld [vmem:[%s172 + $0x100] sm:$0xff]
      %v219 = vld [vmem:[%s172 + $0x108] sm:$0xff]
      %v220 = vld [vmem:[%s172 + $0x110] sm:$0xff]
      %v221 = vld [vmem:[%s172 + $0x118] sm:$0xff]
      %v222 = vpack.c.bf16 %v186, %v186
      %v223 = vpack.c.bf16 %v187, %v187
      %v224 = vpack.c.bf16 %v188, %v188
      %v225 = vpack.c.bf16 %v189, %v189
      %v226 = vpack.c.bf16 %v190, %v190
      %v227 = vpack.c.bf16 %v191, %v191
      %v228 = vpack.c.bf16 %v192, %v192
      %v229 = vpack.c.bf16 %v193, %v193
      %v230 = vpack.c.bf16 %v194, %v194
      %v231 = vpack.c.bf16 %v195, %v195
      %v232 = vpack.c.bf16 %v196, %v196
      %v233 = vpack.c.bf16 %v197, %v197
      %v234 = vpack.c.bf16 %v198, %v198
      %v235 = vpack.c.bf16 %v199, %v199
      %v236 = vpack.c.bf16 %v200, %v200
      %v237 = vpack.c.bf16 %v201, %v201
      %v238 = vpack.c.bf16 %v202, %v202
      %v239 = vpack.c.bf16 %v203, %v203
      %v240 = vpack.c.bf16 %v204, %v204
      %v241 = vpack.c.bf16 %v205, %v205
      %v242 = vpack.c.bf16 %v206, %v206
      %v243 = vpack.c.bf16 %v207, %v207
      %v244 = vpack.c.bf16 %v208, %v208
      %v245 = vpack.c.bf16 %v209, %v209
      %v246 = vpack.c.bf16 %v210, %v210
      %v247 = vpack.c.bf16 %v211, %v211
      %v248 = vpack.c.bf16 %v212, %v212
      %v249 = vpack.c.bf16 %v213, %v213
      %v250 = vpack.c.bf16 %v214, %v214
      %v251 = vpack.c.bf16 %v215, %v215
      %v252 = vpack.c.bf16 %v216, %v216
      %v253 = vpack.c.bf16 %v217, %v217
      %v254 = vpack.c.bf16 %v218, %v218
      %v255 = vpack.c.bf16 %v219, %v219
      %v256 = vpack.c.bf16 %v220, %v220
      %v257 = vpack.c.bf16 %v221, %v221
      %v258 = vld [vmem:[%s178] sm:$0xf]
      %v259 = vld [vmem:[%s178 + $0x4] sm:$0xf]
      %v260 = vld [vmem:[%s178 + $0x8] sm:$0xf]
      %v261 = vld [vmem:[%s178 + $0xc] sm:$0xf]
      %v262 = vld [vmem:[%s178 + $0x10] sm:$0xf]
      %v263 = vld [vmem:[%s178 + $0x14] sm:$0xf]
      %v264 = vld [vmem:[%s178 + $0x18] sm:$0xf]
      %v265 = vld [vmem:[%s178 + $0x1c] sm:$0xf]
      %v266 = vld [vmem:[%s178 + $0x20] sm:$0xf]
      %v267 = vld [vmem:[%s178 + $0x24] sm:$0xf]
      %v268 = vld [vmem:[%s178 + $0x28] sm:$0xf]
      %v269 = vld [vmem:[%s178 + $0x2c] sm:$0xf]
      %v270 = vld [vmem:[%s178 + $0x30] sm:$0xf]
      %v271 = vld [vmem:[%s178 + $0x34] sm:$0xf]
      %v272 = vld [vmem:[%s178 + $0x38] sm:$0xf]
      %v273 = vld [vmem:[%s178 + $0x3c] sm:$0xf]
      %v274 = vld [vmem:[%s178 + $0x40] sm:$0xf]
      %v275 = vld [vmem:[%s178 + $0x44] sm:$0xf]
      %v276 = vld [vmem:[%s178 + $0x48] sm:$0xf]
      %v277 = vld [vmem:[%s178 + $0x4c] sm:$0xf]
      %v278 = vld [vmem:[%s178 + $0x50] sm:$0xf]
      %v279 = vld [vmem:[%s178 + $0x54] sm:$0xf]
      %v280 = vld [vmem:[%s178 + $0x58] sm:$0xf]
      %v281 = vld [vmem:[%s178 + $0x5c] sm:$0xf]
      %v282 = vld [vmem:[%s178 + $0x60] sm:$0xf]
      %v283 = vld [vmem:[%s178 + $0x64] sm:$0xf]
      %v284 = vld [vmem:[%s178 + $0x68] sm:$0xf]
      %v285 = vld [vmem:[%s178 + $0x6c] sm:$0xf]
      %v286 = vld [vmem:[%s178 + $0x70] sm:$0xf]
      %v287 = vld [vmem:[%s178 + $0x74] sm:$0xf]
      %v288 = vld [vmem:[%s178 + $0x78] sm:$0xf]
      %v289 = vld [vmem:[%s178 + $0x7c] sm:$0xf]
      %v290 = vld [vmem:[%s178 + $0x80] sm:$0xf]
      %v291 = vld [vmem:[%s178 + $0x84] sm:$0xf]
      %v292 = vld [vmem:[%s178 + $0x88] sm:$0xf]
      %v293 = vld [vmem:[%s178 + $0x8c] sm:$0xf]
      %v294 = vld [vmem:[%s178 + $0x90] sm:$0xf]
      %v295 = vld [vmem:[%s178 + $0x94] sm:$0xf]
      %v296 = vld [vmem:[%s178 + $0x98] sm:$0xf]
      %v297 = vld [vmem:[%s178 + $0x9c] sm:$0xf]
      %v298 = vld [vmem:[%s178 + $0xa0] sm:$0xf]
      %v299 = vld [vmem:[%s178 + $0xa4] sm:$0xf]
      %v300 = vld [vmem:[%s178 + $0xa8] sm:$0xf]
      %v301 = vld [vmem:[%s178 + $0xac] sm:$0xf]
      %v302 = vld [vmem:[%s178 + $0xb0] sm:$0xf]
      %v303 = vld [vmem:[%s178 + $0xb4] sm:$0xf]
      %v304 = vld [vmem:[%s178 + $0xb8] sm:$0xf]
      %v305 = vld [vmem:[%s178 + $0xbc] sm:$0xf]
      %v306 = vld [vmem:[%s178 + $0xc0] sm:$0xf]
      %v307 = vld [vmem:[%s178 + $0xc4] sm:$0xf]
      %v308 = vld [vmem:[%s178 + $0xc8] sm:$0xf]
      %v309 = vld [vmem:[%s178 + $0xcc] sm:$0xf]
      %v310 = vld [vmem:[%s178 + $0xd0] sm:$0xf]
      %v311 = vld [vmem:[%s178 + $0xd4] sm:$0xf]
      %v312 = vld [vmem:[%s178 + $0xd8] sm:$0xf]
      %v313 = vld [vmem:[%s178 + $0xdc] sm:$0xf]
      %v314 = vld [vmem:[%s178 + $0xe0] sm:$0xf]
      %v315 = vld [vmem:[%s178 + $0xe4] sm:$0xf]
      %v316 = vld [vmem:[%s178 + $0xe8] sm:$0xf]
      %v317 = vld [vmem:[%s178 + $0xec] sm:$0xf]
      %v318 = vld [vmem:[%s178 + $0xf0] sm:$0xf]
      %v319 = vld [vmem:[%s178 + $0xf4] sm:$0xf]
      %v320 = vld [vmem:[%s178 + $0xf8] sm:$0xf]
      %v321 = vld [vmem:[%s178 + $0xfc] sm:$0xf]
      %v322 = vld [vmem:[%s178 + $0x100] sm:$0xf]
      %v323 = vld [vmem:[%s178 + $0x104] sm:$0xf]
      %v324 = vld [vmem:[%s178 + $0x108] sm:$0xf]
      %v325 = vld [vmem:[%s178 + $0x10c] sm:$0xf]
      %v326 = vld [vmem:[%s178 + $0x110] sm:$0xf]
      %v327 = vld [vmem:[%s178 + $0x114] sm:$0xf]
      %v328 = vld [vmem:[%s178 + $0x118] sm:$0xf]
      %v329 = vld [vmem:[%s178 + $0x11c] sm:$0xf]
      %v330 = vld [vmem:[%s178 + $0x120] sm:$0xf]
      %v331 = vld [vmem:[%s178 + $0x124] sm:$0xf]
      %v332 = vld [vmem:[%s178 + $0x128] sm:$0xf]
      %v333 = vld [vmem:[%s178 + $0x12c] sm:$0xf]
      %v334 = vld [vmem:[%s178 + $0x130] sm:$0xf]
      %v335 = vld [vmem:[%s178 + $0x134] sm:$0xf]
      %v336 = vld [vmem:[%s178 + $0x138] sm:$0xf]
      %v337 = vld [vmem:[%s178 + $0x13c] sm:$0xf]
      %v338 = vld [vmem:[%s178 + $0x140] sm:$0xf]
      %v339 = vld [vmem:[%s178 + $0x144] sm:$0xf]
      %v340 = vld [vmem:[%s178 + $0x148] sm:$0xf]
      %v341 = vld [vmem:[%s178 + $0x14c] sm:$0xf]
      %v342 = vld [vmem:[%s178 + $0x150] sm:$0xf]
      %v343 = vld [vmem:[%s178 + $0x154] sm:$0xf]
      %v344 = vld [vmem:[%s178 + $0x158] sm:$0xf]
      %v345 = vld [vmem:[%s178 + $0x15c] sm:$0xf]
      %v346 = vld [vmem:[%s178 + $0x160] sm:$0xf]
      %v347 = vld [vmem:[%s178 + $0x164] sm:$0xf]
      %v348 = vld [vmem:[%s178 + $0x168] sm:$0xf]
      %v349 = vld [vmem:[%s178 + $0x16c] sm:$0xf]
      %v350 = vld [vmem:[%s178 + $0x170] sm:$0xf]
      %v351 = vld [vmem:[%s178 + $0x174] sm:$0xf]
      %v352 = vld [vmem:[%s178 + $0x178] sm:$0xf]
      %v353 = vld [vmem:[%s178 + $0x17c] sm:$0xf]
      %v354 = vld [vmem:[%s178 + $0x180] sm:$0xf]
      %v355 = vld [vmem:[%s178 + $0x184] sm:$0xf]
      %v356 = vld [vmem:[%s178 + $0x188] sm:$0xf]
      %v357 = vld [vmem:[%s178 + $0x18c] sm:$0xf]
      %v358 = vld [vmem:[%s178 + $0x190] sm:$0xf]
      %v359 = vld [vmem:[%s178 + $0x194] sm:$0xf]
      %v360 = vld [vmem:[%s178 + $0x198] sm:$0xf]
      %v361 = vld [vmem:[%s178 + $0x19c] sm:$0xf]
      %v362 = vld [vmem:[%s178 + $0x1a0] sm:$0xf]
      %v363 = vld [vmem:[%s178 + $0x1a4] sm:$0xf]
      %v364 = vld [vmem:[%s178 + $0x1a8] sm:$0xf]
      %v365 = vld [vmem:[%s178 + $0x1ac] sm:$0xf]
      %v366 = vld [vmem:[%s178 + $0x1b0] sm:$0xf]
      %v367 = vld [vmem:[%s178 + $0x1b4] sm:$0xf]
      %v368 = vld [vmem:[%s178 + $0x1b8] sm:$0xf]
      %v369 = vld [vmem:[%s178 + $0x1bc] sm:$0xf]
      %v370 = vld [vmem:[%s178 + $0x1c0] sm:$0xf]
      %v371 = vld [vmem:[%s178 + $0x1c4] sm:$0xf]
      %v372 = vld [vmem:[%s178 + $0x1c8] sm:$0xf]
      %v373 = vld [vmem:[%s178 + $0x1cc] sm:$0xf]
      %v374 = vld [vmem:[%s178 + $0x1d0] sm:$0xf]
      %v375 = vld [vmem:[%s178 + $0x1d4] sm:$0xf]
      %v376 = vld [vmem:[%s178 + $0x1d8] sm:$0xf]
      %v377 = vld [vmem:[%s178 + $0x1dc] sm:$0xf]
      %v378 = vld [vmem:[%s178 + $0x1e0] sm:$0xf]
      %v379 = vld [vmem:[%s178 + $0x1e4] sm:$0xf]
      %v380 = vld [vmem:[%s178 + $0x1e8] sm:$0xf]
      %v381 = vld [vmem:[%s178 + $0x1ec] sm:$0xf]
      %v382 = vld [vmem:[%s178 + $0x1f0] sm:$0xf]
      %v383 = vld [vmem:[%s178 + $0x1f4] sm:$0xf]
      %v384 = vld [vmem:[%s178 + $0x1f8] sm:$0xf]
      %v385 = vld [vmem:[%s178 + $0x1fc] sm:$0xf]
      %v386 = vld [vmem:[%s178 + $0x200] sm:$0xf]
      %v387 = vld [vmem:[%s178 + $0x204] sm:$0xf]
      %v388 = vld [vmem:[%s178 + $0x208] sm:$0xf]
      %v389 = vld [vmem:[%s178 + $0x20c] sm:$0xf]
      %v390 = vld [vmem:[%s178 + $0x210] sm:$0xf]
      %v391 = vld [vmem:[%s178 + $0x214] sm:$0xf]
      %v392 = vld [vmem:[%s178 + $0x218] sm:$0xf]
      %v393 = vld [vmem:[%s178 + $0x21c] sm:$0xf]
      %v394 = vld [vmem:[%s178 + $0x220] sm:$0xf]
      %v395 = vld [vmem:[%s178 + $0x224] sm:$0xf]
      %v396 = vld [vmem:[%s178 + $0x228] sm:$0xf]
      %v397 = vld [vmem:[%s178 + $0x22c] sm:$0xf]
      %v398 = vld [vmem:[%s178 + $0x230] sm:$0xf]
      %v399 = vld [vmem:[%s178 + $0x234] sm:$0xf]
      %v400 = vld [vmem:[%s178 + $0x238] sm:$0xf]
      %v401 = vld [vmem:[%s178 + $0x23c] sm:$0xf]
      %v402 = vld [vmem:[%s178 + $0x240] sm:$0xf]
      %v403 = vld [vmem:[%s178 + $0x244] sm:$0xf]
      %v404 = vld [vmem:[%s178 + $0x248] sm:$0xf]
      %v405 = vld [vmem:[%s178 + $0x24c] sm:$0xf]
      %v406 = vld [vmem:[%s178 + $0x250] sm:$0xf]
      %v407 = vld [vmem:[%s178 + $0x254] sm:$0xf]
      %v408 = vld [vmem:[%s178 + $0x258] sm:$0xf]
      %v409 = vld [vmem:[%s178 + $0x25c] sm:$0xf]
      %v410 = vld [vmem:[%s178 + $0x260] sm:$0xf]
      %v411 = vld [vmem:[%s178 + $0x264] sm:$0xf]
      %v412 = vld [vmem:[%s178 + $0x268] sm:$0xf]
      %v413 = vld [vmem:[%s178 + $0x26c] sm:$0xf]
      %v414 = vld [vmem:[%s178 + $0x270] sm:$0xf]
      %v415 = vld [vmem:[%s178 + $0x274] sm:$0xf]
      %v416 = vld [vmem:[%s178 + $0x278] sm:$0xf]
      %v417 = vld [vmem:[%s178 + $0x27c] sm:$0xf]
      %v418 = vld [vmem:[%s178 + $0x280] sm:$0xf]
      %v419 = vld [vmem:[%s178 + $0x284] sm:$0xf]
      %v420 = vld [vmem:[%s178 + $0x288] sm:$0xf]
      %v421 = vld [vmem:[%s178 + $0x28c] sm:$0xf]
      %v422 = vld [vmem:[%s178 + $0x290] sm:$0xf]
      %v423 = vld [vmem:[%s178 + $0x294] sm:$0xf]
      %v424 = vld [vmem:[%s178 + $0x298] sm:$0xf]
      %v425 = vld [vmem:[%s178 + $0x29c] sm:$0xf]
      %v426 = vld [vmem:[%s178 + $0x2a0] sm:$0xf]
      %v427 = vld [vmem:[%s178 + $0x2a4] sm:$0xf]
      %v428 = vld [vmem:[%s178 + $0x2a8] sm:$0xf]
      %v429 = vld [vmem:[%s178 + $0x2ac] sm:$0xf]
      %v430 = vld [vmem:[%s178 + $0x2b0] sm:$0xf]
      %v431 = vld [vmem:[%s178 + $0x2b4] sm:$0xf]
      %v432 = vld [vmem:[%s178 + $0x2b8] sm:$0xf]
      %v433 = vld [vmem:[%s178 + $0x2bc] sm:$0xf]
      %v434 = vld [vmem:[%s178 + $0x2c0] sm:$0xf]
      %v435 = vld [vmem:[%s178 + $0x2c4] sm:$0xf]
      %v436 = vld [vmem:[%s178 + $0x2c8] sm:$0xf]
      %v437 = vld [vmem:[%s178 + $0x2cc] sm:$0xf]
      %v438 = vld [vmem:[%s178 + $0x2d0] sm:$0xf]
      %v439 = vld [vmem:[%s178 + $0x2d4] sm:$0xf]
      %v440 = vld [vmem:[%s178 + $0x2d8] sm:$0xf]
      %v441 = vld [vmem:[%s178 + $0x2dc] sm:$0xf]
      %v442 = vld [vmem:[%s178 + $0x2e0] sm:$0xf]
      %v443 = vld [vmem:[%s178 + $0x2e4] sm:$0xf]
      %v444 = vld [vmem:[%s178 + $0x2e8] sm:$0xf]
      %v445 = vld [vmem:[%s178 + $0x2ec] sm:$0xf]
      %v446 = vld [vmem:[%s178 + $0x2f0] sm:$0xf]
      %v447 = vld [vmem:[%s178 + $0x2f4] sm:$0xf]
      %v448 = vld [vmem:[%s178 + $0x2f8] sm:$0xf]
      %v449 = vld [vmem:[%s178 + $0x2fc] sm:$0xf]
      %v450 = vld [vmem:[%s178 + $0x300] sm:$0xf]
      %v451 = vld [vmem:[%s178 + $0x304] sm:$0xf]
      %v452 = vld [vmem:[%s178 + $0x308] sm:$0xf]
      %v453 = vld [vmem:[%s178 + $0x30c] sm:$0xf]
      %v454 = vld [vmem:[%s178 + $0x310] sm:$0xf]
      %v455 = vld [vmem:[%s178 + $0x314] sm:$0xf]
      %v456 = vld [vmem:[%s178 + $0x318] sm:$0xf]
      %v457 = vld [vmem:[%s178 + $0x31c] sm:$0xf]
      %v458 = vld [vmem:[%s178 + $0x320] sm:$0xf]
      %v459 = vld [vmem:[%s178 + $0x324] sm:$0xf]
      %v460 = vld [vmem:[%s178 + $0x328] sm:$0xf]
      %v461 = vld [vmem:[%s178 + $0x32c] sm:$0xf]
      %v462 = vld [vmem:[%s178 + $0x330] sm:$0xf]
      %v463 = vld [vmem:[%s178 + $0x334] sm:$0xf]
      %v464 = vld [vmem:[%s178 + $0x338] sm:$0xf]
      %v465 = vld [vmem:[%s178 + $0x33c] sm:$0xf]
      %v466 = vld [vmem:[%s178 + $0x340] sm:$0xf]
      %v467 = vld [vmem:[%s178 + $0x344] sm:$0xf]
      %v468 = vld [vmem:[%s178 + $0x348] sm:$0xf]
      %v469 = vld [vmem:[%s178 + $0x34c] sm:$0xf]
      %v470 = vld [vmem:[%s178 + $0x350] sm:$0xf]
      %v471 = vld [vmem:[%s178 + $0x354] sm:$0xf]
      %v472 = vld [vmem:[%s178 + $0x358] sm:$0xf]
      %v473 = vld [vmem:[%s178 + $0x35c] sm:$0xf]
      %v474 = vld [vmem:[%s178 + $0x360] sm:$0xf]
      %v475 = vld [vmem:[%s178 + $0x364] sm:$0xf]
      %v476 = vld [vmem:[%s178 + $0x368] sm:$0xf]
      %v477 = vld [vmem:[%s178 + $0x36c] sm:$0xf]
      %v478 = vld [vmem:[%s178 + $0x370] sm:$0xf]
      %v479 = vld [vmem:[%s178 + $0x374] sm:$0xf]
      %v480 = vld [vmem:[%s178 + $0x378] sm:$0xf]
      %v481 = vld [vmem:[%s178 + $0x37c] sm:$0xf]
      %v482 = vld [vmem:[%s178 + $0x380] sm:$0xf]
      %v483 = vld [vmem:[%s178 + $0x384] sm:$0xf]
      %v484 = vld [vmem:[%s178 + $0x388] sm:$0xf]
      %v485 = vld [vmem:[%s178 + $0x38c] sm:$0xf]
      %v486 = vld [vmem:[%s178 + $0x390] sm:$0xf]
      %v487 = vld [vmem:[%s178 + $0x394] sm:$0xf]
      %v488 = vld [vmem:[%s178 + $0x398] sm:$0xf]
      %v489 = vld [vmem:[%s178 + $0x39c] sm:$0xf]
      %v490 = vld [vmem:[%s178 + $0x3a0] sm:$0xf]
      %v491 = vld [vmem:[%s178 + $0x3a4] sm:$0xf]
      %v492 = vld [vmem:[%s178 + $0x3a8] sm:$0xf]
      %v493 = vld [vmem:[%s178 + $0x3ac] sm:$0xf]
      %v494 = vld [vmem:[%s178 + $0x3b0] sm:$0xf]
      %v495 = vld [vmem:[%s178 + $0x3b4] sm:$0xf]
      %v496 = vld [vmem:[%s178 + $0x3b8] sm:$0xf]
      %v497 = vld [vmem:[%s178 + $0x3bc] sm:$0xf]
      %v498 = vld [vmem:[%s178 + $0x3c0] sm:$0xf]
      %v499 = vld [vmem:[%s178 + $0x3c4] sm:$0xf]
      %v500 = vld [vmem:[%s178 + $0x3c8] sm:$0xf]
      %v501 = vld [vmem:[%s178 + $0x3cc] sm:$0xf]
      %v502 = vld [vmem:[%s178 + $0x3d0] sm:$0xf]
      %v503 = vld [vmem:[%s178 + $0x3d4] sm:$0xf]
      %v504 = vld [vmem:[%s178 + $0x3d8] sm:$0xf]
      %v505 = vld [vmem:[%s178 + $0x3dc] sm:$0xf]
      %v506 = vld [vmem:[%s178 + $0x3e0] sm:$0xf]
      %v507 = vld [vmem:[%s178 + $0x3e4] sm:$0xf]
      %v508 = vld [vmem:[%s178 + $0x3e8] sm:$0xf]
      %v509 = vld [vmem:[%s178 + $0x3ec] sm:$0xf]
      %v510 = vld [vmem:[%s178 + $0x3f0] sm:$0xf]
      %v511 = vld [vmem:[%s178 + $0x3f4] sm:$0xf]
      %v512 = vld [vmem:[%s178 + $0x3f8] sm:$0xf]
      %v513 = vld [vmem:[%s178 + $0x3fc] sm:$0xf]
      %v514 = vld [vmem:[%s178 + $0x400] sm:$0xf]
      %v515 = vld [vmem:[%s178 + $0x404] sm:$0xf]
      %v516 = vld [vmem:[%s178 + $0x408] sm:$0xf]
      %v517 = vld [vmem:[%s178 + $0x40c] sm:$0xf]
      %v518 = vld [vmem:[%s178 + $0x410] sm:$0xf]
      %v519 = vld [vmem:[%s178 + $0x414] sm:$0xf]
      %v520 = vld [vmem:[%s178 + $0x418] sm:$0xf]
      %v521 = vld [vmem:[%s178 + $0x41c] sm:$0xf]
      %v522 = vld [vmem:[%s178 + $0x420] sm:$0xf]
      %v523 = vld [vmem:[%s178 + $0x424] sm:$0xf]
      %v524 = vld [vmem:[%s178 + $0x428] sm:$0xf]
      %v525 = vld [vmem:[%s178 + $0x42c] sm:$0xf]
      %v526 = vld [vmem:[%s178 + $0x430] sm:$0xf]
      %v527 = vld [vmem:[%s178 + $0x434] sm:$0xf]
      %v528 = vld [vmem:[%s178 + $0x438] sm:$0xf]
      %v529 = vld [vmem:[%s178 + $0x43c] sm:$0xf]
      %v530 = vld [vmem:[%s178 + $0x440] sm:$0xf]
      %v531 = vld [vmem:[%s178 + $0x444] sm:$0xf]
      %v532 = vld [vmem:[%s178 + $0x448] sm:$0xf]
      %v533 = vld [vmem:[%s178 + $0x44c] sm:$0xf]
      %v534 = vld [vmem:[%s178 + $0x450] sm:$0xf]
      %v535 = vld [vmem:[%s178 + $0x454] sm:$0xf]
      %v536 = vld [vmem:[%s178 + $0x458] sm:$0xf]
      %v537 = vld [vmem:[%s178 + $0x45c] sm:$0xf]
      %v538 = vld [vmem:[%s178 + $0x460] sm:$0xf]
      %v539 = vld [vmem:[%s178 + $0x464] sm:$0xf]
      %v540 = vld [vmem:[%s178 + $0x468] sm:$0xf]
      %v541 = vld [vmem:[%s178 + $0x46c] sm:$0xf]
      %v542 = vld [vmem:[%s178 + $0x470] sm:$0xf]
      %v543 = vld [vmem:[%s178 + $0x474] sm:$0xf]
      %v544 = vld [vmem:[%s178 + $0x478] sm:$0xf]
      %v545 = vld [vmem:[%s178 + $0x47c] sm:$0xf]
      %v546 = vld [vmem:[%s178 + $0x480] sm:$0xf]
      %v547 = vld [vmem:[%s178 + $0x484] sm:$0xf]
      %v548 = vld [vmem:[%s178 + $0x488] sm:$0xf]
      %v549 = vld [vmem:[%s178 + $0x48c] sm:$0xf]
      %v550 = vld [vmem:[%s178 + $0x490] sm:$0xf]
      %v551 = vld [vmem:[%s178 + $0x494] sm:$0xf]
      %v552 = vld [vmem:[%s178 + $0x498] sm:$0xf]
      %v553 = vld [vmem:[%s178 + $0x49c] sm:$0xf]
      %v554 = vld [vmem:[%s178 + $0x4a0] sm:$0xf]
      %v555 = vld [vmem:[%s178 + $0x4a4] sm:$0xf]
      %v556 = vld [vmem:[%s178 + $0x4a8] sm:$0xf]
      %v557 = vld [vmem:[%s178 + $0x4ac] sm:$0xf]
      %v558 = vld [vmem:[%s178 + $0x4b0] sm:$0xf]
      %v559 = vld [vmem:[%s178 + $0x4b4] sm:$0xf]
      %v560 = vld [vmem:[%s178 + $0x4b8] sm:$0xf]
      %v561 = vld [vmem:[%s178 + $0x4bc] sm:$0xf]
      %v562 = vld [vmem:[%s178 + $0x4c0] sm:$0xf]
      %v563 = vld [vmem:[%s178 + $0x4c4] sm:$0xf]
      %v564 = vld [vmem:[%s178 + $0x4c8] sm:$0xf]
      %v565 = vld [vmem:[%s178 + $0x4cc] sm:$0xf]
      %v566 = vld [vmem:[%s178 + $0x4d0] sm:$0xf]
      %v567 = vld [vmem:[%s178 + $0x4d4] sm:$0xf]
      %v568 = vld [vmem:[%s178 + $0x4d8] sm:$0xf]
      %v569 = vld [vmem:[%s178 + $0x4dc] sm:$0xf]
      %v570 = vld [vmem:[%s178 + $0x4e0] sm:$0xf]
      %v571 = vld [vmem:[%s178 + $0x4e4] sm:$0xf]
      %v572 = vld [vmem:[%s178 + $0x4e8] sm:$0xf]
      %v573 = vld [vmem:[%s178 + $0x4ec] sm:$0xf]
      %v574 = vld [vmem:[%s178 + $0x4f0] sm:$0xf]
      %v575 = vld [vmem:[%s178 + $0x4f4] sm:$0xf]
      %v576 = vld [vmem:[%s178 + $0x4f8] sm:$0xf]
      %v577 = vld [vmem:[%s178 + $0x4fc] sm:$0xf]
      %v578 = vld [vmem:[%s178 + $0x500] sm:$0xf]
      %v579 = vld [vmem:[%s178 + $0x504] sm:$0xf]
      %v580 = vld [vmem:[%s178 + $0x508] sm:$0xf]
      %v581 = vld [vmem:[%s178 + $0x50c] sm:$0xf]
      %v582 = vld [vmem:[%s178 + $0x510] sm:$0xf]
      %v583 = vld [vmem:[%s178 + $0x514] sm:$0xf]
      %v584 = vld [vmem:[%s178 + $0x518] sm:$0xf]
      %v585 = vld [vmem:[%s178 + $0x51c] sm:$0xf]
      %v586 = vld [vmem:[%s178 + $0x520] sm:$0xf]
      %v587 = vld [vmem:[%s178 + $0x524] sm:$0xf]
      %v588 = vld [vmem:[%s178 + $0x528] sm:$0xf]
      %v589 = vld [vmem:[%s178 + $0x52c] sm:$0xf]
      %v590 = vld [vmem:[%s178 + $0x530] sm:$0xf]
      %v591 = vld [vmem:[%s178 + $0x534] sm:$0xf]
      %v592 = vld [vmem:[%s178 + $0x538] sm:$0xf]
      %v593 = vld [vmem:[%s178 + $0x53c] sm:$0xf]
      %v594 = vld [vmem:[%s178 + $0x540] sm:$0xf]
      %v595 = vld [vmem:[%s178 + $0x544] sm:$0xf]
      %v596 = vld [vmem:[%s178 + $0x548] sm:$0xf]
      %v597 = vld [vmem:[%s178 + $0x54c] sm:$0xf]
      %v598 = vld [vmem:[%s178 + $0x550] sm:$0xf]
      %v599 = vld [vmem:[%s178 + $0x554] sm:$0xf]
      %v600 = vld [vmem:[%s178 + $0x558] sm:$0xf]
      %v601 = vld [vmem:[%s178 + $0x55c] sm:$0xf]
      %v602 = vld [vmem:[%s178 + $0x560] sm:$0xf]
      %v603 = vld [vmem:[%s178 + $0x564] sm:$0xf]
      %v604 = vld [vmem:[%s178 + $0x568] sm:$0xf]
      %v605 = vld [vmem:[%s178 + $0x56c] sm:$0xf]
      %v606 = vld [vmem:[%s178 + $0x570] sm:$0xf]
      %v607 = vld [vmem:[%s178 + $0x574] sm:$0xf]
      %v608 = vld [vmem:[%s178 + $0x578] sm:$0xf]
      %v609 = vld [vmem:[%s178 + $0x57c] sm:$0xf]
      %v610 = vld [vmem:[%s178 + $0x580] sm:$0xf]
      %v611 = vld [vmem:[%s178 + $0x584] sm:$0xf]
      %v612 = vld [vmem:[%s178 + $0x588] sm:$0xf]
      %v613 = vld [vmem:[%s178 + $0x58c] sm:$0xf]
      %v614 = vld [vmem:[%s178 + $0x590] sm:$0xf]
      %v615 = vld [vmem:[%s178 + $0x594] sm:$0xf]
      %v616 = vld [vmem:[%s178 + $0x598] sm:$0xf]
      %v617 = vld [vmem:[%s178 + $0x59c] sm:$0xf]
      %v618 = vld [vmem:[%s178 + $0x5a0] sm:$0xf]
      %v619 = vld [vmem:[%s178 + $0x5a4] sm:$0xf]
      %v620 = vld [vmem:[%s178 + $0x5a8] sm:$0xf]
      %v621 = vld [vmem:[%s178 + $0x5ac] sm:$0xf]
      %v622 = vld [vmem:[%s178 + $0x5b0] sm:$0xf]
      %v623 = vld [vmem:[%s178 + $0x5b4] sm:$0xf]
      %v624 = vld [vmem:[%s178 + $0x5b8] sm:$0xf]
      %v625 = vld [vmem:[%s178 + $0x5bc] sm:$0xf]
      %v626 = vld [vmem:[%s178 + $0x5c0] sm:$0xf]
      %v627 = vld [vmem:[%s178 + $0x5c4] sm:$0xf]
      %v628 = vld [vmem:[%s178 + $0x5c8] sm:$0xf]
      %v629 = vld [vmem:[%s178 + $0x5cc] sm:$0xf]
      %v630 = vld [vmem:[%s178 + $0x5d0] sm:$0xf]
      %v631 = vld [vmem:[%s178 + $0x5d4] sm:$0xf]
      %v632 = vld [vmem:[%s178 + $0x5d8] sm:$0xf]
      %v633 = vld [vmem:[%s178 + $0x5dc] sm:$0xf]
      %v634 = vld [vmem:[%s178 + $0x5e0] sm:$0xf]
      %v635 = vld [vmem:[%s178 + $0x5e4] sm:$0xf]
      %v636 = vld [vmem:[%s178 + $0x5e8] sm:$0xf]
      %v637 = vld [vmem:[%s178 + $0x5ec] sm:$0xf]
      %v638 = vld [vmem:[%s178 + $0x5f0] sm:$0xf]
      %v639 = vld [vmem:[%s178 + $0x5f4] sm:$0xf]
      %v640 = vld [vmem:[%s178 + $0x5f8] sm:$0xf]
      %v641 = vld [vmem:[%s178 + $0x5fc] sm:$0xf]
      %v642 = vld [vmem:[%s178 + $0x600] sm:$0xf]
      %v643 = vld [vmem:[%s178 + $0x604] sm:$0xf]
      %v644 = vld [vmem:[%s178 + $0x608] sm:$0xf]
      %v645 = vld [vmem:[%s178 + $0x60c] sm:$0xf]
      %v646 = vld [vmem:[%s178 + $0x610] sm:$0xf]
      %v647 = vld [vmem:[%s178 + $0x614] sm:$0xf]
      %v648 = vld [vmem:[%s178 + $0x618] sm:$0xf]
      %v649 = vld [vmem:[%s178 + $0x61c] sm:$0xf]
      %v650 = vld [vmem:[%s178 + $0x620] sm:$0xf]
      %v651 = vld [vmem:[%s178 + $0x624] sm:$0xf]
      %v652 = vld [vmem:[%s178 + $0x628] sm:$0xf]
      %v653 = vld [vmem:[%s178 + $0x62c] sm:$0xf]
      %v654 = vld [vmem:[%s178 + $0x630] sm:$0xf]
      %v655 = vld [vmem:[%s178 + $0x634] sm:$0xf]
      %v656 = vld [vmem:[%s178 + $0x638] sm:$0xf]
      %v657 = vld [vmem:[%s178 + $0x63c] sm:$0xf]
      %v658 = vld [vmem:[%s178 + $0x640] sm:$0xf]
      %v659 = vld [vmem:[%s178 + $0x644] sm:$0xf]
      %v660 = vld [vmem:[%s178 + $0x648] sm:$0xf]
      %v661 = vld [vmem:[%s178 + $0x64c] sm:$0xf]
      %v662 = vld [vmem:[%s178 + $0x650] sm:$0xf]
      %v663 = vld [vmem:[%s178 + $0x654] sm:$0xf]
      %v664 = vld [vmem:[%s178 + $0x658] sm:$0xf]
      %v665 = vld [vmem:[%s178 + $0x65c] sm:$0xf]
      %v666 = vld [vmem:[%s178 + $0x660] sm:$0xf]
      %v667 = vld [vmem:[%s178 + $0x664] sm:$0xf]
      %v668 = vld [vmem:[%s178 + $0x668] sm:$0xf]
      %v669 = vld [vmem:[%s178 + $0x66c] sm:$0xf]
      %v670 = vld [vmem:[%s178 + $0x670] sm:$0xf]
      %v671 = vld [vmem:[%s178 + $0x674] sm:$0xf]
      %v672 = vld [vmem:[%s178 + $0x678] sm:$0xf]
      %v673 = vld [vmem:[%s178 + $0x67c] sm:$0xf]
      %v674 = vld [vmem:[%s178 + $0x680] sm:$0xf]
      %v675 = vld [vmem:[%s178 + $0x684] sm:$0xf]
      %v676 = vld [vmem:[%s178 + $0x688] sm:$0xf]
      %v677 = vld [vmem:[%s178 + $0x68c] sm:$0xf]
      %v678 = vld [vmem:[%s178 + $0x690] sm:$0xf]
      %v679 = vld [vmem:[%s178 + $0x694] sm:$0xf]
      %v680 = vld [vmem:[%s178 + $0x698] sm:$0xf]
      %v681 = vld [vmem:[%s178 + $0x69c] sm:$0xf]
      %v682 = vld [vmem:[%s178 + $0x6a0] sm:$0xf]
      %v683 = vld [vmem:[%s178 + $0x6a4] sm:$0xf]
      %v684 = vld [vmem:[%s178 + $0x6a8] sm:$0xf]
      %v685 = vld [vmem:[%s178 + $0x6ac] sm:$0xf]
      %v686 = vld [vmem:[%s178 + $0x6b0] sm:$0xf]
      %v687 = vld [vmem:[%s178 + $0x6b4] sm:$0xf]
      %v688 = vld [vmem:[%s178 + $0x6b8] sm:$0xf]
      %v689 = vld [vmem:[%s178 + $0x6bc] sm:$0xf]
      %v690 = vld [vmem:[%s178 + $0x6c0] sm:$0xf]
      %v691 = vld [vmem:[%s178 + $0x6c4] sm:$0xf]
      %v692 = vld [vmem:[%s178 + $0x6c8] sm:$0xf]
      %v693 = vld [vmem:[%s178 + $0x6cc] sm:$0xf]
      %v694 = vld [vmem:[%s178 + $0x6d0] sm:$0xf]
      %v695 = vld [vmem:[%s178 + $0x6d4] sm:$0xf]
      %v696 = vld [vmem:[%s178 + $0x6d8] sm:$0xf]
      %v697 = vld [vmem:[%s178 + $0x6dc] sm:$0xf]
      %v698 = vld [vmem:[%s178 + $0x6e0] sm:$0xf]
      %v699 = vld [vmem:[%s178 + $0x6e4] sm:$0xf]
      %v700 = vld [vmem:[%s178 + $0x6e8] sm:$0xf]
      %v701 = vld [vmem:[%s178 + $0x6ec] sm:$0xf]
      %v702 = vld [vmem:[%s178 + $0x6f0] sm:$0xf]
      %v703 = vld [vmem:[%s178 + $0x6f4] sm:$0xf]
      %v704 = vld [vmem:[%s178 + $0x6f8] sm:$0xf]
      %v705 = vld [vmem:[%s178 + $0x6fc] sm:$0xf]
      %v706 = vld [vmem:[%s178 + $0x700] sm:$0xf]
      %v707 = vld [vmem:[%s178 + $0x704] sm:$0xf]
      %v708 = vld [vmem:[%s178 + $0x708] sm:$0xf]
      %v709 = vld [vmem:[%s178 + $0x70c] sm:$0xf]
      %v710 = vld [vmem:[%s178 + $0x710] sm:$0xf]
      %v711 = vld [vmem:[%s178 + $0x714] sm:$0xf]
      %v712 = vld [vmem:[%s178 + $0x718] sm:$0xf]
      %v713 = vld [vmem:[%s178 + $0x71c] sm:$0xf]
      %v714 = vld [vmem:[%s178 + $0x720] sm:$0xf]
      %v715 = vld [vmem:[%s178 + $0x724] sm:$0xf]
      %v716 = vld [vmem:[%s178 + $0x728] sm:$0xf]
      %v717 = vld [vmem:[%s178 + $0x72c] sm:$0xf]
      %v718 = vld [vmem:[%s178 + $0x730] sm:$0xf]
      %v719 = vld [vmem:[%s178 + $0x734] sm:$0xf]
      %v720 = vld [vmem:[%s178 + $0x738] sm:$0xf]
      %v721 = vld [vmem:[%s178 + $0x73c] sm:$0xf]
      %v722 = vld [vmem:[%s178 + $0x740] sm:$0xf]
      %v723 = vld [vmem:[%s178 + $0x744] sm:$0xf]
      %v724 = vld [vmem:[%s178 + $0x748] sm:$0xf]
      %v725 = vld [vmem:[%s178 + $0x74c] sm:$0xf]
      %v726 = vld [vmem:[%s178 + $0x750] sm:$0xf]
      %v727 = vld [vmem:[%s178 + $0x754] sm:$0xf]
      %v728 = vld [vmem:[%s178 + $0x758] sm:$0xf]
      %v729 = vld [vmem:[%s178 + $0x75c] sm:$0xf]
      %v730 = vld [vmem:[%s178 + $0x760] sm:$0xf]
      %v731 = vld [vmem:[%s178 + $0x764] sm:$0xf]
      %v732 = vld [vmem:[%s178 + $0x768] sm:$0xf]
      %v733 = vld [vmem:[%s178 + $0x76c] sm:$0xf]
      %v734 = vld [vmem:[%s178 + $0x770] sm:$0xf]
      %v735 = vld [vmem:[%s178 + $0x774] sm:$0xf]
      %v736 = vld [vmem:[%s178 + $0x778] sm:$0xf]
      %v737 = vld [vmem:[%s178 + $0x77c] sm:$0xf]
      %v738 = vld [vmem:[%s178 + $0x780] sm:$0xf]
      %v739 = vld [vmem:[%s178 + $0x784] sm:$0xf]
      %v740 = vld [vmem:[%s178 + $0x788] sm:$0xf]
      %v741 = vld [vmem:[%s178 + $0x78c] sm:$0xf]
      %v742 = vld [vmem:[%s178 + $0x790] sm:$0xf]
      %v743 = vld [vmem:[%s178 + $0x794] sm:$0xf]
      %v744 = vld [vmem:[%s178 + $0x798] sm:$0xf]
      %v745 = vld [vmem:[%s178 + $0x79c] sm:$0xf]
      %v746 = vld [vmem:[%s178 + $0x7a0] sm:$0xf]
      %v747 = vld [vmem:[%s178 + $0x7a4] sm:$0xf]
      %v748 = vld [vmem:[%s178 + $0x7a8] sm:$0xf]
      %v749 = vld [vmem:[%s178 + $0x7ac] sm:$0xf]
      %v750 = vld [vmem:[%s178 + $0x7b0] sm:$0xf]
      %v751 = vld [vmem:[%s178 + $0x7b4] sm:$0xf]
      %v752 = vld [vmem:[%s178 + $0x7b8] sm:$0xf]
      %v753 = vld [vmem:[%s178 + $0x7bc] sm:$0xf]
      %v754 = vld [vmem:[%s178 + $0x7c0] sm:$0xf]
      %v755 = vld [vmem:[%s178 + $0x7c4] sm:$0xf]
      %v756 = vld [vmem:[%s178 + $0x7c8] sm:$0xf]
      %v757 = vld [vmem:[%s178 + $0x7cc] sm:$0xf]
      %v758 = vld [vmem:[%s178 + $0x7d0] sm:$0xf]
      %v759 = vld [vmem:[%s178 + $0x7d4] sm:$0xf]
      %v760 = vld [vmem:[%s178 + $0x7d8] sm:$0xf]
      %v761 = vld [vmem:[%s178 + $0x7dc] sm:$0xf]
      %v762 = vld [vmem:[%s178 + $0x7e0] sm:$0xf]
      %v763 = vld [vmem:[%s178 + $0x7e4] sm:$0xf]
      %v764 = vld [vmem:[%s178 + $0x7e8] sm:$0xf]
      %v765 = vld [vmem:[%s178 + $0x7ec] sm:$0xf]
      %v766 = vld [vmem:[%s178 + $0x7f0] sm:$0xf]
      %v767 = vld [vmem:[%s178 + $0x7f4] sm:$0xf]
      %v768 = vld [vmem:[%s178 + $0x7f8] sm:$0xf]
      %v769 = vld [vmem:[%s178 + $0x7fc] sm:$0xf]
      %v770 = vld [vmem:[%s178 + $0x800] sm:$0xf]
      %v771 = vld [vmem:[%s178 + $0x804] sm:$0xf]
      %v772 = vld [vmem:[%s178 + $0x808] sm:$0xf]
      %v773 = vld [vmem:[%s178 + $0x80c] sm:$0xf]
      %v774 = vld [vmem:[%s178 + $0x810] sm:$0xf]
      %v775 = vld [vmem:[%s178 + $0x814] sm:$0xf]
      %v776 = vld [vmem:[%s178 + $0x818] sm:$0xf]
      %v777 = vld [vmem:[%s178 + $0x81c] sm:$0xf]
      %v778 = vld [vmem:[%s178 + $0x820] sm:$0xf]
      %v779 = vld [vmem:[%s178 + $0x824] sm:$0xf]
      %v780 = vld [vmem:[%s178 + $0x828] sm:$0xf]
      %v781 = vld [vmem:[%s178 + $0x82c] sm:$0xf]
      %v782 = vld [vmem:[%s178 + $0x830] sm:$0xf]
      %v783 = vld [vmem:[%s178 + $0x834] sm:$0xf]
      %v784 = vld [vmem:[%s178 + $0x838] sm:$0xf]
      %v785 = vld [vmem:[%s178 + $0x83c] sm:$0xf]
      %v786 = vld [vmem:[%s178 + $0x840] sm:$0xf]
      %v787 = vld [vmem:[%s178 + $0x844] sm:$0xf]
      %v788 = vld [vmem:[%s178 + $0x848] sm:$0xf]
      %v789 = vld [vmem:[%s178 + $0x84c] sm:$0xf]
      %v790 = vld [vmem:[%s178 + $0x850] sm:$0xf]
      %v791 = vld [vmem:[%s178 + $0x854] sm:$0xf]
      %v792 = vld [vmem:[%s178 + $0x858] sm:$0xf]
      %v793 = vld [vmem:[%s178 + $0x85c] sm:$0xf]
      %v794 = vld [vmem:[%s178 + $0x860] sm:$0xf]
      %v795 = vld [vmem:[%s178 + $0x864] sm:$0xf]
      %v796 = vld [vmem:[%s178 + $0x868] sm:$0xf]
      %v797 = vld [vmem:[%s178 + $0x86c] sm:$0xf]
      %v798 = vld [vmem:[%s178 + $0x870] sm:$0xf]
      %v799 = vld [vmem:[%s178 + $0x874] sm:$0xf]
      %v800 = vld [vmem:[%s178 + $0x878] sm:$0xf]
      %v801 = vld [vmem:[%s178 + $0x87c] sm:$0xf]
      %v802 = vld [vmem:[%s178 + $0x880] sm:$0xf]
      %v803 = vld [vmem:[%s178 + $0x884] sm:$0xf]
      %v804 = vld [vmem:[%s178 + $0x888] sm:$0xf]
      %v805 = vld [vmem:[%s178 + $0x88c] sm:$0xf]
      %v806 = vld [vmem:[%s178 + $0x890] sm:$0xf]
      %v807 = vld [vmem:[%s178 + $0x894] sm:$0xf]
      %v808 = vld [vmem:[%s178 + $0x898] sm:$0xf]
      %v809 = vld [vmem:[%s178 + $0x89c] sm:$0xf]
      %v810 = vld [vmem:[%s178 + $0x8a0] sm:$0xf]
      %v811 = vld [vmem:[%s178 + $0x8a4] sm:$0xf]
      %v812 = vld [vmem:[%s178 + $0x8a8] sm:$0xf]
      %v813 = vld [vmem:[%s178 + $0x8ac] sm:$0xf]
      %v814 = vld [vmem:[%s178 + $0x8b0] sm:$0xf]
      %v815 = vld [vmem:[%s178 + $0x8b4] sm:$0xf]
      %v816 = vld [vmem:[%s178 + $0x8b8] sm:$0xf]
      %v817 = vld [vmem:[%s178 + $0x8bc] sm:$0xf]
      %v818 = vld [vmem:[%s178 + $0x8c0] sm:$0xf]
      %v819 = vld [vmem:[%s178 + $0x8c4] sm:$0xf]
      %v820 = vld [vmem:[%s178 + $0x8c8] sm:$0xf]
      %v821 = vld [vmem:[%s178 + $0x8cc] sm:$0xf]
      %v822 = vld [vmem:[%s178 + $0x8d0] sm:$0xf]
      %v823 = vld [vmem:[%s178 + $0x8d4] sm:$0xf]
      %v824 = vld [vmem:[%s178 + $0x8d8] sm:$0xf]
      %v825 = vld [vmem:[%s178 + $0x8dc] sm:$0xf]
      %v826 = vld [vmem:[%s178 + $0x8e0] sm:$0xf]
      %v827 = vld [vmem:[%s178 + $0x8e4] sm:$0xf]
      %v828 = vld [vmem:[%s178 + $0x8e8] sm:$0xf]
      %v829 = vld [vmem:[%s178 + $0x8ec] sm:$0xf]
      %v830 = vld [vmem:[%s178 + $0x8f0] sm:$0xf]
      %v831 = vld [vmem:[%s178 + $0x8f4] sm:$0xf]
      %v832 = vld [vmem:[%s178 + $0x8f8] sm:$0xf]
      %v833 = vld [vmem:[%s178 + $0x8fc] sm:$0xf]
      %v1410 = vunpack.c.l.b16 %v258
      %v1411 = vunpack.c.l.b16 %v259
      %v1412 = vunpack.c.l.b16 %v260
      %v1413 = vunpack.c.l.b16 %v261
      %v1414 = vunpack.c.l.b16 %v262
      %v1415 = vunpack.c.l.b16 %v263
      %v1416 = vunpack.c.l.b16 %v264
      %v1417 = vunpack.c.l.b16 %v265
      %v1418 = vunpack.c.l.b16 %v266
      %v1419 = vunpack.c.l.b16 %v267
      %v1420 = vunpack.c.l.b16 %v268
      %v1421 = vunpack.c.l.b16 %v269
      %v1422 = vunpack.c.l.b16 %v270
      %v1423 = vunpack.c.l.b16 %v271
      %v1424 = vunpack.c.l.b16 %v272
      %v1425 = vunpack.c.l.b16 %v273
      %v1426 = vunpack.c.l.b16 %v274
      %v1427 = vunpack.c.l.b16 %v275
      %v1428 = vunpack.c.l.b16 %v276
      %v1429 = vunpack.c.l.b16 %v277
      %v1430 = vunpack.c.l.b16 %v278
      %v1431 = vunpack.c.l.b16 %v279
      %v1432 = vunpack.c.l.b16 %v280
      %v1433 = vunpack.c.l.b16 %v281
      %v1434 = vunpack.c.l.b16 %v282
      %v1435 = vunpack.c.l.b16 %v283
      %v1436 = vunpack.c.l.b16 %v284
      %v1437 = vunpack.c.l.b16 %v285
      %v1438 = vunpack.c.l.b16 %v286
      %v1439 = vunpack.c.l.b16 %v287
      %v1440 = vunpack.c.l.b16 %v288
      %v1441 = vunpack.c.l.b16 %v289
      %v1442 = vunpack.c.l.b16 %v290
      %v1443 = vunpack.c.l.b16 %v291
      %v1444 = vunpack.c.l.b16 %v292
      %v1445 = vunpack.c.l.b16 %v293
      %v1446 = vunpack.c.l.b16 %v294
      %v1447 = vunpack.c.l.b16 %v295
      %v1448 = vunpack.c.l.b16 %v296
      %v1449 = vunpack.c.l.b16 %v297
      %v1450 = vunpack.c.l.b16 %v298
      %v1451 = vunpack.c.l.b16 %v299
      %v1452 = vunpack.c.l.b16 %v300
      %v1453 = vunpack.c.l.b16 %v301
      %v1454 = vunpack.c.l.b16 %v302
      %v1455 = vunpack.c.l.b16 %v303
      %v1456 = vunpack.c.l.b16 %v304
      %v1457 = vunpack.c.l.b16 %v305
      %v1458 = vunpack.c.l.b16 %v306
      %v1459 = vunpack.c.l.b16 %v307
      %v1460 = vunpack.c.l.b16 %v308
      %v1461 = vunpack.c.l.b16 %v309
      %v1462 = vunpack.c.l.b16 %v310
      %v1463 = vunpack.c.l.b16 %v311
      %v1464 = vunpack.c.l.b16 %v312
      %v1465 = vunpack.c.l.b16 %v313
      %v1466 = vunpack.c.l.b16 %v314
      %v1467 = vunpack.c.l.b16 %v315
      %v1468 = vunpack.c.l.b16 %v316
      %v1469 = vunpack.c.l.b16 %v317
      %v1470 = vunpack.c.l.b16 %v318
      %v1471 = vunpack.c.l.b16 %v319
      %v1472 = vunpack.c.l.b16 %v320
      %v1473 = vunpack.c.l.b16 %v321
      %v1474 = vunpack.c.l.b16 %v322
      %v1475 = vunpack.c.l.b16 %v323
      %v1476 = vunpack.c.l.b16 %v324
      %v1477 = vunpack.c.l.b16 %v325
      %v1478 = vunpack.c.l.b16 %v326
      %v1479 = vunpack.c.l.b16 %v327
      %v1480 = vunpack.c.l.b16 %v328
      %v1481 = vunpack.c.l.b16 %v329
      %v1482 = vunpack.c.l.b16 %v330
      %v1483 = vunpack.c.l.b16 %v331
      %v1484 = vunpack.c.l.b16 %v332
      %v1485 = vunpack.c.l.b16 %v333
      %v1486 = vunpack.c.l.b16 %v334
      %v1487 = vunpack.c.l.b16 %v335
      %v1488 = vunpack.c.l.b16 %v336
      %v1489 = vunpack.c.l.b16 %v337
      %v1490 = vunpack.c.l.b16 %v338
      %v1491 = vunpack.c.l.b16 %v339
      %v1492 = vunpack.c.l.b16 %v340
      %v1493 = vunpack.c.l.b16 %v341
      %v1494 = vunpack.c.l.b16 %v342
      %v1495 = vunpack.c.l.b16 %v343
      %v1496 = vunpack.c.l.b16 %v344
      %v1497 = vunpack.c.l.b16 %v345
      %v1498 = vunpack.c.l.b16 %v346
      %v1499 = vunpack.c.l.b16 %v347
      %v1500 = vunpack.c.l.b16 %v348
      %v1501 = vunpack.c.l.b16 %v349
      %v1502 = vunpack.c.l.b16 %v350
      %v1503 = vunpack.c.l.b16 %v351
      %v1504 = vunpack.c.l.b16 %v352
      %v1505 = vunpack.c.l.b16 %v353
      %v1506 = vunpack.c.l.b16 %v354
      %v1507 = vunpack.c.l.b16 %v355
      %v1508 = vunpack.c.l.b16 %v356
      %v1509 = vunpack.c.l.b16 %v357
      %v1510 = vunpack.c.l.b16 %v358
      %v1511 = vunpack.c.l.b16 %v359
      %v1512 = vunpack.c.l.b16 %v360
      %v1513 = vunpack.c.l.b16 %v361
      %v1514 = vunpack.c.l.b16 %v362
      %v1515 = vunpack.c.l.b16 %v363
      %v1516 = vunpack.c.l.b16 %v364
      %v1517 = vunpack.c.l.b16 %v365
      %v1518 = vunpack.c.l.b16 %v366
      %v1519 = vunpack.c.l.b16 %v367
      %v1520 = vunpack.c.l.b16 %v368
      %v1521 = vunpack.c.l.b16 %v369
      %v1522 = vunpack.c.l.b16 %v370
      %v1523 = vunpack.c.l.b16 %v371
      %v1524 = vunpack.c.l.b16 %v372
      %v1525 = vunpack.c.l.b16 %v373
      %v1526 = vunpack.c.l.b16 %v374
      %v1527 = vunpack.c.l.b16 %v375
      %v1528 = vunpack.c.l.b16 %v376
      %v1529 = vunpack.c.l.b16 %v377
      %v1530 = vunpack.c.l.b16 %v378
      %v1531 = vunpack.c.l.b16 %v379
      %v1532 = vunpack.c.l.b16 %v380
      %v1533 = vunpack.c.l.b16 %v381
      %v1534 = vunpack.c.l.b16 %v382
      %v1535 = vunpack.c.l.b16 %v383
      %v1536 = vunpack.c.l.b16 %v384
      %v1537 = vunpack.c.l.b16 %v385
      %v1538 = vunpack.c.l.b16 %v386
      %v1539 = vunpack.c.l.b16 %v387
      %v1540 = vunpack.c.l.b16 %v388
      %v1541 = vunpack.c.l.b16 %v389
      %v1542 = vunpack.c.l.b16 %v390
      %v1543 = vunpack.c.l.b16 %v391
      %v1544 = vunpack.c.l.b16 %v392
      %v1545 = vunpack.c.l.b16 %v393
      %v1546 = vunpack.c.l.b16 %v394
      %v1547 = vunpack.c.l.b16 %v395
      %v1548 = vunpack.c.l.b16 %v396
      %v1549 = vunpack.c.l.b16 %v397
      %v1550 = vunpack.c.l.b16 %v398
      %v1551 = vunpack.c.l.b16 %v399
      %v1552 = vunpack.c.l.b16 %v400
      %v1553 = vunpack.c.l.b16 %v401
      %v1554 = vunpack.c.l.b16 %v402
      %v1555 = vunpack.c.l.b16 %v403
      %v1556 = vunpack.c.l.b16 %v404
      %v1557 = vunpack.c.l.b16 %v405
      %v1558 = vunpack.c.l.b16 %v406
      %v1559 = vunpack.c.l.b16 %v407
      %v1560 = vunpack.c.l.b16 %v408
      %v1561 = vunpack.c.l.b16 %v409
      %v1562 = vunpack.c.l.b16 %v410
      %v1563 = vunpack.c.l.b16 %v411
      %v1564 = vunpack.c.l.b16 %v412
      %v1565 = vunpack.c.l.b16 %v413
      %v1566 = vunpack.c.l.b16 %v414
      %v1567 = vunpack.c.l.b16 %v415
      %v1568 = vunpack.c.l.b16 %v416
      %v1569 = vunpack.c.l.b16 %v417
      %v1570 = vunpack.c.l.b16 %v418
      %v1571 = vunpack.c.l.b16 %v419
      %v1572 = vunpack.c.l.b16 %v420
      %v1573 = vunpack.c.l.b16 %v421
      %v1574 = vunpack.c.l.b16 %v422
      %v1575 = vunpack.c.l.b16 %v423
      %v1576 = vunpack.c.l.b16 %v424
      %v1577 = vunpack.c.l.b16 %v425
      %v1578 = vunpack.c.l.b16 %v426
      %v1579 = vunpack.c.l.b16 %v427
      %v1580 = vunpack.c.l.b16 %v428
      %v1581 = vunpack.c.l.b16 %v429
      %v1582 = vunpack.c.l.b16 %v430
      %v1583 = vunpack.c.l.b16 %v431
      %v1584 = vunpack.c.l.b16 %v432
      %v1585 = vunpack.c.l.b16 %v433
      %v1586 = vunpack.c.l.b16 %v434
      %v1587 = vunpack.c.l.b16 %v435
      %v1588 = vunpack.c.l.b16 %v436
      %v1589 = vunpack.c.l.b16 %v437
      %v1590 = vunpack.c.l.b16 %v438
      %v1591 = vunpack.c.l.b16 %v439
      %v1592 = vunpack.c.l.b16 %v440
      %v1593 = vunpack.c.l.b16 %v441
      %v1594 = vunpack.c.l.b16 %v442
      %v1595 = vunpack.c.l.b16 %v443
      %v1596 = vunpack.c.l.b16 %v444
      %v1597 = vunpack.c.l.b16 %v445
      %v1598 = vunpack.c.l.b16 %v446
      %v1599 = vunpack.c.l.b16 %v447
      %v1600 = vunpack.c.l.b16 %v448
      %v1601 = vunpack.c.l.b16 %v449
      %v1602 = vunpack.c.l.b16 %v450
      %v1603 = vunpack.c.l.b16 %v451
      %v1604 = vunpack.c.l.b16 %v452
      %v1605 = vunpack.c.l.b16 %v453
      %v1606 = vunpack.c.l.b16 %v454
      %v1607 = vunpack.c.l.b16 %v455
      %v1608 = vunpack.c.l.b16 %v456
      %v1609 = vunpack.c.l.b16 %v457
      %v1610 = vunpack.c.l.b16 %v458
      %v1611 = vunpack.c.l.b16 %v459
      %v1612 = vunpack.c.l.b16 %v460
      %v1613 = vunpack.c.l.b16 %v461
      %v1614 = vunpack.c.l.b16 %v462
      %v1615 = vunpack.c.l.b16 %v463
      %v1616 = vunpack.c.l.b16 %v464
      %v1617 = vunpack.c.l.b16 %v465
      %v1618 = vunpack.c.l.b16 %v466
      %v1619 = vunpack.c.l.b16 %v467
      %v1620 = vunpack.c.l.b16 %v468
      %v1621 = vunpack.c.l.b16 %v469
      %v1622 = vunpack.c.l.b16 %v470
      %v1623 = vunpack.c.l.b16 %v471
      %v1624 = vunpack.c.l.b16 %v472
      %v1625 = vunpack.c.l.b16 %v473
      %v1626 = vunpack.c.l.b16 %v474
      %v1627 = vunpack.c.l.b16 %v475
      %v1628 = vunpack.c.l.b16 %v476
      %v1629 = vunpack.c.l.b16 %v477
      %v1630 = vunpack.c.l.b16 %v478
      %v1631 = vunpack.c.l.b16 %v479
      %v1632 = vunpack.c.l.b16 %v480
      %v1633 = vunpack.c.l.b16 %v481
      %v1634 = vunpack.c.l.b16 %v482
      %v1635 = vunpack.c.l.b16 %v483
      %v1636 = vunpack.c.l.b16 %v484
      %v1637 = vunpack.c.l.b16 %v485
      %v1638 = vunpack.c.l.b16 %v486
      %v1639 = vunpack.c.l.b16 %v487
      %v1640 = vunpack.c.l.b16 %v488
      %v1641 = vunpack.c.l.b16 %v489
      %v1642 = vunpack.c.l.b16 %v490
      %v1643 = vunpack.c.l.b16 %v491
      %v1644 = vunpack.c.l.b16 %v492
      %v1645 = vunpack.c.l.b16 %v493
      %v1646 = vunpack.c.l.b16 %v494
      %v1647 = vunpack.c.l.b16 %v495
      %v1648 = vunpack.c.l.b16 %v496
      %v1649 = vunpack.c.l.b16 %v497
      %v1650 = vunpack.c.l.b16 %v498
      %v1651 = vunpack.c.l.b16 %v499
      %v1652 = vunpack.c.l.b16 %v500
      %v1653 = vunpack.c.l.b16 %v501
      %v1654 = vunpack.c.l.b16 %v502
      %v1655 = vunpack.c.l.b16 %v503
      %v1656 = vunpack.c.l.b16 %v504
      %v1657 = vunpack.c.l.b16 %v505
      %v1658 = vunpack.c.l.b16 %v506
      %v1659 = vunpack.c.l.b16 %v507
      %v1660 = vunpack.c.l.b16 %v508
      %v1661 = vunpack.c.l.b16 %v509
      %v1662 = vunpack.c.l.b16 %v510
      %v1663 = vunpack.c.l.b16 %v511
      %v1664 = vunpack.c.l.b16 %v512
      %v1665 = vunpack.c.l.b16 %v513
      %v1666 = vunpack.c.l.b16 %v514
      %v1667 = vunpack.c.l.b16 %v515
      %v1668 = vunpack.c.l.b16 %v516
      %v1669 = vunpack.c.l.b16 %v517
      %v1670 = vunpack.c.l.b16 %v518
      %v1671 = vunpack.c.l.b16 %v519
      %v1672 = vunpack.c.l.b16 %v520
      %v1673 = vunpack.c.l.b16 %v521
      %v1674 = vunpack.c.l.b16 %v522
      %v1675 = vunpack.c.l.b16 %v523
      %v1676 = vunpack.c.l.b16 %v524
      %v1677 = vunpack.c.l.b16 %v525
      %v1678 = vunpack.c.l.b16 %v526
      %v1679 = vunpack.c.l.b16 %v527
      %v1680 = vunpack.c.l.b16 %v528
      %v1681 = vunpack.c.l.b16 %v529
      %v1682 = vunpack.c.l.b16 %v530
      %v1683 = vunpack.c.l.b16 %v531
      %v1684 = vunpack.c.l.b16 %v532
      %v1685 = vunpack.c.l.b16 %v533
      %v1686 = vunpack.c.l.b16 %v534
      %v1687 = vunpack.c.l.b16 %v535
      %v1688 = vunpack.c.l.b16 %v536
      %v1689 = vunpack.c.l.b16 %v537
      %v1690 = vunpack.c.l.b16 %v538
      %v1691 = vunpack.c.l.b16 %v539
      %v1692 = vunpack.c.l.b16 %v540
      %v1693 = vunpack.c.l.b16 %v541
      %v1694 = vunpack.c.l.b16 %v542
      %v1695 = vunpack.c.l.b16 %v543
      %v1696 = vunpack.c.l.b16 %v544
      %v1697 = vunpack.c.l.b16 %v545
      %v1698 = vunpack.c.l.b16 %v546
      %v1699 = vunpack.c.l.b16 %v547
      %v1700 = vunpack.c.l.b16 %v548
      %v1701 = vunpack.c.l.b16 %v549
      %v1702 = vunpack.c.l.b16 %v550
      %v1703 = vunpack.c.l.b16 %v551
      %v1704 = vunpack.c.l.b16 %v552
      %v1705 = vunpack.c.l.b16 %v553
      %v1706 = vunpack.c.l.b16 %v554
      %v1707 = vunpack.c.l.b16 %v555
      %v1708 = vunpack.c.l.b16 %v556
      %v1709 = vunpack.c.l.b16 %v557
      %v1710 = vunpack.c.l.b16 %v558
      %v1711 = vunpack.c.l.b16 %v559
      %v1712 = vunpack.c.l.b16 %v560
      %v1713 = vunpack.c.l.b16 %v561
      %v1714 = vunpack.c.l.b16 %v562
      %v1715 = vunpack.c.l.b16 %v563
      %v1716 = vunpack.c.l.b16 %v564
      %v1717 = vunpack.c.l.b16 %v565
      %v1718 = vunpack.c.l.b16 %v566
      %v1719 = vunpack.c.l.b16 %v567
      %v1720 = vunpack.c.l.b16 %v568
      %v1721 = vunpack.c.l.b16 %v569
      %v1722 = vunpack.c.l.b16 %v570
      %v1723 = vunpack.c.l.b16 %v571
      %v1724 = vunpack.c.l.b16 %v572
      %v1725 = vunpack.c.l.b16 %v573
      %v1726 = vunpack.c.l.b16 %v574
      %v1727 = vunpack.c.l.b16 %v575
      %v1728 = vunpack.c.l.b16 %v576
      %v1729 = vunpack.c.l.b16 %v577
      %v1730 = vunpack.c.l.b16 %v578
      %v1731 = vunpack.c.l.b16 %v579
      %v1732 = vunpack.c.l.b16 %v580
      %v1733 = vunpack.c.l.b16 %v581
      %v1734 = vunpack.c.l.b16 %v582
      %v1735 = vunpack.c.l.b16 %v583
      %v1736 = vunpack.c.l.b16 %v584
      %v1737 = vunpack.c.l.b16 %v585
      %v1738 = vunpack.c.l.b16 %v586
      %v1739 = vunpack.c.l.b16 %v587
      %v1740 = vunpack.c.l.b16 %v588
      %v1741 = vunpack.c.l.b16 %v589
      %v1742 = vunpack.c.l.b16 %v590
      %v1743 = vunpack.c.l.b16 %v591
      %v1744 = vunpack.c.l.b16 %v592
      %v1745 = vunpack.c.l.b16 %v593
      %v1746 = vunpack.c.l.b16 %v594
      %v1747 = vunpack.c.l.b16 %v595
      %v1748 = vunpack.c.l.b16 %v596
      %v1749 = vunpack.c.l.b16 %v597
      %v1750 = vunpack.c.l.b16 %v598
      %v1751 = vunpack.c.l.b16 %v599
      %v1752 = vunpack.c.l.b16 %v600
      %v1753 = vunpack.c.l.b16 %v601
      %v1754 = vunpack.c.l.b16 %v602
      %v1755 = vunpack.c.l.b16 %v603
      %v1756 = vunpack.c.l.b16 %v604
      %v1757 = vunpack.c.l.b16 %v605
      %v1758 = vunpack.c.l.b16 %v606
      %v1759 = vunpack.c.l.b16 %v607
      %v1760 = vunpack.c.l.b16 %v608
      %v1761 = vunpack.c.l.b16 %v609
      %v1762 = vunpack.c.l.b16 %v610
      %v1763 = vunpack.c.l.b16 %v611
      %v1764 = vunpack.c.l.b16 %v612
      %v1765 = vunpack.c.l.b16 %v613
      %v1766 = vunpack.c.l.b16 %v614
      %v1767 = vunpack.c.l.b16 %v615
      %v1768 = vunpack.c.l.b16 %v616
      %v1769 = vunpack.c.l.b16 %v617
      %v1770 = vunpack.c.l.b16 %v618
      %v1771 = vunpack.c.l.b16 %v619
      %v1772 = vunpack.c.l.b16 %v620
      %v1773 = vunpack.c.l.b16 %v621
      %v1774 = vunpack.c.l.b16 %v622
      %v1775 = vunpack.c.l.b16 %v623
      %v1776 = vunpack.c.l.b16 %v624
      %v1777 = vunpack.c.l.b16 %v625
      %v1778 = vunpack.c.l.b16 %v626
      %v1779 = vunpack.c.l.b16 %v627
      %v1780 = vunpack.c.l.b16 %v628
      %v1781 = vunpack.c.l.b16 %v629
      %v1782 = vunpack.c.l.b16 %v630
      %v1783 = vunpack.c.l.b16 %v631
      %v1784 = vunpack.c.l.b16 %v632
      %v1785 = vunpack.c.l.b16 %v633
      %v1786 = vunpack.c.l.b16 %v634
      %v1787 = vunpack.c.l.b16 %v635
      %v1788 = vunpack.c.l.b16 %v636
      %v1789 = vunpack.c.l.b16 %v637
      %v1790 = vunpack.c.l.b16 %v638
      %v1791 = vunpack.c.l.b16 %v639
      %v1792 = vunpack.c.l.b16 %v640
      %v1793 = vunpack.c.l.b16 %v641
      %v1794 = vunpack.c.l.b16 %v642
      %v1795 = vunpack.c.l.b16 %v643
      %v1796 = vunpack.c.l.b16 %v644
      %v1797 = vunpack.c.l.b16 %v645
      %v1798 = vunpack.c.l.b16 %v646
      %v1799 = vunpack.c.l.b16 %v647
      %v1800 = vunpack.c.l.b16 %v648
      %v1801 = vunpack.c.l.b16 %v649
      %v1802 = vunpack.c.l.b16 %v650
      %v1803 = vunpack.c.l.b16 %v651
      %v1804 = vunpack.c.l.b16 %v652
      %v1805 = vunpack.c.l.b16 %v653
      %v1806 = vunpack.c.l.b16 %v654
      %v1807 = vunpack.c.l.b16 %v655
      %v1808 = vunpack.c.l.b16 %v656
      %v1809 = vunpack.c.l.b16 %v657
      %v1810 = vunpack.c.l.b16 %v658
      %v1811 = vunpack.c.l.b16 %v659
      %v1812 = vunpack.c.l.b16 %v660
      %v1813 = vunpack.c.l.b16 %v661
      %v1814 = vunpack.c.l.b16 %v662
      %v1815 = vunpack.c.l.b16 %v663
      %v1816 = vunpack.c.l.b16 %v664
      %v1817 = vunpack.c.l.b16 %v665
      %v1818 = vunpack.c.l.b16 %v666
      %v1819 = vunpack.c.l.b16 %v667
      %v1820 = vunpack.c.l.b16 %v668
      %v1821 = vunpack.c.l.b16 %v669
      %v1822 = vunpack.c.l.b16 %v670
      %v1823 = vunpack.c.l.b16 %v671
      %v1824 = vunpack.c.l.b16 %v672
      %v1825 = vunpack.c.l.b16 %v673
      %v1826 = vunpack.c.l.b16 %v674
      %v1827 = vunpack.c.l.b16 %v675
      %v1828 = vunpack.c.l.b16 %v676
      %v1829 = vunpack.c.l.b16 %v677
      %v1830 = vunpack.c.l.b16 %v678
      %v1831 = vunpack.c.l.b16 %v679
      %v1832 = vunpack.c.l.b16 %v680
      %v1833 = vunpack.c.l.b16 %v681
      %v1834 = vunpack.c.l.b16 %v682
      %v1835 = vunpack.c.l.b16 %v683
      %v1836 = vunpack.c.l.b16 %v684
      %v1837 = vunpack.c.l.b16 %v685
      %v1838 = vunpack.c.l.b16 %v686
      %v1839 = vunpack.c.l.b16 %v687
      %v1840 = vunpack.c.l.b16 %v688
      %v1841 = vunpack.c.l.b16 %v689
      %v1842 = vunpack.c.l.b16 %v690
      %v1843 = vunpack.c.l.b16 %v691
      %v1844 = vunpack.c.l.b16 %v692
      %v1845 = vunpack.c.l.b16 %v693
      %v1846 = vunpack.c.l.b16 %v694
      %v1847 = vunpack.c.l.b16 %v695
      %v1848 = vunpack.c.l.b16 %v696
      %v1849 = vunpack.c.l.b16 %v697
      %v1850 = vunpack.c.l.b16 %v698
      %v1851 = vunpack.c.l.b16 %v699
      %v1852 = vunpack.c.l.b16 %v700
      %v1853 = vunpack.c.l.b16 %v701
      %v1854 = vunpack.c.l.b16 %v702
      %v1855 = vunpack.c.l.b16 %v703
      %v1856 = vunpack.c.l.b16 %v704
      %v1857 = vunpack.c.l.b16 %v705
      %v1858 = vunpack.c.l.b16 %v706
      %v1859 = vunpack.c.l.b16 %v707
      %v1860 = vunpack.c.l.b16 %v708
      %v1861 = vunpack.c.l.b16 %v709
      %v1862 = vunpack.c.l.b16 %v710
      %v1863 = vunpack.c.l.b16 %v711
      %v1864 = vunpack.c.l.b16 %v712
      %v1865 = vunpack.c.l.b16 %v713
      %v1866 = vunpack.c.l.b16 %v714
      %v1867 = vunpack.c.l.b16 %v715
      %v1868 = vunpack.c.l.b16 %v716
      %v1869 = vunpack.c.l.b16 %v717
      %v1870 = vunpack.c.l.b16 %v718
      %v1871 = vunpack.c.l.b16 %v719
      %v1872 = vunpack.c.l.b16 %v720
      %v1873 = vunpack.c.l.b16 %v721
      %v1874 = vunpack.c.l.b16 %v722
      %v1875 = vunpack.c.l.b16 %v723
      %v1876 = vunpack.c.l.b16 %v724
      %v1877 = vunpack.c.l.b16 %v725
      %v1878 = vunpack.c.l.b16 %v726
      %v1879 = vunpack.c.l.b16 %v727
      %v1880 = vunpack.c.l.b16 %v728
      %v1881 = vunpack.c.l.b16 %v729
      %v1882 = vunpack.c.l.b16 %v730
      %v1883 = vunpack.c.l.b16 %v731
      %v1884 = vunpack.c.l.b16 %v732
      %v1885 = vunpack.c.l.b16 %v733
      %v1886 = vunpack.c.l.b16 %v734
      %v1887 = vunpack.c.l.b16 %v735
      %v1888 = vunpack.c.l.b16 %v736
      %v1889 = vunpack.c.l.b16 %v737
      %v1890 = vunpack.c.l.b16 %v738
      %v1891 = vunpack.c.l.b16 %v739
      %v1892 = vunpack.c.l.b16 %v740
      %v1893 = vunpack.c.l.b16 %v741
      %v1894 = vunpack.c.l.b16 %v742
      %v1895 = vunpack.c.l.b16 %v743
      %v1896 = vunpack.c.l.b16 %v744
      %v1897 = vunpack.c.l.b16 %v745
      %v1898 = vunpack.c.l.b16 %v746
      %v1899 = vunpack.c.l.b16 %v747
      %v1900 = vunpack.c.l.b16 %v748
      %v1901 = vunpack.c.l.b16 %v749
      %v1902 = vunpack.c.l.b16 %v750
      %v1903 = vunpack.c.l.b16 %v751
      %v1904 = vunpack.c.l.b16 %v752
      %v1905 = vunpack.c.l.b16 %v753
      %v1906 = vunpack.c.l.b16 %v754
      %v1907 = vunpack.c.l.b16 %v755
      %v1908 = vunpack.c.l.b16 %v756
      %v1909 = vunpack.c.l.b16 %v757
      %v1910 = vunpack.c.l.b16 %v758
      %v1911 = vunpack.c.l.b16 %v759
      %v1912 = vunpack.c.l.b16 %v760
      %v1913 = vunpack.c.l.b16 %v761
      %v1914 = vunpack.c.l.b16 %v762
      %v1915 = vunpack.c.l.b16 %v763
      %v1916 = vunpack.c.l.b16 %v764
      %v1917 = vunpack.c.l.b16 %v765
      %v1918 = vunpack.c.l.b16 %v766
      %v1919 = vunpack.c.l.b16 %v767
      %v1920 = vunpack.c.l.b16 %v768
      %v1921 = vunpack.c.l.b16 %v769
      %v1922 = vunpack.c.l.b16 %v770
      %v1923 = vunpack.c.l.b16 %v771
      %v1924 = vunpack.c.l.b16 %v772
      %v1925 = vunpack.c.l.b16 %v773
      %v1926 = vunpack.c.l.b16 %v774
      %v1927 = vunpack.c.l.b16 %v775
      %v1928 = vunpack.c.l.b16 %v776
      %v1929 = vunpack.c.l.b16 %v777
      %v1930 = vunpack.c.l.b16 %v778
      %v1931 = vunpack.c.l.b16 %v779
      %v1932 = vunpack.c.l.b16 %v780
      %v1933 = vunpack.c.l.b16 %v781
      %v1934 = vunpack.c.l.b16 %v782
      %v1935 = vunpack.c.l.b16 %v783
      %v1936 = vunpack.c.l.b16 %v784
      %v1937 = vunpack.c.l.b16 %v785
      %v1938 = vunpack.c.l.b16 %v786
      %v1939 = vunpack.c.l.b16 %v787
      %v1940 = vunpack.c.l.b16 %v788
      %v1941 = vunpack.c.l.b16 %v789
      %v1942 = vunpack.c.l.b16 %v790
      %v1943 = vunpack.c.l.b16 %v791
      %v1944 = vunpack.c.l.b16 %v792
      %v1945 = vunpack.c.l.b16 %v793
      %v1946 = vunpack.c.l.b16 %v794
      %v1947 = vunpack.c.l.b16 %v795
      %v1948 = vunpack.c.l.b16 %v796
      %v1949 = vunpack.c.l.b16 %v797
      %v1950 = vunpack.c.l.b16 %v798
      %v1951 = vunpack.c.l.b16 %v799
      %v1952 = vunpack.c.l.b16 %v800
      %v1953 = vunpack.c.l.b16 %v801
      %v1954 = vunpack.c.l.b16 %v802
      %v1955 = vunpack.c.l.b16 %v803
      %v1956 = vunpack.c.l.b16 %v804
      %v1957 = vunpack.c.l.b16 %v805
      %v1958 = vunpack.c.l.b16 %v806
      %v1959 = vunpack.c.l.b16 %v807
      %v1960 = vunpack.c.l.b16 %v808
      %v1961 = vunpack.c.l.b16 %v809
      %v1962 = vunpack.c.l.b16 %v810
      %v1963 = vunpack.c.l.b16 %v811
      %v1964 = vunpack.c.l.b16 %v812
      %v1965 = vunpack.c.l.b16 %v813
      %v1966 = vunpack.c.l.b16 %v814
      %v1967 = vunpack.c.l.b16 %v815
      %v1968 = vunpack.c.l.b16 %v816
      %v1969 = vunpack.c.l.b16 %v817
      %v1970 = vunpack.c.l.b16 %v818
      %v1971 = vunpack.c.l.b16 %v819
      %v1972 = vunpack.c.l.b16 %v820
      %v1973 = vunpack.c.l.b16 %v821
      %v1974 = vunpack.c.l.b16 %v822
      %v1975 = vunpack.c.l.b16 %v823
      %v1976 = vunpack.c.l.b16 %v824
      %v1977 = vunpack.c.l.b16 %v825
      %v1978 = vunpack.c.l.b16 %v826
      %v1979 = vunpack.c.l.b16 %v827
      %v1980 = vunpack.c.l.b16 %v828
      %v1981 = vunpack.c.l.b16 %v829
      %v1982 = vunpack.c.l.b16 %v830
      %v1983 = vunpack.c.l.b16 %v831
      %v1984 = vunpack.c.l.b16 %v832
      %v1985 = vunpack.c.l.b16 %v833
      %v1986 = vpack.c.b16 %v1411, %v1410
      %v1987 = vpack.c.b16 %v1413, %v1412
      %v1988 = vpack.c.b16 %v1415, %v1414
      %v1989 = vpack.c.b16 %v1417, %v1416
      %v1990 = vpack.c.b16 %v1419, %v1418
      %v1991 = vpack.c.b16 %v1421, %v1420
      %v1992 = vpack.c.b16 %v1423, %v1422
      %v1993 = vpack.c.b16 %v1425, %v1424
      %v1994 = vpack.c.b16 %v1427, %v1426
      %v1995 = vpack.c.b16 %v1429, %v1428
      %v1996 = vpack.c.b16 %v1431, %v1430
      %v1997 = vpack.c.b16 %v1433, %v1432
      %v1998 = vpack.c.b16 %v1435, %v1434
      %v1999 = vpack.c.b16 %v1437, %v1436
      %v2000 = vpack.c.b16 %v1439, %v1438
      %v2001 = vpack.c.b16 %v1441, %v1440
      %v2002 = vpack.c.b16 %v1443, %v1442
      %v2003 = vpack.c.b16 %v1445, %v1444
      %v2004 = vpack.c.b16 %v1447, %v1446
      %v2005 = vpack.c.b16 %v1449, %v1448
      %v2006 = vpack.c.b16 %v1451, %v1450
      %v2007 = vpack.c.b16 %v1453, %v1452
      %v2008 = vpack.c.b16 %v1455, %v1454
      %v2009 = vpack.c.b16 %v1457, %v1456
      %v2010 = vpack.c.b16 %v1459, %v1458
      %v2011 = vpack.c.b16 %v1461, %v1460
      %v2012 = vpack.c.b16 %v1463, %v1462
      %v2013 = vpack.c.b16 %v1465, %v1464
      %v2014 = vpack.c.b16 %v1467, %v1466
      %v2015 = vpack.c.b16 %v1469, %v1468
      %v2016 = vpack.c.b16 %v1471, %v1470
      %v2017 = vpack.c.b16 %v1473, %v1472
      %v2018 = vpack.c.b16 %v1475, %v1474
      %v2019 = vpack.c.b16 %v1477, %v1476
      %v2020 = vpack.c.b16 %v1479, %v1478
      %v2021 = vpack.c.b16 %v1481, %v1480
      %v2022 = vpack.c.b16 %v1483, %v1482
      %v2023 = vpack.c.b16 %v1485, %v1484
      %v2024 = vpack.c.b16 %v1487, %v1486
      %v2025 = vpack.c.b16 %v1489, %v1488
      %v2026 = vpack.c.b16 %v1491, %v1490
      %v2027 = vpack.c.b16 %v1493, %v1492
      %v2028 = vpack.c.b16 %v1495, %v1494
      %v2029 = vpack.c.b16 %v1497, %v1496
      %v2030 = vpack.c.b16 %v1499, %v1498
      %v2031 = vpack.c.b16 %v1501, %v1500
      %v2032 = vpack.c.b16 %v1503, %v1502
      %v2033 = vpack.c.b16 %v1505, %v1504
      %v2034 = vpack.c.b16 %v1507, %v1506
      %v2035 = vpack.c.b16 %v1509, %v1508
      %v2036 = vpack.c.b16 %v1511, %v1510
      %v2037 = vpack.c.b16 %v1513, %v1512
      %v2038 = vpack.c.b16 %v1515, %v1514
      %v2039 = vpack.c.b16 %v1517, %v1516
      %v2040 = vpack.c.b16 %v1519, %v1518
      %v2041 = vpack.c.b16 %v1521, %v1520
      %v2042 = vpack.c.b16 %v1523, %v1522
      %v2043 = vpack.c.b16 %v1525, %v1524
      %v2044 = vpack.c.b16 %v1527, %v1526
      %v2045 = vpack.c.b16 %v1529, %v1528
      %v2046 = vpack.c.b16 %v1531, %v1530
      %v2047 = vpack.c.b16 %v1533, %v1532
      %v2048 = vpack.c.b16 %v1535, %v1534
      %v2049 = vpack.c.b16 %v1537, %v1536
      %v2050 = vpack.c.b16 %v1539, %v1538
      %v2051 = vpack.c.b16 %v1541, %v1540
      %v2052 = vpack.c.b16 %v1543, %v1542
      %v2053 = vpack.c.b16 %v1545, %v1544
      %v2054 = vpack.c.b16 %v1547, %v1546
      %v2055 = vpack.c.b16 %v1549, %v1548
      %v2056 = vpack.c.b16 %v1551, %v1550
      %v2057 = vpack.c.b16 %v1553, %v1552
      %v2058 = vpack.c.b16 %v1555, %v1554
      %v2059 = vpack.c.b16 %v1557, %v1556
      %v2060 = vpack.c.b16 %v1559, %v1558
      %v2061 = vpack.c.b16 %v1561, %v1560
      %v2062 = vpack.c.b16 %v1563, %v1562
      %v2063 = vpack.c.b16 %v1565, %v1564
      %v2064 = vpack.c.b16 %v1567, %v1566
      %v2065 = vpack.c.b16 %v1569, %v1568
      %v2066 = vpack.c.b16 %v1571, %v1570
      %v2067 = vpack.c.b16 %v1573, %v1572
      %v2068 = vpack.c.b16 %v1575, %v1574
      %v2069 = vpack.c.b16 %v1577, %v1576
      %v2070 = vpack.c.b16 %v1579, %v1578
      %v2071 = vpack.c.b16 %v1581, %v1580
      %v2072 = vpack.c.b16 %v1583, %v1582
      %v2073 = vpack.c.b16 %v1585, %v1584
      %v2074 = vpack.c.b16 %v1587, %v1586
      %v2075 = vpack.c.b16 %v1589, %v1588
      %v2076 = vpack.c.b16 %v1591, %v1590
      %v2077 = vpack.c.b16 %v1593, %v1592
      %v2078 = vpack.c.b16 %v1595, %v1594
      %v2079 = vpack.c.b16 %v1597, %v1596
      %v2080 = vpack.c.b16 %v1599, %v1598
      %v2081 = vpack.c.b16 %v1601, %v1600
      %v2082 = vpack.c.b16 %v1603, %v1602
      %v2083 = vpack.c.b16 %v1605, %v1604
      %v2084 = vpack.c.b16 %v1607, %v1606
      %v2085 = vpack.c.b16 %v1609, %v1608
      %v2086 = vpack.c.b16 %v1611, %v1610
      %v2087 = vpack.c.b16 %v1613, %v1612
      %v2088 = vpack.c.b16 %v1615, %v1614
      %v2089 = vpack.c.b16 %v1617, %v1616
      %v2090 = vpack.c.b16 %v1619, %v1618
      %v2091 = vpack.c.b16 %v1621, %v1620
      %v2092 = vpack.c.b16 %v1623, %v1622
      %v2093 = vpack.c.b16 %v1625, %v1624
      %v2094 = vpack.c.b16 %v1627, %v1626
      %v2095 = vpack.c.b16 %v1629, %v1628
      %v2096 = vpack.c.b16 %v1631, %v1630
      %v2097 = vpack.c.b16 %v1633, %v1632
      %v2098 = vpack.c.b16 %v1635, %v1634
      %v2099 = vpack.c.b16 %v1637, %v1636
      %v2100 = vpack.c.b16 %v1639, %v1638
      %v2101 = vpack.c.b16 %v1641, %v1640
      %v2102 = vpack.c.b16 %v1643, %v1642
      %v2103 = vpack.c.b16 %v1645, %v1644
      %v2104 = vpack.c.b16 %v1647, %v1646
      %v2105 = vpack.c.b16 %v1649, %v1648
      %v2106 = vpack.c.b16 %v1651, %v1650
      %v2107 = vpack.c.b16 %v1653, %v1652
      %v2108 = vpack.c.b16 %v1655, %v1654
      %v2109 = vpack.c.b16 %v1657, %v1656
      %v2110 = vpack.c.b16 %v1659, %v1658
      %v2111 = vpack.c.b16 %v1661, %v1660
      %v2112 = vpack.c.b16 %v1663, %v1662
      %v2113 = vpack.c.b16 %v1665, %v1664
      %v2114 = vpack.c.b16 %v1667, %v1666
      %v2115 = vpack.c.b16 %v1669, %v1668
      %v2116 = vpack.c.b16 %v1671, %v1670
      %v2117 = vpack.c.b16 %v1673, %v1672
      %v2118 = vpack.c.b16 %v1675, %v1674
      %v2119 = vpack.c.b16 %v1677, %v1676
      %v2120 = vpack.c.b16 %v1679, %v1678
      %v2121 = vpack.c.b16 %v1681, %v1680
      %v2122 = vpack.c.b16 %v1683, %v1682
      %v2123 = vpack.c.b16 %v1685, %v1684
      %v2124 = vpack.c.b16 %v1687, %v1686
      %v2125 = vpack.c.b16 %v1689, %v1688
      %v2126 = vpack.c.b16 %v1691, %v1690
      %v2127 = vpack.c.b16 %v1693, %v1692
      %v2128 = vpack.c.b16 %v1695, %v1694
      %v2129 = vpack.c.b16 %v1697, %v1696
      %v2130 = vpack.c.b16 %v1699, %v1698
      %v2131 = vpack.c.b16 %v1701, %v1700
      %v2132 = vpack.c.b16 %v1703, %v1702
      %v2133 = vpack.c.b16 %v1705, %v1704
      %v2134 = vpack.c.b16 %v1707, %v1706
      %v2135 = vpack.c.b16 %v1709, %v1708
      %v2136 = vpack.c.b16 %v1711, %v1710
      %v2137 = vpack.c.b16 %v1713, %v1712
      %v2138 = vpack.c.b16 %v1715, %v1714
      %v2139 = vpack.c.b16 %v1717, %v1716
      %v2140 = vpack.c.b16 %v1719, %v1718
      %v2141 = vpack.c.b16 %v1721, %v1720
      %v2142 = vpack.c.b16 %v1723, %v1722
      %v2143 = vpack.c.b16 %v1725, %v1724
      %v2144 = vpack.c.b16 %v1727, %v1726
      %v2145 = vpack.c.b16 %v1729, %v1728
      %v2146 = vpack.c.b16 %v1731, %v1730
      %v2147 = vpack.c.b16 %v1733, %v1732
      %v2148 = vpack.c.b16 %v1735, %v1734
      %v2149 = vpack.c.b16 %v1737, %v1736
      %v2150 = vpack.c.b16 %v1739, %v1738
      %v2151 = vpack.c.b16 %v1741, %v1740
      %v2152 = vpack.c.b16 %v1743, %v1742
      %v2153 = vpack.c.b16 %v1745, %v1744
      %v2154 = vpack.c.b16 %v1747, %v1746
      %v2155 = vpack.c.b16 %v1749, %v1748
      %v2156 = vpack.c.b16 %v1751, %v1750
      %v2157 = vpack.c.b16 %v1753, %v1752
      %v2158 = vpack.c.b16 %v1755, %v1754
      %v2159 = vpack.c.b16 %v1757, %v1756
      %v2160 = vpack.c.b16 %v1759, %v1758
      %v2161 = vpack.c.b16 %v1761, %v1760
      %v2162 = vpack.c.b16 %v1763, %v1762
      %v2163 = vpack.c.b16 %v1765, %v1764
      %v2164 = vpack.c.b16 %v1767, %v1766
      %v2165 = vpack.c.b16 %v1769, %v1768
      %v2166 = vpack.c.b16 %v1771, %v1770
      %v2167 = vpack.c.b16 %v1773, %v1772
      %v2168 = vpack.c.b16 %v1775, %v1774
      %v2169 = vpack.c.b16 %v1777, %v1776
      %v2170 = vpack.c.b16 %v1779, %v1778
      %v2171 = vpack.c.b16 %v1781, %v1780
      %v2172 = vpack.c.b16 %v1783, %v1782
      %v2173 = vpack.c.b16 %v1785, %v1784
      %v2174 = vpack.c.b16 %v1787, %v1786
      %v2175 = vpack.c.b16 %v1789, %v1788
      %v2176 = vpack.c.b16 %v1791, %v1790
      %v2177 = vpack.c.b16 %v1793, %v1792
      %v2178 = vpack.c.b16 %v1795, %v1794
      %v2179 = vpack.c.b16 %v1797, %v1796
      %v2180 = vpack.c.b16 %v1799, %v1798
      %v2181 = vpack.c.b16 %v1801, %v1800
      %v2182 = vpack.c.b16 %v1803, %v1802
      %v2183 = vpack.c.b16 %v1805, %v1804
      %v2184 = vpack.c.b16 %v1807, %v1806
      %v2185 = vpack.c.b16 %v1809, %v1808
      %v2186 = vpack.c.b16 %v1811, %v1810
      %v2187 = vpack.c.b16 %v1813, %v1812
      %v2188 = vpack.c.b16 %v1815, %v1814
      %v2189 = vpack.c.b16 %v1817, %v1816
      %v2190 = vpack.c.b16 %v1819, %v1818
      %v2191 = vpack.c.b16 %v1821, %v1820
      %v2192 = vpack.c.b16 %v1823, %v1822
      %v2193 = vpack.c.b16 %v1825, %v1824
      %v2194 = vpack.c.b16 %v1827, %v1826
      %v2195 = vpack.c.b16 %v1829, %v1828
      %v2196 = vpack.c.b16 %v1831, %v1830
      %v2197 = vpack.c.b16 %v1833, %v1832
      %v2198 = vpack.c.b16 %v1835, %v1834
      %v2199 = vpack.c.b16 %v1837, %v1836
      %v2200 = vpack.c.b16 %v1839, %v1838
      %v2201 = vpack.c.b16 %v1841, %v1840
      %v2202 = vpack.c.b16 %v1843, %v1842
      %v2203 = vpack.c.b16 %v1845, %v1844
      %v2204 = vpack.c.b16 %v1847, %v1846
      %v2205 = vpack.c.b16 %v1849, %v1848
      %v2206 = vpack.c.b16 %v1851, %v1850
      %v2207 = vpack.c.b16 %v1853, %v1852
      %v2208 = vpack.c.b16 %v1855, %v1854
      %v2209 = vpack.c.b16 %v1857, %v1856
      %v2210 = vpack.c.b16 %v1859, %v1858
      %v2211 = vpack.c.b16 %v1861, %v1860
      %v2212 = vpack.c.b16 %v1863, %v1862
      %v2213 = vpack.c.b16 %v1865, %v1864
      %v2214 = vpack.c.b16 %v1867, %v1866
      %v2215 = vpack.c.b16 %v1869, %v1868
      %v2216 = vpack.c.b16 %v1871, %v1870
      %v2217 = vpack.c.b16 %v1873, %v1872
      %v2218 = vpack.c.b16 %v1875, %v1874
      %v2219 = vpack.c.b16 %v1877, %v1876
      %v2220 = vpack.c.b16 %v1879, %v1878
      %v2221 = vpack.c.b16 %v1881, %v1880
      %v2222 = vpack.c.b16 %v1883, %v1882
      %v2223 = vpack.c.b16 %v1885, %v1884
      %v2224 = vpack.c.b16 %v1887, %v1886
      %v2225 = vpack.c.b16 %v1889, %v1888
      %v2226 = vpack.c.b16 %v1891, %v1890
      %v2227 = vpack.c.b16 %v1893, %v1892
      %v2228 = vpack.c.b16 %v1895, %v1894
      %v2229 = vpack.c.b16 %v1897, %v1896
      %v2230 = vpack.c.b16 %v1899, %v1898
      %v2231 = vpack.c.b16 %v1901, %v1900
      %v2232 = vpack.c.b16 %v1903, %v1902
      %v2233 = vpack.c.b16 %v1905, %v1904
      %v2234 = vpack.c.b16 %v1907, %v1906
      %v2235 = vpack.c.b16 %v1909, %v1908
      %v2236 = vpack.c.b16 %v1911, %v1910
      %v2237 = vpack.c.b16 %v1913, %v1912
      %v2238 = vpack.c.b16 %v1915, %v1914
      %v2239 = vpack.c.b16 %v1917, %v1916
      %v2240 = vpack.c.b16 %v1919, %v1918
      %v2241 = vpack.c.b16 %v1921, %v1920
      %v2242 = vpack.c.b16 %v1923, %v1922
      %v2243 = vpack.c.b16 %v1925, %v1924
      %v2244 = vpack.c.b16 %v1927, %v1926
      %v2245 = vpack.c.b16 %v1929, %v1928
      %v2246 = vpack.c.b16 %v1931, %v1930
      %v2247 = vpack.c.b16 %v1933, %v1932
      %v2248 = vpack.c.b16 %v1935, %v1934
      %v2249 = vpack.c.b16 %v1937, %v1936
      %v2250 = vpack.c.b16 %v1939, %v1938
      %v2251 = vpack.c.b16 %v1941, %v1940
      %v2252 = vpack.c.b16 %v1943, %v1942
      %v2253 = vpack.c.b16 %v1945, %v1944
      %v2254 = vpack.c.b16 %v1947, %v1946
      %v2255 = vpack.c.b16 %v1949, %v1948
      %v2256 = vpack.c.b16 %v1951, %v1950
      %v2257 = vpack.c.b16 %v1953, %v1952
      %v2258 = vpack.c.b16 %v1955, %v1954
      %v2259 = vpack.c.b16 %v1957, %v1956
      %v2260 = vpack.c.b16 %v1959, %v1958
      %v2261 = vpack.c.b16 %v1961, %v1960
      %v2262 = vpack.c.b16 %v1963, %v1962
      %v2263 = vpack.c.b16 %v1965, %v1964
      %v2264 = vpack.c.b16 %v1967, %v1966
      %v2265 = vpack.c.b16 %v1969, %v1968
      %v2266 = vpack.c.b16 %v1971, %v1970
      %v2267 = vpack.c.b16 %v1973, %v1972
      %v2268 = vpack.c.b16 %v1975, %v1974
      %v2269 = vpack.c.b16 %v1977, %v1976
      %v2270 = vpack.c.b16 %v1979, %v1978
      %v2271 = vpack.c.b16 %v1981, %v1980
      %v2272 = vpack.c.b16 %v1983, %v1982
      %v2273 = vpack.c.b16 %v1985, %v1984
      %2562 = vmatpush.bf16.msra.mxu0 %v1993
      %2563 = vmatpush.bf16.msra.mxu0 %v1992
      %2564 = vmatpush.bf16.msra.mxu0 %v1991
      %2565 = vmatpush.bf16.msra.mxu0 %v1990
      %2566 = vmatpush.bf16.msra.mxu0 %v1989
      %2567 = vmatpush.bf16.msra.mxu0 %v1988
      %2568 = vmatpush.bf16.msra.mxu0 %v1987
      %2569 = vmatpush.bf16.msra.mxu0 %v1986
      %2570 = vmatmul.bf16.gmra.mxu0 %v222
      %v2571 = vpop.f32.mrf.mxu0
      %v2572 = vadd.f32 0.0, %v2571
      %v2573 = vpop.f32.mrf.mxu0
      %2574 = vdwg.mxu0
      %2575 = vmatpush.bf16.msra.mxu0 %v2001
      %2576 = vmatpush.bf16.msra.mxu0 %v2000
      %2577 = vmatpush.bf16.msra.mxu0 %v1999
      %2578 = vmatpush.bf16.msra.mxu0 %v1998
      %2579 = vmatpush.bf16.msra.mxu0 %v1997
      %2580 = vmatpush.bf16.msra.mxu0 %v1996
      %2581 = vmatpush.bf16.msra.mxu0 %v1995
      %2582 = vmatpush.bf16.msra.mxu0 %v1994
      %2583 = vmatmul.bf16.gmra.mxu0 %v223
      %v2584 = vpop.f32.mrf.mxu0
      %v2585 = vadd.f32 %v2572, %v2584
      %v2586 = vpop.f32.mrf.mxu0
      %2587 = vdwg.mxu0
      %2588 = vmatpush.bf16.msra.mxu0 %v2009
      %2589 = vmatpush.bf16.msra.mxu0 %v2008
      %2590 = vmatpush.bf16.msra.mxu0 %v2007
      %2591 = vmatpush.bf16.msra.mxu0 %v2006
      %2592 = vmatpush.bf16.msra.mxu0 %v2005
      %2593 = vmatpush.bf16.msra.mxu0 %v2004
      %2594 = vmatpush.bf16.msra.mxu0 %v2003
      %2595 = vmatpush.bf16.msra.mxu0 %v2002
      %2596 = vmatmul.bf16.gmra.mxu0 %v224
      %v2597 = vpop.f32.mrf.mxu0
      %v2598 = vadd.f32 %v2585, %v2597
      %v2599 = vpop.f32.mrf.mxu0
      %2600 = vdwg.mxu0
      %2601 = vmatpush.bf16.msra.mxu0 %v2017
      %2602 = vmatpush.bf16.msra.mxu0 %v2016
      %2603 = vmatpush.bf16.msra.mxu0 %v2015
      %2604 = vmatpush.bf16.msra.mxu0 %v2014
      %2605 = vmatpush.bf16.msra.mxu0 %v2013
      %2606 = vmatpush.bf16.msra.mxu0 %v2012
      %2607 = vmatpush.bf16.msra.mxu0 %v2011
      %2608 = vmatpush.bf16.msra.mxu0 %v2010
      %2609 = vmatmul.bf16.gmra.mxu0 %v225
      %v2610 = vpop.f32.mrf.mxu0
      %v2611 = vadd.f32 %v2598, %v2610
      %v2612 = vpop.f32.mrf.mxu0
      %2613 = vdwg.mxu0
      %2614 = vmatpush.bf16.msra.mxu0 %v2025
      %2615 = vmatpush.bf16.msra.mxu0 %v2024
      %2616 = vmatpush.bf16.msra.mxu0 %v2023
      %2617 = vmatpush.bf16.msra.mxu0 %v2022
      %2618 = vmatpush.bf16.msra.mxu0 %v2021
      %2619 = vmatpush.bf16.msra.mxu0 %v2020
      %2620 = vmatpush.bf16.msra.mxu0 %v2019
      %2621 = vmatpush.bf16.msra.mxu0 %v2018
      %2622 = vmatmul.bf16.gmra.mxu0 %v226
      %v2623 = vpop.f32.mrf.mxu0
      %v2624 = vadd.f32 %v2611, %v2623
      %v2625 = vpop.f32.mrf.mxu0
      %2626 = vdwg.mxu0
      %2627 = vmatpush.bf16.msra.mxu0 %v2033
      %2628 = vmatpush.bf16.msra.mxu0 %v2032
      %2629 = vmatpush.bf16.msra.mxu0 %v2031
      %2630 = vmatpush.bf16.msra.mxu0 %v2030
      %2631 = vmatpush.bf16.msra.mxu0 %v2029
      %2632 = vmatpush.bf16.msra.mxu0 %v2028
      %2633 = vmatpush.bf16.msra.mxu0 %v2027
      %2634 = vmatpush.bf16.msra.mxu0 %v2026
      %2635 = vmatmul.bf16.gmra.mxu0 %v227
      %v2636 = vpop.f32.mrf.mxu0
      %v2637 = vadd.f32 %v2624, %v2636
      %v2638 = vpop.f32.mrf.mxu0
      %2639 = vdwg.mxu0
      %2640 = vmatpush.bf16.msra.mxu0 %v2041
      %2641 = vmatpush.bf16.msra.mxu0 %v2040
      %2642 = vmatpush.bf16.msra.mxu0 %v2039
      %2643 = vmatpush.bf16.msra.mxu0 %v2038
      %2644 = vmatpush.bf16.msra.mxu0 %v2037
      %2645 = vmatpush.bf16.msra.mxu0 %v2036
      %2646 = vmatpush.bf16.msra.mxu0 %v2035
      %2647 = vmatpush.bf16.msra.mxu0 %v2034
      %2648 = vmatmul.bf16.gmra.mxu0 %v228
      %v2649 = vpop.f32.mrf.mxu0
      %v2650 = vadd.f32 %v2637, %v2649
      %v2651 = vpop.f32.mrf.mxu0
      %2652 = vdwg.mxu0
      %2653 = vmatpush.bf16.msra.mxu0 %v2049
      %2654 = vmatpush.bf16.msra.mxu0 %v2048
      %2655 = vmatpush.bf16.msra.mxu0 %v2047
      %2656 = vmatpush.bf16.msra.mxu0 %v2046
      %2657 = vmatpush.bf16.msra.mxu0 %v2045
      %2658 = vmatpush.bf16.msra.mxu0 %v2044
      %2659 = vmatpush.bf16.msra.mxu0 %v2043
      %2660 = vmatpush.bf16.msra.mxu0 %v2042
      %2661 = vmatmul.bf16.gmra.mxu0 %v229
      %v2662 = vpop.f32.mrf.mxu0
      %v2663 = vadd.f32 %v2650, %v2662
      %v2664 = vpop.f32.mrf.mxu0
      %2665 = vdwg.mxu0
      %2666 = vmatpush.bf16.msra.mxu0 %v2057
      %2667 = vmatpush.bf16.msra.mxu0 %v2056
      %2668 = vmatpush.bf16.msra.mxu0 %v2055
      %2669 = vmatpush.bf16.msra.mxu0 %v2054
      %2670 = vmatpush.bf16.msra.mxu0 %v2053
      %2671 = vmatpush.bf16.msra.mxu0 %v2052
      %2672 = vmatpush.bf16.msra.mxu0 %v2051
      %2673 = vmatpush.bf16.msra.mxu0 %v2050
      %2674 = vmatmul.bf16.gmra.mxu0 %v230
      %v2675 = vpop.f32.mrf.mxu0
      %v2676 = vadd.f32 %v2663, %v2675
      %v2677 = vpop.f32.mrf.mxu0
      %2678 = vdwg.mxu0
      %2679 = vmatpush.bf16.msra.mxu0 %v2065
      %2680 = vmatpush.bf16.msra.mxu0 %v2064
      %2681 = vmatpush.bf16.msra.mxu0 %v2063
      %2682 = vmatpush.bf16.msra.mxu0 %v2062
      %2683 = vmatpush.bf16.msra.mxu0 %v2061
      %2684 = vmatpush.bf16.msra.mxu0 %v2060
      %2685 = vmatpush.bf16.msra.mxu0 %v2059
      %2686 = vmatpush.bf16.msra.mxu0 %v2058
      %2687 = vmatmul.bf16.gmra.mxu0 %v231
      %v2688 = vpop.f32.mrf.mxu0
      %v2689 = vadd.f32 %v2676, %v2688
      %v2690 = vpop.f32.mrf.mxu0
      %2691 = vdwg.mxu0
      %2692 = vmatpush.bf16.msra.mxu0 %v2073
      %2693 = vmatpush.bf16.msra.mxu0 %v2072
      %2694 = vmatpush.bf16.msra.mxu0 %v2071
      %2695 = vmatpush.bf16.msra.mxu0 %v2070
      %2696 = vmatpush.bf16.msra.mxu0 %v2069
      %2697 = vmatpush.bf16.msra.mxu0 %v2068
      %2698 = vmatpush.bf16.msra.mxu0 %v2067
      %2699 = vmatpush.bf16.msra.mxu0 %v2066
      %2700 = vmatmul.bf16.gmra.mxu0 %v232
      %v2701 = vpop.f32.mrf.mxu0
      %v2702 = vadd.f32 %v2689, %v2701
      %v2703 = vpop.f32.mrf.mxu0
      %2704 = vdwg.mxu0
      %2705 = vmatpush.bf16.msra.mxu0 %v2081
      %2706 = vmatpush.bf16.msra.mxu0 %v2080
      %2707 = vmatpush.bf16.msra.mxu0 %v2079
      %2708 = vmatpush.bf16.msra.mxu0 %v2078
      %2709 = vmatpush.bf16.msra.mxu0 %v2077
      %2710 = vmatpush.bf16.msra.mxu0 %v2076
      %2711 = vmatpush.bf16.msra.mxu0 %v2075
      %2712 = vmatpush.bf16.msra.mxu0 %v2074
      %2713 = vmatmul.bf16.gmra.mxu0 %v233
      %v2714 = vpop.f32.mrf.mxu0
      %v2715 = vadd.f32 %v2702, %v2714
      %v2716 = vpop.f32.mrf.mxu0
      %2717 = vdwg.mxu0
      %2718 = vmatpush.bf16.msra.mxu0 %v2089
      %2719 = vmatpush.bf16.msra.mxu0 %v2088
      %2720 = vmatpush.bf16.msra.mxu0 %v2087
      %2721 = vmatpush.bf16.msra.mxu0 %v2086
      %2722 = vmatpush.bf16.msra.mxu0 %v2085
      %2723 = vmatpush.bf16.msra.mxu0 %v2084
      %2724 = vmatpush.bf16.msra.mxu0 %v2083
      %2725 = vmatpush.bf16.msra.mxu0 %v2082
      %2726 = vmatmul.bf16.gmra.mxu0 %v234
      %v2727 = vpop.f32.mrf.mxu0
      %v2728 = vadd.f32 %v2715, %v2727
      %v2729 = vpop.f32.mrf.mxu0
      %2730 = vdwg.mxu0
      %2731 = vmatpush.bf16.msra.mxu0 %v2097
      %2732 = vmatpush.bf16.msra.mxu0 %v2096
      %2733 = vmatpush.bf16.msra.mxu0 %v2095
      %2734 = vmatpush.bf16.msra.mxu0 %v2094
      %2735 = vmatpush.bf16.msra.mxu0 %v2093
      %2736 = vmatpush.bf16.msra.mxu0 %v2092
      %2737 = vmatpush.bf16.msra.mxu0 %v2091
      %2738 = vmatpush.bf16.msra.mxu0 %v2090
      %2739 = vmatmul.bf16.gmra.mxu0 %v235
      %v2740 = vpop.f32.mrf.mxu0
      %v2741 = vadd.f32 %v2728, %v2740
      %v2742 = vpop.f32.mrf.mxu0
      %2743 = vdwg.mxu0
      %2744 = vmatpush.bf16.msra.mxu0 %v2105
      %2745 = vmatpush.bf16.msra.mxu0 %v2104
      %2746 = vmatpush.bf16.msra.mxu0 %v2103
      %2747 = vmatpush.bf16.msra.mxu0 %v2102
      %2748 = vmatpush.bf16.msra.mxu0 %v2101
      %2749 = vmatpush.bf16.msra.mxu0 %v2100
      %2750 = vmatpush.bf16.msra.mxu0 %v2099
      %2751 = vmatpush.bf16.msra.mxu0 %v2098
      %2752 = vmatmul.bf16.gmra.mxu0 %v236
      %v2753 = vpop.f32.mrf.mxu0
      %v2754 = vadd.f32 %v2741, %v2753
      %v2755 = vpop.f32.mrf.mxu0
      %2756 = vdwg.mxu0
      %2757 = vmatpush.bf16.msra.mxu0 %v2113
      %2758 = vmatpush.bf16.msra.mxu0 %v2112
      %2759 = vmatpush.bf16.msra.mxu0 %v2111
      %2760 = vmatpush.bf16.msra.mxu0 %v2110
      %2761 = vmatpush.bf16.msra.mxu0 %v2109
      %2762 = vmatpush.bf16.msra.mxu0 %v2108
      %2763 = vmatpush.bf16.msra.mxu0 %v2107
      %2764 = vmatpush.bf16.msra.mxu0 %v2106
      %2765 = vmatmul.bf16.gmra.mxu0 %v237
      %v2766 = vpop.f32.mrf.mxu0
      %v2767 = vadd.f32 %v2754, %v2766
      %v2768 = vpop.f32.mrf.mxu0
      %2769 = vdwg.mxu0
      %2770 = vmatpush.bf16.msra.mxu0 %v2121
      %2771 = vmatpush.bf16.msra.mxu0 %v2120
      %2772 = vmatpush.bf16.msra.mxu0 %v2119
      %2773 = vmatpush.bf16.msra.mxu0 %v2118
      %2774 = vmatpush.bf16.msra.mxu0 %v2117
      %2775 = vmatpush.bf16.msra.mxu0 %v2116
      %2776 = vmatpush.bf16.msra.mxu0 %v2115
      %2777 = vmatpush.bf16.msra.mxu0 %v2114
      %2778 = vmatmul.bf16.gmra.mxu0 %v238
      %v2779 = vpop.f32.mrf.mxu0
      %v2780 = vadd.f32 %v2767, %v2779
      %v2781 = vpop.f32.mrf.mxu0
      %2782 = vdwg.mxu0
      %2783 = vmatpush.bf16.msra.mxu0 %v2129
      %2784 = vmatpush.bf16.msra.mxu0 %v2128
      %2785 = vmatpush.bf16.msra.mxu0 %v2127
      %2786 = vmatpush.bf16.msra.mxu0 %v2126
      %2787 = vmatpush.bf16.msra.mxu0 %v2125
      %2788 = vmatpush.bf16.msra.mxu0 %v2124
      %2789 = vmatpush.bf16.msra.mxu0 %v2123
      %2790 = vmatpush.bf16.msra.mxu0 %v2122
      %2791 = vmatmul.bf16.gmra.mxu0 %v239
      %v2792 = vpop.f32.mrf.mxu0
      %v2793 = vadd.f32 %v2780, %v2792
      %v2794 = vpop.f32.mrf.mxu0
      %2795 = vdwg.mxu0
      %2796 = vmatpush.bf16.msra.mxu0 %v2137
      %2797 = vmatpush.bf16.msra.mxu0 %v2136
      %2798 = vmatpush.bf16.msra.mxu0 %v2135
      %2799 = vmatpush.bf16.msra.mxu0 %v2134
      %2800 = vmatpush.bf16.msra.mxu0 %v2133
      %2801 = vmatpush.bf16.msra.mxu0 %v2132
      %2802 = vmatpush.bf16.msra.mxu0 %v2131
      %2803 = vmatpush.bf16.msra.mxu0 %v2130
      %2804 = vmatmul.bf16.gmra.mxu0 %v240
      %v2805 = vpop.f32.mrf.mxu0
      %v2806 = vadd.f32 %v2793, %v2805
      %v2807 = vpop.f32.mrf.mxu0
      %2808 = vdwg.mxu0
      %2809 = vmatpush.bf16.msra.mxu0 %v2145
      %2810 = vmatpush.bf16.msra.mxu0 %v2144
      %2811 = vmatpush.bf16.msra.mxu0 %v2143
      %2812 = vmatpush.bf16.msra.mxu0 %v2142
      %2813 = vmatpush.bf16.msra.mxu0 %v2141
      %2814 = vmatpush.bf16.msra.mxu0 %v2140
      %2815 = vmatpush.bf16.msra.mxu0 %v2139
      %2816 = vmatpush.bf16.msra.mxu0 %v2138
      %2817 = vmatmul.bf16.gmra.mxu0 %v241
      %v2818 = vpop.f32.mrf.mxu0
      %v2819 = vadd.f32 %v2806, %v2818
      %v2820 = vpop.f32.mrf.mxu0
      %2821 = vdwg.mxu0
      %2822 = vmatpush.bf16.msra.mxu0 %v2153
      %2823 = vmatpush.bf16.msra.mxu0 %v2152
      %2824 = vmatpush.bf16.msra.mxu0 %v2151
      %2825 = vmatpush.bf16.msra.mxu0 %v2150
      %2826 = vmatpush.bf16.msra.mxu0 %v2149
      %2827 = vmatpush.bf16.msra.mxu0 %v2148
      %2828 = vmatpush.bf16.msra.mxu0 %v2147
      %2829 = vmatpush.bf16.msra.mxu0 %v2146
      %2830 = vmatmul.bf16.gmra.mxu0 %v242
      %v2831 = vpop.f32.mrf.mxu0
      %v2832 = vadd.f32 %v2819, %v2831
      %v2833 = vpop.f32.mrf.mxu0
      %2834 = vdwg.mxu0
      %2835 = vmatpush.bf16.msra.mxu0 %v2161
      %2836 = vmatpush.bf16.msra.mxu0 %v2160
      %2837 = vmatpush.bf16.msra.mxu0 %v2159
      %2838 = vmatpush.bf16.msra.mxu0 %v2158
      %2839 = vmatpush.bf16.msra.mxu0 %v2157
      %2840 = vmatpush.bf16.msra.mxu0 %v2156
      %2841 = vmatpush.bf16.msra.mxu0 %v2155
      %2842 = vmatpush.bf16.msra.mxu0 %v2154
      %2843 = vmatmul.bf16.gmra.mxu0 %v243
      %v2844 = vpop.f32.mrf.mxu0
      %v2845 = vadd.f32 %v2832, %v2844
      %v2846 = vpop.f32.mrf.mxu0
      %2847 = vdwg.mxu0
      %2848 = vmatpush.bf16.msra.mxu0 %v2169
      %2849 = vmatpush.bf16.msra.mxu0 %v2168
      %2850 = vmatpush.bf16.msra.mxu0 %v2167
      %2851 = vmatpush.bf16.msra.mxu0 %v2166
      %2852 = vmatpush.bf16.msra.mxu0 %v2165
      %2853 = vmatpush.bf16.msra.mxu0 %v2164
      %2854 = vmatpush.bf16.msra.mxu0 %v2163
      %2855 = vmatpush.bf16.msra.mxu0 %v2162
      %2856 = vmatmul.bf16.gmra.mxu0 %v244
      %v2857 = vpop.f32.mrf.mxu0
      %v2858 = vadd.f32 %v2845, %v2857
      %v2859 = vpop.f32.mrf.mxu0
      %2860 = vdwg.mxu0
      %2861 = vmatpush.bf16.msra.mxu0 %v2177
      %2862 = vmatpush.bf16.msra.mxu0 %v2176
      %2863 = vmatpush.bf16.msra.mxu0 %v2175
      %2864 = vmatpush.bf16.msra.mxu0 %v2174
      %2865 = vmatpush.bf16.msra.mxu0 %v2173
      %2866 = vmatpush.bf16.msra.mxu0 %v2172
      %2867 = vmatpush.bf16.msra.mxu0 %v2171
      %2868 = vmatpush.bf16.msra.mxu0 %v2170
      %2869 = vmatmul.bf16.gmra.mxu0 %v245
      %v2870 = vpop.f32.mrf.mxu0
      %v2871 = vadd.f32 %v2858, %v2870
      %v2872 = vpop.f32.mrf.mxu0
      %2873 = vdwg.mxu0
      %2874 = vmatpush.bf16.msra.mxu0 %v2185
      %2875 = vmatpush.bf16.msra.mxu0 %v2184
      %2876 = vmatpush.bf16.msra.mxu0 %v2183
      %2877 = vmatpush.bf16.msra.mxu0 %v2182
      %2878 = vmatpush.bf16.msra.mxu0 %v2181
      %2879 = vmatpush.bf16.msra.mxu0 %v2180
      %2880 = vmatpush.bf16.msra.mxu0 %v2179
      %2881 = vmatpush.bf16.msra.mxu0 %v2178
      %2882 = vmatmul.bf16.gmra.mxu0 %v246
      %v2883 = vpop.f32.mrf.mxu0
      %v2884 = vadd.f32 %v2871, %v2883
      %v2885 = vpop.f32.mrf.mxu0
      %2886 = vdwg.mxu0
      %2887 = vmatpush.bf16.msra.mxu0 %v2193
      %2888 = vmatpush.bf16.msra.mxu0 %v2192
      %2889 = vmatpush.bf16.msra.mxu0 %v2191
      %2890 = vmatpush.bf16.msra.mxu0 %v2190
      %2891 = vmatpush.bf16.msra.mxu0 %v2189
      %2892 = vmatpush.bf16.msra.mxu0 %v2188
      %2893 = vmatpush.bf16.msra.mxu0 %v2187
      %2894 = vmatpush.bf16.msra.mxu0 %v2186
      %2895 = vmatmul.bf16.gmra.mxu0 %v247
      %v2896 = vpop.f32.mrf.mxu0
      %v2897 = vadd.f32 %v2884, %v2896
      %v2898 = vpop.f32.mrf.mxu0
      %2899 = vdwg.mxu0
      %2900 = vmatpush.bf16.msra.mxu0 %v2201
      %2901 = vmatpush.bf16.msra.mxu0 %v2200
      %2902 = vmatpush.bf16.msra.mxu0 %v2199
      %2903 = vmatpush.bf16.msra.mxu0 %v2198
      %2904 = vmatpush.bf16.msra.mxu0 %v2197
      %2905 = vmatpush.bf16.msra.mxu0 %v2196
      %2906 = vmatpush.bf16.msra.mxu0 %v2195
      %2907 = vmatpush.bf16.msra.mxu0 %v2194
      %2908 = vmatmul.bf16.gmra.mxu0 %v248
      %v2909 = vpop.f32.mrf.mxu0
      %v2910 = vadd.f32 %v2897, %v2909
      %v2911 = vpop.f32.mrf.mxu0
      %2912 = vdwg.mxu0
      %2913 = vmatpush.bf16.msra.mxu0 %v2209
      %2914 = vmatpush.bf16.msra.mxu0 %v2208
      %2915 = vmatpush.bf16.msra.mxu0 %v2207
      %2916 = vmatpush.bf16.msra.mxu0 %v2206
      %2917 = vmatpush.bf16.msra.mxu0 %v2205
      %2918 = vmatpush.bf16.msra.mxu0 %v2204
      %2919 = vmatpush.bf16.msra.mxu0 %v2203
      %2920 = vmatpush.bf16.msra.mxu0 %v2202
      %2921 = vmatmul.bf16.gmra.mxu0 %v249
      %v2922 = vpop.f32.mrf.mxu0
      %v2923 = vadd.f32 %v2910, %v2922
      %v2924 = vpop.f32.mrf.mxu0
      %2925 = vdwg.mxu0
      %2926 = vmatpush.bf16.msra.mxu0 %v2217
      %2927 = vmatpush.bf16.msra.mxu0 %v2216
      %2928 = vmatpush.bf16.msra.mxu0 %v2215
      %2929 = vmatpush.bf16.msra.mxu0 %v2214
      %2930 = vmatpush.bf16.msra.mxu0 %v2213
      %2931 = vmatpush.bf16.msra.mxu0 %v2212
      %2932 = vmatpush.bf16.msra.mxu0 %v2211
      %2933 = vmatpush.bf16.msra.mxu0 %v2210
      %2934 = vmatmul.bf16.gmra.mxu0 %v250
      %v2935 = vpop.f32.mrf.mxu0
      %v2936 = vadd.f32 %v2923, %v2935
      %v2937 = vpop.f32.mrf.mxu0
      %2938 = vdwg.mxu0
      %2939 = vmatpush.bf16.msra.mxu0 %v2225
      %2940 = vmatpush.bf16.msra.mxu0 %v2224
      %2941 = vmatpush.bf16.msra.mxu0 %v2223
      %2942 = vmatpush.bf16.msra.mxu0 %v2222
      %2943 = vmatpush.bf16.msra.mxu0 %v2221
      %2944 = vmatpush.bf16.msra.mxu0 %v2220
      %2945 = vmatpush.bf16.msra.mxu0 %v2219
      %2946 = vmatpush.bf16.msra.mxu0 %v2218
      %2947 = vmatmul.bf16.gmra.mxu0 %v251
      %v2948 = vpop.f32.mrf.mxu0
      %v2949 = vadd.f32 %v2936, %v2948
      %v2950 = vpop.f32.mrf.mxu0
      %2951 = vdwg.mxu0
      %2952 = vmatpush.bf16.msra.mxu0 %v2233
      %2953 = vmatpush.bf16.msra.mxu0 %v2232
      %2954 = vmatpush.bf16.msra.mxu0 %v2231
      %2955 = vmatpush.bf16.msra.mxu0 %v2230
      %2956 = vmatpush.bf16.msra.mxu0 %v2229
      %2957 = vmatpush.bf16.msra.mxu0 %v2228
      %2958 = vmatpush.bf16.msra.mxu0 %v2227
      %2959 = vmatpush.bf16.msra.mxu0 %v2226
      %2960 = vmatmul.bf16.gmra.mxu0 %v252
      %v2961 = vpop.f32.mrf.mxu0
      %v2962 = vadd.f32 %v2949, %v2961
      %v2963 = vpop.f32.mrf.mxu0
      %2964 = vdwg.mxu0
      %2965 = vmatpush.bf16.msra.mxu0 %v2241
      %2966 = vmatpush.bf16.msra.mxu0 %v2240
      %2967 = vmatpush.bf16.msra.mxu0 %v2239
      %2968 = vmatpush.bf16.msra.mxu0 %v2238
      %2969 = vmatpush.bf16.msra.mxu0 %v2237
      %2970 = vmatpush.bf16.msra.mxu0 %v2236
      %2971 = vmatpush.bf16.msra.mxu0 %v2235
      %2972 = vmatpush.bf16.msra.mxu0 %v2234
      %2973 = vmatmul.bf16.gmra.mxu0 %v253
      %v2974 = vpop.f32.mrf.mxu0
      %v2975 = vadd.f32 %v2962, %v2974
      %v2976 = vpop.f32.mrf.mxu0
      %2977 = vdwg.mxu0
      %2978 = vmatpush.bf16.msra.mxu0 %v2249
      %2979 = vmatpush.bf16.msra.mxu0 %v2248
      %2980 = vmatpush.bf16.msra.mxu0 %v2247
      %2981 = vmatpush.bf16.msra.mxu0 %v2246
      %2982 = vmatpush.bf16.msra.mxu0 %v2245
      %2983 = vmatpush.bf16.msra.mxu0 %v2244
      %2984 = vmatpush.bf16.msra.mxu0 %v2243
      %2985 = vmatpush.bf16.msra.mxu0 %v2242
      %2986 = vmatmul.bf16.gmra.mxu0 %v254
      %v2987 = vpop.f32.mrf.mxu0
      %v2988 = vadd.f32 %v2975, %v2987
      %v2989 = vpop.f32.mrf.mxu0
      %2990 = vdwg.mxu0
      %2991 = vmatpush.bf16.msra.mxu0 %v2257
      %2992 = vmatpush.bf16.msra.mxu0 %v2256
      %2993 = vmatpush.bf16.msra.mxu0 %v2255
      %2994 = vmatpush.bf16.msra.mxu0 %v2254
      %2995 = vmatpush.bf16.msra.mxu0 %v2253
      %2996 = vmatpush.bf16.msra.mxu0 %v2252
      %2997 = vmatpush.bf16.msra.mxu0 %v2251
      %2998 = vmatpush.bf16.msra.mxu0 %v2250
      %2999 = vmatmul.bf16.gmra.mxu0 %v255
      %v3000 = vpop.f32.mrf.mxu0
      %v3001 = vadd.f32 %v2988, %v3000
      %v3002 = vpop.f32.mrf.mxu0
      %3003 = vdwg.mxu0
      %3004 = vmatpush.bf16.msra.mxu0 %v2265
      %3005 = vmatpush.bf16.msra.mxu0 %v2264
      %3006 = vmatpush.bf16.msra.mxu0 %v2263
      %3007 = vmatpush.bf16.msra.mxu0 %v2262
      %3008 = vmatpush.bf16.msra.mxu0 %v2261
      %3009 = vmatpush.bf16.msra.mxu0 %v2260
      %3010 = vmatpush.bf16.msra.mxu0 %v2259
      %3011 = vmatpush.bf16.msra.mxu0 %v2258
      %3012 = vmatmul.bf16.gmra.mxu0 %v256
      %v3013 = vpop.f32.mrf.mxu0
      %v3014 = vadd.f32 %v3001, %v3013
      %v3015 = vpop.f32.mrf.mxu0
      %3016 = vdwg.mxu0
      %3017 = vmatpush.bf16.msra.mxu0 %v2273
      %3018 = vmatpush.bf16.msra.mxu0 %v2272
      %3019 = vmatpush.bf16.msra.mxu0 %v2271
      %3020 = vmatpush.bf16.msra.mxu0 %v2270
      %3021 = vmatpush.bf16.msra.mxu0 %v2269
      %3022 = vmatpush.bf16.msra.mxu0 %v2268
      %3023 = vmatpush.bf16.msra.mxu0 %v2267
      %3024 = vmatpush.bf16.msra.mxu0 %v2266
      %3025 = vmatmul.bf16.gmra.mxu0 %v257
      %v3026 = vpop.f32.mrf.mxu0
      %v3027 = vadd.f32 %v3014, %v3026
      %v3028 = vpop.f32.mrf.mxu0
      %3029 = vdwg.mxu0
      %v3030 = vadd.f32 %v185, %v3027
      %3031 = vst [vmem:[#allocation2] sm:$0xff] %v3030
      %p3032 = scmp.eq.s32.totalorder %s14, 1
      // Predicated region
      $region37: #{net2layer_forward.3} parent=31 // pred_check
        %p3033 = pneg %p3032
      $region38: #{net2layer_forward.3} parent=31 // pred_check_branch
        %3035 = sbr.rel (%p3033) target = $region40
      $region39: #{net2layer_forward.3} parent=31 // pred_region
        %v3036 = vld [vmem:[#allocation2] sm:$0xff]
        %v3037 = vld [vmem:[%s2] sm:$0x1]
        %v3039 = vperm.slane %v3037, 0
        %v3041 = vadd.f32 %v3036, %v3039
        %3042 = vst [vmem:[%s3] sm:$0xff] %v3041
      $region40: #{net2layer_forward.3} parent=31 // pred_fallthru
        _
      // Predicated region
      $region41: #{net2layer_forward.3} parent=31 // pred_check
        %p3043 = pneg %p100
      $region42: #{net2layer_forward.3} parent=31 // pred_check_branch
        %3045 = sbr.rel (%p3043) target = $region44
      $region43: #{net2layer_forward.3} parent=31 // pred_region
        _
      $region44: #{net2layer_forward.3} parent=31 // pred_fallthru
        _
      // Predicated region
      $region45: #{net2layer_forward.3} parent=31 // pred_check
        %p3046 = pneg %p100
      $region46: #{net2layer_forward.3} parent=31 // pred_check_branch
        %3048 = sbr.rel (%p3046) target = $region48
      $region47: #{net2layer_forward.3} parent=31 // pred_region
        _
      $region48: #{net2layer_forward.3} parent=31 // pred_fallthru
        _
    $region32: #{net2layer_forward.3} parent=5 // pred_fallthru
      _
    %p3049 = scmp.le.s32.totalorder 2, %s9
    // Predicated region
    $region49: #{net2layer_forward.3} parent=5 // pred_check
      %p3050 = pneg %p3049
    $region50: #{net2layer_forward.3} parent=5 // pred_check_branch
      %3052 = sbr.rel (%p3050) target = $region52
    $region51: #{net2layer_forward.3} parent=5 // pred_region
      %s3053 = ssub.s32 %s9, 2
    $region52: #{net2layer_forward.3} parent=5 // pred_fallthru
      _
  $region6: #{net2layer_forward.3} parent=0 // loop_footer
    %s13 = sadd.s32 1, %s9
  $region7: #{net2layer_forward.3} parent=0 // loop_footer_branch
    %8 = sbr.rel target = $region3
  $region8: #{net2layer_forward.3} parent=0 // loop_exit
    _

// kernel: net2layer_forward.2
$region0: #{net2layer_forward.2}
  #allocation0 [shape = 'u32[]', space=smem, size = 0x4, offset = 0x4, fixed_abs, tag = 'smem constant byte address 0x4 - core index']
  #allocation1 [shape = 'u32[72,128]{1,0:T(1,128)}', space=vmem, size = 0x9000, scoped, tag = 'internal scratch']
  #allocation2 [shape = 'f32[768,32]{1,0:T(8,128)}', space=vmem, size = 0x60000, scoped, tag = 'scratch operand']
  #allocation3 [shape = 'f32[672,64]{1,0:T(8,128)}', space=vmem, size = 0x54000, scoped, tag = 'scratch operand']
  %s0 = inlined_call_operand.vmem [shape: f32[2,768,32], index: 0, kind: input, shape index: {}]
  %s1 = inlined_call_operand.vmem [shape: f32[32,32], index: 1, kind: input, shape index: {}]
  %s2 = inlined_call_operand.vmem [shape: f32[1,32], index: 2, kind: input, shape index: {}]
  %s3 = inlined_call_operand.vmem [shape: f32[288,64], index: 3, kind: input, shape index: {}]
  %s4 = inlined_call_operand.vmem [shape: f32[1,64], index: 4, kind: input, shape index: {}]
  %s5 = inlined_call_operand.vmem [shape: f32[2,72,128], index: 5, kind: output, shape index: {}]
  %s6 = sld [smem:[#allocation0]]
  $region53: #{net2layer_forward.2} parent=0
    _
  %s8 = ssub.s32 1, %s6
  %s9 = scalar_select 0, %s8, %s6
  loop: start=0, step=1, limit=4
  $region2: #{net2layer_forward.2} parent=0 // loop_pre_header
    _
  $region3: #{net2layer_forward.2} parent=0 // loop_header
    %s11 = sphi 0, %s15
    %p12 = scmp.ge.s32.totalorder %s11, 4
    %s21 = sphi 0, %s23
    %s24 = sphi 0, %s21
    %s25 = sphi 0, %s24
    %s41 = sphi 0, %s25
    %s45 = sphi 0, %s45
    %s47 = sphi 0, %s45
    %s48 = sphi 0, %s47
    %s62 = sphi 0, %s48
    %s66 = sphi 0, %s66
    %s68 = sphi 0, %s66
    %s69 = sphi 0, %s68
    %s83 = sphi 0, %s69
    %s87 = sphi 0, %s87
    %s89 = sphi 0, %s87
    %s90 = sphi 0, %s89
    %s104 = sphi 0, %s90
    %s108 = sphi 0, %s108
    %s110 = sphi 0, %s108
    %s111 = sphi 0, %s110
    %s125 = sphi 0, %s111
    %s131 = sphi 0, %s133
    %s134 = sphi 0, %s131
    %s135 = sphi 0, %s134
    %s151 = sphi 0, %s135
  $region4: #{net2layer_forward.2} parent=0 // loop_header_branch
    %14 = sbr.rel (%p12) target = $region8
  $region5: #{net2layer_forward.2} parent=0 // loop_body
    %s16 = ssub.s32 %s11, 1
    %s17 = ssub.s32 %s11, 2
    %s18 = sadd.s32 %s11, 1
    %s19 = ssub.s32 %s11, %s18
    %p20 = scmp.eq.s32.totalorder %s19, 0
    %s22 = sadd.s32 %s21, 1
    %s23 = scalar_select %p20, %s21, %s22
    %p26 = pneg %p20
    %p27 = scmp.eq.s32.totalorder %s11, 1
    %p28 = por %p26, %p27
    %p29 = scmp.ne.s32.totalorder %s21, %s24
    %p30 = scmp.eq.s32.totalorder %s11, 0
    %p31 = por %p29, %p30
    %p32 = scmp.ne.s32.totalorder %s21, %s24
    %p33 = scmp.eq.s32.totalorder %s16, 1
    %p34 = por %p32, %p33
    %p35 = scmp.ne.s32.totalorder %s24, %s25
    %p36 = scmp.eq.s32.totalorder %s16, 0
    %p37 = por %p35, %p36
    %p38 = scmp.ne.s32.totalorder %s24, %s25
    %p39 = scmp.eq.s32.totalorder %s17, 1
    %p40 = por %p38, %p39
    %p42 = scmp.ne.s32.totalorder %s25, %s41
    %p43 = scmp.eq.s32.totalorder %s17, 0
    %p44 = por %p42, %p43
    %s46 = sadd.s32 %s45, 1
    %p49 = scmp.eq.s32.totalorder %s11, 1
    %p50 = scmp.ne.s32.totalorder %s45, %s47
    %p51 = scmp.eq.s32.totalorder %s11, 0
    %p52 = por %p50, %p51
    %p53 = scmp.ne.s32.totalorder %s45, %s47
    %p54 = scmp.eq.s32.totalorder %s16, 1
    %p55 = por %p53, %p54
    %p56 = scmp.ne.s32.totalorder %s47, %s48
    %p57 = scmp.eq.s32.totalorder %s16, 0
    %p58 = por %p56, %p57
    %p59 = scmp.ne.s32.totalorder %s47, %s48
    %p60 = scmp.eq.s32.totalorder %s17, 1
    %p61 = por %p59, %p60
    %p63 = scmp.ne.s32.totalorder %s48, %s62
    %p64 = scmp.eq.s32.totalorder %s17, 0
    %p65 = por %p63, %p64
    %s67 = sadd.s32 %s66, 1
    %p70 = scmp.eq.s32.totalorder %s11, 1
    %p71 = scmp.ne.s32.totalorder %s66, %s68
    %p72 = scmp.eq.s32.totalorder %s11, 0
    %p73 = por %p71, %p72
    %p74 = scmp.ne.s32.totalorder %s66, %s68
    %p75 = scmp.eq.s32.totalorder %s16, 1
    %p76 = por %p74, %p75
    %p77 = scmp.ne.s32.totalorder %s68, %s69
    %p78 = scmp.eq.s32.totalorder %s16, 0
    %p79 = por %p77, %p78
    %p80 = scmp.ne.s32.totalorder %s68, %s69
    %p81 = scmp.eq.s32.totalorder %s17, 1
    %p82 = por %p80, %p81
    %p84 = scmp.ne.s32.totalorder %s69, %s83
    %p85 = scmp.eq.s32.totalorder %s17, 0
    %p86 = por %p84, %p85
    %s88 = sadd.s32 %s87, 1
    %p91 = scmp.eq.s32.totalorder %s11, 1
    %p92 = scmp.ne.s32.totalorder %s87, %s89
    %p93 = scmp.eq.s32.totalorder %s11, 0
    %p94 = por %p92, %p93
    %p95 = scmp.ne.s32.totalorder %s87, %s89
    %p96 = scmp.eq.s32.totalorder %s16, 1
    %p97 = por %p95, %p96
    %p98 = scmp.ne.s32.totalorder %s89, %s90
    %p99 = scmp.eq.s32.totalorder %s16, 0
    %p100 = por %p98, %p99
    %p101 = scmp.ne.s32.totalorder %s89, %s90
    %p102 = scmp.eq.s32.totalorder %s17, 1
    %p103 = por %p101, %p102
    %p105 = scmp.ne.s32.totalorder %s90, %s104
    %p106 = scmp.eq.s32.totalorder %s17, 0
    %p107 = por %p105, %p106
    %s109 = sadd.s32 %s108, 1
    %p112 = scmp.eq.s32.totalorder %s11, 1
    %p113 = scmp.ne.s32.totalorder %s108, %s110
    %p114 = scmp.eq.s32.totalorder %s11, 0
    %p115 = por %p113, %p114
    %p116 = scmp.ne.s32.totalorder %s108, %s110
    %p117 = scmp.eq.s32.totalorder %s16, 1
    %p118 = por %p116, %p117
    %p119 = scmp.ne.s32.totalorder %s110, %s111
    %p120 = scmp.eq.s32.totalorder %s16, 0
    %p121 = por %p119, %p120
    %p122 = scmp.ne.s32.totalorder %s110, %s111
    %p123 = scmp.eq.s32.totalorder %s17, 1
    %p124 = por %p122, %p123
    %p126 = scmp.ne.s32.totalorder %s111, %s125
    %p127 = scmp.eq.s32.totalorder %s17, 0
    %p128 = por %p126, %p127
    %s129 = ssub.s32 %s11, %s18
    %p130 = scmp.eq.s32.totalorder %s129, 0
    %s132 = sadd.s32 %s131, 1
    %s133 = scalar_select %p130, %s131, %s132
    %p136 = pneg %p130
    %p137 = scmp.eq.s32.totalorder %s11, 1
    %p138 = por %p136, %p137
    %p139 = scmp.ne.s32.totalorder %s131, %s134
    %p140 = scmp.eq.s32.totalorder %s11, 0
    %p141 = por %p139, %p140
    %p142 = scmp.ne.s32.totalorder %s131, %s134
    %p143 = scmp.eq.s32.totalorder %s16, 1
    %p144 = por %p142, %p143
    %p145 = scmp.ne.s32.totalorder %s134, %s135
    %p146 = scmp.eq.s32.totalorder %s16, 0
    %p147 = por %p145, %p146
    %p148 = scmp.ne.s32.totalorder %s134, %s135
    %p149 = scmp.eq.s32.totalorder %s17, 1
    %p150 = por %p148, %p149
    %p152 = scmp.ne.s32.totalorder %s135, %s151
    %p153 = scmp.eq.s32.totalorder %s17, 0
    %p154 = por %p152, %p153
    %p155 = scmp.le.s32.totalorder 1, %s11
    %p156 = scmp.lt.s32.totalorder %s11, 3
    %p157 = pnand %p155, %p156
    %p158 = pneg %p157
    // Predicated region
    $region9: #{net2layer_forward.2} parent=5 // pred_check
      _
    $region10: #{net2layer_forward.2} parent=5 // pred_check_branch
      %160 = sbr.rel (%p157) target = $region12
    $region11: #{net2layer_forward.2} parent=5 // pred_region
      %s161 = ssub.s32 %s11, 1
      // Predicated region
      $region13: #{net2layer_forward.2} parent=11 // pred_check
        %p162 = pneg %p58
      $region14: #{net2layer_forward.2} parent=11 // pred_check_branch
        %164 = sbr.rel (%p162) target = $region16
      $region15: #{net2layer_forward.2} parent=11 // pred_region
        _
      $region16: #{net2layer_forward.2} parent=11 // pred_fallthru
        _
      // Predicated region
      $region17: #{net2layer_forward.2} parent=11 // pred_check
        %p165 = pneg %p79
      $region18: #{net2layer_forward.2} parent=11 // pred_check_branch
        %167 = sbr.rel (%p165) target = $region20
      $region19: #{net2layer_forward.2} parent=11 // pred_region
        _
      $region20: #{net2layer_forward.2} parent=11 // pred_fallthru
        _
      // Predicated region
      $region21: #{net2layer_forward.2} parent=11 // pred_check
        %p168 = pneg %p100
      $region22: #{net2layer_forward.2} parent=11 // pred_check_branch
        %170 = sbr.rel (%p168) target = $region24
      $region23: #{net2layer_forward.2} parent=11 // pred_region
        _
      $region24: #{net2layer_forward.2} parent=11 // pred_fallthru
        _
      // Predicated region
      $region25: #{net2layer_forward.2} parent=11 // pred_check
        %p171 = pneg %p121
      $region26: #{net2layer_forward.2} parent=11 // pred_check_branch
        %173 = sbr.rel (%p171) target = $region28
      $region27: #{net2layer_forward.2} parent=11 // pred_region
        _
      $region28: #{net2layer_forward.2} parent=11 // pred_fallthru
        _
    $region12: #{net2layer_forward.2} parent=5 // pred_fallthru
      _
    %p174 = scmp.lt.s32.totalorder %s11, 2
    // Predicated region
    $region29: #{net2layer_forward.2} parent=5 // pred_check
      %p175 = pneg %p174
    $region30: #{net2layer_forward.2} parent=5 // pred_check_branch
      %177 = sbr.rel (%p175) target = $region32
    $region31: #{net2layer_forward.2} parent=5 // pred_region
      // Predicated region
      $region33: #{net2layer_forward.2} parent=31 // pred_check
        %p178 = pneg %p31
      $region34: #{net2layer_forward.2} parent=31 // pred_check_branch
        %180 = sbr.rel (%p178) target = $region36
      $region35: #{net2layer_forward.2} parent=31 // pred_region
        %p181 = scmp.lt.s32.totalorder %s11, 1
        %s182 = scalar_select %p181, %s11, 1
        %s183 = smul.addr %s182, 96
        %s184 = smul.addr %s183, 8
        %s185 = scalar_lea.vmem %s0, %s184
      $region36: #{net2layer_forward.2} parent=31 // pred_fallthru
        _
    $region32: #{net2layer_forward.2} parent=5 // pred_fallthru
      _
    %p186 = scmp.le.s32.totalorder 1, %s11
    %p187 = scmp.lt.s32.totalorder %s11, 3
    %p188 = pnand %p186, %p187
    %p189 = pneg %p188
    // Predicated region
    $region37: #{net2layer_forward.2} parent=5 // pred_check
      _
    $region38: #{net2layer_forward.2} parent=5 // pred_check_branch
      %191 = sbr.rel (%p188) target = $region40
    $region39: #{net2layer_forward.2} parent=5 // pred_region
      %s192 = ssub.s32 %s11, 1
      %p193 = scmp.lt.s32.totalorder %s16, 1
      %s194 = scalar_select %p193, %s16, 1
      %s195 = smul.addr %s194, 96
      %s196 = smul.addr %s195, 8
      %s197 = scalar_lea.vmem %s0, %s196
      %p198 = pneg %p37
      %p199 = pneg %p34
      %p200 = pneg %p58
      %p201 = pneg %p55
      %p202 = pneg %p79
      %p203 = pneg %p76
      %p204 = pneg %p100
      %p205 = pneg %p97
      %p206 = pneg %p121
      %p207 = pneg %p118
      %p208 = pneg %p147
      %p209 = pneg %p144
      %p210 = scmp.lt.s32.totalorder %s16, 1
      %s211 = scalar_select %p210, %s16, 1
      %s212 = smul.addr %s211, 9
      %s213 = smul.addr %s212, 8
      %s214 = scalar_lea.vmem %s5, %s213
      %p215 = scmp.lt.s32.totalorder %s16, 1
      %s216 = scalar_select %p215, %s16, 1
      %s217 = smul.addr %s216, 96
      %s218 = smul.addr %s217, 8
      %s219 = scalar_lea.vmem %s0, %s218
      %p220 = scmp.lt.s32.totalorder %s16, 1
      %s221 = scalar_select %p220, %s16, 1
      %s222 = smul.addr %s221, 9
      %s223 = smul.addr %s222, 8
      %s224 = scalar_lea.vmem %s5, %s223
      %v225 = vld [vmem:[%s2] sm:$0x1]
      %v227 = vperm.slane %v225, 0
      %v229 = vld [vmem:[%s4] sm:$0x1]
      %v231 = vperm.slane %v229, 0
      %v233 = vld [vmem:[%s219] sm:$0xff]
      %v234 = vld [vmem:[%s219 + $0x8] sm:$0xff]
      %v235 = vld [vmem:[%s219 + $0x10] sm:$0xff]
      %v236 = vld [vmem:[%s219 + $0x18] sm:$0xff]
      %v237 = vld [vmem:[%s219 + $0x20] sm:$0xff]
      %v238 = vld [vmem:[%s219 + $0x28] sm:$0xff]
      %v239 = vld [vmem:[%s219 + $0x30] sm:$0xff]
      %v240 = vld [vmem:[%s219 + $0x38] sm:$0xff]
      %v241 = vld [vmem:[%s219 + $0x40] sm:$0xff]
      %v242 = vld [vmem:[%s219 + $0x48] sm:$0xff]
      %v243 = vld [vmem:[%s219 + $0x50] sm:$0xff]
      %v244 = vld [vmem:[%s219 + $0x58] sm:$0xff]
      %v245 = vld [vmem:[%s219 + $0x60] sm:$0xff]
      %v246 = vld [vmem:[%s219 + $0x68] sm:$0xff]
      %v247 = vld [vmem:[%s219 + $0x70] sm:$0xff]
      %v248 = vld [vmem:[%s219 + $0x78] sm:$0xff]
      %v249 = vld [vmem:[%s1] sm:$0xff]
      %v250 = vld [vmem:[%s1 + $0x8] sm:$0xff]
      %v251 = vld [vmem:[%s1 + $0x10] sm:$0xff]
      %v252 = vld [vmem:[%s1 + $0x18] sm:$0xff]
      %vm253 = vcmask 261120
      %v255 = vsel %vm253, %v233, 0
      %v258 = vsel %vm253, %v234, 0
      %v261 = vsel %vm253, %v235, 0
      %v264 = vsel %vm253, %v236, 0
      %v267 = vsel %vm253, %v237, 0
      %v270 = vsel %vm253, %v238, 0
      %v273 = vsel %vm253, %v239, 0
      %v276 = vsel %vm253, %v240, 0
      %v279 = vsel %vm253, %v241, 0
      %v282 = vsel %vm253, %v242, 0
      %v285 = vsel %vm253, %v243, 0
      %v288 = vsel %vm253, %v244, 0
      %v291 = vsel %vm253, %v245, 0
      %v294 = vsel %vm253, %v246, 0
      %v297 = vsel %vm253, %v247, 0
      %v300 = vsel %vm253, %v248, 0
      %302 = vmatpush.msra.mxu0 0.0
      %303 = vmatpush.msra.mxu0 0.0
      %304 = vmatpush.msra.mxu0 0.0
      %305 = vmatpush.msra.mxu0 0.0
      %306 = vmatpush.msra.mxu0 0.0
      %307 = vmatpush.msra.mxu0 0.0
      %308 = vmatpush.msra.mxu0 0.0
      %309 = vmatpush.msra.mxu0 0.0
      %310 = vmatpush.msra.mxu0 0.0
      %311 = vmatpush.msra.mxu0 0.0
      %312 = vmatpush.msra.mxu0 0.0
      %313 = vmatpush.msra.mxu0 0.0
      %314 = vmatpush.msra.mxu0 %v252
      %315 = vmatpush.msra.mxu0 %v251
      %316 = vmatpush.msra.mxu0 %v250
      %317 = vmatpush.msra.mxu0 %v249
      %318 = vmatmul.f32.gmra.mxu0 %v255
      %v319 = vpop.f32.mrf.mxu0
      %v320 = vadd.f32 %v227, %v319
      %321 = vmatmul.f32.gmra.mxu0 %v258
      %v322 = vpop.f32.mrf.mxu0
      %v323 = vadd.f32 %v227, %v322
      %324 = vmatmul.f32.gmra.mxu0 %v261
      %v325 = vpop.f32.mrf.mxu0
      %v326 = vadd.f32 %v227, %v325
      %327 = vmatmul.f32.gmra.mxu0 %v264
      %v328 = vpop.f32.mrf.mxu0
      %v329 = vadd.f32 %v227, %v328
      %330 = vmatmul.f32.gmra.mxu0 %v267
      %v331 = vpop.f32.mrf.mxu0
      %v332 = vadd.f32 %v227, %v331
      %333 = vmatmul.f32.gmra.mxu0 %v270
      %v334 = vpop.f32.mrf.mxu0
      %v335 = vadd.f32 %v227, %v334
      %336 = vmatmul.f32.gmra.mxu0 %v273
      %v337 = vpop.f32.mrf.mxu0
      %v338 = vadd.f32 %v227, %v337
      %339 = vmatmul.f32.gmra.mxu0 %v276
      %v340 = vpop.f32.mrf.mxu0
      %v341 = vadd.f32 %v227, %v340
      %342 = vmatmul.f32.gmra.mxu0 %v279
      %v343 = vpop.f32.mrf.mxu0
      %v344 = vadd.f32 %v227, %v343
      %345 = vmatmul.f32.gmra.mxu0 %v282
      %v346 = vpop.f32.mrf.mxu0
      %v347 = vadd.f32 %v227, %v346
      %348 = vmatmul.f32.gmra.mxu0 %v285
      %v349 = vpop.f32.mrf.mxu0
      %v350 = vadd.f32 %v227, %v349
      %351 = vmatmul.f32.gmra.mxu0 %v288
      %v352 = vpop.f32.mrf.mxu0
      %v353 = vadd.f32 %v227, %v352
      %354 = vmatmul.f32.gmra.mxu0 %v291
      %v355 = vpop.f32.mrf.mxu0
      %v356 = vadd.f32 %v227, %v355
      %357 = vmatmul.f32.gmra.mxu0 %v294
      %v358 = vpop.f32.mrf.mxu0
      %v359 = vadd.f32 %v227, %v358
      %360 = vmatmul.f32.gmra.mxu0 %v297
      %v361 = vpop.f32.mrf.mxu0
      %v362 = vadd.f32 %v227, %v361
      %363 = vmatmul.f32.gmra.mxu0 %v300
      %v364 = vpop.f32.mrf.mxu0
      %v365 = vadd.f32 %v227, %v364
      %366 = vdwg.mxu0
      %v367 = vmax.f32 %v320, 0.0
      %v368 = vmax.f32 %v323, 0.0
      %v369 = vmax.f32 %v326, 0.0
      %v370 = vmax.f32 %v329, 0.0
      %v371 = vmax.f32 %v332, 0.0
      %v372 = vmax.f32 %v335, 0.0
      %v373 = vmax.f32 %v338, 0.0
      %v374 = vmax.f32 %v341, 0.0
      %v375 = vmax.f32 %v344, 0.0
      %v376 = vmax.f32 %v347, 0.0
      %v377 = vmax.f32 %v350, 0.0
      %v378 = vmax.f32 %v353, 0.0
      %v379 = vmax.f32 %v356, 0.0
      %v380 = vmax.f32 %v359, 0.0
      %v381 = vmax.f32 %v362, 0.0
      %v382 = vmax.f32 %v365, 0.0
      %383 = vst.msk [vmem:[#allocation2] sm:$0xff] %vm253, %v367
      %384 = vst.msk [vmem:[#allocation2 + $0x8] sm:$0xff] %vm253, %v368
      %385 = vst.msk [vmem:[#allocation2 + $0x10] sm:$0xff] %vm253, %v369
      %386 = vst.msk [vmem:[#allocation2 + $0x18] sm:$0xff] %vm253, %v370
      %387 = vst.msk [vmem:[#allocation2 + $0x20] sm:$0xff] %vm253, %v371
      %388 = vst.msk [vmem:[#allocation2 + $0x28] sm:$0xff] %vm253, %v372
      %389 = vst.msk [vmem:[#allocation2 + $0x30] sm:$0xff] %vm253, %v373
      %390 = vst.msk [vmem:[#allocation2 + $0x38] sm:$0xff] %vm253, %v374
      %391 = vst.msk [vmem:[#allocation2 + $0x40] sm:$0xff] %vm253, %v375
      %392 = vst.msk [vmem:[#allocation2 + $0x48] sm:$0xff] %vm253, %v376
      %393 = vst.msk [vmem:[#allocation2 + $0x50] sm:$0xff] %vm253, %v377
      %394 = vst.msk [vmem:[#allocation2 + $0x58] sm:$0xff] %vm253, %v378
      %395 = vst.msk [vmem:[#allocation2 + $0x60] sm:$0xff] %vm253, %v379
      %396 = vst.msk [vmem:[#allocation2 + $0x68] sm:$0xff] %vm253, %v380
      %397 = vst.msk [vmem:[#allocation2 + $0x70] sm:$0xff] %vm253, %v381
      %398 = vst.msk [vmem:[#allocation2 + $0x78] sm:$0xff] %vm253, %v382
      %v399 = vld [vmem:[%s219 + $0x80] sm:$0xff]
      %v400 = vld [vmem:[%s219 + $0x88] sm:$0xff]
      %v401 = vld [vmem:[%s219 + $0x90] sm:$0xff]
      %v402 = vld [vmem:[%s219 + $0x98] sm:$0xff]
      %v403 = vld [vmem:[%s219 + $0xa0] sm:$0xff]
      %v404 = vld [vmem:[%s219 + $0xa8] sm:$0xff]
      %v405 = vld [vmem:[%s219 + $0xb0] sm:$0xff]
      %v406 = vld [vmem:[%s219 + $0xb8] sm:$0xff]
      %v407 = vld [vmem:[%s219 + $0xc0] sm:$0xff]
      %v408 = vld [vmem:[%s219 + $0xc8] sm:$0xff]
      %v409 = vld [vmem:[%s219 + $0xd0] sm:$0xff]
      %v410 = vld [vmem:[%s219 + $0xd8] sm:$0xff]
      %v411 = vld [vmem:[%s219 + $0xe0] sm:$0xff]
      %v412 = vld [vmem:[%s219 + $0xe8] sm:$0xff]
      %v413 = vld [vmem:[%s219 + $0xf0] sm:$0xff]
      %v414 = vld [vmem:[%s219 + $0xf8] sm:$0xff]
      %v415 = vld [vmem:[%s1] sm:$0xff]
      %v416 = vld [vmem:[%s1 + $0x8] sm:$0xff]
      %v417 = vld [vmem:[%s1 + $0x10] sm:$0xff]
      %v418 = vld [vmem:[%s1 + $0x18] sm:$0xff]
      %v420 = vsel %vm253, %v399, 0
      %v423 = vsel %vm253, %v400, 0
      %v426 = vsel %vm253, %v401, 0
      %v429 = vsel %vm253, %v402, 0
      %v432 = vsel %vm253, %v403, 0
      %v435 = vsel %vm253, %v404, 0
      %v438 = vsel %vm253, %v405, 0
      %v441 = vsel %vm253, %v406, 0
      %v444 = vsel %vm253, %v407, 0
      %v447 = vsel %vm253, %v408, 0
      %v450 = vsel %vm253, %v409, 0
      %v453 = vsel %vm253, %v410, 0
      %v456 = vsel %vm253, %v411, 0
      %v459 = vsel %vm253, %v412, 0
      %v462 = vsel %vm253, %v413, 0
      %v465 = vsel %vm253, %v414, 0
      %467 = vmatpush.msra.mxu0 0.0
      %468 = vmatpush.msra.mxu0 0.0
      %469 = vmatpush.msra.mxu0 0.0
      %470 = vmatpush.msra.mxu0 0.0
      %471 = vmatpush.msra.mxu0 0.0
      %472 = vmatpush.msra.mxu0 0.0
      %473 = vmatpush.msra.mxu0 0.0
      %474 = vmatpush.msra.mxu0 0.0
      %475 = vmatpush.msra.mxu0 0.0
      %476 = vmatpush.msra.mxu0 0.0
      %477 = vmatpush.msra.mxu0 0.0
      %478 = vmatpush.msra.mxu0 0.0
      %479 = vmatpush.msra.mxu0 %v418
      %480 = vmatpush.msra.mxu0 %v417
      %481 = vmatpush.msra.mxu0 %v416
      %482 = vmatpush.msra.mxu0 %v415
      %483 = vmatmul.f32.gmra.mxu0 %v420
      %v484 = vpop.f32.mrf.mxu0
      %v485 = vadd.f32 %v227, %v484
      %486 = vmatmul.f32.gmra.mxu0 %v423
      %v487 = vpop.f32.mrf.mxu0
      %v488 = vadd.f32 %v227, %v487
      %489 = vmatmul.f32.gmra.mxu0 %v426
      %v490 = vpop.f32.mrf.mxu0
      %v491 = vadd.f32 %v227, %v490
      %492 = vmatmul.f32.gmra.mxu0 %v429
      %v493 = vpop.f32.mrf.mxu0
      %v494 = vadd.f32 %v227, %v493
      %495 = vmatmul.f32.gmra.mxu0 %v432
      %v496 = vpop.f32.mrf.mxu0
      %v497 = vadd.f32 %v227, %v496
      %498 = vmatmul.f32.gmra.mxu0 %v435
      %v499 = vpop.f32.mrf.mxu0
      %v500 = vadd.f32 %v227, %v499
      %501 = vmatmul.f32.gmra.mxu0 %v438
      %v502 = vpop.f32.mrf.mxu0
      %v503 = vadd.f32 %v227, %v502
      %504 = vmatmul.f32.gmra.mxu0 %v441
      %v505 = vpop.f32.mrf.mxu0
      %v506 = vadd.f32 %v227, %v505
      %507 = vmatmul.f32.gmra.mxu0 %v444
      %v508 = vpop.f32.mrf.mxu0
      %v509 = vadd.f32 %v227, %v508
      %510 = vmatmul.f32.gmra.mxu0 %v447
      %v511 = vpop.f32.mrf.mxu0
      %v512 = vadd.f32 %v227, %v511
      %513 = vmatmul.f32.gmra.mxu0 %v450
      %v514 = vpop.f32.mrf.mxu0
      %v515 = vadd.f32 %v227, %v514
      %516 = vmatmul.f32.gmra.mxu0 %v453
      %v517 = vpop.f32.mrf.mxu0
      %v518 = vadd.f32 %v227, %v517
      %519 = vmatmul.f32.gmra.mxu0 %v456
      %v520 = vpop.f32.mrf.mxu0
      %v521 = vadd.f32 %v227, %v520
      %522 = vmatmul.f32.gmra.mxu0 %v459
      %v523 = vpop.f32.mrf.mxu0
      %v524 = vadd.f32 %v227, %v523
      %525 = vmatmul.f32.gmra.mxu0 %v462
      %v526 = vpop.f32.mrf.mxu0
      %v527 = vadd.f32 %v227, %v526
      %528 = vmatmul.f32.gmra.mxu0 %v465
      %v529 = vpop.f32.mrf.mxu0
      %v530 = vadd.f32 %v227, %v529
      %531 = vdwg.mxu0
      %v532 = vmax.f32 %v485, 0.0
      %v533 = vmax.f32 %v488, 0.0
      %v534 = vmax.f32 %v491, 0.0
      %v535 = vmax.f32 %v494, 0.0
      %v536 = vmax.f32 %v497, 0.0
      %v537 = vmax.f32 %v500, 0.0
      %v538 = vmax.f32 %v503, 0.0
      %v539 = vmax.f32 %v506, 0.0
      %v540 = vmax.f32 %v509, 0.0
      %v541 = vmax.f32 %v512, 0.0
      %v542 = vmax.f32 %v515, 0.0
      %v543 = vmax.f32 %v518, 0.0
      %v544 = vmax.f32 %v521, 0.0
      %v545 = vmax.f32 %v524, 0.0
      %v546 = vmax.f32 %v527, 0.0
      %v547 = vmax.f32 %v530, 0.0
      %548 = vst.msk [vmem:[#allocation2 + $0x80] sm:$0xff] %vm253, %v532
      %549 = vst.msk [vmem:[#allocation2 + $0x88] sm:$0xff] %vm253, %v533
      %550 = vst.msk [vmem:[#allocation2 + $0x90] sm:$0xff] %vm253, %v534
      %551 = vst.msk [vmem:[#allocation2 + $0x98] sm:$0xff] %vm253, %v535
      %552 = vst.msk [vmem:[#allocation2 + $0xa0] sm:$0xff] %vm253, %v536
      %553 = vst.msk [vmem:[#allocation2 + $0xa8] sm:$0xff] %vm253, %v537
      %554 = vst.msk [vmem:[#allocation2 + $0xb0] sm:$0xff] %vm253, %v538
      %555 = vst.msk [vmem:[#allocation2 + $0xb8] sm:$0xff] %vm253, %v539
      %556 = vst.msk [vmem:[#allocation2 + $0xc0] sm:$0xff] %vm253, %v540
      %557 = vst.msk [vmem:[#allocation2 + $0xc8] sm:$0xff] %vm253, %v541
      %558 = vst.msk [vmem:[#allocation2 + $0xd0] sm:$0xff] %vm253, %v542
      %559 = vst.msk [vmem:[#allocation2 + $0xd8] sm:$0xff] %vm253, %v543
      %560 = vst.msk [vmem:[#allocation2 + $0xe0] sm:$0xff] %vm253, %v544
      %561 = vst.msk [vmem:[#allocation2 + $0xe8] sm:$0xff] %vm253, %v545
      %562 = vst.msk [vmem:[#allocation2 + $0xf0] sm:$0xff] %vm253, %v546
      %563 = vst.msk [vmem:[#allocation2 + $0xf8] sm:$0xff] %vm253, %v547
      %v564 = vld [vmem:[%s219 + $0x100] sm:$0xff]
      %v565 = vld [vmem:[%s219 + $0x108] sm:$0xff]
      %v566 = vld [vmem:[%s219 + $0x110] sm:$0xff]
      %v567 = vld [vmem:[%s219 + $0x118] sm:$0xff]
      %v568 = vld [vmem:[%s219 + $0x120] sm:$0xff]
      %v569 = vld [vmem:[%s219 + $0x128] sm:$0xff]
      %v570 = vld [vmem:[%s219 + $0x130] sm:$0xff]
      %v571 = vld [vmem:[%s219 + $0x138] sm:$0xff]
      %v572 = vld [vmem:[%s219 + $0x140] sm:$0xff]
      %v573 = vld [vmem:[%s219 + $0x148] sm:$0xff]
      %v574 = vld [vmem:[%s219 + $0x150] sm:$0xff]
      %v575 = vld [vmem:[%s219 + $0x158] sm:$0xff]
      %v576 = vld [vmem:[%s219 + $0x160] sm:$0xff]
      %v577 = vld [vmem:[%s219 + $0x168] sm:$0xff]
      %v578 = vld [vmem:[%s219 + $0x170] sm:$0xff]
      %v579 = vld [vmem:[%s219 + $0x178] sm:$0xff]
      %v580 = vld [vmem:[%s1] sm:$0xff]
      %v581 = vld [vmem:[%s1 + $0x8] sm:$0xff]
      %v582 = vld [vmem:[%s1 + $0x10] sm:$0xff]
      %v583 = vld [vmem:[%s1 + $0x18] sm:$0xff]
      %v585 = vsel %vm253, %v564, 0
      %v588 = vsel %vm253, %v565, 0
      %v591 = vsel %vm253, %v566, 0
      %v594 = vsel %vm253, %v567, 0
      %v597 = vsel %vm253, %v568, 0
      %v600 = vsel %vm253, %v569, 0
      %v603 = vsel %vm253, %v570, 0
      %v606 = vsel %vm253, %v571, 0
      %v609 = vsel %vm253, %v572, 0
      %v612 = vsel %vm253, %v573, 0
      %v615 = vsel %vm253, %v574, 0
      %v618 = vsel %vm253, %v575, 0
      %v621 = vsel %vm253, %v576, 0
      %v624 = vsel %vm253, %v577, 0
      %v627 = vsel %vm253, %v578, 0
      %v630 = vsel %vm253, %v579, 0
      %632 = vmatpush.msra.mxu0 0.0
      %633 = vmatpush.msra.mxu0 0.0
      %634 = vmatpush.msra.mxu0 0.0
      %635 = vmatpush.msra.mxu0 0.0
      %636 = vmatpush.msra.mxu0 0.0
      %637 = vmatpush.msra.mxu0 0.0
      %638 = vmatpush.msra.mxu0 0.0
      %639 = vmatpush.msra.mxu0 0.0
      %640 = vmatpush.msra.mxu0 0.0
      %641 = vmatpush.msra.mxu0 0.0
      %642 = vmatpush.msra.mxu0 0.0
      %643 = vmatpush.msra.mxu0 0.0
      %644 = vmatpush.msra.mxu0 %v583
      %645 = vmatpush.msra.mxu0 %v582
      %646 = vmatpush.msra.mxu0 %v581
      %647 = vmatpush.msra.mxu0 %v580
      %648 = vmatmul.f32.gmra.mxu0 %v585
      %v649 = vpop.f32.mrf.mxu0
      %v650 = vadd.f32 %v227, %v649
      %651 = vmatmul.f32.gmra.mxu0 %v588
      %v652 = vpop.f32.mrf.mxu0
      %v653 = vadd.f32 %v227, %v652
      %654 = vmatmul.f32.gmra.mxu0 %v591
      %v655 = vpop.f32.mrf.mxu0
      %v656 = vadd.f32 %v227, %v655
      %657 = vmatmul.f32.gmra.mxu0 %v594
      %v658 = vpop.f32.mrf.mxu0
      %v659 = vadd.f32 %v227, %v658
      %660 = vmatmul.f32.gmra.mxu0 %v597
      %v661 = vpop.f32.mrf.mxu0
      %v662 = vadd.f32 %v227, %v661
      %663 = vmatmul.f32.gmra.mxu0 %v600
      %v664 = vpop.f32.mrf.mxu0
      %v665 = vadd.f32 %v227, %v664
      %666 = vmatmul.f32.gmra.mxu0 %v603
      %v667 = vpop.f32.mrf.mxu0
      %v668 = vadd.f32 %v227, %v667
      %669 = vmatmul.f32.gmra.mxu0 %v606
      %v670 = vpop.f32.mrf.mxu0
      %v671 = vadd.f32 %v227, %v670
      %672 = vmatmul.f32.gmra.mxu0 %v609
      %v673 = vpop.f32.mrf.mxu0
      %v674 = vadd.f32 %v227, %v673
      %675 = vmatmul.f32.gmra.mxu0 %v612
      %v676 = vpop.f32.mrf.mxu0
      %v677 = vadd.f32 %v227, %v676
      %678 = vmatmul.f32.gmra.mxu0 %v615
      %v679 = vpop.f32.mrf.mxu0
      %v680 = vadd.f32 %v227, %v679
      %681 = vmatmul.f32.gmra.mxu0 %v618
      %v682 = vpop.f32.mrf.mxu0
      %v683 = vadd.f32 %v227, %v682
      %684 = vmatmul.f32.gmra.mxu0 %v621
      %v685 = vpop.f32.mrf.mxu0
      %v686 = vadd.f32 %v227, %v685
      %687 = vmatmul.f32.gmra.mxu0 %v624
      %v688 = vpop.f32.mrf.mxu0
      %v689 = vadd.f32 %v227, %v688
      %690 = vmatmul.f32.gmra.mxu0 %v627
      %v691 = vpop.f32.mrf.mxu0
      %v692 = vadd.f32 %v227, %v691
      %693 = vmatmul.f32.gmra.mxu0 %v630
      %v694 = vpop.f32.mrf.mxu0
      %v695 = vadd.f32 %v227, %v694
      %696 = vdwg.mxu0
      %v697 = vmax.f32 %v650, 0.0
      %v698 = vmax.f32 %v653, 0.0
      %v699 = vmax.f32 %v656, 0.0
      %v700 = vmax.f32 %v659, 0.0
      %v701 = vmax.f32 %v662, 0.0
      %v702 = vmax.f32 %v665, 0.0
      %v703 = vmax.f32 %v668, 0.0
      %v704 = vmax.f32 %v671, 0.0
      %v705 = vmax.f32 %v674, 0.0
      %v706 = vmax.f32 %v677, 0.0
      %v707 = vmax.f32 %v680, 0.0
      %v708 = vmax.f32 %v683, 0.0
      %v709 = vmax.f32 %v686, 0.0
      %v710 = vmax.f32 %v689, 0.0
      %v711 = vmax.f32 %v692, 0.0
      %v712 = vmax.f32 %v695, 0.0
      %713 = vst.msk [vmem:[#allocation2 + $0x100] sm:$0xff] %vm253, %v697
      %714 = vst.msk [vmem:[#allocation2 + $0x108] sm:$0xff] %vm253, %v698
      %715 = vst.msk [vmem:[#allocation2 + $0x110] sm:$0xff] %vm253, %v699
      %716 = vst.msk [vmem:[#allocation2 + $0x118] sm:$0xff] %vm253, %v700
      %717 = vst.msk [vmem:[#allocation2 + $0x120] sm:$0xff] %vm253, %v701
      %718 = vst.msk [vmem:[#allocation2 + $0x128] sm:$0xff] %vm253, %v702
      %719 = vst.msk [vmem:[#allocation2 + $0x130] sm:$0xff] %vm253, %v703
      %720 = vst.msk [vmem:[#allocation2 + $0x138] sm:$0xff] %vm253, %v704
      %721 = vst.msk [vmem:[#allocation2 + $0x140] sm:$0xff] %vm253, %v705
      %722 = vst.msk [vmem:[#allocation2 + $0x148] sm:$0xff] %vm253, %v706
      %723 = vst.msk [vmem:[#allocation2 + $0x150] sm:$0xff] %vm253, %v707
      %724 = vst.msk [vmem:[#allocation2 + $0x158] sm:$0xff] %vm253, %v708
      %725 = vst.msk [vmem:[#allocation2 + $0x160] sm:$0xff] %vm253, %v709
      %726 = vst.msk [vmem:[#allocation2 + $0x168] sm:$0xff] %vm253, %v710
      %727 = vst.msk [vmem:[#allocation2 + $0x170] sm:$0xff] %vm253, %v711
      %728 = vst.msk [vmem:[#allocation2 + $0x178] sm:$0xff] %vm253, %v712
      %v729 = vld [vmem:[%s219 + $0x180] sm:$0xff]
      %v730 = vld [vmem:[%s219 + $0x188] sm:$0xff]
      %v731 = vld [vmem:[%s219 + $0x190] sm:$0xff]
      %v732 = vld [vmem:[%s219 + $0x198] sm:$0xff]
      %v733 = vld [vmem:[%s219 + $0x1a0] sm:$0xff]
      %v734 = vld [vmem:[%s219 + $0x1a8] sm:$0xff]
      %v735 = vld [vmem:[%s219 + $0x1b0] sm:$0xff]
      %v736 = vld [vmem:[%s219 + $0x1b8] sm:$0xff]
      %v737 = vld [vmem:[%s219 + $0x1c0] sm:$0xff]
      %v738 = vld [vmem:[%s219 + $0x1c8] sm:$0xff]
      %v739 = vld [vmem:[%s219 + $0x1d0] sm:$0xff]
      %v740 = vld [vmem:[%s219 + $0x1d8] sm:$0xff]
      %v741 = vld [vmem:[%s219 + $0x1e0] sm:$0xff]
      %v742 = vld [vmem:[%s219 + $0x1e8] sm:$0xff]
      %v743 = vld [vmem:[%s219 + $0x1f0] sm:$0xff]
      %v744 = vld [vmem:[%s219 + $0x1f8] sm:$0xff]
      %v745 = vld [vmem:[%s1] sm:$0xff]
      %v746 = vld [vmem:[%s1 + $0x8] sm:$0xff]
      %v747 = vld [vmem:[%s1 + $0x10] sm:$0xff]
      %v748 = vld [vmem:[%s1 + $0x18] sm:$0xff]
      %v750 = vsel %vm253, %v729, 0
      %v753 = vsel %vm253, %v730, 0
      %v756 = vsel %vm253, %v731, 0
      %v759 = vsel %vm253, %v732, 0
      %v762 = vsel %vm253, %v733, 0
      %v765 = vsel %vm253, %v734, 0
      %v768 = vsel %vm253, %v735, 0
      %v771 = vsel %vm253, %v736, 0
      %v774 = vsel %vm253, %v737, 0
      %v777 = vsel %vm253, %v738, 0
      %v780 = vsel %vm253, %v739, 0
      %v783 = vsel %vm253, %v740, 0
      %v786 = vsel %vm253, %v741, 0
      %v789 = vsel %vm253, %v742, 0
      %v792 = vsel %vm253, %v743, 0
      %v795 = vsel %vm253, %v744, 0
      %797 = vmatpush.msra.mxu0 0.0
      %798 = vmatpush.msra.mxu0 0.0
      %799 = vmatpush.msra.mxu0 0.0
      %800 = vmatpush.msra.mxu0 0.0
      %801 = vmatpush.msra.mxu0 0.0
      %802 = vmatpush.msra.mxu0 0.0
      %803 = vmatpush.msra.mxu0 0.0
      %804 = vmatpush.msra.mxu0 0.0
      %805 = vmatpush.msra.mxu0 0.0
      %806 = vmatpush.msra.mxu0 0.0
      %807 = vmatpush.msra.mxu0 0.0
      %808 = vmatpush.msra.mxu0 0.0
      %809 = vmatpush.msra.mxu0 %v748
      %810 = vmatpush.msra.mxu0 %v747
      %811 = vmatpush.msra.mxu0 %v746
      %812 = vmatpush.msra.mxu0 %v745
      %813 = vmatmul.f32.gmra.mxu0 %v750
      %v814 = vpop.f32.mrf.mxu0
      %v815 = vadd.f32 %v227, %v814
      %816 = vmatmul.f32.gmra.mxu0 %v753
      %v817 = vpop.f32.mrf.mxu0
      %v818 = vadd.f32 %v227, %v817
      %819 = vmatmul.f32.gmra.mxu0 %v756
      %v820 = vpop.f32.mrf.mxu0
      %v821 = vadd.f32 %v227, %v820
      %822 = vmatmul.f32.gmra.mxu0 %v759
      %v823 = vpop.f32.mrf.mxu0
      %v824 = vadd.f32 %v227, %v823
      %825 = vmatmul.f32.gmra.mxu0 %v762
      %v826 = vpop.f32.mrf.mxu0
      %v827 = vadd.f32 %v227, %v826
      %828 = vmatmul.f32.gmra.mxu0 %v765
      %v829 = vpop.f32.mrf.mxu0
      %v830 = vadd.f32 %v227, %v829
      %831 = vmatmul.f32.gmra.mxu0 %v768
      %v832 = vpop.f32.mrf.mxu0
      %v833 = vadd.f32 %v227, %v832
      %834 = vmatmul.f32.gmra.mxu0 %v771
      %v835 = vpop.f32.mrf.mxu0
      %v836 = vadd.f32 %v227, %v835
      %837 = vmatmul.f32.gmra.mxu0 %v774
      %v838 = vpop.f32.mrf.mxu0
      %v839 = vadd.f32 %v227, %v838
      %840 = vmatmul.f32.gmra.mxu0 %v777
      %v841 = vpop.f32.mrf.mxu0
      %v842 = vadd.f32 %v227, %v841
      %843 = vmatmul.f32.gmra.mxu0 %v780
      %v844 = vpop.f32.mrf.mxu0
      %v845 = vadd.f32 %v227, %v844
      %846 = vmatmul.f32.gmra.mxu0 %v783
      %v847 = vpop.f32.mrf.mxu0
      %v848 = vadd.f32 %v227, %v847
      %849 = vmatmul.f32.gmra.mxu0 %v786
      %v850 = vpop.f32.mrf.mxu0
      %v851 = vadd.f32 %v227, %v850
      %852 = vmatmul.f32.gmra.mxu0 %v789
      %v853 = vpop.f32.mrf.mxu0
      %v854 = vadd.f32 %v227, %v853
      %855 = vmatmul.f32.gmra.mxu0 %v792
      %v856 = vpop.f32.mrf.mxu0
      %v857 = vadd.f32 %v227, %v856
      %858 = vmatmul.f32.gmra.mxu0 %v795
      %v859 = vpop.f32.mrf.mxu0
      %v860 = vadd.f32 %v227, %v859
      %861 = vdwg.mxu0
      %v862 = vmax.f32 %v815, 0.0
      %v863 = vmax.f32 %v818, 0.0
      %v864 = vmax.f32 %v821, 0.0
      %v865 = vmax.f32 %v824, 0.0
      %v866 = vmax.f32 %v827, 0.0
      %v867 = vmax.f32 %v830, 0.0
      %v868 = vmax.f32 %v833, 0.0
      %v869 = vmax.f32 %v836, 0.0
      %v870 = vmax.f32 %v839, 0.0
      %v871 = vmax.f32 %v842, 0.0
      %v872 = vmax.f32 %v845, 0.0
      %v873 = vmax.f32 %v848, 0.0
      %v874 = vmax.f32 %v851, 0.0
      %v875 = vmax.f32 %v854, 0.0
      %v876 = vmax.f32 %v857, 0.0
      %v877 = vmax.f32 %v860, 0.0
      %878 = vst.msk [vmem:[#allocation2 + $0x180] sm:$0xff] %vm253, %v862
      %879 = vst.msk [vmem:[#allocation2 + $0x188] sm:$0xff] %vm253, %v863
      %880 = vst.msk [vmem:[#allocation2 + $0x190] sm:$0xff] %vm253, %v864
      %881 = vst.msk [vmem:[#allocation2 + $0x198] sm:$0xff] %vm253, %v865
      %882 = vst.msk [vmem:[#allocation2 + $0x1a0] sm:$0xff] %vm253, %v866
      %883 = vst.msk [vmem:[#allocation2 + $0x1a8] sm:$0xff] %vm253, %v867
      %884 = vst.msk [vmem:[#allocation2 + $0x1b0] sm:$0xff] %vm253, %v868
      %885 = vst.msk [vmem:[#allocation2 + $0x1b8] sm:$0xff] %vm253, %v869
      %886 = vst.msk [vmem:[#allocation2 + $0x1c0] sm:$0xff] %vm253, %v870
      %887 = vst.msk [vmem:[#allocation2 + $0x1c8] sm:$0xff] %vm253, %v871
      %888 = vst.msk [vmem:[#allocation2 + $0x1d0] sm:$0xff] %vm253, %v872
      %889 = vst.msk [vmem:[#allocation2 + $0x1d8] sm:$0xff] %vm253, %v873
      %890 = vst.msk [vmem:[#allocation2 + $0x1e0] sm:$0xff] %vm253, %v874
      %891 = vst.msk [vmem:[#allocation2 + $0x1e8] sm:$0xff] %vm253, %v875
      %892 = vst.msk [vmem:[#allocation2 + $0x1f0] sm:$0xff] %vm253, %v876
      %893 = vst.msk [vmem:[#allocation2 + $0x1f8] sm:$0xff] %vm253, %v877
      %v894 = vld [vmem:[%s219 + $0x200] sm:$0xff]
      %v895 = vld [vmem:[%s219 + $0x208] sm:$0xff]
      %v896 = vld [vmem:[%s219 + $0x210] sm:$0xff]
      %v897 = vld [vmem:[%s219 + $0x218] sm:$0xff]
      %v898 = vld [vmem:[%s219 + $0x220] sm:$0xff]
      %v899 = vld [vmem:[%s219 + $0x228] sm:$0xff]
      %v900 = vld [vmem:[%s219 + $0x230] sm:$0xff]
      %v901 = vld [vmem:[%s219 + $0x238] sm:$0xff]
      %v902 = vld [vmem:[%s219 + $0x240] sm:$0xff]
      %v903 = vld [vmem:[%s219 + $0x248] sm:$0xff]
      %v904 = vld [vmem:[%s219 + $0x250] sm:$0xff]
      %v905 = vld [vmem:[%s219 + $0x258] sm:$0xff]
      %v906 = vld [vmem:[%s219 + $0x260] sm:$0xff]
      %v907 = vld [vmem:[%s219 + $0x268] sm:$0xff]
      %v908 = vld [vmem:[%s219 + $0x270] sm:$0xff]
      %v909 = vld [vmem:[%s219 + $0x278] sm:$0xff]
      %v910 = vld [vmem:[%s1] sm:$0xff]
      %v911 = vld [vmem:[%s1 + $0x8] sm:$0xff]
      %v912 = vld [vmem:[%s1 + $0x10] sm:$0xff]
      %v913 = vld [vmem:[%s1 + $0x18] sm:$0xff]
      %v915 = vsel %vm253, %v894, 0
      %v918 = vsel %vm253, %v895, 0
      %v921 = vsel %vm253, %v896, 0
      %v924 = vsel %vm253, %v897, 0
      %v927 = vsel %vm253, %v898, 0
      %v930 = vsel %vm253, %v899, 0
      %v933 = vsel %vm253, %v900, 0
      %v936 = vsel %vm253, %v901, 0
      %v939 = vsel %vm253, %v902, 0
      %v942 = vsel %vm253, %v903, 0
      %v945 = vsel %vm253, %v904, 0
      %v948 = vsel %vm253, %v905, 0
      %v951 = vsel %vm253, %v906, 0
      %v954 = vsel %vm253, %v907, 0
      %v957 = vsel %vm253, %v908, 0
      %v960 = vsel %vm253, %v909, 0
      %962 = vmatpush.msra.mxu0 0.0
      %963 = vmatpush.msra.mxu0 0.0
      %964 = vmatpush.msra.mxu0 0.0
      %965 = vmatpush.msra.mxu0 0.0
      %966 = vmatpush.msra.mxu0 0.0
      %967 = vmatpush.msra.mxu0 0.0
      %968 = vmatpush.msra.mxu0 0.0
      %969 = vmatpush.msra.mxu0 0.0
      %970 = vmatpush.msra.mxu0 0.0
      %971 = vmatpush.msra.mxu0 0.0
      %972 = vmatpush.msra.mxu0 0.0
      %973 = vmatpush.msra.mxu0 0.0
      %974 = vmatpush.msra.mxu0 %v913
      %975 = vmatpush.msra.mxu0 %v912
      %976 = vmatpush.msra.mxu0 %v911
      %977 = vmatpush.msra.mxu0 %v910
      %978 = vmatmul.f32.gmra.mxu0 %v915
      %v979 = vpop.f32.mrf.mxu0
      %v980 = vadd.f32 %v227, %v979
      %981 = vmatmul.f32.gmra.mxu0 %v918
      %v982 = vpop.f32.mrf.mxu0
      %v983 = vadd.f32 %v227, %v982
      %984 = vmatmul.f32.gmra.mxu0 %v921
      %v985 = vpop.f32.mrf.mxu0
      %v986 = vadd.f32 %v227, %v985
      %987 = vmatmul.f32.gmra.mxu0 %v924
      %v988 = vpop.f32.mrf.mxu0
      %v989 = vadd.f32 %v227, %v988
      %990 = vmatmul.f32.gmra.mxu0 %v927
      %v991 = vpop.f32.mrf.mxu0
      %v992 = vadd.f32 %v227, %v991
      %993 = vmatmul.f32.gmra.mxu0 %v930
      %v994 = vpop.f32.mrf.mxu0
      %v995 = vadd.f32 %v227, %v994
      %996 = vmatmul.f32.gmra.mxu0 %v933
      %v997 = vpop.f32.mrf.mxu0
      %v998 = vadd.f32 %v227, %v997
      %999 = vmatmul.f32.gmra.mxu0 %v936
      %v1000 = vpop.f32.mrf.mxu0
      %v1001 = vadd.f32 %v227, %v1000
      %1002 = vmatmul.f32.gmra.mxu0 %v939
      %v1003 = vpop.f32.mrf.mxu0
      %v1004 = vadd.f32 %v227, %v1003
      %1005 = vmatmul.f32.gmra.mxu0 %v942
      %v1006 = vpop.f32.mrf.mxu0
      %v1007 = vadd.f32 %v227, %v1006
      %1008 = vmatmul.f32.gmra.mxu0 %v945
      %v1009 = vpop.f32.mrf.mxu0
      %v1010 = vadd.f32 %v227, %v1009
      %1011 = vmatmul.f32.gmra.mxu0 %v948
      %v1012 = vpop.f32.mrf.mxu0
      %v1013 = vadd.f32 %v227, %v1012
      %1014 = vmatmul.f32.gmra.mxu0 %v951
      %v1015 = vpop.f32.mrf.mxu0
      %v1016 = vadd.f32 %v227, %v1015
      %1017 = vmatmul.f32.gmra.mxu0 %v954
      %v1018 = vpop.f32.mrf.mxu0
      %v1019 = vadd.f32 %v227, %v1018
      %1020 = vmatmul.f32.gmra.mxu0 %v957
      %v1021 = vpop.f32.mrf.mxu0
      %v1022 = vadd.f32 %v227, %v1021
      %1023 = vmatmul.f32.gmra.mxu0 %v960
      %v1024 = vpop.f32.mrf.mxu0
      %v1025 = vadd.f32 %v227, %v1024
      %1026 = vdwg.mxu0
      %v1027 = vmax.f32 %v980, 0.0
      %v1028 = vmax.f32 %v983, 0.0
      %v1029 = vmax.f32 %v986, 0.0
      %v1030 = vmax.f32 %v989, 0.0
      %v1031 = vmax.f32 %v992, 0.0
      %v1032 = vmax.f32 %v995, 0.0
      %v1033 = vmax.f32 %v998, 0.0
      %v1034 = vmax.f32 %v1001, 0.0
      %v1035 = vmax.f32 %v1004, 0.0
      %v1036 = vmax.f32 %v1007, 0.0
      %v1037 = vmax.f32 %v1010, 0.0
      %v1038 = vmax.f32 %v1013, 0.0
      %v1039 = vmax.f32 %v1016, 0.0
      %v1040 = vmax.f32 %v1019, 0.0
      %v1041 = vmax.f32 %v1022, 0.0
      %v1042 = vmax.f32 %v1025, 0.0
      %1043 = vst.msk [vmem:[#allocation2 + $0x200] sm:$0xff] %vm253, %v1027
      %1044 = vst.msk [vmem:[#allocation2 + $0x208] sm:$0xff] %vm253, %v1028
      %1045 = vst.msk [vmem:[#allocation2 + $0x210] sm:$0xff] %vm253, %v1029
      %1046 = vst.msk [vmem:[#allocation2 + $0x218] sm:$0xff] %vm253, %v1030
      %1047 = vst.msk [vmem:[#allocation2 + $0x220] sm:$0xff] %vm253, %v1031
      %1048 = vst.msk [vmem:[#allocation2 + $0x228] sm:$0xff] %vm253, %v1032
      %1049 = vst.msk [vmem:[#allocation2 + $0x230] sm:$0xff] %vm253, %v1033
      %1050 = vst.msk [vmem:[#allocation2 + $0x238] sm:$0xff] %vm253, %v1034
      %1051 = vst.msk [vmem:[#allocation2 + $0x240] sm:$0xff] %vm253, %v1035
      %1052 = vst.msk [vmem:[#allocation2 + $0x248] sm:$0xff] %vm253, %v1036
      %1053 = vst.msk [vmem:[#allocation2 + $0x250] sm:$0xff] %vm253, %v1037
      %1054 = vst.msk [vmem:[#allocation2 + $0x258] sm:$0xff] %vm253, %v1038
      %1055 = vst.msk [vmem:[#allocation2 + $0x260] sm:$0xff] %vm253, %v1039
      %1056 = vst.msk [vmem:[#allocation2 + $0x268] sm:$0xff] %vm253, %v1040
      %1057 = vst.msk [vmem:[#allocation2 + $0x270] sm:$0xff] %vm253, %v1041
      %1058 = vst.msk [vmem:[#allocation2 + $0x278] sm:$0xff] %vm253, %v1042
      %v1059 = vld [vmem:[%s219 + $0x280] sm:$0xff]
      %v1060 = vld [vmem:[%s219 + $0x288] sm:$0xff]
      %v1061 = vld [vmem:[%s219 + $0x290] sm:$0xff]
      %v1062 = vld [vmem:[%s219 + $0x298] sm:$0xff]
      %v1063 = vld [vmem:[%s219 + $0x2a0] sm:$0xff]
      %v1064 = vld [vmem:[%s219 + $0x2a8] sm:$0xff]
      %v1065 = vld [vmem:[%s219 + $0x2b0] sm:$0xff]
      %v1066 = vld [vmem:[%s219 + $0x2b8] sm:$0xff]
      %v1067 = vld [vmem:[%s219 + $0x2c0] sm:$0xff]
      %v1068 = vld [vmem:[%s219 + $0x2c8] sm:$0xff]
      %v1069 = vld [vmem:[%s219 + $0x2d0] sm:$0xff]
      %v1070 = vld [vmem:[%s219 + $0x2d8] sm:$0xff]
      %v1071 = vld [vmem:[%s219 + $0x2e0] sm:$0xff]
      %v1072 = vld [vmem:[%s219 + $0x2e8] sm:$0xff]
      %v1073 = vld [vmem:[%s219 + $0x2f0] sm:$0xff]
      %v1074 = vld [vmem:[%s219 + $0x2f8] sm:$0xff]
      %v1075 = vld [vmem:[%s1] sm:$0xff]
      %v1076 = vld [vmem:[%s1 + $0x8] sm:$0xff]
      %v1077 = vld [vmem:[%s1 + $0x10] sm:$0xff]
      %v1078 = vld [vmem:[%s1 + $0x18] sm:$0xff]
      %v1080 = vsel %vm253, %v1059, 0
      %v1083 = vsel %vm253, %v1060, 0
      %v1086 = vsel %vm253, %v1061, 0
      %v1089 = vsel %vm253, %v1062, 0
      %v1092 = vsel %vm253, %v1063, 0
      %v1095 = vsel %vm253, %v1064, 0
      %v1098 = vsel %vm253, %v1065, 0
      %v1101 = vsel %vm253, %v1066, 0
      %v1104 = vsel %vm253, %v1067, 0
      %v1107 = vsel %vm253, %v1068, 0
      %v1110 = vsel %vm253, %v1069, 0
      %v1113 = vsel %vm253, %v1070, 0
      %v1116 = vsel %vm253, %v1071, 0
      %v1119 = vsel %vm253, %v1072, 0
      %v1122 = vsel %vm253, %v1073, 0
      %v1125 = vsel %vm253, %v1074, 0
      %1127 = vmatpush.msra.mxu0 0.0
      %1128 = vmatpush.msra.mxu0 0.0
      %1129 = vmatpush.msra.mxu0 0.0
      %1130 = vmatpush.msra.mxu0 0.0
      %1131 = vmatpush.msra.mxu0 0.0
      %1132 = vmatpush.msra.mxu0 0.0
      %1133 = vmatpush.msra.mxu0 0.0
      %1134 = vmatpush.msra.mxu0 0.0
      %1135 = vmatpush.msra.mxu0 0.0
      %1136 = vmatpush.msra.mxu0 0.0
      %1137 = vmatpush.msra.mxu0 0.0
      %1138 = vmatpush.msra.mxu0 0.0
      %1139 = vmatpush.msra.mxu0 %v1078
      %1140 = vmatpush.msra.mxu0 %v1077
      %1141 = vmatpush.msra.mxu0 %v1076
      %1142 = vmatpush.msra.mxu0 %v1075
      %1143 = vmatmul.f32.gmra.mxu0 %v1080
      %v1144 = vpop.f32.mrf.mxu0
      %v1145 = vadd.f32 %v227, %v1144
      %1146 = vmatmul.f32.gmra.mxu0 %v1083
      %v1147 = vpop.f32.mrf.mxu0
      %v1148 = vadd.f32 %v227, %v1147
      %1149 = vmatmul.f32.gmra.mxu0 %v1086
      %v1150 = vpop.f32.mrf.mxu0
      %v1151 = vadd.f32 %v227, %v1150
      %1152 = vmatmul.f32.gmra.mxu0 %v1089
      %v1153 = vpop.f32.mrf.mxu0
      %v1154 = vadd.f32 %v227, %v1153
      %1155 = vmatmul.f32.gmra.mxu0 %v1092
      %v1156 = vpop.f32.mrf.mxu0
      %v1157 = vadd.f32 %v227, %v1156
      %1158 = vmatmul.f32.gmra.mxu0 %v1095
      %v1159 = vpop.f32.mrf.mxu0
      %v1160 = vadd.f32 %v227, %v1159
      %1161 = vmatmul.f32.gmra.mxu0 %v1098
      %v1162 = vpop.f32.mrf.mxu0
      %v1163 = vadd.f32 %v227, %v1162
      %1164 = vmatmul.f32.gmra.mxu0 %v1101
      %v1165 = vpop.f32.mrf.mxu0
      %v1166 = vadd.f32 %v227, %v1165
      %1167 = vmatmul.f32.gmra.mxu0 %v1104
      %v1168 = vpop.f32.mrf.mxu0
      %v1169 = vadd.f32 %v227, %v1168
      %1170 = vmatmul.f32.gmra.mxu0 %v1107
      %v1171 = vpop.f32.mrf.mxu0
      %v1172 = vadd.f32 %v227, %v1171
      %1173 = vmatmul.f32.gmra.mxu0 %v1110
      %v1174 = vpop.f32.mrf.mxu0
      %v1175 = vadd.f32 %v227, %v1174
      %1176 = vmatmul.f32.gmra.mxu0 %v1113
      %v1177 = vpop.f32.mrf.mxu0
      %v1178 = vadd.f32 %v227, %v1177
      %1179 = vmatmul.f32.gmra.mxu0 %v1116
      %v1180 = vpop.f32.mrf.mxu0
      %v1181 = vadd.f32 %v227, %v1180
      %1182 = vmatmul.f32.gmra.mxu0 %v1119
      %v1183 = vpop.f32.mrf.mxu0
      %v1184 = vadd.f32 %v227, %v1183
      %1185 = vmatmul.f32.gmra.mxu0 %v1122
      %v1186 = vpop.f32.mrf.mxu0
      %v1187 = vadd.f32 %v227, %v1186
      %1188 = vmatmul.f32.gmra.mxu0 %v1125
      %v1189 = vpop.f32.mrf.mxu0
      %v1190 = vadd.f32 %v227, %v1189
      %1191 = vdwg.mxu0
      %v1192 = vmax.f32 %v1145, 0.0
      %v1193 = vmax.f32 %v1148, 0.0
      %v1194 = vmax.f32 %v1151, 0.0
      %v1195 = vmax.f32 %v1154, 0.0
      %v1196 = vmax.f32 %v1157, 0.0
      %v1197 = vmax.f32 %v1160, 0.0
      %v1198 = vmax.f32 %v1163, 0.0
      %v1199 = vmax.f32 %v1166, 0.0
      %v1200 = vmax.f32 %v1169, 0.0
      %v1201 = vmax.f32 %v1172, 0.0
      %v1202 = vmax.f32 %v1175, 0.0
      %v1203 = vmax.f32 %v1178, 0.0
      %v1204 = vmax.f32 %v1181, 0.0
      %v1205 = vmax.f32 %v1184, 0.0
      %v1206 = vmax.f32 %v1187, 0.0
      %v1207 = vmax.f32 %v1190, 0.0
      %1208 = vst.msk [vmem:[#allocation2 + $0x280] sm:$0xff] %vm253, %v1192
      %1209 = vst.msk [vmem:[#allocation2 + $0x288] sm:$0xff] %vm253, %v1193
      %1210 = vst.msk [vmem:[#allocation2 + $0x290] sm:$0xff] %vm253, %v1194
      %1211 = vst.msk [vmem:[#allocation2 + $0x298] sm:$0xff] %vm253, %v1195
      %1212 = vst.msk [vmem:[#allocation2 + $0x2a0] sm:$0xff] %vm253, %v1196
      %1213 = vst.msk [vmem:[#allocation2 + $0x2a8] sm:$0xff] %vm253, %v1197
      %1214 = vst.msk [vmem:[#allocation2 + $0x2b0] sm:$0xff] %vm253, %v1198
      %1215 = vst.msk [vmem:[#allocation2 + $0x2b8] sm:$0xff] %vm253, %v1199
      %1216 = vst.msk [vmem:[#allocation2 + $0x2c0] sm:$0xff] %vm253, %v1200
      %1217 = vst.msk [vmem:[#allocation2 + $0x2c8] sm:$0xff] %vm253, %v1201
      %1218 = vst.msk [vmem:[#allocation2 + $0x2d0] sm:$0xff] %vm253, %v1202
      %1219 = vst.msk [vmem:[#allocation2 + $0x2d8] sm:$0xff] %vm253, %v1203
      %1220 = vst.msk [vmem:[#allocation2 + $0x2e0] sm:$0xff] %vm253, %v1204
      %1221 = vst.msk [vmem:[#allocation2 + $0x2e8] sm:$0xff] %vm253, %v1205
      %1222 = vst.msk [vmem:[#allocation2 + $0x2f0] sm:$0xff] %vm253, %v1206
      %1223 = vst.msk [vmem:[#allocation2 + $0x2f8] sm:$0xff] %vm253, %v1207
      %v1224 = vld [vmem:[#allocation2] sm:$0xff]
      %v1225 = vld [vmem:[#allocation2 + $0x8] sm:$0xff]
      %v1226 = vld [vmem:[#allocation2 + $0x10] sm:$0xff]
      %v1227 = vld [vmem:[#allocation2 + $0x18] sm:$0xff]
      %v1228 = vld [vmem:[#allocation2 + $0x20] sm:$0xff]
      %v1229 = vld [vmem:[#allocation2 + $0x28] sm:$0xff]
      %v1230 = vld [vmem:[#allocation2 + $0x30] sm:$0xff]
      %v1231 = vld [vmem:[#allocation2 + $0x38] sm:$0xff]
      %v1232 = vld [vmem:[#allocation2 + $0x40] sm:$0xff]
      %v1233 = vld [vmem:[#allocation2 + $0x48] sm:$0xff]
      %v1234 = vld [vmem:[#allocation2 + $0x50] sm:$0xff]
      %v1235 = vld [vmem:[#allocation2 + $0x58] sm:$0xff]
      %v1236 = vld [vmem:[#allocation2 + $0x60] sm:$0xff]
      %v1237 = vld [vmem:[#allocation2 + $0x68] sm:$0xff]
      %v1238 = vld [vmem:[#allocation2 + $0x1] sm:$0xff]
      %v1239 = vld [vmem:[#allocation2 + $0x9] sm:$0xff]
      %v1240 = vld [vmem:[#allocation2 + $0x11] sm:$0xff]
      %v1241 = vld [vmem:[#allocation2 + $0x19] sm:$0xff]
      %v1242 = vld [vmem:[#allocation2 + $0x21] sm:$0xff]
      %v1243 = vld [vmem:[#allocation2 + $0x29] sm:$0xff]
      %v1244 = vld [vmem:[#allocation2 + $0x31] sm:$0xff]
      %v1245 = vld [vmem:[#allocation2 + $0x39] sm:$0xff]
      %v1246 = vld [vmem:[#allocation2 + $0x41] sm:$0xff]
      %v1247 = vld [vmem:[#allocation2 + $0x49] sm:$0xff]
      %v1248 = vld [vmem:[#allocation2 + $0x51] sm:$0xff]
      %v1249 = vld [vmem:[#allocation2 + $0x59] sm:$0xff]
      %v1250 = vld [vmem:[#allocation2 + $0x61] sm:$0xff]
      %v1251 = vld [vmem:[#allocation2 + $0x69] sm:$0xff]
      %v1252 = vld [vmem:[#allocation2 + $0x2] sm:$0xff]
      %v1253 = vld [vmem:[#allocation2 + $0xa] sm:$0xff]
      %v1254 = vld [vmem:[#allocation2 + $0x12] sm:$0xff]
      %v1255 = vld [vmem:[#allocation2 + $0x1a] sm:$0xff]
      %v1256 = vld [vmem:[#allocation2 + $0x22] sm:$0xff]
      %v1257 = vld [vmem:[#allocation2 + $0x2a] sm:$0xff]
      %v1258 = vld [vmem:[#allocation2 + $0x32] sm:$0xff]
      %v1259 = vld [vmem:[#allocation2 + $0x3a] sm:$0xff]
      %v1260 = vld [vmem:[#allocation2 + $0x42] sm:$0xff]
      %v1261 = vld [vmem:[#allocation2 + $0x4a] sm:$0xff]
      %v1262 = vld [vmem:[#allocation2 + $0x52] sm:$0xff]
      %v1263 = vld [vmem:[#allocation2 + $0x5a] sm:$0xff]
      %v1264 = vld [vmem:[#allocation2 + $0x62] sm:$0xff]
      %v1265 = vld [vmem:[#allocation2 + $0x6a] sm:$0xff]
      %v1266 = vld [vmem:[#allocation2 + $0x1c] sm:$0xff]
      %v1267 = vld [vmem:[#allocation2 + $0x24] sm:$0xff]
      %v1268 = vld [vmem:[#allocation2 + $0x2c] sm:$0xff]
      %v1269 = vld [vmem:[#allocation2 + $0x34] sm:$0xff]
      %v1270 = vld [vmem:[#allocation2 + $0x3c] sm:$0xff]
      %v1271 = vld [vmem:[#allocation2 + $0x44] sm:$0xff]
      %v1272 = vld [vmem:[#allocation2 + $0x4c] sm:$0xff]
      %v1273 = vld [vmem:[#allocation2 + $0x54] sm:$0xff]
      %v1274 = vld [vmem:[#allocation2 + $0x5c] sm:$0xff]
      %v1275 = vld [vmem:[#allocation2 + $0x64] sm:$0xff]
      %v1276 = vld [vmem:[#allocation2 + $0x6c] sm:$0xff]
      %v1277 = vld [vmem:[#allocation2 + $0x74] sm:$0xff]
      %v1278 = vld [vmem:[#allocation2 + $0x7c] sm:$0xff]
      %v1279 = vld [vmem:[#allocation2 + $0x84] sm:$0xff]
      %v1280 = vld [vmem:[#allocation2 + $0x1d] sm:$0xff]
      %v1281 = vld [vmem:[#allocation2 + $0x25] sm:$0xff]
      %v1282 = vld [vmem:[#allocation2 + $0x2d] sm:$0xff]
      %v1283 = vld [vmem:[#allocation2 + $0x35] sm:$0xff]
      %v1284 = vld [vmem:[#allocation2 + $0x3d] sm:$0xff]
      %v1285 = vld [vmem:[#allocation2 + $0x45] sm:$0xff]
      %v1286 = vld [vmem:[#allocation2 + $0x4d] sm:$0xff]
      %v1287 = vld [vmem:[#allocation2 + $0x55] sm:$0xff]
      %v1288 = vld [vmem:[#allocation2 + $0x5d] sm:$0xff]
      %v1289 = vld [vmem:[#allocation2 + $0x65] sm:$0xff]
      %v1290 = vld [vmem:[#allocation2 + $0x6d] sm:$0xff]
      %v1291 = vld [vmem:[#allocation2 + $0x75] sm:$0xff]
      %v1292 = vld [vmem:[#allocation2 + $0x7d] sm:$0xff]
      %v1293 = vld [vmem:[#allocation2 + $0x85] sm:$0xff]
      %v1294 = vld [vmem:[#allocation2 + $0x1e] sm:$0xff]
      %v1295 = vld [vmem:[#allocation2 + $0x26] sm:$0xff]
      %v1296 = vld [vmem:[#allocation2 + $0x2e] sm:$0xff]
      %v1297 = vld [vmem:[#allocation2 + $0x36] sm:$0xff]
      %v1298 = vld [vmem:[#allocation2 + $0x3e] sm:$0xff]
      %v1299 = vld [vmem:[#allocation2 + $0x46] sm:$0xff]
      %v1300 = vld [vmem:[#allocation2 + $0x4e] sm:$0xff]
      %v1301 = vld [vmem:[#allocation2 + $0x56] sm:$0xff]
      %v1302 = vld [vmem:[#allocation2 + $0x5e] sm:$0xff]
      %v1303 = vld [vmem:[#allocation2 + $0x66] sm:$0xff]
      %v1304 = vld [vmem:[#allocation2 + $0x6e] sm:$0xff]
      %v1305 = vld [vmem:[#allocation2 + $0x76] sm:$0xff]
      %v1306 = vld [vmem:[#allocation2 + $0x7e] sm:$0xff]
      %v1307 = vld [vmem:[#allocation2 + $0x86] sm:$0xff]
      %v1308 = vld [vmem:[#allocation2 + $0x70] sm:$0xff]
      %v1309 = vld [vmem:[#allocation2 + $0x78] sm:$0xff]
      %v1310 = vld [vmem:[#allocation2 + $0x80] sm:$0xff]
      %v1311 = vld [vmem:[#allocation2 + $0x88] sm:$0xff]
      %v1312 = vld [vmem:[#allocation2 + $0x90] sm:$0xff]
      %v1313 = vld [vmem:[#allocation2 + $0x98] sm:$0xff]
      %v1314 = vld [vmem:[#allocation2 + $0xa0] sm:$0xff]
      %v1315 = vld [vmem:[#allocation2 + $0x71] sm:$0xff]
      %v1316 = vld [vmem:[#allocation2 + $0x79] sm:$0xff]
      %v1317 = vld [vmem:[#allocation2 + $0x81] sm:$0xff]
      %v1318 = vld [vmem:[#allocation2 + $0x89] sm:$0xff]
      %v1319 = vld [vmem:[#allocation2 + $0x91] sm:$0xff]
      %v1320 = vld [vmem:[#allocation2 + $0x99] sm:$0xff]
      %v1321 = vld [vmem:[#allocation2 + $0xa1] sm:$0xff]
      %v1322 = vld [vmem:[#allocation2 + $0x72] sm:$0xff]
      %v1323 = vld [vmem:[#allocation2 + $0x7a] sm:$0xff]
      %v1324 = vld [vmem:[#allocation2 + $0x82] sm:$0xff]
      %v1325 = vld [vmem:[#allocation2 + $0x8a] sm:$0xff]
      %v1326 = vld [vmem:[#allocation2 + $0x92] sm:$0xff]
      %v1327 = vld [vmem:[#allocation2 + $0x9a] sm:$0xff]
      %v1328 = vld [vmem:[#allocation2 + $0xa2] sm:$0xff]
      %1343 = vrot.lane.b32.xlu0 %v1238, 32
      %v1344 = vpop.permute.xlu0 %1343
      %1345 = vrot.lane.b32.xlu0 %v1239, 32
      %v1346 = vpop.permute.xlu0 %1345
      %1347 = vrot.lane.b32.xlu0 %v1240, 32
      %v1348 = vpop.permute.xlu0 %1347
      %1349 = vrot.lane.b32.xlu0 %v1241, 32
      %v1350 = vpop.permute.xlu0 %1349
      %1351 = vrot.lane.b32.xlu0 %v1242, 32
      %v1352 = vpop.permute.xlu0 %1351
      %1353 = vrot.lane.b32.xlu0 %v1243, 32
      %v1354 = vpop.permute.xlu0 %1353
      %1355 = vrot.lane.b32.xlu0 %v1244, 32
      %v1356 = vpop.permute.xlu0 %1355
      %1357 = vrot.lane.b32.xlu0 %v1245, 32
      %v1358 = vpop.permute.xlu0 %1357
      %1359 = vrot.lane.b32.xlu0 %v1246, 32
      %v1360 = vpop.permute.xlu0 %1359
      %1361 = vrot.lane.b32.xlu0 %v1247, 32
      %v1362 = vpop.permute.xlu0 %1361
      %1363 = vrot.lane.b32.xlu0 %v1248, 32
      %v1364 = vpop.permute.xlu0 %1363
      %1365 = vrot.lane.b32.xlu0 %v1249, 32
      %v1366 = vpop.permute.xlu0 %1365
      %1367 = vrot.lane.b32.xlu0 %v1250, 32
      %v1368 = vpop.permute.xlu0 %1367
      %1369 = vrot.lane.b32.xlu0 %v1251, 32
      %v1370 = vpop.permute.xlu0 %1369
      %1399 = vrot.lane.b32.xlu0 %v1252, 64
      %v1400 = vpop.permute.xlu0 %1399
      %1401 = vrot.lane.b32.xlu0 %v1253, 64
      %v1402 = vpop.permute.xlu0 %1401
      %1403 = vrot.lane.b32.xlu0 %v1254, 64
      %v1404 = vpop.permute.xlu0 %1403
      %1405 = vrot.lane.b32.xlu0 %v1255, 64
      %v1406 = vpop.permute.xlu0 %1405
      %1407 = vrot.lane.b32.xlu0 %v1256, 64
      %v1408 = vpop.permute.xlu0 %1407
      %1409 = vrot.lane.b32.xlu0 %v1257, 64
      %v1410 = vpop.permute.xlu0 %1409
      %1411 = vrot.lane.b32.xlu0 %v1258, 64
      %v1412 = vpop.permute.xlu0 %1411
      %1413 = vrot.lane.b32.xlu0 %v1259, 64
      %v1414 = vpop.permute.xlu0 %1413
      %1415 = vrot.lane.b32.xlu0 %v1260, 64
      %v1416 = vpop.permute.xlu0 %1415
      %1417 = vrot.lane.b32.xlu0 %v1261, 64
      %v1418 = vpop.permute.xlu0 %1417
      %1419 = vrot.lane.b32.xlu0 %v1262, 64
      %v1420 = vpop.permute.xlu0 %1419
      %1421 = vrot.lane.b32.xlu0 %v1263, 64
      %v1422 = vpop.permute.xlu0 %1421
      %1423 = vrot.lane.b32.xlu0 %v1264, 64
      %v1424 = vpop.permute.xlu0 %1423
      %1425 = vrot.lane.b32.xlu0 %v1265, 64
      %v1426 = vpop.permute.xlu0 %1425
      %1455 = vrot.lane.b32.xlu0 %v1266, 96
      %v1456 = vpop.permute.xlu0 %1455
      %1457 = vrot.lane.b32.xlu0 %v1267, 96
      %v1458 = vpop.permute.xlu0 %1457
      %1459 = vrot.lane.b32.xlu0 %v1268, 96
      %v1460 = vpop.permute.xlu0 %1459
      %1461 = vrot.lane.b32.xlu0 %v1269, 96
      %v1462 = vpop.permute.xlu0 %1461
      %1463 = vrot.lane.b32.xlu0 %v1270, 96
      %v1464 = vpop.permute.xlu0 %1463
      %1465 = vrot.lane.b32.xlu0 %v1271, 96
      %v1466 = vpop.permute.xlu0 %1465
      %1467 = vrot.lane.b32.xlu0 %v1272, 96
      %v1468 = vpop.permute.xlu0 %1467
      %1469 = vrot.lane.b32.xlu0 %v1273, 96
      %v1470 = vpop.permute.xlu0 %1469
      %1471 = vrot.lane.b32.xlu0 %v1274, 96
      %v1472 = vpop.permute.xlu0 %1471
      %1473 = vrot.lane.b32.xlu0 %v1275, 96
      %v1474 = vpop.permute.xlu0 %1473
      %1475 = vrot.lane.b32.xlu0 %v1276, 96
      %v1476 = vpop.permute.xlu0 %1475
      %1477 = vrot.lane.b32.xlu0 %v1277, 96
      %v1478 = vpop.permute.xlu0 %1477
      %1479 = vrot.lane.b32.xlu0 %v1278, 96
      %v1480 = vpop.permute.xlu0 %1479
      %1481 = vrot.lane.b32.xlu0 %v1279, 96
      %v1482 = vpop.permute.xlu0 %1481
      %1511 = vrot.lane.b32.xlu0 %v1294, 32
      %v1512 = vpop.permute.xlu0 %1511
      %1513 = vrot.lane.b32.xlu0 %v1295, 32
      %v1514 = vpop.permute.xlu0 %1513
      %1515 = vrot.lane.b32.xlu0 %v1296, 32
      %v1516 = vpop.permute.xlu0 %1515
      %1517 = vrot.lane.b32.xlu0 %v1297, 32
      %v1518 = vpop.permute.xlu0 %1517
      %1519 = vrot.lane.b32.xlu0 %v1298, 32
      %v1520 = vpop.permute.xlu0 %1519
      %1521 = vrot.lane.b32.xlu0 %v1299, 32
      %v1522 = vpop.permute.xlu0 %1521
      %1523 = vrot.lane.b32.xlu0 %v1300, 32
      %v1524 = vpop.permute.xlu0 %1523
      %1525 = vrot.lane.b32.xlu0 %v1301, 32
      %v1526 = vpop.permute.xlu0 %1525
      %1527 = vrot.lane.b32.xlu0 %v1302, 32
      %v1528 = vpop.permute.xlu0 %1527
      %1529 = vrot.lane.b32.xlu0 %v1303, 32
      %v1530 = vpop.permute.xlu0 %1529
      %1531 = vrot.lane.b32.xlu0 %v1304, 32
      %v1532 = vpop.permute.xlu0 %1531
      %1533 = vrot.lane.b32.xlu0 %v1305, 32
      %v1534 = vpop.permute.xlu0 %1533
      %1535 = vrot.lane.b32.xlu0 %v1306, 32
      %v1536 = vpop.permute.xlu0 %1535
      %1537 = vrot.lane.b32.xlu0 %v1307, 32
      %v1538 = vpop.permute.xlu0 %1537
      %1567 = vrot.lane.b32.xlu0 %v1231, 64
      %v1568 = vpop.permute.xlu0 %1567
      %1569 = vrot.lane.b32.xlu0 %v1232, 64
      %v1570 = vpop.permute.xlu0 %1569
      %1571 = vrot.lane.b32.xlu0 %v1233, 64
      %v1572 = vpop.permute.xlu0 %1571
      %1573 = vrot.lane.b32.xlu0 %v1234, 64
      %v1574 = vpop.permute.xlu0 %1573
      %1575 = vrot.lane.b32.xlu0 %v1235, 64
      %v1576 = vpop.permute.xlu0 %1575
      %1577 = vrot.lane.b32.xlu0 %v1236, 64
      %v1578 = vpop.permute.xlu0 %1577
      %1579 = vrot.lane.b32.xlu0 %v1237, 64
      %v1580 = vpop.permute.xlu0 %1579
      %1581 = vrot.lane.b32.xlu0 %v1308, 64
      %v1582 = vpop.permute.xlu0 %1581
      %1583 = vrot.lane.b32.xlu0 %v1309, 64
      %v1584 = vpop.permute.xlu0 %1583
      %1585 = vrot.lane.b32.xlu0 %v1310, 64
      %v1586 = vpop.permute.xlu0 %1585
      %1587 = vrot.lane.b32.xlu0 %v1311, 64
      %v1588 = vpop.permute.xlu0 %1587
      %1589 = vrot.lane.b32.xlu0 %v1312, 64
      %v1590 = vpop.permute.xlu0 %1589
      %1591 = vrot.lane.b32.xlu0 %v1313, 64
      %v1592 = vpop.permute.xlu0 %1591
      %1593 = vrot.lane.b32.xlu0 %v1314, 64
      %v1594 = vpop.permute.xlu0 %1593
      %1616 = vrot.lane.b32.xlu0 %v1245, 96
      %v1617 = vpop.permute.xlu0 %1616
      %1618 = vrot.lane.b32.xlu0 %v1246, 96
      %v1619 = vpop.permute.xlu0 %1618
      %1620 = vrot.lane.b32.xlu0 %v1247, 96
      %v1621 = vpop.permute.xlu0 %1620
      %1622 = vrot.lane.b32.xlu0 %v1248, 96
      %v1623 = vpop.permute.xlu0 %1622
      %1624 = vrot.lane.b32.xlu0 %v1249, 96
      %v1625 = vpop.permute.xlu0 %1624
      %1626 = vrot.lane.b32.xlu0 %v1250, 96
      %v1627 = vpop.permute.xlu0 %1626
      %1628 = vrot.lane.b32.xlu0 %v1251, 96
      %v1629 = vpop.permute.xlu0 %1628
      %1630 = vrot.lane.b32.xlu0 %v1315, 96
      %v1631 = vpop.permute.xlu0 %1630
      %1632 = vrot.lane.b32.xlu0 %v1316, 96
      %v1633 = vpop.permute.xlu0 %1632
      %1634 = vrot.lane.b32.xlu0 %v1317, 96
      %v1635 = vpop.permute.xlu0 %1634
      %1636 = vrot.lane.b32.xlu0 %v1318, 96
      %v1637 = vpop.permute.xlu0 %1636
      %1638 = vrot.lane.b32.xlu0 %v1319, 96
      %v1639 = vpop.permute.xlu0 %1638
      %1640 = vrot.lane.b32.xlu0 %v1320, 96
      %v1641 = vpop.permute.xlu0 %1640
      %1642 = vrot.lane.b32.xlu0 %v1321, 96
      %v1643 = vpop.permute.xlu0 %1642
      %v1658 = vsel %vm253, %v1224, %v1344
      %v1659 = vsel %vm253, %v1225, %v1346
      %v1660 = vsel %vm253, %v1226, %v1348
      %v1661 = vsel %vm253, %v1227, %v1350
      %v1662 = vsel %vm253, %v1228, %v1352
      %v1663 = vsel %vm253, %v1229, %v1354
      %v1664 = vsel %vm253, %v1230, %v1356
      %v1665 = vsel %vm253, %v1231, %v1358
      %v1666 = vsel %vm253, %v1232, %v1360
      %v1667 = vsel %vm253, %v1233, %v1362
      %v1668 = vsel %vm253, %v1234, %v1364
      %v1669 = vsel %vm253, %v1235, %v1366
      %v1670 = vsel %vm253, %v1236, %v1368
      %v1671 = vsel %vm253, %v1237, %v1370
      %vm1672 = vcmask 523264
      %v1673 = vsel %vm1672, %v1658, %v1400
      %v1674 = vsel %vm1672, %v1659, %v1402
      %v1675 = vsel %vm1672, %v1660, %v1404
      %v1676 = vsel %vm1672, %v1661, %v1406
      %v1677 = vsel %vm1672, %v1662, %v1408
      %v1678 = vsel %vm1672, %v1663, %v1410
      %v1679 = vsel %vm1672, %v1664, %v1412
      %v1680 = vsel %vm1672, %v1665, %v1414
      %v1681 = vsel %vm1672, %v1666, %v1416
      %v1682 = vsel %vm1672, %v1667, %v1418
      %v1683 = vsel %vm1672, %v1668, %v1420
      %v1684 = vsel %vm1672, %v1669, %v1422
      %v1685 = vsel %vm1672, %v1670, %v1424
      %v1686 = vsel %vm1672, %v1671, %v1426
      %vm1687 = vcmask 785408
      %v1688 = vsel %vm1687, %v1673, %v1456
      %v1689 = vsel %vm1687, %v1674, %v1458
      %v1690 = vsel %vm1687, %v1675, %v1460
      %v1691 = vsel %vm1687, %v1676, %v1462
      %v1692 = vsel %vm1687, %v1677, %v1464
      %v1693 = vsel %vm1687, %v1678, %v1466
      %v1694 = vsel %vm1687, %v1679, %v1468
      %v1695 = vsel %vm1687, %v1680, %v1470
      %v1696 = vsel %vm1687, %v1681, %v1472
      %v1697 = vsel %vm1687, %v1682, %v1474
      %v1698 = vsel %vm1687, %v1683, %v1476
      %v1699 = vsel %vm1687, %v1684, %v1478
      %v1700 = vsel %vm1687, %v1685, %v1480
      %v1701 = vsel %vm1687, %v1686, %v1482
      %v1702 = vsel %vm253, %v1280, %v1512
      %v1703 = vsel %vm253, %v1281, %v1514
      %v1704 = vsel %vm253, %v1282, %v1516
      %v1705 = vsel %vm253, %v1283, %v1518
      %v1706 = vsel %vm253, %v1284, %v1520
      %v1707 = vsel %vm253, %v1285, %v1522
      %v1708 = vsel %vm253, %v1286, %v1524
      %v1709 = vsel %vm253, %v1287, %v1526
      %v1710 = vsel %vm253, %v1288, %v1528
      %v1711 = vsel %vm253, %v1289, %v1530
      %v1712 = vsel %vm253, %v1290, %v1532
      %v1713 = vsel %vm253, %v1291, %v1534
      %v1714 = vsel %vm253, %v1292, %v1536
      %v1715 = vsel %vm253, %v1293, %v1538
      %v1716 = vsel %vm1672, %v1702, %v1568
      %v1717 = vsel %vm1672, %v1703, %v1570
      %v1718 = vsel %vm1672, %v1704, %v1572
      %v1719 = vsel %vm1672, %v1705, %v1574
      %v1720 = vsel %vm1672, %v1706, %v1576
      %v1721 = vsel %vm1672, %v1707, %v1578
      %v1722 = vsel %vm1672, %v1708, %v1580
      %v1723 = vsel %vm1672, %v1709, %v1582
      %v1724 = vsel %vm1672, %v1710, %v1584
      %v1725 = vsel %vm1672, %v1711, %v1586
      %v1726 = vsel %vm1672, %v1712, %v1588
      %v1727 = vsel %vm1672, %v1713, %v1590
      %v1728 = vsel %vm1672, %v1714, %v1592
      %v1729 = vsel %vm1672, %v1715, %v1594
      %v1730 = vsel %vm1687, %v1716, %v1617
      %v1731 = vsel %vm1687, %v1717, %v1619
      %v1732 = vsel %vm1687, %v1718, %v1621
      %v1733 = vsel %vm1687, %v1719, %v1623
      %v1734 = vsel %vm1687, %v1720, %v1625
      %v1735 = vsel %vm1687, %v1721, %v1627
      %v1736 = vsel %vm1687, %v1722, %v1629
      %v1737 = vsel %vm1687, %v1723, %v1631
      %v1738 = vsel %vm1687, %v1724, %v1633
      %v1739 = vsel %vm1687, %v1725, %v1635
      %v1740 = vsel %vm1687, %v1726, %v1637
      %v1741 = vsel %vm1687, %v1727, %v1639
      %v1742 = vsel %vm1687, %v1728, %v1641
      %v1743 = vsel %vm1687, %v1729, %v1643
      %v1744 = vld [vmem:[%s3] sm:$0xff]
      %v1745 = vld [vmem:[%s3 + $0x8] sm:$0xff]
      %v1746 = vld [vmem:[%s3 + $0x10] sm:$0xff]
      %v1747 = vld [vmem:[%s3 + $0x18] sm:$0xff]
      %v1748 = vld [vmem:[%s3 + $0x20] sm:$0xff]
      %v1749 = vld [vmem:[%s3 + $0x28] sm:$0xff]
      %v1750 = vld [vmem:[%s3 + $0x30] sm:$0xff]
      %v1751 = vld [vmem:[%s3 + $0x38] sm:$0xff]
      %v1752 = vld [vmem:[%s3 + $0x40] sm:$0xff]
      %v1753 = vld [vmem:[%s3 + $0x48] sm:$0xff]
      %v1754 = vld [vmem:[%s3 + $0x50] sm:$0xff]
      %v1755 = vld [vmem:[%s3 + $0x58] sm:$0xff]
      %v1756 = vld [vmem:[%s3 + $0x60] sm:$0xff]
      %v1757 = vld [vmem:[%s3 + $0x68] sm:$0xff]
      %v1758 = vld [vmem:[%s3 + $0x70] sm:$0xff]
      %v1759 = vld [vmem:[%s3 + $0x78] sm:$0xff]
      %v1760 = vld [vmem:[%s3 + $0x80] sm:$0xff]
      %v1761 = vld [vmem:[%s3 + $0x88] sm:$0xff]
      %v1762 = vld [vmem:[%s3 + $0x90] sm:$0xff]
      %v1763 = vld [vmem:[%s3 + $0x98] sm:$0xff]
      %v1764 = vld [vmem:[%s3 + $0xa0] sm:$0xff]
      %v1765 = vld [vmem:[%s3 + $0xa8] sm:$0xff]
      %v1766 = vld [vmem:[%s3 + $0xb0] sm:$0xff]
      %v1767 = vld [vmem:[%s3 + $0xb8] sm:$0xff]
      %v1768 = vld [vmem:[%s3 + $0xc0] sm:$0xff]
      %v1769 = vld [vmem:[%s3 + $0xc8] sm:$0xff]
      %v1770 = vld [vmem:[%s3 + $0xd0] sm:$0xff]
      %v1771 = vld [vmem:[%s3 + $0xd8] sm:$0xff]
      %v1772 = vld [vmem:[%s3 + $0xe0] sm:$0xff]
      %v1773 = vld [vmem:[%s3 + $0xe8] sm:$0xff]
      %v1774 = vld [vmem:[%s3 + $0xf0] sm:$0xff]
      %v1775 = vld [vmem:[%s3 + $0xf8] sm:$0xff]
      %v1776 = vld [vmem:[%s3 + $0x100] sm:$0xff]
      %v1777 = vld [vmem:[%s3 + $0x108] sm:$0xff]
      %v1778 = vld [vmem:[%s3 + $0x110] sm:$0xff]
      %v1779 = vld [vmem:[%s3 + $0x118] sm:$0xff]
      %v1780 = vsel %vm253, %v1259, 0
      %v1782 = vsel %vm253, %v1260, 0
      %v1784 = vsel %vm253, %v1261, 0
      %v1786 = vsel %vm253, %v1262, 0
      %v1788 = vsel %vm253, %v1263, 0
      %v1790 = vsel %vm253, %v1264, 0
      %v1792 = vsel %vm253, %v1265, 0
      %v1795 = vsel %vm253, %v1322, 0
      %v1798 = vsel %vm253, %v1323, 0
      %v1801 = vsel %vm253, %v1324, 0
      %v1804 = vsel %vm253, %v1325, 0
      %v1807 = vsel %vm253, %v1326, 0
      %v1810 = vsel %vm253, %v1327, 0
      %v1813 = vsel %vm253, %v1328, 0
      %1815 = vmatpush.msra.mxu0 %v1759
      %1816 = vmatpush.msra.mxu0 %v1758
      %1817 = vmatpush.msra.mxu0 %v1757
      %1818 = vmatpush.msra.mxu0 %v1756
      %1819 = vmatpush.msra.mxu0 %v1755
      %1820 = vmatpush.msra.mxu0 %v1754
      %1821 = vmatpush.msra.mxu0 %v1753
      %1822 = vmatpush.msra.mxu0 %v1752
      %1823 = vmatpush.msra.mxu0 %v1751
      %1824 = vmatpush.msra.mxu0 %v1750
      %1825 = vmatpush.msra.mxu0 %v1749
      %1826 = vmatpush.msra.mxu0 %v1748
      %1827 = vmatpush.msra.mxu0 %v1747
      %1828 = vmatpush.msra.mxu0 %v1746
      %1829 = vmatpush.msra.mxu0 %v1745
      %1830 = vmatpush.msra.mxu0 %v1744
      %1831 = vmatmul.f32.gmra.mxu0 %v1688
      %v1832 = vpop.f32.mrf.mxu0
      %v1833 = vadd.f32 %v231, %v1832
      %1834 = vmatmul.f32.gmra.mxu0 %v1689
      %v1835 = vpop.f32.mrf.mxu0
      %v1836 = vadd.f32 %v231, %v1835
      %1837 = vmatmul.f32.gmra.mxu0 %v1690
      %v1838 = vpop.f32.mrf.mxu0
      %v1839 = vadd.f32 %v231, %v1838
      %1840 = vmatmul.f32.gmra.mxu0 %v1691
      %v1841 = vpop.f32.mrf.mxu0
      %v1842 = vadd.f32 %v231, %v1841
      %1843 = vmatmul.f32.gmra.mxu0 %v1692
      %v1844 = vpop.f32.mrf.mxu0
      %v1845 = vadd.f32 %v231, %v1844
      %1846 = vmatmul.f32.gmra.mxu0 %v1693
      %v1847 = vpop.f32.mrf.mxu0
      %v1848 = vadd.f32 %v231, %v1847
      %1849 = vmatmul.f32.gmra.mxu0 %v1694
      %v1850 = vpop.f32.mrf.mxu0
      %v1851 = vadd.f32 %v231, %v1850
      %1852 = vmatmul.f32.gmra.mxu0 %v1695
      %v1853 = vpop.f32.mrf.mxu0
      %v1854 = vadd.f32 %v231, %v1853
      %1855 = vmatmul.f32.gmra.mxu0 %v1696
      %v1856 = vpop.f32.mrf.mxu0
      %v1857 = vadd.f32 %v231, %v1856
      %1858 = vmatmul.f32.gmra.mxu0 %v1697
      %v1859 = vpop.f32.mrf.mxu0
      %v1860 = vadd.f32 %v231, %v1859
      %1861 = vmatmul.f32.gmra.mxu0 %v1698
      %v1862 = vpop.f32.mrf.mxu0
      %v1863 = vadd.f32 %v231, %v1862
      %1864 = vmatmul.f32.gmra.mxu0 %v1699
      %v1865 = vpop.f32.mrf.mxu0
      %v1866 = vadd.f32 %v231, %v1865
      %1867 = vmatmul.f32.gmra.mxu0 %v1700
      %v1868 = vpop.f32.mrf.mxu0
      %v1869 = vadd.f32 %v231, %v1868
      %1870 = vmatmul.f32.gmra.mxu0 %v1701
      %v1871 = vpop.f32.mrf.mxu0
      %v1872 = vadd.f32 %v231, %v1871
      %1873 = vdwg.mxu0
      %1874 = vmatpush.msra.mxu0 %v1775
      %1875 = vmatpush.msra.mxu0 %v1774
      %1876 = vmatpush.msra.mxu0 %v1773
      %1877 = vmatpush.msra.mxu0 %v1772
      %1878 = vmatpush.msra.mxu0 %v1771
      %1879 = vmatpush.msra.mxu0 %v1770
      %1880 = vmatpush.msra.mxu0 %v1769
      %1881 = vmatpush.msra.mxu0 %v1768
      %1882 = vmatpush.msra.mxu0 %v1767
      %1883 = vmatpush.msra.mxu0 %v1766
      %1884 = vmatpush.msra.mxu0 %v1765
      %1885 = vmatpush.msra.mxu0 %v1764
      %1886 = vmatpush.msra.mxu0 %v1763
      %1887 = vmatpush.msra.mxu0 %v1762
      %1888 = vmatpush.msra.mxu0 %v1761
      %1889 = vmatpush.msra.mxu0 %v1760
      %1890 = vmatmul.f32.gmra.mxu0 %v1730
      %v1891 = vpop.f32.mrf.mxu0
      %v1892 = vadd.f32 %v1833, %v1891
      %1893 = vmatmul.f32.gmra.mxu0 %v1731
      %v1894 = vpop.f32.mrf.mxu0
      %v1895 = vadd.f32 %v1836, %v1894
      %1896 = vmatmul.f32.gmra.mxu0 %v1732
      %v1897 = vpop.f32.mrf.mxu0
      %v1898 = vadd.f32 %v1839, %v1897
      %1899 = vmatmul.f32.gmra.mxu0 %v1733
      %v1900 = vpop.f32.mrf.mxu0
      %v1901 = vadd.f32 %v1842, %v1900
      %1902 = vmatmul.f32.gmra.mxu0 %v1734
      %v1903 = vpop.f32.mrf.mxu0
      %v1904 = vadd.f32 %v1845, %v1903
      %1905 = vmatmul.f32.gmra.mxu0 %v1735
      %v1906 = vpop.f32.mrf.mxu0
      %v1907 = vadd.f32 %v1848, %v1906
      %1908 = vmatmul.f32.gmra.mxu0 %v1736
      %v1909 = vpop.f32.mrf.mxu0
      %v1910 = vadd.f32 %v1851, %v1909
      %1911 = vmatmul.f32.gmra.mxu0 %v1737
      %v1912 = vpop.f32.mrf.mxu0
      %v1913 = vadd.f32 %v1854, %v1912
      %1914 = vmatmul.f32.gmra.mxu0 %v1738
      %v1915 = vpop.f32.mrf.mxu0
      %v1916 = vadd.f32 %v1857, %v1915
      %1917 = vmatmul.f32.gmra.mxu0 %v1739
      %v1918 = vpop.f32.mrf.mxu0
      %v1919 = vadd.f32 %v1860, %v1918
      %1920 = vmatmul.f32.gmra.mxu0 %v1740
      %v1921 = vpop.f32.mrf.mxu0
      %v1922 = vadd.f32 %v1863, %v1921
      %1923 = vmatmul.f32.gmra.mxu0 %v1741
      %v1924 = vpop.f32.mrf.mxu0
      %v1925 = vadd.f32 %v1866, %v1924
      %1926 = vmatmul.f32.gmra.mxu0 %v1742
      %v1927 = vpop.f32.mrf.mxu0
      %v1928 = vadd.f32 %v1869, %v1927
      %1929 = vmatmul.f32.gmra.mxu0 %v1743
      %v1930 = vpop.f32.mrf.mxu0
      %v1931 = vadd.f32 %v1872, %v1930
      %1932 = vdwg.mxu0
      %1933 = vmatpush.msra.mxu0 0.0
      %1934 = vmatpush.msra.mxu0 0.0
      %1935 = vmatpush.msra.mxu0 0.0
      %1936 = vmatpush.msra.mxu0 0.0
      %1937 = vmatpush.msra.mxu0 0.0
      %1938 = vmatpush.msra.mxu0 0.0
      %1939 = vmatpush.msra.mxu0 0.0
      %1940 = vmatpush.msra.mxu0 0.0
      %1941 = vmatpush.msra.mxu0 0.0
      %1942 = vmatpush.msra.mxu0 0.0
      %1943 = vmatpush.msra.mxu0 0.0
      %1944 = vmatpush.msra.mxu0 0.0
      %1945 = vmatpush.msra.mxu0 %v1779
      %1946 = vmatpush.msra.mxu0 %v1778
      %1947 = vmatpush.msra.mxu0 %v1777
      %1948 = vmatpush.msra.mxu0 %v1776
      %1949 = vmatmul.f32.gmra.mxu0 %v1780
      %v1950 = vpop.f32.mrf.mxu0
      %v1951 = vadd.f32 %v1892, %v1950
      %1952 = vmatmul.f32.gmra.mxu0 %v1782
      %v1953 = vpop.f32.mrf.mxu0
      %v1954 = vadd.f32 %v1895, %v1953
      %1955 = vmatmul.f32.gmra.mxu0 %v1784
      %v1956 = vpop.f32.mrf.mxu0
      %v1957 = vadd.f32 %v1898, %v1956
      %1958 = vmatmul.f32.gmra.mxu0 %v1786
      %v1959 = vpop.f32.mrf.mxu0
      %v1960 = vadd.f32 %v1901, %v1959
      %1961 = vmatmul.f32.gmra.mxu0 %v1788
      %v1962 = vpop.f32.mrf.mxu0
      %v1963 = vadd.f32 %v1904, %v1962
      %1964 = vmatmul.f32.gmra.mxu0 %v1790
      %v1965 = vpop.f32.mrf.mxu0
      %v1966 = vadd.f32 %v1907, %v1965
      %1967 = vmatmul.f32.gmra.mxu0 %v1792
      %v1968 = vpop.f32.mrf.mxu0
      %v1969 = vadd.f32 %v1910, %v1968
      %1970 = vmatmul.f32.gmra.mxu0 %v1795
      %v1971 = vpop.f32.mrf.mxu0
      %v1972 = vadd.f32 %v1913, %v1971
      %1973 = vmatmul.f32.gmra.mxu0 %v1798
      %v1974 = vpop.f32.mrf.mxu0
      %v1975 = vadd.f32 %v1916, %v1974
      %1976 = vmatmul.f32.gmra.mxu0 %v1801
      %v1977 = vpop.f32.mrf.mxu0
      %v1978 = vadd.f32 %v1919, %v1977
      %1979 = vmatmul.f32.gmra.mxu0 %v1804
      %v1980 = vpop.f32.mrf.mxu0
      %v1981 = vadd.f32 %v1922, %v1980
      %1982 = vmatmul.f32.gmra.mxu0 %v1807
      %v1983 = vpop.f32.mrf.mxu0
      %v1984 = vadd.f32 %v1925, %v1983
      %1985 = vmatmul.f32.gmra.mxu0 %v1810
      %v1986 = vpop.f32.mrf.mxu0
      %v1987 = vadd.f32 %v1928, %v1986
      %1988 = vmatmul.f32.gmra.mxu0 %v1813
      %v1989 = vpop.f32.mrf.mxu0
      %v1990 = vadd.f32 %v1931, %v1989
      %1991 = vdwg.mxu0
      %v1992 = vmax.f32 %v1951, 0.0
      %v1993 = vmax.f32 %v1954, 0.0
      %v1994 = vmax.f32 %v1957, 0.0
      %v1995 = vmax.f32 %v1960, 0.0
      %v1996 = vmax.f32 %v1963, 0.0
      %v1997 = vmax.f32 %v1966, 0.0
      %v1998 = vmax.f32 %v1969, 0.0
      %v1999 = vmax.f32 %v1972, 0.0
      %v2000 = vmax.f32 %v1975, 0.0
      %v2001 = vmax.f32 %v1978, 0.0
      %v2002 = vmax.f32 %v1981, 0.0
      %v2003 = vmax.f32 %v1984, 0.0
      %v2004 = vmax.f32 %v1987, 0.0
      %v2005 = vmax.f32 %v1990, 0.0
      %2006 = vst.msk [vmem:[#allocation3] sm:$0xff] %vm1672, %v1992
      %2007 = vst.msk [vmem:[#allocation3 + $0x8] sm:$0xff] %vm1672, %v1993
      %2008 = vst.msk [vmem:[#allocation3 + $0x10] sm:$0xff] %vm1672, %v1994
      %2009 = vst.msk [vmem:[#allocation3 + $0x18] sm:$0xff] %vm1672, %v1995
      %2010 = vst.msk [vmem:[#allocation3 + $0x20] sm:$0xff] %vm1672, %v1996
      %2011 = vst.msk [vmem:[#allocation3 + $0x28] sm:$0xff] %vm1672, %v1997
      %2012 = vst.msk [vmem:[#allocation3 + $0x30] sm:$0xff] %vm1672, %v1998
      %2013 = vst.msk [vmem:[#allocation3 + $0x38] sm:$0xff] %vm1672, %v1999
      %2014 = vst.msk [vmem:[#allocation3 + $0x40] sm:$0xff] %vm1672, %v2000
      %2015 = vst.msk [vmem:[#allocation3 + $0x48] sm:$0xff] %vm1672, %v2001
      %2016 = vst.msk [vmem:[#allocation3 + $0x50] sm:$0xff] %vm1672, %v2002
      %2017 = vst.msk [vmem:[#allocation3 + $0x58] sm:$0xff] %vm1672, %v2003
      %2018 = vst.msk [vmem:[#allocation3 + $0x60] sm:$0xff] %vm1672, %v2004
      %2019 = vst.msk [vmem:[#allocation3 + $0x68] sm:$0xff] %vm1672, %v2005
      %v2020 = vld [vmem:[#allocation2 + $0x70] sm:$0xff]
      %v2021 = vld [vmem:[#allocation2 + $0x78] sm:$0xff]
      %v2022 = vld [vmem:[#allocation2 + $0x80] sm:$0xff]
      %v2023 = vld [vmem:[#allocation2 + $0x88] sm:$0xff]
      %v2024 = vld [vmem:[#allocation2 + $0x90] sm:$0xff]
      %v2025 = vld [vmem:[#allocation2 + $0x98] sm:$0xff]
      %v2026 = vld [vmem:[#allocation2 + $0xa0] sm:$0xff]
      %v2027 = vld [vmem:[#allocation2 + $0xa8] sm:$0xff]
      %v2028 = vld [vmem:[#allocation2 + $0xb0] sm:$0xff]
      %v2029 = vld [vmem:[#allocation2 + $0xb8] sm:$0xff]
      %v2030 = vld [vmem:[#allocation2 + $0xc0] sm:$0xff]
      %v2031 = vld [vmem:[#allocation2 + $0xc8] sm:$0xff]
      %v2032 = vld [vmem:[#allocation2 + $0xd0] sm:$0xff]
      %v2033 = vld [vmem:[#allocation2 + $0xd8] sm:$0xff]
      %v2034 = vld [vmem:[#allocation2 + $0x71] sm:$0xff]
      %v2035 = vld [vmem:[#allocation2 + $0x79] sm:$0xff]
      %v2036 = vld [vmem:[#allocation2 + $0x81] sm:$0xff]
      %v2037 = vld [vmem:[#allocation2 + $0x89] sm:$0xff]
      %v2038 = vld [vmem:[#allocation2 + $0x91] sm:$0xff]
      %v2039 = vld [vmem:[#allocation2 + $0x99] sm:$0xff]
      %v2040 = vld [vmem:[#allocation2 + $0xa1] sm:$0xff]
      %v2041 = vld [vmem:[#allocation2 + $0xa9] sm:$0xff]
      %v2042 = vld [vmem:[#allocation2 + $0xb1] sm:$0xff]
      %v2043 = vld [vmem:[#allocation2 + $0xb9] sm:$0xff]
      %v2044 = vld [vmem:[#allocation2 + $0xc1] sm:$0xff]
      %v2045 = vld [vmem:[#allocation2 + $0xc9] sm:$0xff]
      %v2046 = vld [vmem:[#allocation2 + $0xd1] sm:$0xff]
      %v2047 = vld [vmem:[#allocation2 + $0xd9] sm:$0xff]
      %v2048 = vld [vmem:[#allocation2 + $0x72] sm:$0xff]
      %v2049 = vld [vmem:[#allocation2 + $0x7a] sm:$0xff]
      %v2050 = vld [vmem:[#allocation2 + $0x82] sm:$0xff]
      %v2051 = vld [vmem:[#allocation2 + $0x8a] sm:$0xff]
      %v2052 = vld [vmem:[#allocation2 + $0x92] sm:$0xff]
      %v2053 = vld [vmem:[#allocation2 + $0x9a] sm:$0xff]
      %v2054 = vld [vmem:[#allocation2 + $0xa2] sm:$0xff]
      %v2055 = vld [vmem:[#allocation2 + $0xaa] sm:$0xff]
      %v2056 = vld [vmem:[#allocation2 + $0xb2] sm:$0xff]
      %v2057 = vld [vmem:[#allocation2 + $0xba] sm:$0xff]
      %v2058 = vld [vmem:[#allocation2 + $0xc2] sm:$0xff]
      %v2059 = vld [vmem:[#allocation2 + $0xca] sm:$0xff]
      %v2060 = vld [vmem:[#allocation2 + $0xd2] sm:$0xff]
      %v2061 = vld [vmem:[#allocation2 + $0xda] sm:$0xff]
      %v2062 = vld [vmem:[#allocation2 + $0x8c] sm:$0xff]
      %v2063 = vld [vmem:[#allocation2 + $0x94] sm:$0xff]
      %v2064 = vld [vmem:[#allocation2 + $0x9c] sm:$0xff]
      %v2065 = vld [vmem:[#allocation2 + $0xa4] sm:$0xff]
      %v2066 = vld [vmem:[#allocation2 + $0xac] sm:$0xff]
      %v2067 = vld [vmem:[#allocation2 + $0xb4] sm:$0xff]
      %v2068 = vld [vmem:[#allocation2 + $0xbc] sm:$0xff]
      %v2069 = vld [vmem:[#allocation2 + $0xc4] sm:$0xff]
      %v2070 = vld [vmem:[#allocation2 + $0xcc] sm:$0xff]
      %v2071 = vld [vmem:[#allocation2 + $0xd4] sm:$0xff]
      %v2072 = vld [vmem:[#allocation2 + $0xdc] sm:$0xff]
      %v2073 = vld [vmem:[#allocation2 + $0xe4] sm:$0xff]
      %v2074 = vld [vmem:[#allocation2 + $0xec] sm:$0xff]
      %v2075 = vld [vmem:[#allocation2 + $0xf4] sm:$0xff]
      %v2076 = vld [vmem:[#allocation2 + $0x8d] sm:$0xff]
      %v2077 = vld [vmem:[#allocation2 + $0x95] sm:$0xff]
      %v2078 = vld [vmem:[#allocation2 + $0x9d] sm:$0xff]
      %v2079 = vld [vmem:[#allocation2 + $0xa5] sm:$0xff]
      %v2080 = vld [vmem:[#allocation2 + $0xad] sm:$0xff]
      %v2081 = vld [vmem:[#allocation2 + $0xb5] sm:$0xff]
      %v2082 = vld [vmem:[#allocation2 + $0xbd] sm:$0xff]
      %v2083 = vld [vmem:[#allocation2 + $0xc5] sm:$0xff]
      %v2084 = vld [vmem:[#allocation2 + $0xcd] sm:$0xff]
      %v2085 = vld [vmem:[#allocation2 + $0xd5] sm:$0xff]
      %v2086 = vld [vmem:[#allocation2 + $0xdd] sm:$0xff]
      %v2087 = vld [vmem:[#allocation2 + $0xe5] sm:$0xff]
      %v2088 = vld [vmem:[#allocation2 + $0xed] sm:$0xff]
      %v2089 = vld [vmem:[#allocation2 + $0xf5] sm:$0xff]
      %v2090 = vld [vmem:[#allocation2 + $0x8e] sm:$0xff]
      %v2091 = vld [vmem:[#allocation2 + $0x96] sm:$0xff]
      %v2092 = vld [vmem:[#allocation2 + $0x9e] sm:$0xff]
      %v2093 = vld [vmem:[#allocation2 + $0xa6] sm:$0xff]
      %v2094 = vld [vmem:[#allocation2 + $0xae] sm:$0xff]
      %v2095 = vld [vmem:[#allocation2 + $0xb6] sm:$0xff]
      %v2096 = vld [vmem:[#allocation2 + $0xbe] sm:$0xff]
      %v2097 = vld [vmem:[#allocation2 + $0xc6] sm:$0xff]
      %v2098 = vld [vmem:[#allocation2 + $0xce] sm:$0xff]
      %v2099 = vld [vmem:[#allocation2 + $0xd6] sm:$0xff]
      %v2100 = vld [vmem:[#allocation2 + $0xde] sm:$0xff]
      %v2101 = vld [vmem:[#allocation2 + $0xe6] sm:$0xff]
      %v2102 = vld [vmem:[#allocation2 + $0xee] sm:$0xff]
      %v2103 = vld [vmem:[#allocation2 + $0xf6] sm:$0xff]
      %v2104 = vld [vmem:[#allocation2 + $0xe0] sm:$0xff]
      %v2105 = vld [vmem:[#allocation2 + $0xe8] sm:$0xff]
      %v2106 = vld [vmem:[#allocation2 + $0xf0] sm:$0xff]
      %v2107 = vld [vmem:[#allocation2 + $0xf8] sm:$0xff]
      %v2108 = vld [vmem:[#allocation2 + $0x100] sm:$0xff]
      %v2109 = vld [vmem:[#allocation2 + $0x108] sm:$0xff]
      %v2110 = vld [vmem:[#allocation2 + $0x110] sm:$0xff]
      %v2111 = vld [vmem:[#allocation2 + $0xe1] sm:$0xff]
      %v2112 = vld [vmem:[#allocation2 + $0xe9] sm:$0xff]
      %v2113 = vld [vmem:[#allocation2 + $0xf1] sm:$0xff]
      %v2114 = vld [vmem:[#allocation2 + $0xf9] sm:$0xff]
      %v2115 = vld [vmem:[#allocation2 + $0x101] sm:$0xff]
      %v2116 = vld [vmem:[#allocation2 + $0x109] sm:$0xff]
      %v2117 = vld [vmem:[#allocation2 + $0x111] sm:$0xff]
      %v2118 = vld [vmem:[#allocation2 + $0xe2] sm:$0xff]
      %v2119 = vld [vmem:[#allocation2 + $0xea] sm:$0xff]
      %v2120 = vld [vmem:[#allocation2 + $0xf2] sm:$0xff]
      %v2121 = vld [vmem:[#allocation2 + $0xfa] sm:$0xff]
      %v2122 = vld [vmem:[#allocation2 + $0x102] sm:$0xff]
      %v2123 = vld [vmem:[#allocation2 + $0x10a] sm:$0xff]
      %v2124 = vld [vmem:[#allocation2 + $0x112] sm:$0xff]
      %2139 = vrot.lane.b32.xlu0 %v2034, 32
      %v2140 = vpop.permute.xlu0 %2139
      %2141 = vrot.lane.b32.xlu0 %v2035, 32
      %v2142 = vpop.permute.xlu0 %2141
      %2143 = vrot.lane.b32.xlu0 %v2036, 32
      %v2144 = vpop.permute.xlu0 %2143
      %2145 = vrot.lane.b32.xlu0 %v2037, 32
      %v2146 = vpop.permute.xlu0 %2145
      %2147 = vrot.lane.b32.xlu0 %v2038, 32
      %v2148 = vpop.permute.xlu0 %2147
      %2149 = vrot.lane.b32.xlu0 %v2039, 32
      %v2150 = vpop.permute.xlu0 %2149
      %2151 = vrot.lane.b32.xlu0 %v2040, 32
      %v2152 = vpop.permute.xlu0 %2151
      %2153 = vrot.lane.b32.xlu0 %v2041, 32
      %v2154 = vpop.permute.xlu0 %2153
      %2155 = vrot.lane.b32.xlu0 %v2042, 32
      %v2156 = vpop.permute.xlu0 %2155
      %2157 = vrot.lane.b32.xlu0 %v2043, 32
      %v2158 = vpop.permute.xlu0 %2157
      %2159 = vrot.lane.b32.xlu0 %v2044, 32
      %v2160 = vpop.permute.xlu0 %2159
      %2161 = vrot.lane.b32.xlu0 %v2045, 32
      %v2162 = vpop.permute.xlu0 %2161
      %2163 = vrot.lane.b32.xlu0 %v2046, 32
      %v2164 = vpop.permute.xlu0 %2163
      %2165 = vrot.lane.b32.xlu0 %v2047, 32
      %v2166 = vpop.permute.xlu0 %2165
      %2195 = vrot.lane.b32.xlu0 %v2048, 64
      %v2196 = vpop.permute.xlu0 %2195
      %2197 = vrot.lane.b32.xlu0 %v2049, 64
      %v2198 = vpop.permute.xlu0 %2197
      %2199 = vrot.lane.b32.xlu0 %v2050, 64
      %v2200 = vpop.permute.xlu0 %2199
      %2201 = vrot.lane.b32.xlu0 %v2051, 64
      %v2202 = vpop.permute.xlu0 %2201
      %2203 = vrot.lane.b32.xlu0 %v2052, 64
      %v2204 = vpop.permute.xlu0 %2203
      %2205 = vrot.lane.b32.xlu0 %v2053, 64
      %v2206 = vpop.permute.xlu0 %2205
      %2207 = vrot.lane.b32.xlu0 %v2054, 64
      %v2208 = vpop.permute.xlu0 %2207
      %2209 = vrot.lane.b32.xlu0 %v2055, 64
      %v2210 = vpop.permute.xlu0 %2209
      %2211 = vrot.lane.b32.xlu0 %v2056, 64
      %v2212 = vpop.permute.xlu0 %2211
      %2213 = vrot.lane.b32.xlu0 %v2057, 64
      %v2214 = vpop.permute.xlu0 %2213
      %2215 = vrot.lane.b32.xlu0 %v2058, 64
      %v2216 = vpop.permute.xlu0 %2215
      %2217 = vrot.lane.b32.xlu0 %v2059, 64
      %v2218 = vpop.permute.xlu0 %2217
      %2219 = vrot.lane.b32.xlu0 %v2060, 64
      %v2220 = vpop.permute.xlu0 %2219
      %2221 = vrot.lane.b32.xlu0 %v2061, 64
      %v2222 = vpop.permute.xlu0 %2221
      %2251 = vrot.lane.b32.xlu0 %v2062, 96
      %v2252 = vpop.permute.xlu0 %2251
      %2253 = vrot.lane.b32.xlu0 %v2063, 96
      %v2254 = vpop.permute.xlu0 %2253
      %2255 = vrot.lane.b32.xlu0 %v2064, 96
      %v2256 = vpop.permute.xlu0 %2255
      %2257 = vrot.lane.b32.xlu0 %v2065, 96
      %v2258 = vpop.permute.xlu0 %2257
      %2259 = vrot.lane.b32.xlu0 %v2066, 96
      %v2260 = vpop.permute.xlu0 %2259
      %2261 = vrot.lane.b32.xlu0 %v2067, 96
      %v2262 = vpop.permute.xlu0 %2261
      %2263 = vrot.lane.b32.xlu0 %v2068, 96
      %v2264 = vpop.permute.xlu0 %2263
      %2265 = vrot.lane.b32.xlu0 %v2069, 96
      %v2266 = vpop.permute.xlu0 %2265
      %2267 = vrot.lane.b32.xlu0 %v2070, 96
      %v2268 = vpop.permute.xlu0 %2267
      %2269 = vrot.lane.b32.xlu0 %v2071, 96
      %v2270 = vpop.permute.xlu0 %2269
      %2271 = vrot.lane.b32.xlu0 %v2072, 96
      %v2272 = vpop.permute.xlu0 %2271
      %2273 = vrot.lane.b32.xlu0 %v2073, 96
      %v2274 = vpop.permute.xlu0 %2273
      %2275 = vrot.lane.b32.xlu0 %v2074, 96
      %v2276 = vpop.permute.xlu0 %2275
      %2277 = vrot.lane.b32.xlu0 %v2075, 96
      %v2278 = vpop.permute.xlu0 %2277
      %2307 = vrot.lane.b32.xlu0 %v2090, 32
      %v2308 = vpop.permute.xlu0 %2307
      %2309 = vrot.lane.b32.xlu0 %v2091, 32
      %v2310 = vpop.permute.xlu0 %2309
      %2311 = vrot.lane.b32.xlu0 %v2092, 32
      %v2312 = vpop.permute.xlu0 %2311
      %2313 = vrot.lane.b32.xlu0 %v2093, 32
      %v2314 = vpop.permute.xlu0 %2313
      %2315 = vrot.lane.b32.xlu0 %v2094, 32
      %v2316 = vpop.permute.xlu0 %2315
      %2317 = vrot.lane.b32.xlu0 %v2095, 32
      %v2318 = vpop.permute.xlu0 %2317
      %2319 = vrot.lane.b32.xlu0 %v2096, 32
      %v2320 = vpop.permute.xlu0 %2319
      %2321 = vrot.lane.b32.xlu0 %v2097, 32
      %v2322 = vpop.permute.xlu0 %2321
      %2323 = vrot.lane.b32.xlu0 %v2098, 32
      %v2324 = vpop.permute.xlu0 %2323
      %2325 = vrot.lane.b32.xlu0 %v2099, 32
      %v2326 = vpop.permute.xlu0 %2325
      %2327 = vrot.lane.b32.xlu0 %v2100, 32
      %v2328 = vpop.permute.xlu0 %2327
      %2329 = vrot.lane.b32.xlu0 %v2101, 32
      %v2330 = vpop.permute.xlu0 %2329
      %2331 = vrot.lane.b32.xlu0 %v2102, 32
      %v2332 = vpop.permute.xlu0 %2331
      %2333 = vrot.lane.b32.xlu0 %v2103, 32
      %v2334 = vpop.permute.xlu0 %2333
      %2363 = vrot.lane.b32.xlu0 %v2027, 64
      %v2364 = vpop.permute.xlu0 %2363
      %2365 = vrot.lane.b32.xlu0 %v2028, 64
      %v2366 = vpop.permute.xlu0 %2365
      %2367 = vrot.lane.b32.xlu0 %v2029, 64
      %v2368 = vpop.permute.xlu0 %2367
      %2369 = vrot.lane.b32.xlu0 %v2030, 64
      %v2370 = vpop.permute.xlu0 %2369
      %2371 = vrot.lane.b32.xlu0 %v2031, 64
      %v2372 = vpop.permute.xlu0 %2371
      %2373 = vrot.lane.b32.xlu0 %v2032, 64
      %v2374 = vpop.permute.xlu0 %2373
      %2375 = vrot.lane.b32.xlu0 %v2033, 64
      %v2376 = vpop.permute.xlu0 %2375
      %2377 = vrot.lane.b32.xlu0 %v2104, 64
      %v2378 = vpop.permute.xlu0 %2377
      %2379 = vrot.lane.b32.xlu0 %v2105, 64
      %v2380 = vpop.permute.xlu0 %2379
      %2381 = vrot.lane.b32.xlu0 %v2106, 64
      %v2382 = vpop.permute.xlu0 %2381
      %2383 = vrot.lane.b32.xlu0 %v2107, 64
      %v2384 = vpop.permute.xlu0 %2383
      %2385 = vrot.lane.b32.xlu0 %v2108, 64
      %v2386 = vpop.permute.xlu0 %2385
      %2387 = vrot.lane.b32.xlu0 %v2109, 64
      %v2388 = vpop.permute.xlu0 %2387
      %2389 = vrot.lane.b32.xlu0 %v2110, 64
      %v2390 = vpop.permute.xlu0 %2389
      %2412 = vrot.lane.b32.xlu0 %v2041, 96
      %v2413 = vpop.permute.xlu0 %2412
      %2414 = vrot.lane.b32.xlu0 %v2042, 96
      %v2415 = vpop.permute.xlu0 %2414
      %2416 = vrot.lane.b32.xlu0 %v2043, 96
      %v2417 = vpop.permute.xlu0 %2416
      %2418 = vrot.lane.b32.xlu0 %v2044, 96
      %v2419 = vpop.permute.xlu0 %2418
      %2420 = vrot.lane.b32.xlu0 %v2045, 96
      %v2421 = vpop.permute.xlu0 %2420
      %2422 = vrot.lane.b32.xlu0 %v2046, 96
      %v2423 = vpop.permute.xlu0 %2422
      %2424 = vrot.lane.b32.xlu0 %v2047, 96
      %v2425 = vpop.permute.xlu0 %2424
      %2426 = vrot.lane.b32.xlu0 %v2111, 96
      %v2427 = vpop.permute.xlu0 %2426
      %2428 = vrot.lane.b32.xlu0 %v2112, 96
      %v2429 = vpop.permute.xlu0 %2428
      %2430 = vrot.lane.b32.xlu0 %v2113, 96
      %v2431 = vpop.permute.xlu0 %2430
      %2432 = vrot.lane.b32.xlu0 %v2114, 96
      %v2433 = vpop.permute.xlu0 %2432
      %2434 = vrot.lane.b32.xlu0 %v2115, 96
      %v2435 = vpop.permute.xlu0 %2434
      %2436 = vrot.lane.b32.xlu0 %v2116, 96
      %v2437 = vpop.permute.xlu0 %2436
      %2438 = vrot.lane.b32.xlu0 %v2117, 96
      %v2439 = vpop.permute.xlu0 %2438
      %v2454 = vsel %vm253, %v2020, %v2140
      %v2455 = vsel %vm253, %v2021, %v2142
      %v2456 = vsel %vm253, %v2022, %v2144
      %v2457 = vsel %vm253, %v2023, %v2146
      %v2458 = vsel %vm253, %v2024, %v2148
      %v2459 = vsel %vm253, %v2025, %v2150
      %v2460 = vsel %vm253, %v2026, %v2152
      %v2461 = vsel %vm253, %v2027, %v2154
      %v2462 = vsel %vm253, %v2028, %v2156
      %v2463 = vsel %vm253, %v2029, %v2158
      %v2464 = vsel %vm253, %v2030, %v2160
      %v2465 = vsel %vm253, %v2031, %v2162
      %v2466 = vsel %vm253, %v2032, %v2164
      %v2467 = vsel %vm253, %v2033, %v2166
      %v2468 = vsel %vm1672, %v2454, %v2196
      %v2469 = vsel %vm1672, %v2455, %v2198
      %v2470 = vsel %vm1672, %v2456, %v2200
      %v2471 = vsel %vm1672, %v2457, %v2202
      %v2472 = vsel %vm1672, %v2458, %v2204
      %v2473 = vsel %vm1672, %v2459, %v2206
      %v2474 = vsel %vm1672, %v2460, %v2208
      %v2475 = vsel %vm1672, %v2461, %v2210
      %v2476 = vsel %vm1672, %v2462, %v2212
      %v2477 = vsel %vm1672, %v2463, %v2214
      %v2478 = vsel %vm1672, %v2464, %v2216
      %v2479 = vsel %vm1672, %v2465, %v2218
      %v2480 = vsel %vm1672, %v2466, %v2220
      %v2481 = vsel %vm1672, %v2467, %v2222
      %v2482 = vsel %vm1687, %v2468, %v2252
      %v2483 = vsel %vm1687, %v2469, %v2254
      %v2484 = vsel %vm1687, %v2470, %v2256
      %v2485 = vsel %vm1687, %v2471, %v2258
      %v2486 = vsel %vm1687, %v2472, %v2260
      %v2487 = vsel %vm1687, %v2473, %v2262
      %v2488 = vsel %vm1687, %v2474, %v2264
      %v2489 = vsel %vm1687, %v2475, %v2266
      %v2490 = vsel %vm1687, %v2476, %v2268
      %v2491 = vsel %vm1687, %v2477, %v2270
      %v2492 = vsel %vm1687, %v2478, %v2272
      %v2493 = vsel %vm1687, %v2479, %v2274
      %v2494 = vsel %vm1687, %v2480, %v2276
      %v2495 = vsel %vm1687, %v2481, %v2278
      %v2496 = vsel %vm253, %v2076, %v2308
      %v2497 = vsel %vm253, %v2077, %v2310
      %v2498 = vsel %vm253, %v2078, %v2312
      %v2499 = vsel %vm253, %v2079, %v2314
      %v2500 = vsel %vm253, %v2080, %v2316
      %v2501 = vsel %vm253, %v2081, %v2318
      %v2502 = vsel %vm253, %v2082, %v2320
      %v2503 = vsel %vm253, %v2083, %v2322
      %v2504 = vsel %vm253, %v2084, %v2324
      %v2505 = vsel %vm253, %v2085, %v2326
      %v2506 = vsel %vm253, %v2086, %v2328
      %v2507 = vsel %vm253, %v2087, %v2330
      %v2508 = vsel %vm253, %v2088, %v2332
      %v2509 = vsel %vm253, %v2089, %v2334
      %v2510 = vsel %vm1672, %v2496, %v2364
      %v2511 = vsel %vm1672, %v2497, %v2366
      %v2512 = vsel %vm1672, %v2498, %v2368
      %v2513 = vsel %vm1672, %v2499, %v2370
      %v2514 = vsel %vm1672, %v2500, %v2372
      %v2515 = vsel %vm1672, %v2501, %v2374
      %v2516 = vsel %vm1672, %v2502, %v2376
      %v2517 = vsel %vm1672, %v2503, %v2378
      %v2518 = vsel %vm1672, %v2504, %v2380
      %v2519 = vsel %vm1672, %v2505, %v2382
      %v2520 = vsel %vm1672, %v2506, %v2384
      %v2521 = vsel %vm1672, %v2507, %v2386
      %v2522 = vsel %vm1672, %v2508, %v2388
      %v2523 = vsel %vm1672, %v2509, %v2390
      %v2524 = vsel %vm1687, %v2510, %v2413
      %v2525 = vsel %vm1687, %v2511, %v2415
      %v2526 = vsel %vm1687, %v2512, %v2417
      %v2527 = vsel %vm1687, %v2513, %v2419
      %v2528 = vsel %vm1687, %v2514, %v2421
      %v2529 = vsel %vm1687, %v2515, %v2423
      %v2530 = vsel %vm1687, %v2516, %v2425
      %v2531 = vsel %vm1687, %v2517, %v2427
      %v2532 = vsel %vm1687, %v2518, %v2429
      %v2533 = vsel %vm1687, %v2519, %v2431
      %v2534 = vsel %vm1687, %v2520, %v2433
      %v2535 = vsel %vm1687, %v2521, %v2435
      %v2536 = vsel %vm1687, %v2522, %v2437
      %v2537 = vsel %vm1687, %v2523, %v2439
      %v2538 = vld [vmem:[%s3] sm:$0xff]
      %v2539 = vld [vmem:[%s3 + $0x8] sm:$0xff]
      %v2540 = vld [vmem:[%s3 + $0x10] sm:$0xff]
      %v2541 = vld [vmem:[%s3 + $0x18] sm:$0xff]
      %v2542 = vld [vmem:[%s3 + $0x20] sm:$0xff]
      %v2543 = vld [vmem:[%s3 + $0x28] sm:$0xff]
      %v2544 = vld [vmem:[%s3 + $0x30] sm:$0xff]
      %v2545 = vld [vmem:[%s3 + $0x38] sm:$0xff]
      %v2546 = vld [vmem:[%s3 + $0x40] sm:$0xff]
      %v2547 = vld [vmem:[%s3 + $0x48] sm:$0xff]
      %v2548 = vld [vmem:[%s3 + $0x50] sm:$0xff]
      %v2549 = vld [vmem:[%s3 + $0x58] sm:$0xff]
      %v2550 = vld [vmem:[%s3 + $0x60] sm:$0xff]
      %v2551 = vld [vmem:[%s3 + $0x68] sm:$0xff]
      %v2552 = vld [vmem:[%s3 + $0x70] sm:$0xff]
      %v2553 = vld [vmem:[%s3 + $0x78] sm:$0xff]
      %v2554 = vld [vmem:[%s3 + $0x80] sm:$0xff]
      %v2555 = vld [vmem:[%s3 + $0x88] sm:$0xff]
      %v2556 = vld [vmem:[%s3 + $0x90] sm:$0xff]
      %v2557 = vld [vmem:[%s3 + $0x98] sm:$0xff]
      %v2558 = vld [vmem:[%s3 + $0xa0] sm:$0xff]
      %v2559 = vld [vmem:[%s3 + $0xa8] sm:$0xff]
      %v2560 = vld [vmem:[%s3 + $0xb0] sm:$0xff]
      %v2561 = vld [vmem:[%s3 + $0xb8] sm:$0xff]
      %v2562 = vld [vmem:[%s3 + $0xc0] sm:$0xff]
      %v2563 = vld [vmem:[%s3 + $0xc8] sm:$0xff]
      %v2564 = vld [vmem:[%s3 + $0xd0] sm:$0xff]
      %v2565 = vld [vmem:[%s3 + $0xd8] sm:$0xff]
      %v2566 = vld [vmem:[%s3 + $0xe0] sm:$0xff]
      %v2567 = vld [vmem:[%s3 + $0xe8] sm:$0xff]
      %v2568 = vld [vmem:[%s3 + $0xf0] sm:$0xff]
      %v2569 = vld [vmem:[%s3 + $0xf8] sm:$0xff]
      %v2570 = vld [vmem:[%s3 + $0x100] sm:$0xff]
      %v2571 = vld [vmem:[%s3 + $0x108] sm:$0xff]
      %v2572 = vld [vmem:[%s3 + $0x110] sm:$0xff]
      %v2573 = vld [vmem:[%s3 + $0x118] sm:$0xff]
      %v2574 = vsel %vm253, %v2055, 0
      %v2576 = vsel %vm253, %v2056, 0
      %v2578 = vsel %vm253, %v2057, 0
      %v2580 = vsel %vm253, %v2058, 0
      %v2582 = vsel %vm253, %v2059, 0
      %v2584 = vsel %vm253, %v2060, 0
      %v2586 = vsel %vm253, %v2061, 0
      %v2589 = vsel %vm253, %v2118, 0
      %v2592 = vsel %vm253, %v2119, 0
      %v2595 = vsel %vm253, %v2120, 0
      %v2598 = vsel %vm253, %v2121, 0
      %v2601 = vsel %vm253, %v2122, 0
      %v2604 = vsel %vm253, %v2123, 0
      %v2607 = vsel %vm253, %v2124, 0
      %2609 = vmatpush.msra.mxu0 %v2553
      %2610 = vmatpush.msra.mxu0 %v2552
      %2611 = vmatpush.msra.mxu0 %v2551
      %2612 = vmatpush.msra.mxu0 %v2550
      %2613 = vmatpush.msra.mxu0 %v2549
      %2614 = vmatpush.msra.mxu0 %v2548
      %2615 = vmatpush.msra.mxu0 %v2547
      %2616 = vmatpush.msra.mxu0 %v2546
      %2617 = vmatpush.msra.mxu0 %v2545
      %2618 = vmatpush.msra.mxu0 %v2544
      %2619 = vmatpush.msra.mxu0 %v2543
      %2620 = vmatpush.msra.mxu0 %v2542
      %2621 = vmatpush.msra.mxu0 %v2541
      %2622 = vmatpush.msra.mxu0 %v2540
      %2623 = vmatpush.msra.mxu0 %v2539
      %2624 = vmatpush.msra.mxu0 %v2538
      %2625 = vmatmul.f32.gmra.mxu0 %v2482
      %v2626 = vpop.f32.mrf.mxu0
      %v2627 = vadd.f32 %v231, %v2626
      %2628 = vmatmul.f32.gmra.mxu0 %v2483
      %v2629 = vpop.f32.mrf.mxu0
      %v2630 = vadd.f32 %v231, %v2629
      %2631 = vmatmul.f32.gmra.mxu0 %v2484
      %v2632 = vpop.f32.mrf.mxu0
      %v2633 = vadd.f32 %v231, %v2632
      %2634 = vmatmul.f32.gmra.mxu0 %v2485
      %v2635 = vpop.f32.mrf.mxu0
      %v2636 = vadd.f32 %v231, %v2635
      %2637 = vmatmul.f32.gmra.mxu0 %v2486
      %v2638 = vpop.f32.mrf.mxu0
      %v2639 = vadd.f32 %v231, %v2638
      %2640 = vmatmul.f32.gmra.mxu0 %v2487
      %v2641 = vpop.f32.mrf.mxu0
      %v2642 = vadd.f32 %v231, %v2641
      %2643 = vmatmul.f32.gmra.mxu0 %v2488
      %v2644 = vpop.f32.mrf.mxu0
      %v2645 = vadd.f32 %v231, %v2644
      %2646 = vmatmul.f32.gmra.mxu0 %v2489
      %v2647 = vpop.f32.mrf.mxu0
      %v2648 = vadd.f32 %v231, %v2647
      %2649 = vmatmul.f32.gmra.mxu0 %v2490
      %v2650 = vpop.f32.mrf.mxu0
      %v2651 = vadd.f32 %v231, %v2650
      %2652 = vmatmul.f32.gmra.mxu0 %v2491
      %v2653 = vpop.f32.mrf.mxu0
      %v2654 = vadd.f32 %v231, %v2653
      %2655 = vmatmul.f32.gmra.mxu0 %v2492
      %v2656 = vpop.f32.mrf.mxu0
      %v2657 = vadd.f32 %v231, %v2656
      %2658 = vmatmul.f32.gmra.mxu0 %v2493
      %v2659 = vpop.f32.mrf.mxu0
      %v2660 = vadd.f32 %v231, %v2659
      %2661 = vmatmul.f32.gmra.mxu0 %v2494
      %v2662 = vpop.f32.mrf.mxu0
      %v2663 = vadd.f32 %v231, %v2662
      %2664 = vmatmul.f32.gmra.mxu0 %v2495
      %v2665 = vpop.f32.mrf.mxu0
      %v2666 = vadd.f32 %v231, %v2665
      %2667 = vdwg.mxu0
      %2668 = vmatpush.msra.mxu0 %v2569
      %2669 = vmatpush.msra.mxu0 %v2568
      %2670 = vmatpush.msra.mxu0 %v2567
      %2671 = vmatpush.msra.mxu0 %v2566
      %2672 = vmatpush.msra.mxu0 %v2565
      %2673 = vmatpush.msra.mxu0 %v2564
      %2674 = vmatpush.msra.mxu0 %v2563
      %2675 = vmatpush.msra.mxu0 %v2562
      %2676 = vmatpush.msra.mxu0 %v2561
      %2677 = vmatpush.msra.mxu0 %v2560
      %2678 = vmatpush.msra.mxu0 %v2559
      %2679 = vmatpush.msra.mxu0 %v2558
      %2680 = vmatpush.msra.mxu0 %v2557
      %2681 = vmatpush.msra.mxu0 %v2556
      %2682 = vmatpush.msra.mxu0 %v2555
      %2683 = vmatpush.msra.mxu0 %v2554
      %2684 = vmatmul.f32.gmra.mxu0 %v2524
      %v2685 = vpop.f32.mrf.mxu0
      %v2686 = vadd.f32 %v2627, %v2685
      %2687 = vmatmul.f32.gmra.mxu0 %v2525
      %v2688 = vpop.f32.mrf.mxu0
      %v2689 = vadd.f32 %v2630, %v2688
      %2690 = vmatmul.f32.gmra.mxu0 %v2526
      %v2691 = vpop.f32.mrf.mxu0
      %v2692 = vadd.f32 %v2633, %v2691
      %2693 = vmatmul.f32.gmra.mxu0 %v2527
      %v2694 = vpop.f32.mrf.mxu0
      %v2695 = vadd.f32 %v2636, %v2694
      %2696 = vmatmul.f32.gmra.mxu0 %v2528
      %v2697 = vpop.f32.mrf.mxu0
      %v2698 = vadd.f32 %v2639, %v2697
      %2699 = vmatmul.f32.gmra.mxu0 %v2529
      %v2700 = vpop.f32.mrf.mxu0
      %v2701 = vadd.f32 %v2642, %v2700
      %2702 = vmatmul.f32.gmra.mxu0 %v2530
      %v2703 = vpop.f32.mrf.mxu0
      %v2704 = vadd.f32 %v2645, %v2703
      %2705 = vmatmul.f32.gmra.mxu0 %v2531
      %v2706 = vpop.f32.mrf.mxu0
      %v2707 = vadd.f32 %v2648, %v2706
      %2708 = vmatmul.f32.gmra.mxu0 %v2532
      %v2709 = vpop.f32.mrf.mxu0
      %v2710 = vadd.f32 %v2651, %v2709
      %2711 = vmatmul.f32.gmra.mxu0 %v2533
      %v2712 = vpop.f32.mrf.mxu0
      %v2713 = vadd.f32 %v2654, %v2712
      %2714 = vmatmul.f32.gmra.mxu0 %v2534
      %v2715 = vpop.f32.mrf.mxu0
      %v2716 = vadd.f32 %v2657, %v2715
      %2717 = vmatmul.f32.gmra.mxu0 %v2535
      %v2718 = vpop.f32.mrf.mxu0
      %v2719 = vadd.f32 %v2660, %v2718
      %2720 = vmatmul.f32.gmra.mxu0 %v2536
      %v2721 = vpop.f32.mrf.mxu0
      %v2722 = vadd.f32 %v2663, %v2721
      %2723 = vmatmul.f32.gmra.mxu0 %v2537
      %v2724 = vpop.f32.mrf.mxu0
      %v2725 = vadd.f32 %v2666, %v2724
      %2726 = vdwg.mxu0
      %2727 = vmatpush.msra.mxu0 0.0
      %2728 = vmatpush.msra.mxu0 0.0
      %2729 = vmatpush.msra.mxu0 0.0
      %2730 = vmatpush.msra.mxu0 0.0
      %2731 = vmatpush.msra.mxu0 0.0
      %2732 = vmatpush.msra.mxu0 0.0
      %2733 = vmatpush.msra.mxu0 0.0
      %2734 = vmatpush.msra.mxu0 0.0
      %2735 = vmatpush.msra.mxu0 0.0
      %2736 = vmatpush.msra.mxu0 0.0
      %2737 = vmatpush.msra.mxu0 0.0
      %2738 = vmatpush.msra.mxu0 0.0
      %2739 = vmatpush.msra.mxu0 %v2573
      %2740 = vmatpush.msra.mxu0 %v2572
      %2741 = vmatpush.msra.mxu0 %v2571
      %2742 = vmatpush.msra.mxu0 %v2570
      %2743 = vmatmul.f32.gmra.mxu0 %v2574
      %v2744 = vpop.f32.mrf.mxu0
      %v2745 = vadd.f32 %v2686, %v2744
      %2746 = vmatmul.f32.gmra.mxu0 %v2576
      %v2747 = vpop.f32.mrf.mxu0
      %v2748 = vadd.f32 %v2689, %v2747
      %2749 = vmatmul.f32.gmra.mxu0 %v2578
      %v2750 = vpop.f32.mrf.mxu0
      %v2751 = vadd.f32 %v2692, %v2750
      %2752 = vmatmul.f32.gmra.mxu0 %v2580
      %v2753 = vpop.f32.mrf.mxu0
      %v2754 = vadd.f32 %v2695, %v2753
      %2755 = vmatmul.f32.gmra.mxu0 %v2582
      %v2756 = vpop.f32.mrf.mxu0
      %v2757 = vadd.f32 %v2698, %v2756
      %2758 = vmatmul.f32.gmra.mxu0 %v2584
      %v2759 = vpop.f32.mrf.mxu0
      %v2760 = vadd.f32 %v2701, %v2759
      %2761 = vmatmul.f32.gmra.mxu0 %v2586
      %v2762 = vpop.f32.mrf.mxu0
      %v2763 = vadd.f32 %v2704, %v2762
      %2764 = vmatmul.f32.gmra.mxu0 %v2589
      %v2765 = vpop.f32.mrf.mxu0
      %v2766 = vadd.f32 %v2707, %v2765
      %2767 = vmatmul.f32.gmra.mxu0 %v2592
      %v2768 = vpop.f32.mrf.mxu0
      %v2769 = vadd.f32 %v2710, %v2768
      %2770 = vmatmul.f32.gmra.mxu0 %v2595
      %v2771 = vpop.f32.mrf.mxu0
      %v2772 = vadd.f32 %v2713, %v2771
      %2773 = vmatmul.f32.gmra.mxu0 %v2598
      %v2774 = vpop.f32.mrf.mxu0
      %v2775 = vadd.f32 %v2716, %v2774
      %2776 = vmatmul.f32.gmra.mxu0 %v2601
      %v2777 = vpop.f32.mrf.mxu0
      %v2778 = vadd.f32 %v2719, %v2777
      %2779 = vmatmul.f32.gmra.mxu0 %v2604
      %v2780 = vpop.f32.mrf.mxu0
      %v2781 = vadd.f32 %v2722, %v2780
      %2782 = vmatmul.f32.gmra.mxu0 %v2607
      %v2783 = vpop.f32.mrf.mxu0
      %v2784 = vadd.f32 %v2725, %v2783
      %2785 = vdwg.mxu0
      %v2786 = vmax.f32 %v2745, 0.0
      %v2787 = vmax.f32 %v2748, 0.0
      %v2788 = vmax.f32 %v2751, 0.0
      %v2789 = vmax.f32 %v2754, 0.0
      %v2790 = vmax.f32 %v2757, 0.0
      %v2791 = vmax.f32 %v2760, 0.0
      %v2792 = vmax.f32 %v2763, 0.0
      %v2793 = vmax.f32 %v2766, 0.0
      %v2794 = vmax.f32 %v2769, 0.0
      %v2795 = vmax.f32 %v2772, 0.0
      %v2796 = vmax.f32 %v2775, 0.0
      %v2797 = vmax.f32 %v2778, 0.0
      %v2798 = vmax.f32 %v2781, 0.0
      %v2799 = vmax.f32 %v2784, 0.0
      %2800 = vst.msk [vmem:[#allocation3 + $0x70] sm:$0xff] %vm1672, %v2786
      %2801 = vst.msk [vmem:[#allocation3 + $0x78] sm:$0xff] %vm1672, %v2787
      %2802 = vst.msk [vmem:[#allocation3 + $0x80] sm:$0xff] %vm1672, %v2788
      %2803 = vst.msk [vmem:[#allocation3 + $0x88] sm:$0xff] %vm1672, %v2789
      %2804 = vst.msk [vmem:[#allocation3 + $0x90] sm:$0xff] %vm1672, %v2790
      %2805 = vst.msk [vmem:[#allocation3 + $0x98] sm:$0xff] %vm1672, %v2791
      %2806 = vst.msk [vmem:[#allocation3 + $0xa0] sm:$0xff] %vm1672, %v2792
      %2807 = vst.msk [vmem:[#allocation3 + $0xa8] sm:$0xff] %vm1672, %v2793
      %2808 = vst.msk [vmem:[#allocation3 + $0xb0] sm:$0xff] %vm1672, %v2794
      %2809 = vst.msk [vmem:[#allocation3 + $0xb8] sm:$0xff] %vm1672, %v2795
      %2810 = vst.msk [vmem:[#allocation3 + $0xc0] sm:$0xff] %vm1672, %v2796
      %2811 = vst.msk [vmem:[#allocation3 + $0xc8] sm:$0xff] %vm1672, %v2797
      %2812 = vst.msk [vmem:[#allocation3 + $0xd0] sm:$0xff] %vm1672, %v2798
      %2813 = vst.msk [vmem:[#allocation3 + $0xd8] sm:$0xff] %vm1672, %v2799
      %v2814 = vld [vmem:[#allocation2 + $0xe0] sm:$0xff]
      %v2815 = vld [vmem:[#allocation2 + $0xe8] sm:$0xff]
      %v2816 = vld [vmem:[#allocation2 + $0xf0] sm:$0xff]
      %v2817 = vld [vmem:[#allocation2 + $0xf8] sm:$0xff]
      %v2818 = vld [vmem:[#allocation2 + $0x100] sm:$0xff]
      %v2819 = vld [vmem:[#allocation2 + $0x108] sm:$0xff]
      %v2820 = vld [vmem:[#allocation2 + $0x110] sm:$0xff]
      %v2821 = vld [vmem:[#allocation2 + $0x118] sm:$0xff]
      %v2822 = vld [vmem:[#allocation2 + $0x120] sm:$0xff]
      %v2823 = vld [vmem:[#allocation2 + $0x128] sm:$0xff]
      %v2824 = vld [vmem:[#allocation2 + $0x130] sm:$0xff]
      %v2825 = vld [vmem:[#allocation2 + $0x138] sm:$0xff]
      %v2826 = vld [vmem:[#allocation2 + $0x140] sm:$0xff]
      %v2827 = vld [vmem:[#allocation2 + $0x148] sm:$0xff]
      %v2828 = vld [vmem:[#allocation2 + $0xe1] sm:$0xff]
      %v2829 = vld [vmem:[#allocation2 + $0xe9] sm:$0xff]
      %v2830 = vld [vmem:[#allocation2 + $0xf1] sm:$0xff]
      %v2831 = vld [vmem:[#allocation2 + $0xf9] sm:$0xff]
      %v2832 = vld [vmem:[#allocation2 + $0x101] sm:$0xff]
      %v2833 = vld [vmem:[#allocation2 + $0x109] sm:$0xff]
      %v2834 = vld [vmem:[#allocation2 + $0x111] sm:$0xff]
      %v2835 = vld [vmem:[#allocation2 + $0x119] sm:$0xff]
      %v2836 = vld [vmem:[#allocation2 + $0x121] sm:$0xff]
      %v2837 = vld [vmem:[#allocation2 + $0x129] sm:$0xff]
      %v2838 = vld [vmem:[#allocation2 + $0x131] sm:$0xff]
      %v2839 = vld [vmem:[#allocation2 + $0x139] sm:$0xff]
      %v2840 = vld [vmem:[#allocation2 + $0x141] sm:$0xff]
      %v2841 = vld [vmem:[#allocation2 + $0x149] sm:$0xff]
      %v2842 = vld [vmem:[#allocation2 + $0xe2] sm:$0xff]
      %v2843 = vld [vmem:[#allocation2 + $0xea] sm:$0xff]
      %v2844 = vld [vmem:[#allocation2 + $0xf2] sm:$0xff]
      %v2845 = vld [vmem:[#allocation2 + $0xfa] sm:$0xff]
      %v2846 = vld [vmem:[#allocation2 + $0x102] sm:$0xff]
      %v2847 = vld [vmem:[#allocation2 + $0x10a] sm:$0xff]
      %v2848 = vld [vmem:[#allocation2 + $0x112] sm:$0xff]
      %v2849 = vld [vmem:[#allocation2 + $0x11a] sm:$0xff]
      %v2850 = vld [vmem:[#allocation2 + $0x122] sm:$0xff]
      %v2851 = vld [vmem:[#allocation2 + $0x12a] sm:$0xff]
      %v2852 = vld [vmem:[#allocation2 + $0x132] sm:$0xff]
      %v2853 = vld [vmem:[#allocation2 + $0x13a] sm:$0xff]
      %v2854 = vld [vmem:[#allocation2 + $0x142] sm:$0xff]
      %v2855 = vld [vmem:[#allocation2 + $0x14a] sm:$0xff]
      %v2856 = vld [vmem:[#allocation2 + $0xfc] sm:$0xff]
      %v2857 = vld [vmem:[#allocation2 + $0x104] sm:$0xff]
      %v2858 = vld [vmem:[#allocation2 + $0x10c] sm:$0xff]
      %v2859 = vld [vmem:[#allocation2 + $0x114] sm:$0xff]
      %v2860 = vld [vmem:[#allocation2 + $0x11c] sm:$0xff]
      %v2861 = vld [vmem:[#allocation2 + $0x124] sm:$0xff]
      %v2862 = vld [vmem:[#allocation2 + $0x12c] sm:$0xff]
      %v2863 = vld [vmem:[#allocation2 + $0x134] sm:$0xff]
      %v2864 = vld [vmem:[#allocation2 + $0x13c] sm:$0xff]
      %v2865 = vld [vmem:[#allocation2 + $0x144] sm:$0xff]
      %v2866 = vld [vmem:[#allocation2 + $0x14c] sm:$0xff]
      %v2867 = vld [vmem:[#allocation2 + $0x154] sm:$0xff]
      %v2868 = vld [vmem:[#allocation2 + $0x15c] sm:$0xff]
      %v2869 = vld [vmem:[#allocation2 + $0x164] sm:$0xff]
      %v2870 = vld [vmem:[#allocation2 + $0xfd] sm:$0xff]
      %v2871 = vld [vmem:[#allocation2 + $0x105] sm:$0xff]
      %v2872 = vld [vmem:[#allocation2 + $0x10d] sm:$0xff]
      %v2873 = vld [vmem:[#allocation2 + $0x115] sm:$0xff]
      %v2874 = vld [vmem:[#allocation2 + $0x11d] sm:$0xff]
      %v2875 = vld [vmem:[#allocation2 + $0x125] sm:$0xff]
      %v2876 = vld [vmem:[#allocation2 + $0x12d] sm:$0xff]
      %v2877 = vld [vmem:[#allocation2 + $0x135] sm:$0xff]
      %v2878 = vld [vmem:[#allocation2 + $0x13d] sm:$0xff]
      %v2879 = vld [vmem:[#allocation2 + $0x145] sm:$0xff]
      %v2880 = vld [vmem:[#allocation2 + $0x14d] sm:$0xff]
      %v2881 = vld [vmem:[#allocation2 + $0x155] sm:$0xff]
      %v2882 = vld [vmem:[#allocation2 + $0x15d] sm:$0xff]
      %v2883 = vld [vmem:[#allocation2 + $0x165] sm:$0xff]
      %v2884 = vld [vmem:[#allocation2 + $0xfe] sm:$0xff]
      %v2885 = vld [vmem:[#allocation2 + $0x106] sm:$0xff]
      %v2886 = vld [vmem:[#allocation2 + $0x10e] sm:$0xff]
      %v2887 = vld [vmem:[#allocation2 + $0x116] sm:$0xff]
      %v2888 = vld [vmem:[#allocation2 + $0x11e] sm:$0xff]
      %v2889 = vld [vmem:[#allocation2 + $0x126] sm:$0xff]
      %v2890 = vld [vmem:[#allocation2 + $0x12e] sm:$0xff]
      %v2891 = vld [vmem:[#allocation2 + $0x136] sm:$0xff]
      %v2892 = vld [vmem:[#allocation2 + $0x13e] sm:$0xff]
      %v2893 = vld [vmem:[#allocation2 + $0x146] sm:$0xff]
      %v2894 = vld [vmem:[#allocation2 + $0x14e] sm:$0xff]
      %v2895 = vld [vmem:[#allocation2 + $0x156] sm:$0xff]
      %v2896 = vld [vmem:[#allocation2 + $0x15e] sm:$0xff]
      %v2897 = vld [vmem:[#allocation2 + $0x166] sm:$0xff]
      %v2898 = vld [vmem:[#allocation2 + $0x150] sm:$0xff]
      %v2899 = vld [vmem:[#allocation2 + $0x158] sm:$0xff]
      %v2900 = vld [vmem:[#allocation2 + $0x160] sm:$0xff]
      %v2901 = vld [vmem:[#allocation2 + $0x168] sm:$0xff]
      %v2902 = vld [vmem:[#allocation2 + $0x170] sm:$0xff]
      %v2903 = vld [vmem:[#allocation2 + $0x178] sm:$0xff]
      %v2904 = vld [vmem:[#allocation2 + $0x180] sm:$0xff]
      %v2905 = vld [vmem:[#allocation2 + $0x151] sm:$0xff]
      %v2906 = vld [vmem:[#allocation2 + $0x159] sm:$0xff]
      %v2907 = vld [vmem:[#allocation2 + $0x161] sm:$0xff]
      %v2908 = vld [vmem:[#allocation2 + $0x169] sm:$0xff]
      %v2909 = vld [vmem:[#allocation2 + $0x171] sm:$0xff]
      %v2910 = vld [vmem:[#allocation2 + $0x179] sm:$0xff]
      %v2911 = vld [vmem:[#allocation2 + $0x181] sm:$0xff]
      %v2912 = vld [vmem:[#allocation2 + $0x152] sm:$0xff]
      %v2913 = vld [vmem:[#allocation2 + $0x15a] sm:$0xff]
      %v2914 = vld [vmem:[#allocation2 + $0x162] sm:$0xff]
      %v2915 = vld [vmem:[#allocation2 + $0x16a] sm:$0xff]
      %v2916 = vld [vmem:[#allocation2 + $0x172] sm:$0xff]
      %v2917 = vld [vmem:[#allocation2 + $0x17a] sm:$0xff]
      %v2918 = vld [vmem:[#allocation2 + $0x182] sm:$0xff]
      %2933 = vrot.lane.b32.xlu0 %v2828, 32
      %v2934 = vpop.permute.xlu0 %2933
      %2935 = vrot.lane.b32.xlu0 %v2829, 32
      %v2936 = vpop.permute.xlu0 %2935
      %2937 = vrot.lane.b32.xlu0 %v2830, 32
      %v2938 = vpop.permute.xlu0 %2937
      %2939 = vrot.lane.b32.xlu0 %v2831, 32
      %v2940 = vpop.permute.xlu0 %2939
      %2941 = vrot.lane.b32.xlu0 %v2832, 32
      %v2942 = vpop.permute.xlu0 %2941
      %2943 = vrot.lane.b32.xlu0 %v2833, 32
      %v2944 = vpop.permute.xlu0 %2943
      %2945 = vrot.lane.b32.xlu0 %v2834, 32
      %v2946 = vpop.permute.xlu0 %2945
      %2947 = vrot.lane.b32.xlu0 %v2835, 32
      %v2948 = vpop.permute.xlu0 %2947
      %2949 = vrot.lane.b32.xlu0 %v2836, 32
      %v2950 = vpop.permute.xlu0 %2949
      %2951 = vrot.lane.b32.xlu0 %v2837, 32
      %v2952 = vpop.permute.xlu0 %2951
      %2953 = vrot.lane.b32.xlu0 %v2838, 32
      %v2954 = vpop.permute.xlu0 %2953
      %2955 = vrot.lane.b32.xlu0 %v2839, 32
      %v2956 = vpop.permute.xlu0 %2955
      %2957 = vrot.lane.b32.xlu0 %v2840, 32
      %v2958 = vpop.permute.xlu0 %2957
      %2959 = vrot.lane.b32.xlu0 %v2841, 32
      %v2960 = vpop.permute.xlu0 %2959
      %2989 = vrot.lane.b32.xlu0 %v2842, 64
      %v2990 = vpop.permute.xlu0 %2989
      %2991 = vrot.lane.b32.xlu0 %v2843, 64
      %v2992 = vpop.permute.xlu0 %2991
      %2993 = vrot.lane.b32.xlu0 %v2844, 64
      %v2994 = vpop.permute.xlu0 %2993
      %2995 = vrot.lane.b32.xlu0 %v2845, 64
      %v2996 = vpop.permute.xlu0 %2995
      %2997 = vrot.lane.b32.xlu0 %v2846, 64
      %v2998 = vpop.permute.xlu0 %2997
      %2999 = vrot.lane.b32.xlu0 %v2847, 64
      %v3000 = vpop.permute.xlu0 %2999
      %3001 = vrot.lane.b32.xlu0 %v2848, 64
      %v3002 = vpop.permute.xlu0 %3001
      %3003 = vrot.lane.b32.xlu0 %v2849, 64
      %v3004 = vpop.permute.xlu0 %3003
      %3005 = vrot.lane.b32.xlu0 %v2850, 64
      %v3006 = vpop.permute.xlu0 %3005
      %3007 = vrot.lane.b32.xlu0 %v2851, 64
      %v3008 = vpop.permute.xlu0 %3007
      %3009 = vrot.lane.b32.xlu0 %v2852, 64
      %v3010 = vpop.permute.xlu0 %3009
      %3011 = vrot.lane.b32.xlu0 %v2853, 64
      %v3012 = vpop.permute.xlu0 %3011
      %3013 = vrot.lane.b32.xlu0 %v2854, 64
      %v3014 = vpop.permute.xlu0 %3013
      %3015 = vrot.lane.b32.xlu0 %v2855, 64
      %v3016 = vpop.permute.xlu0 %3015
      %3045 = vrot.lane.b32.xlu0 %v2856, 96
      %v3046 = vpop.permute.xlu0 %3045
      %3047 = vrot.lane.b32.xlu0 %v2857, 96
      %v3048 = vpop.permute.xlu0 %3047
      %3049 = vrot.lane.b32.xlu0 %v2858, 96
      %v3050 = vpop.permute.xlu0 %3049
      %3051 = vrot.lane.b32.xlu0 %v2859, 96
      %v3052 = vpop.permute.xlu0 %3051
      %3053 = vrot.lane.b32.xlu0 %v2860, 96
      %v3054 = vpop.permute.xlu0 %3053
      %3055 = vrot.lane.b32.xlu0 %v2861, 96
      %v3056 = vpop.permute.xlu0 %3055
      %3057 = vrot.lane.b32.xlu0 %v2862, 96
      %v3058 = vpop.permute.xlu0 %3057
      %3059 = vrot.lane.b32.xlu0 %v2863, 96
      %v3060 = vpop.permute.xlu0 %3059
      %3061 = vrot.lane.b32.xlu0 %v2864, 96
      %v3062 = vpop.permute.xlu0 %3061
      %3063 = vrot.lane.b32.xlu0 %v2865, 96
      %v3064 = vpop.permute.xlu0 %3063
      %3065 = vrot.lane.b32.xlu0 %v2866, 96
      %v3066 = vpop.permute.xlu0 %3065
      %3067 = vrot.lane.b32.xlu0 %v2867, 96
      %v3068 = vpop.permute.xlu0 %3067
      %3069 = vrot.lane.b32.xlu0 %v2868, 96
      %v3070 = vpop.permute.xlu0 %3069
      %3071 = vrot.lane.b32.xlu0 %v2869, 96
      %v3072 = vpop.permute.xlu0 %3071
      %3101 = vrot.lane.b32.xlu0 %v2884, 32
      %v3102 = vpop.permute.xlu0 %3101
      %3103 = vrot.lane.b32.xlu0 %v2885, 32
      %v3104 = vpop.permute.xlu0 %3103
      %3105 = vrot.lane.b32.xlu0 %v2886, 32
      %v3106 = vpop.permute.xlu0 %3105
      %3107 = vrot.lane.b32.xlu0 %v2887, 32
      %v3108 = vpop.permute.xlu0 %3107
      %3109 = vrot.lane.b32.xlu0 %v2888, 32
      %v3110 = vpop.permute.xlu0 %3109
      %3111 = vrot.lane.b32.xlu0 %v2889, 32
      %v3112 = vpop.permute.xlu0 %3111
      %3113 = vrot.lane.b32.xlu0 %v2890, 32
      %v3114 = vpop.permute.xlu0 %3113
      %3115 = vrot.lane.b32.xlu0 %v2891, 32
      %v3116 = vpop.permute.xlu0 %3115
      %3117 = vrot.lane.b32.xlu0 %v2892, 32
      %v3118 = vpop.permute.xlu0 %3117
      %3119 = vrot.lane.b32.xlu0 %v2893, 32
      %v3120 = vpop.permute.xlu0 %3119
      %3121 = vrot.lane.b32.xlu0 %v2894, 32
      %v3122 = vpop.permute.xlu0 %3121
      %3123 = vrot.lane.b32.xlu0 %v2895, 32
      %v3124 = vpop.permute.xlu0 %3123
      %3125 = vrot.lane.b32.xlu0 %v2896, 32
      %v3126 = vpop.permute.xlu0 %3125
      %3127 = vrot.lane.b32.xlu0 %v2897, 32
      %v3128 = vpop.permute.xlu0 %3127
      %3157 = vrot.lane.b32.xlu0 %v2821, 64
      %v3158 = vpop.permute.xlu0 %3157
      %3159 = vrot.lane.b32.xlu0 %v2822, 64
      %v3160 = vpop.permute.xlu0 %3159
      %3161 = vrot.lane.b32.xlu0 %v2823, 64
      %v3162 = vpop.permute.xlu0 %3161
      %3163 = vrot.lane.b32.xlu0 %v2824, 64
      %v3164 = vpop.permute.xlu0 %3163
      %3165 = vrot.lane.b32.xlu0 %v2825, 64
      %v3166 = vpop.permute.xlu0 %3165
      %3167 = vrot.lane.b32.xlu0 %v2826, 64
      %v3168 = vpop.permute.xlu0 %3167
      %3169 = vrot.lane.b32.xlu0 %v2827, 64
      %v3170 = vpop.permute.xlu0 %3169
      %3171 = vrot.lane.b32.xlu0 %v2898, 64
      %v3172 = vpop.permute.xlu0 %3171
      %3173 = vrot.lane.b32.xlu0 %v2899, 64
      %v3174 = vpop.permute.xlu0 %3173
      %3175 = vrot.lane.b32.xlu0 %v2900, 64
      %v3176 = vpop.permute.xlu0 %3175
      %3177 = vrot.lane.b32.xlu0 %v2901, 64
      %v3178 = vpop.permute.xlu0 %3177
      %3179 = vrot.lane.b32.xlu0 %v2902, 64
      %v3180 = vpop.permute.xlu0 %3179
      %3181 = vrot.lane.b32.xlu0 %v2903, 64
      %v3182 = vpop.permute.xlu0 %3181
      %3183 = vrot.lane.b32.xlu0 %v2904, 64
      %v3184 = vpop.permute.xlu0 %3183
      %3206 = vrot.lane.b32.xlu0 %v2835, 96
      %v3207 = vpop.permute.xlu0 %3206
      %3208 = vrot.lane.b32.xlu0 %v2836, 96
      %v3209 = vpop.permute.xlu0 %3208
      %3210 = vrot.lane.b32.xlu0 %v2837, 96
      %v3211 = vpop.permute.xlu0 %3210
      %3212 = vrot.lane.b32.xlu0 %v2838, 96
      %v3213 = vpop.permute.xlu0 %3212
      %3214 = vrot.lane.b32.xlu0 %v2839, 96
      %v3215 = vpop.permute.xlu0 %3214
      %3216 = vrot.lane.b32.xlu0 %v2840, 96
      %v3217 = vpop.permute.xlu0 %3216
      %3218 = vrot.lane.b32.xlu0 %v2841, 96
      %v3219 = vpop.permute.xlu0 %3218
      %3220 = vrot.lane.b32.xlu0 %v2905, 96
      %v3221 = vpop.permute.xlu0 %3220
      %3222 = vrot.lane.b32.xlu0 %v2906, 96
      %v3223 = vpop.permute.xlu0 %3222
      %3224 = vrot.lane.b32.xlu0 %v2907, 96
      %v3225 = vpop.permute.xlu0 %3224
      %3226 = vrot.lane.b32.xlu0 %v2908, 96
      %v3227 = vpop.permute.xlu0 %3226
      %3228 = vrot.lane.b32.xlu0 %v2909, 96
      %v3229 = vpop.permute.xlu0 %3228
      %3230 = vrot.lane.b32.xlu0 %v2910, 96
      %v3231 = vpop.permute.xlu0 %3230
      %3232 = vrot.lane.b32.xlu0 %v2911, 96
      %v3233 = vpop.permute.xlu0 %3232
      %v3248 = vsel %vm253, %v2814, %v2934
      %v3249 = vsel %vm253, %v2815, %v2936
      %v3250 = vsel %vm253, %v2816, %v2938
      %v3251 = vsel %vm253, %v2817, %v2940
      %v3252 = vsel %vm253, %v2818, %v2942
      %v3253 = vsel %vm253, %v2819, %v2944
      %v3254 = vsel %vm253, %v2820, %v2946
      %v3255 = vsel %vm253, %v2821, %v2948
      %v3256 = vsel %vm253, %v2822, %v2950
      %v3257 = vsel %vm253, %v2823, %v2952
      %v3258 = vsel %vm253, %v2824, %v2954
      %v3259 = vsel %vm253, %v2825, %v2956
      %v3260 = vsel %vm253, %v2826, %v2958
      %v3261 = vsel %vm253, %v2827, %v2960
      %v3262 = vsel %vm1672, %v3248, %v2990
      %v3263 = vsel %vm1672, %v3249, %v2992
      %v3264 = vsel %vm1672, %v3250, %v2994
      %v3265 = vsel %vm1672, %v3251, %v2996
      %v3266 = vsel %vm1672, %v3252, %v2998
      %v3267 = vsel %vm1672, %v3253, %v3000
      %v3268 = vsel %vm1672, %v3254, %v3002
      %v3269 = vsel %vm1672, %v3255, %v3004
      %v3270 = vsel %vm1672, %v3256, %v3006
      %v3271 = vsel %vm1672, %v3257, %v3008
      %v3272 = vsel %vm1672, %v3258, %v3010
      %v3273 = vsel %vm1672, %v3259, %v3012
      %v3274 = vsel %vm1672, %v3260, %v3014
      %v3275 = vsel %vm1672, %v3261, %v3016
      %v3276 = vsel %vm1687, %v3262, %v3046
      %v3277 = vsel %vm1687, %v3263, %v3048
      %v3278 = vsel %vm1687, %v3264, %v3050
      %v3279 = vsel %vm1687, %v3265, %v3052
      %v3280 = vsel %vm1687, %v3266, %v3054
      %v3281 = vsel %vm1687, %v3267, %v3056
      %v3282 = vsel %vm1687, %v3268, %v3058
      %v3283 = vsel %vm1687, %v3269, %v3060
      %v3284 = vsel %vm1687, %v3270, %v3062
      %v3285 = vsel %vm1687, %v3271, %v3064
      %v3286 = vsel %vm1687, %v3272, %v3066
      %v3287 = vsel %vm1687, %v3273, %v3068
      %v3288 = vsel %vm1687, %v3274, %v3070
      %v3289 = vsel %vm1687, %v3275, %v3072
      %v3290 = vsel %vm253, %v2870, %v3102
      %v3291 = vsel %vm253, %v2871, %v3104
      %v3292 = vsel %vm253, %v2872, %v3106
      %v3293 = vsel %vm253, %v2873, %v3108
      %v3294 = vsel %vm253, %v2874, %v3110
      %v3295 = vsel %vm253, %v2875, %v3112
      %v3296 = vsel %vm253, %v2876, %v3114
      %v3297 = vsel %vm253, %v2877, %v3116
      %v3298 = vsel %vm253, %v2878, %v3118
      %v3299 = vsel %vm253, %v2879, %v3120
      %v3300 = vsel %vm253, %v2880, %v3122
      %v3301 = vsel %vm253, %v2881, %v3124
      %v3302 = vsel %vm253, %v2882, %v3126
      %v3303 = vsel %vm253, %v2883, %v3128
      %v3304 = vsel %vm1672, %v3290, %v3158
      %v3305 = vsel %vm1672, %v3291, %v3160
      %v3306 = vsel %vm1672, %v3292, %v3162
      %v3307 = vsel %vm1672, %v3293, %v3164
      %v3308 = vsel %vm1672, %v3294, %v3166
      %v3309 = vsel %vm1672, %v3295, %v3168
      %v3310 = vsel %vm1672, %v3296, %v3170
      %v3311 = vsel %vm1672, %v3297, %v3172
      %v3312 = vsel %vm1672, %v3298, %v3174
      %v3313 = vsel %vm1672, %v3299, %v3176
      %v3314 = vsel %vm1672, %v3300, %v3178
      %v3315 = vsel %vm1672, %v3301, %v3180
      %v3316 = vsel %vm1672, %v3302, %v3182
      %v3317 = vsel %vm1672, %v3303, %v3184
      %v3318 = vsel %vm1687, %v3304, %v3207
      %v3319 = vsel %vm1687, %v3305, %v3209
      %v3320 = vsel %vm1687, %v3306, %v3211
      %v3321 = vsel %vm1687, %v3307, %v3213
      %v3322 = vsel %vm1687, %v3308, %v3215
      %v3323 = vsel %vm1687, %v3309, %v3217
      %v3324 = vsel %vm1687, %v3310, %v3219
      %v3325 = vsel %vm1687, %v3311, %v3221
      %v3326 = vsel %vm1687, %v3312, %v3223
      %v3327 = vsel %vm1687, %v3313, %v3225
      %v3328 = vsel %vm1687, %v3314, %v3227
      %v3329 = vsel %vm1687, %v3315, %v3229
      %v3330 = vsel %vm1687, %v3316, %v3231
      %v3331 = vsel %vm1687, %v3317, %v3233
      %v3332 = vld [vmem:[%s3] sm:$0xff]
      %v3333 = vld [vmem:[%s3 + $0x8] sm:$0xff]
      %v3334 = vld [vmem:[%s3 + $0x10] sm:$0xff]
      %v3335 = vld [vmem:[%s3 + $0x18] sm:$0xff]
      %v3336 = vld [vmem:[%s3 + $0x20] sm:$0xff]
      %v3337 = vld [vmem:[%s3 + $0x28] sm:$0xff]
      %v3338 = vld [vmem:[%s3 + $0x30] sm:$0xff]
      %v3339 = vld [vmem:[%s3 + $0x38] sm:$0xff]
      %v3340 = vld [vmem:[%s3 + $0x40] sm:$0xff]
      %v3341 = vld [vmem:[%s3 + $0x48] sm:$0xff]
      %v3342 = vld [vmem:[%s3 + $0x50] sm:$0xff]
      %v3343 = vld [vmem:[%s3 + $0x58] sm:$0xff]
      %v3344 = vld [vmem:[%s3 + $0x60] sm:$0xff]
      %v3345 = vld [vmem:[%s3 + $0x68] sm:$0xff]
      %v3346 = vld [vmem:[%s3 + $0x70] sm:$0xff]
      %v3347 = vld [vmem:[%s3 + $0x78] sm:$0xff]
      %v3348 = vld [vmem:[%s3 + $0x80] sm:$0xff]
      %v3349 = vld [vmem:[%s3 + $0x88] sm:$0xff]
      %v3350 = vld [vmem:[%s3 + $0x90] sm:$0xff]
      %v3351 = vld [vmem:[%s3 + $0x98] sm:$0xff]
      %v3352 = vld [vmem:[%s3 + $0xa0] sm:$0xff]
      %v3353 = vld [vmem:[%s3 + $0xa8] sm:$0xff]
      %v3354 = vld [vmem:[%s3 + $0xb0] sm:$0xff]
      %v3355 = vld [vmem:[%s3 + $0xb8] sm:$0xff]
      %v3356 = vld [vmem:[%s3 + $0xc0] sm:$0xff]
      %v3357 = vld [vmem:[%s3 + $0xc8] sm:$0xff]
      %v3358 = vld [vmem:[%s3 + $0xd0] sm:$0xff]
      %v3359 = vld [vmem:[%s3 + $0xd8] sm:$0xff]
      %v3360 = vld [vmem:[%s3 + $0xe0] sm:$0xff]
      %v3361 = vld [vmem:[%s3 + $0xe8] sm:$0xff]
      %v3362 = vld [vmem:[%s3 + $0xf0] sm:$0xff]
      %v3363 = vld [vmem:[%s3 + $0xf8] sm:$0xff]
      %v3364 = vld [vmem:[%s3 + $0x100] sm:$0xff]
      %v3365 = vld [vmem:[%s3 + $0x108] sm:$0xff]
      %v3366 = vld [vmem:[%s3 + $0x110] sm:$0xff]
      %v3367 = vld [vmem:[%s3 + $0x118] sm:$0xff]
      %v3368 = vsel %vm253, %v2849, 0
      %v3370 = vsel %vm253, %v2850, 0
      %v3372 = vsel %vm253, %v2851, 0
      %v3374 = vsel %vm253, %v2852, 0
      %v3376 = vsel %vm253, %v2853, 0
      %v3378 = vsel %vm253, %v2854, 0
      %v3380 = vsel %vm253, %v2855, 0
      %v3383 = vsel %vm253, %v2912, 0
      %v3386 = vsel %vm253, %v2913, 0
      %v3389 = vsel %vm253, %v2914, 0
      %v3392 = vsel %vm253, %v2915, 0
      %v3395 = vsel %vm253, %v2916, 0
      %v3398 = vsel %vm253, %v2917, 0
      %v3401 = vsel %vm253, %v2918, 0
      %3403 = vmatpush.msra.mxu0 %v3347
      %3404 = vmatpush.msra.mxu0 %v3346
      %3405 = vmatpush.msra.mxu0 %v3345
      %3406 = vmatpush.msra.mxu0 %v3344
      %3407 = vmatpush.msra.mxu0 %v3343
      %3408 = vmatpush.msra.mxu0 %v3342
      %3409 = vmatpush.msra.mxu0 %v3341
      %3410 = vmatpush.msra.mxu0 %v3340
      %3411 = vmatpush.msra.mxu0 %v3339
      %3412 = vmatpush.msra.mxu0 %v3338
      %3413 = vmatpush.msra.mxu0 %v3337
      %3414 = vmatpush.msra.mxu0 %v3336
      %3415 = vmatpush.msra.mxu0 %v3335
      %3416 = vmatpush.msra.mxu0 %v3334
      %3417 = vmatpush.msra.mxu0 %v3333
      %3418 = vmatpush.msra.mxu0 %v3332
      %3419 = vmatmul.f32.gmra.mxu0 %v3276
      %v3420 = vpop.f32.mrf.mxu0
      %v3421 = vadd.f32 %v231, %v3420
      %3422 = vmatmul.f32.gmra.mxu0 %v3277
      %v3423 = vpop.f32.mrf.mxu0
      %v3424 = vadd.f32 %v231, %v3423
      %3425 = vmatmul.f32.gmra.mxu0 %v3278
      %v3426 = vpop.f32.mrf.mxu0
      %v3427 = vadd.f32 %v231, %v3426
      %3428 = vmatmul.f32.gmra.mxu0 %v3279
      %v3429 = vpop.f32.mrf.mxu0
      %v3430 = vadd.f32 %v231, %v3429
      %3431 = vmatmul.f32.gmra.mxu0 %v3280
      %v3432 = vpop.f32.mrf.mxu0
      %v3433 = vadd.f32 %v231, %v3432
      %3434 = vmatmul.f32.gmra.mxu0 %v3281
      %v3435 = vpop.f32.mrf.mxu0
      %v3436 = vadd.f32 %v231, %v3435
      %3437 = vmatmul.f32.gmra.mxu0 %v3282
      %v3438 = vpop.f32.mrf.mxu0
      %v3439 = vadd.f32 %v231, %v3438
      %3440 = vmatmul.f32.gmra.mxu0 %v3283
      %v3441 = vpop.f32.mrf.mxu0
      %v3442 = vadd.f32 %v231, %v3441
      %3443 = vmatmul.f32.gmra.mxu0 %v3284
      %v3444 = vpop.f32.mrf.mxu0
      %v3445 = vadd.f32 %v231, %v3444
      %3446 = vmatmul.f32.gmra.mxu0 %v3285
      %v3447 = vpop.f32.mrf.mxu0
      %v3448 = vadd.f32 %v231, %v3447
      %3449 = vmatmul.f32.gmra.mxu0 %v3286
      %v3450 = vpop.f32.mrf.mxu0
      %v3451 = vadd.f32 %v231, %v3450
      %3452 = vmatmul.f32.gmra.mxu0 %v3287
      %v3453 = vpop.f32.mrf.mxu0
      %v3454 = vadd.f32 %v231, %v3453
      %3455 = vmatmul.f32.gmra.mxu0 %v3288
      %v3456 = vpop.f32.mrf.mxu0
      %v3457 = vadd.f32 %v231, %v3456
      %3458 = vmatmul.f32.gmra.mxu0 %v3289
      %v3459 = vpop.f32.mrf.mxu0
      %v3460 = vadd.f32 %v231, %v3459
      %3461 = vdwg.mxu0
      %3462 = vmatpush.msra.mxu0 %v3363
      %3463 = vmatpush.msra.mxu0 %v3362
      %3464 = vmatpush.msra.mxu0 %v3361
      %3465 = vmatpush.msra.mxu0 %v3360
      %3466 = vmatpush.msra.mxu0 %v3359
      %3467 = vmatpush.msra.mxu0 %v3358
      %3468 = vmatpush.msra.mxu0 %v3357
      %3469 = vmatpush.msra.mxu0 %v3356
      %3470 = vmatpush.msra.mxu0 %v3355
      %3471 = vmatpush.msra.mxu0 %v3354
      %3472 = vmatpush.msra.mxu0 %v3353
      %3473 = vmatpush.msra.mxu0 %v3352
      %3474 = vmatpush.msra.mxu0 %v3351
      %3475 = vmatpush.msra.mxu0 %v3350
      %3476 = vmatpush.msra.mxu0 %v3349
      %3477 = vmatpush.msra.mxu0 %v3348
      %3478 = vmatmul.f32.gmra.mxu0 %v3318
      %v3479 = vpop.f32.mrf.mxu0
      %v3480 = vadd.f32 %v3421, %v3479
      %3481 = vmatmul.f32.gmra.mxu0 %v3319
      %v3482 = vpop.f32.mrf.mxu0
      %v3483 = vadd.f32 %v3424, %v3482
      %3484 = vmatmul.f32.gmra.mxu0 %v3320
      %v3485 = vpop.f32.mrf.mxu0
      %v3486 = vadd.f32 %v3427, %v3485
      %3487 = vmatmul.f32.gmra.mxu0 %v3321
      %v3488 = vpop.f32.mrf.mxu0
      %v3489 = vadd.f32 %v3430, %v3488
      %3490 = vmatmul.f32.gmra.mxu0 %v3322
      %v3491 = vpop.f32.mrf.mxu0
      %v3492 = vadd.f32 %v3433, %v3491
      %3493 = vmatmul.f32.gmra.mxu0 %v3323
      %v3494 = vpop.f32.mrf.mxu0
      %v3495 = vadd.f32 %v3436, %v3494
      %3496 = vmatmul.f32.gmra.mxu0 %v3324
      %v3497 = vpop.f32.mrf.mxu0
      %v3498 = vadd.f32 %v3439, %v3497
      %3499 = vmatmul.f32.gmra.mxu0 %v3325
      %v3500 = vpop.f32.mrf.mxu0
      %v3501 = vadd.f32 %v3442, %v3500
      %3502 = vmatmul.f32.gmra.mxu0 %v3326
      %v3503 = vpop.f32.mrf.mxu0
      %v3504 = vadd.f32 %v3445, %v3503
      %3505 = vmatmul.f32.gmra.mxu0 %v3327
      %v3506 = vpop.f32.mrf.mxu0
      %v3507 = vadd.f32 %v3448, %v3506
      %3508 = vmatmul.f32.gmra.mxu0 %v3328
      %v3509 = vpop.f32.mrf.mxu0
      %v3510 = vadd.f32 %v3451, %v3509
      %3511 = vmatmul.f32.gmra.mxu0 %v3329
      %v3512 = vpop.f32.mrf.mxu0
      %v3513 = vadd.f32 %v3454, %v3512
      %3514 = vmatmul.f32.gmra.mxu0 %v3330
      %v3515 = vpop.f32.mrf.mxu0
      %v3516 = vadd.f32 %v3457, %v3515
      %3517 = vmatmul.f32.gmra.mxu0 %v3331
      %v3518 = vpop.f32.mrf.mxu0
      %v3519 = vadd.f32 %v3460, %v3518
      %3520 = vdwg.mxu0
      %3521 = vmatpush.msra.mxu0 0.0
      %3522 = vmatpush.msra.mxu0 0.0
      %3523 = vmatpush.msra.mxu0 0.0
      %3524 = vmatpush.msra.mxu0 0.0
      %3525 = vmatpush.msra.mxu0 0.0
      %3526 = vmatpush.msra.mxu0 0.0
      %3527 = vmatpush.msra.mxu0 0.0
      %3528 = vmatpush.msra.mxu0 0.0
      %3529 = vmatpush.msra.mxu0 0.0
      %3530 = vmatpush.msra.mxu0 0.0
      %3531 = vmatpush.msra.mxu0 0.0
      %3532 = vmatpush.msra.mxu0 0.0
      %3533 = vmatpush.msra.mxu0 %v3367
      %3534 = vmatpush.msra.mxu0 %v3366
      %3535 = vmatpush.msra.mxu0 %v3365
      %3536 = vmatpush.msra.mxu0 %v3364
      %3537 = vmatmul.f32.gmra.mxu0 %v3368
      %v3538 = vpop.f32.mrf.mxu0
      %v3539 = vadd.f32 %v3480, %v3538
      %3540 = vmatmul.f32.gmra.mxu0 %v3370
      %v3541 = vpop.f32.mrf.mxu0
      %v3542 = vadd.f32 %v3483, %v3541
      %3543 = vmatmul.f32.gmra.mxu0 %v3372
      %v3544 = vpop.f32.mrf.mxu0
      %v3545 = vadd.f32 %v3486, %v3544
      %3546 = vmatmul.f32.gmra.mxu0 %v3374
      %v3547 = vpop.f32.mrf.mxu0
      %v3548 = vadd.f32 %v3489, %v3547
      %3549 = vmatmul.f32.gmra.mxu0 %v3376
      %v3550 = vpop.f32.mrf.mxu0
      %v3551 = vadd.f32 %v3492, %v3550
      %3552 = vmatmul.f32.gmra.mxu0 %v3378
      %v3553 = vpop.f32.mrf.mxu0
      %v3554 = vadd.f32 %v3495, %v3553
      %3555 = vmatmul.f32.gmra.mxu0 %v3380
      %v3556 = vpop.f32.mrf.mxu0
      %v3557 = vadd.f32 %v3498, %v3556
      %3558 = vmatmul.f32.gmra.mxu0 %v3383
      %v3559 = vpop.f32.mrf.mxu0
      %v3560 = vadd.f32 %v3501, %v3559
      %3561 = vmatmul.f32.gmra.mxu0 %v3386
      %v3562 = vpop.f32.mrf.mxu0
      %v3563 = vadd.f32 %v3504, %v3562
      %3564 = vmatmul.f32.gmra.mxu0 %v3389
      %v3565 = vpop.f32.mrf.mxu0
      %v3566 = vadd.f32 %v3507, %v3565
      %3567 = vmatmul.f32.gmra.mxu0 %v3392
      %v3568 = vpop.f32.mrf.mxu0
      %v3569 = vadd.f32 %v3510, %v3568
      %3570 = vmatmul.f32.gmra.mxu0 %v3395
      %v3571 = vpop.f32.mrf.mxu0
      %v3572 = vadd.f32 %v3513, %v3571
      %3573 = vmatmul.f32.gmra.mxu0 %v3398
      %v3574 = vpop.f32.mrf.mxu0
      %v3575 = vadd.f32 %v3516, %v3574
      %3576 = vmatmul.f32.gmra.mxu0 %v3401
      %v3577 = vpop.f32.mrf.mxu0
      %v3578 = vadd.f32 %v3519, %v3577
      %3579 = vdwg.mxu0
      %v3580 = vmax.f32 %v3539, 0.0
      %v3581 = vmax.f32 %v3542, 0.0
      %v3582 = vmax.f32 %v3545, 0.0
      %v3583 = vmax.f32 %v3548, 0.0
      %v3584 = vmax.f32 %v3551, 0.0
      %v3585 = vmax.f32 %v3554, 0.0
      %v3586 = vmax.f32 %v3557, 0.0
      %v3587 = vmax.f32 %v3560, 0.0
      %v3588 = vmax.f32 %v3563, 0.0
      %v3589 = vmax.f32 %v3566, 0.0
      %v3590 = vmax.f32 %v3569, 0.0
      %v3591 = vmax.f32 %v3572, 0.0
      %v3592 = vmax.f32 %v3575, 0.0
      %v3593 = vmax.f32 %v3578, 0.0
      %3594 = vst.msk [vmem:[#allocation3 + $0xe0] sm:$0xff] %vm1672, %v3580
      %3595 = vst.msk [vmem:[#allocation3 + $0xe8] sm:$0xff] %vm1672, %v3581
      %3596 = vst.msk [vmem:[#allocation3 + $0xf0] sm:$0xff] %vm1672, %v3582
      %3597 = vst.msk [vmem:[#allocation3 + $0xf8] sm:$0xff] %vm1672, %v3583
      %3598 = vst.msk [vmem:[#allocation3 + $0x100] sm:$0xff] %vm1672, %v3584
      %3599 = vst.msk [vmem:[#allocation3 + $0x108] sm:$0xff] %vm1672, %v3585
      %3600 = vst.msk [vmem:[#allocation3 + $0x110] sm:$0xff] %vm1672, %v3586
      %3601 = vst.msk [vmem:[#allocation3 + $0x118] sm:$0xff] %vm1672, %v3587
      %3602 = vst.msk [vmem:[#allocation3 + $0x120] sm:$0xff] %vm1672, %v3588
      %3603 = vst.msk [vmem:[#allocation3 + $0x128] sm:$0xff] %vm1672, %v3589
      %3604 = vst.msk [vmem:[#allocation3 + $0x130] sm:$0xff] %vm1672, %v3590
      %3605 = vst.msk [vmem:[#allocation3 + $0x138] sm:$0xff] %vm1672, %v3591
      %3606 = vst.msk [vmem:[#allocation3 + $0x140] sm:$0xff] %vm1672, %v3592
      %3607 = vst.msk [vmem:[#allocation3 + $0x148] sm:$0xff] %vm1672, %v3593
      %v3608 = vld [vmem:[#allocation2 + $0x150] sm:$0xff]
      %v3609 = vld [vmem:[#allocation2 + $0x158] sm:$0xff]
      %v3610 = vld [vmem:[#allocation2 + $0x160] sm:$0xff]
      %v3611 = vld [vmem:[#allocation2 + $0x168] sm:$0xff]
      %v3612 = vld [vmem:[#allocation2 + $0x170] sm:$0xff]
      %v3613 = vld [vmem:[#allocation2 + $0x178] sm:$0xff]
      %v3614 = vld [vmem:[#allocation2 + $0x180] sm:$0xff]
      %v3615 = vld [vmem:[#allocation2 + $0x188] sm:$0xff]
      %v3616 = vld [vmem:[#allocation2 + $0x190] sm:$0xff]
      %v3617 = vld [vmem:[#allocation2 + $0x198] sm:$0xff]
      %v3618 = vld [vmem:[#allocation2 + $0x1a0] sm:$0xff]
      %v3619 = vld [vmem:[#allocation2 + $0x1a8] sm:$0xff]
      %v3620 = vld [vmem:[#allocation2 + $0x1b0] sm:$0xff]
      %v3621 = vld [vmem:[#allocation2 + $0x1b8] sm:$0xff]
      %v3622 = vld [vmem:[#allocation2 + $0x151] sm:$0xff]
      %v3623 = vld [vmem:[#allocation2 + $0x159] sm:$0xff]
      %v3624 = vld [vmem:[#allocation2 + $0x161] sm:$0xff]
      %v3625 = vld [vmem:[#allocation2 + $0x169] sm:$0xff]
      %v3626 = vld [vmem:[#allocation2 + $0x171] sm:$0xff]
      %v3627 = vld [vmem:[#allocation2 + $0x179] sm:$0xff]
      %v3628 = vld [vmem:[#allocation2 + $0x181] sm:$0xff]
      %v3629 = vld [vmem:[#allocation2 + $0x189] sm:$0xff]
      %v3630 = vld [vmem:[#allocation2 + $0x191] sm:$0xff]
      %v3631 = vld [vmem:[#allocation2 + $0x199] sm:$0xff]
      %v3632 = vld [vmem:[#allocation2 + $0x1a1] sm:$0xff]
      %v3633 = vld [vmem:[#allocation2 + $0x1a9] sm:$0xff]
      %v3634 = vld [vmem:[#allocation2 + $0x1b1] sm:$0xff]
      %v3635 = vld [vmem:[#allocation2 + $0x1b9] sm:$0xff]
      %v3636 = vld [vmem:[#allocation2 + $0x152] sm:$0xff]
      %v3637 = vld [vmem:[#allocation2 + $0x15a] sm:$0xff]
      %v3638 = vld [vmem:[#allocation2 + $0x162] sm:$0xff]
      %v3639 = vld [vmem:[#allocation2 + $0x16a] sm:$0xff]
      %v3640 = vld [vmem:[#allocation2 + $0x172] sm:$0xff]
      %v3641 = vld [vmem:[#allocation2 + $0x17a] sm:$0xff]
      %v3642 = vld [vmem:[#allocation2 + $0x182] sm:$0xff]
      %v3643 = vld [vmem:[#allocation2 + $0x18a] sm:$0xff]
      %v3644 = vld [vmem:[#allocation2 + $0x192] sm:$0xff]
      %v3645 = vld [vmem:[#allocation2 + $0x19a] sm:$0xff]
      %v3646 = vld [vmem:[#allocation2 + $0x1a2] sm:$0xff]
      %v3647 = vld [vmem:[#allocation2 + $0x1aa] sm:$0xff]
      %v3648 = vld [vmem:[#allocation2 + $0x1b2] sm:$0xff]
      %v3649 = vld [vmem:[#allocation2 + $0x1ba] sm:$0xff]
      %v3650 = vld [vmem:[#allocation2 + $0x16c] sm:$0xff]
      %v3651 = vld [vmem:[#allocation2 + $0x174] sm:$0xff]
      %v3652 = vld [vmem:[#allocation2 + $0x17c] sm:$0xff]
      %v3653 = vld [vmem:[#allocation2 + $0x184] sm:$0xff]
      %v3654 = vld [vmem:[#allocation2 + $0x18c] sm:$0xff]
      %v3655 = vld [vmem:[#allocation2 + $0x194] sm:$0xff]
      %v3656 = vld [vmem:[#allocation2 + $0x19c] sm:$0xff]
      %v3657 = vld [vmem:[#allocation2 + $0x1a4] sm:$0xff]
      %v3658 = vld [vmem:[#allocation2 + $0x1ac] sm:$0xff]
      %v3659 = vld [vmem:[#allocation2 + $0x1b4] sm:$0xff]
      %v3660 = vld [vmem:[#allocation2 + $0x1bc] sm:$0xff]
      %v3661 = vld [vmem:[#allocation2 + $0x1c4] sm:$0xff]
      %v3662 = vld [vmem:[#allocation2 + $0x1cc] sm:$0xff]
      %v3663 = vld [vmem:[#allocation2 + $0x1d4] sm:$0xff]
      %v3664 = vld [vmem:[#allocation2 + $0x16d] sm:$0xff]
      %v3665 = vld [vmem:[#allocation2 + $0x175] sm:$0xff]
      %v3666 = vld [vmem:[#allocation2 + $0x17d] sm:$0xff]
      %v3667 = vld [vmem:[#allocation2 + $0x185] sm:$0xff]
      %v3668 = vld [vmem:[#allocation2 + $0x18d] sm:$0xff]
      %v3669 = vld [vmem:[#allocation2 + $0x195] sm:$0xff]
      %v3670 = vld [vmem:[#allocation2 + $0x19d] sm:$0xff]
      %v3671 = vld [vmem:[#allocation2 + $0x1a5] sm:$0xff]
      %v3672 = vld [vmem:[#allocation2 + $0x1ad] sm:$0xff]
      %v3673 = vld [vmem:[#allocation2 + $0x1b5] sm:$0xff]
      %v3674 = vld [vmem:[#allocation2 + $0x1bd] sm:$0xff]
      %v3675 = vld [vmem:[#allocation2 + $0x1c5] sm:$0xff]
      %v3676 = vld [vmem:[#allocation2 + $0x1cd] sm:$0xff]
      %v3677 = vld [vmem:[#allocation2 + $0x1d5] sm:$0xff]
      %v3678 = vld [vmem:[#allocation2 + $0x16e] sm:$0xff]
      %v3679 = vld [vmem:[#allocation2 + $0x176] sm:$0xff]
      %v3680 = vld [vmem:[#allocation2 + $0x17e] sm:$0xff]
      %v3681 = vld [vmem:[#allocation2 + $0x186] sm:$0xff]
      %v3682 = vld [vmem:[#allocation2 + $0x18e] sm:$0xff]
      %v3683 = vld [vmem:[#allocation2 + $0x196] sm:$0xff]
      %v3684 = vld [vmem:[#allocation2 + $0x19e] sm:$0xff]
      %v3685 = vld [vmem:[#allocation2 + $0x1a6] sm:$0xff]
      %v3686 = vld [vmem:[#allocation2 + $0x1ae] sm:$0xff]
      %v3687 = vld [vmem:[#allocation2 + $0x1b6] sm:$0xff]
      %v3688 = vld [vmem:[#allocation2 + $0x1be] sm:$0xff]
      %v3689 = vld [vmem:[#allocation2 + $0x1c6] sm:$0xff]
      %v3690 = vld [vmem:[#allocation2 + $0x1ce] sm:$0xff]
      %v3691 = vld [vmem:[#allocation2 + $0x1d6] sm:$0xff]
      %v3692 = vld [vmem:[#allocation2 + $0x1c0] sm:$0xff]
      %v3693 = vld [vmem:[#allocation2 + $0x1c8] sm:$0xff]
      %v3694 = vld [vmem:[#allocation2 + $0x1d0] sm:$0xff]
      %v3695 = vld [vmem:[#allocation2 + $0x1d8] sm:$0xff]
      %v3696 = vld [vmem:[#allocation2 + $0x1e0] sm:$0xff]
      %v3697 = vld [vmem:[#allocation2 + $0x1e8] sm:$0xff]
      %v3698 = vld [vmem:[#allocation2 + $0x1f0] sm:$0xff]
      %v3699 = vld [vmem:[#allocation2 + $0x1c1] sm:$0xff]
      %v3700 = vld [vmem:[#allocation2 + $0x1c9] sm:$0xff]
      %v3701 = vld [vmem:[#allocation2 + $0x1d1] sm:$0xff]
      %v3702 = vld [vmem:[#allocation2 + $0x1d9] sm:$0xff]
      %v3703 = vld [vmem:[#allocation2 + $0x1e1] sm:$0xff]
      %v3704 = vld [vmem:[#allocation2 + $0x1e9] sm:$0xff]
      %v3705 = vld [vmem:[#allocation2 + $0x1f1] sm:$0xff]
      %v3706 = vld [vmem:[#allocation2 + $0x1c2] sm:$0xff]
      %v3707 = vld [vmem:[#allocation2 + $0x1ca] sm:$0xff]
      %v3708 = vld [vmem:[#allocation2 + $0x1d2] sm:$0xff]
      %v3709 = vld [vmem:[#allocation2 + $0x1da] sm:$0xff]
      %v3710 = vld [vmem:[#allocation2 + $0x1e2] sm:$0xff]
      %v3711 = vld [vmem:[#allocation2 + $0x1ea] sm:$0xff]
      %v3712 = vld [vmem:[#allocation2 + $0x1f2] sm:$0xff]
      %3727 = vrot.lane.b32.xlu0 %v3622, 32
      %v3728 = vpop.permute.xlu0 %3727
      %3729 = vrot.lane.b32.xlu0 %v3623, 32
      %v3730 = vpop.permute.xlu0 %3729
      %3731 = vrot.lane.b32.xlu0 %v3624, 32
      %v3732 = vpop.permute.xlu0 %3731
      %3733 = vrot.lane.b32.xlu0 %v3625, 32
      %v3734 = vpop.permute.xlu0 %3733
      %3735 = vrot.lane.b32.xlu0 %v3626, 32
      %v3736 = vpop.permute.xlu0 %3735
      %3737 = vrot.lane.b32.xlu0 %v3627, 32
      %v3738 = vpop.permute.xlu0 %3737
      %3739 = vrot.lane.b32.xlu0 %v3628, 32
      %v3740 = vpop.permute.xlu0 %3739
      %3741 = vrot.lane.b32.xlu0 %v3629, 32
      %v3742 = vpop.permute.xlu0 %3741
      %3743 = vrot.lane.b32.xlu0 %v3630, 32
      %v3744 = vpop.permute.xlu0 %3743
      %3745 = vrot.lane.b32.xlu0 %v3631, 32
      %v3746 = vpop.permute.xlu0 %3745
      %3747 = vrot.lane.b32.xlu0 %v3632, 32
      %v3748 = vpop.permute.xlu0 %3747
      %3749 = vrot.lane.b32.xlu0 %v3633, 32
      %v3750 = vpop.permute.xlu0 %3749
      %3751 = vrot.lane.b32.xlu0 %v3634, 32
      %v3752 = vpop.permute.xlu0 %3751
      %3753 = vrot.lane.b32.xlu0 %v3635, 32
      %v3754 = vpop.permute.xlu0 %3753
      %3783 = vrot.lane.b32.xlu0 %v3636, 64
      %v3784 = vpop.permute.xlu0 %3783
      %3785 = vrot.lane.b32.xlu0 %v3637, 64
      %v3786 = vpop.permute.xlu0 %3785
      %3787 = vrot.lane.b32.xlu0 %v3638, 64
      %v3788 = vpop.permute.xlu0 %3787
      %3789 = vrot.lane.b32.xlu0 %v3639, 64
      %v3790 = vpop.permute.xlu0 %3789
      %3791 = vrot.lane.b32.xlu0 %v3640, 64
      %v3792 = vpop.permute.xlu0 %3791
      %3793 = vrot.lane.b32.xlu0 %v3641, 64
      %v3794 = vpop.permute.xlu0 %3793
      %3795 = vrot.lane.b32.xlu0 %v3642, 64
      %v3796 = vpop.permute.xlu0 %3795
      %3797 = vrot.lane.b32.xlu0 %v3643, 64
      %v3798 = vpop.permute.xlu0 %3797
      %3799 = vrot.lane.b32.xlu0 %v3644, 64
      %v3800 = vpop.permute.xlu0 %3799
      %3801 = vrot.lane.b32.xlu0 %v3645, 64
      %v3802 = vpop.permute.xlu0 %3801
      %3803 = vrot.lane.b32.xlu0 %v3646, 64
      %v3804 = vpop.permute.xlu0 %3803
      %3805 = vrot.lane.b32.xlu0 %v3647, 64
      %v3806 = vpop.permute.xlu0 %3805
      %3807 = vrot.lane.b32.xlu0 %v3648, 64
      %v3808 = vpop.permute.xlu0 %3807
      %3809 = vrot.lane.b32.xlu0 %v3649, 64
      %v3810 = vpop.permute.xlu0 %3809
      %3839 = vrot.lane.b32.xlu0 %v3650, 96
      %v3840 = vpop.permute.xlu0 %3839
      %3841 = vrot.lane.b32.xlu0 %v3651, 96
      %v3842 = vpop.permute.xlu0 %3841
      %3843 = vrot.lane.b32.xlu0 %v3652, 96
      %v3844 = vpop.permute.xlu0 %3843
      %3845 = vrot.lane.b32.xlu0 %v3653, 96
      %v3846 = vpop.permute.xlu0 %3845
      %3847 = vrot.lane.b32.xlu0 %v3654, 96
      %v3848 = vpop.permute.xlu0 %3847
      %3849 = vrot.lane.b32.xlu0 %v3655, 96
      %v3850 = vpop.permute.xlu0 %3849
      %3851 = vrot.lane.b32.xlu0 %v3656, 96
      %v3852 = vpop.permute.xlu0 %3851
      %3853 = vrot.lane.b32.xlu0 %v3657, 96
      %v3854 = vpop.permute.xlu0 %3853
      %3855 = vrot.lane.b32.xlu0 %v3658, 96
      %v3856 = vpop.permute.xlu0 %3855
      %3857 = vrot.lane.b32.xlu0 %v3659, 96
      %v3858 = vpop.permute.xlu0 %3857
      %3859 = vrot.lane.b32.xlu0 %v3660, 96
      %v3860 = vpop.permute.xlu0 %3859
      %3861 = vrot.lane.b32.xlu0 %v3661, 96
      %v3862 = vpop.permute.xlu0 %3861
      %3863 = vrot.lane.b32.xlu0 %v3662, 96
      %v3864 = vpop.permute.xlu0 %3863
      %3865 = vrot.lane.b32.xlu0 %v3663, 96
      %v3866 = vpop.permute.xlu0 %3865
      %3895 = vrot.lane.b32.xlu0 %v3678, 32
      %v3896 = vpop.permute.xlu0 %3895
      %3897 = vrot.lane.b32.xlu0 %v3679, 32
      %v3898 = vpop.permute.xlu0 %3897
      %3899 = vrot.lane.b32.xlu0 %v3680, 32
      %v3900 = vpop.permute.xlu0 %3899
      %3901 = vrot.lane.b32.xlu0 %v3681, 32
      %v3902 = vpop.permute.xlu0 %3901
      %3903 = vrot.lane.b32.xlu0 %v3682, 32
      %v3904 = vpop.permute.xlu0 %3903
      %3905 = vrot.lane.b32.xlu0 %v3683, 32
      %v3906 = vpop.permute.xlu0 %3905
      %3907 = vrot.lane.b32.xlu0 %v3684, 32
      %v3908 = vpop.permute.xlu0 %3907
      %3909 = vrot.lane.b32.xlu0 %v3685, 32
      %v3910 = vpop.permute.xlu0 %3909
      %3911 = vrot.lane.b32.xlu0 %v3686, 32
      %v3912 = vpop.permute.xlu0 %3911
      %3913 = vrot.lane.b32.xlu0 %v3687, 32
      %v3914 = vpop.permute.xlu0 %3913
      %3915 = vrot.lane.b32.xlu0 %v3688, 32
      %v3916 = vpop.permute.xlu0 %3915
      %3917 = vrot.lane.b32.xlu0 %v3689, 32
      %v3918 = vpop.permute.xlu0 %3917
      %3919 = vrot.lane.b32.xlu0 %v3690, 32
      %v3920 = vpop.permute.xlu0 %3919
      %3921 = vrot.lane.b32.xlu0 %v3691, 32
      %v3922 = vpop.permute.xlu0 %3921
      %3951 = vrot.lane.b32.xlu0 %v3615, 64
      %v3952 = vpop.permute.xlu0 %3951
      %3953 = vrot.lane.b32.xlu0 %v3616, 64
      %v3954 = vpop.permute.xlu0 %3953
      %3955 = vrot.lane.b32.xlu0 %v3617, 64
      %v3956 = vpop.permute.xlu0 %3955
      %3957 = vrot.lane.b32.xlu0 %v3618, 64
      %v3958 = vpop.permute.xlu0 %3957
      %3959 = vrot.lane.b32.xlu0 %v3619, 64
      %v3960 = vpop.permute.xlu0 %3959
      %3961 = vrot.lane.b32.xlu0 %v3620, 64
      %v3962 = vpop.permute.xlu0 %3961
      %3963 = vrot.lane.b32.xlu0 %v3621, 64
      %v3964 = vpop.permute.xlu0 %3963
      %3965 = vrot.lane.b32.xlu0 %v3692, 64
      %v3966 = vpop.permute.xlu0 %3965
      %3967 = vrot.lane.b32.xlu0 %v3693, 64
      %v3968 = vpop.permute.xlu0 %3967
      %3969 = vrot.lane.b32.xlu0 %v3694, 64
      %v3970 = vpop.permute.xlu0 %3969
      %3971 = vrot.lane.b32.xlu0 %v3695, 64
      %v3972 = vpop.permute.xlu0 %3971
      %3973 = vrot.lane.b32.xlu0 %v3696, 64
      %v3974 = vpop.permute.xlu0 %3973
      %3975 = vrot.lane.b32.xlu0 %v3697, 64
      %v3976 = vpop.permute.xlu0 %3975
      %3977 = vrot.lane.b32.xlu0 %v3698, 64
      %v3978 = vpop.permute.xlu0 %3977
      %4000 = vrot.lane.b32.xlu0 %v3629, 96
      %v4001 = vpop.permute.xlu0 %4000
      %4002 = vrot.lane.b32.xlu0 %v3630, 96
      %v4003 = vpop.permute.xlu0 %4002
      %4004 = vrot.lane.b32.xlu0 %v3631, 96
      %v4005 = vpop.permute.xlu0 %4004
      %4006 = vrot.lane.b32.xlu0 %v3632, 96
      %v4007 = vpop.permute.xlu0 %4006
      %4008 = vrot.lane.b32.xlu0 %v3633, 96
      %v4009 = vpop.permute.xlu0 %4008
      %4010 = vrot.lane.b32.xlu0 %v3634, 96
      %v4011 = vpop.permute.xlu0 %4010
      %4012 = vrot.lane.b32.xlu0 %v3635, 96
      %v4013 = vpop.permute.xlu0 %4012
      %4014 = vrot.lane.b32.xlu0 %v3699, 96
      %v4015 = vpop.permute.xlu0 %4014
      %4016 = vrot.lane.b32.xlu0 %v3700, 96
      %v4017 = vpop.permute.xlu0 %4016
      %4018 = vrot.lane.b32.xlu0 %v3701, 96
      %v4019 = vpop.permute.xlu0 %4018
      %4020 = vrot.lane.b32.xlu0 %v3702, 96
      %v4021 = vpop.permute.xlu0 %4020
      %4022 = vrot.lane.b32.xlu0 %v3703, 96
      %v4023 = vpop.permute.xlu0 %4022
      %4024 = vrot.lane.b32.xlu0 %v3704, 96
      %v4025 = vpop.permute.xlu0 %4024
      %4026 = vrot.lane.b32.xlu0 %v3705, 96
      %v4027 = vpop.permute.xlu0 %4026
      %v4042 = vsel %vm253, %v3608, %v3728
      %v4043 = vsel %vm253, %v3609, %v3730
      %v4044 = vsel %vm253, %v3610, %v3732
      %v4045 = vsel %vm253, %v3611, %v3734
      %v4046 = vsel %vm253, %v3612, %v3736
      %v4047 = vsel %vm253, %v3613, %v3738
      %v4048 = vsel %vm253, %v3614, %v3740
      %v4049 = vsel %vm253, %v3615, %v3742
      %v4050 = vsel %vm253, %v3616, %v3744
      %v4051 = vsel %vm253, %v3617, %v3746
      %v4052 = vsel %vm253, %v3618, %v3748
      %v4053 = vsel %vm253, %v3619, %v3750
      %v4054 = vsel %vm253, %v3620, %v3752
      %v4055 = vsel %vm253, %v3621, %v3754
      %v4056 = vsel %vm1672, %v4042, %v3784
      %v4057 = vsel %vm1672, %v4043, %v3786
      %v4058 = vsel %vm1672, %v4044, %v3788
      %v4059 = vsel %vm1672, %v4045, %v3790
      %v4060 = vsel %vm1672, %v4046, %v3792
      %v4061 = vsel %vm1672, %v4047, %v3794
      %v4062 = vsel %vm1672, %v4048, %v3796
      %v4063 = vsel %vm1672, %v4049, %v3798
      %v4064 = vsel %vm1672, %v4050, %v3800
      %v4065 = vsel %vm1672, %v4051, %v3802
      %v4066 = vsel %vm1672, %v4052, %v3804
      %v4067 = vsel %vm1672, %v4053, %v3806
      %v4068 = vsel %vm1672, %v4054, %v3808
      %v4069 = vsel %vm1672, %v4055, %v3810
      %v4070 = vsel %vm1687, %v4056, %v3840
      %v4071 = vsel %vm1687, %v4057, %v3842
      %v4072 = vsel %vm1687, %v4058, %v3844
      %v4073 = vsel %vm1687, %v4059, %v3846
      %v4074 = vsel %vm1687, %v4060, %v3848
      %v4075 = vsel %vm1687, %v4061, %v3850
      %v4076 = vsel %vm1687, %v4062, %v3852
      %v4077 = vsel %vm1687, %v4063, %v3854
      %v4078 = vsel %vm1687, %v4064, %v3856
      %v4079 = vsel %vm1687, %v4065, %v3858
      %v4080 = vsel %vm1687, %v4066, %v3860
      %v4081 = vsel %vm1687, %v4067, %v3862
      %v4082 = vsel %vm1687, %v4068, %v3864
      %v4083 = vsel %vm1687, %v4069, %v3866
      %v4084 = vsel %vm253, %v3664, %v3896
      %v4085 = vsel %vm253, %v3665, %v3898
      %v4086 = vsel %vm253, %v3666, %v3900
      %v4087 = vsel %vm253, %v3667, %v3902
      %v4088 = vsel %vm253, %v3668, %v3904
      %v4089 = vsel %vm253, %v3669, %v3906
      %v4090 = vsel %vm253, %v3670, %v3908
      %v4091 = vsel %vm253, %v3671, %v3910
      %v4092 = vsel %vm253, %v3672, %v3912
      %v4093 = vsel %vm253, %v3673, %v3914
      %v4094 = vsel %vm253, %v3674, %v3916
      %v4095 = vsel %vm253, %v3675, %v3918
      %v4096 = vsel %vm253, %v3676, %v3920
      %v4097 = vsel %vm253, %v3677, %v3922
      %v4098 = vsel %vm1672, %v4084, %v3952
      %v4099 = vsel %vm1672, %v4085, %v3954
      %v4100 = vsel %vm1672, %v4086, %v3956
      %v4101 = vsel %vm1672, %v4087, %v3958
      %v4102 = vsel %vm1672, %v4088, %v3960
      %v4103 = vsel %vm1672, %v4089, %v3962
      %v4104 = vsel %vm1672, %v4090, %v3964
      %v4105 = vsel %vm1672, %v4091, %v3966
      %v4106 = vsel %vm1672, %v4092, %v3968
      %v4107 = vsel %vm1672, %v4093, %v3970
      %v4108 = vsel %vm1672, %v4094, %v3972
      %v4109 = vsel %vm1672, %v4095, %v3974
      %v4110 = vsel %vm1672, %v4096, %v3976
      %v4111 = vsel %vm1672, %v4097, %v3978
      %v4112 = vsel %vm1687, %v4098, %v4001
      %v4113 = vsel %vm1687, %v4099, %v4003
      %v4114 = vsel %vm1687, %v4100, %v4005
      %v4115 = vsel %vm1687, %v4101, %v4007
      %v4116 = vsel %vm1687, %v4102, %v4009
      %v4117 = vsel %vm1687, %v4103, %v4011
      %v4118 = vsel %vm1687, %v4104, %v4013
      %v4119 = vsel %vm1687, %v4105, %v4015
      %v4120 = vsel %vm1687, %v4106, %v4017
      %v4121 = vsel %vm1687, %v4107, %v4019
      %v4122 = vsel %vm1687, %v4108, %v4021
      %v4123 = vsel %vm1687, %v4109, %v4023
      %v4124 = vsel %vm1687, %v4110, %v4025
      %v4125 = vsel %vm1687, %v4111, %v4027
      %v4126 = vld [vmem:[%s3] sm:$0xff]
      %v4127 = vld [vmem:[%s3 + $0x8] sm:$0xff]
      %v4128 = vld [vmem:[%s3 + $0x10] sm:$0xff]
      %v4129 = vld [vmem:[%s3 + $0x18] sm:$0xff]
      %v4130 = vld [vmem:[%s3 + $0x20] sm:$0xff]
      %v4131 = vld [vmem:[%s3 + $0x28] sm:$0xff]
      %v4132 = vld [vmem:[%s3 + $0x30] sm:$0xff]
      %v4133 = vld [vmem:[%s3 + $0x38] sm:$0xff]
      %v4134 = vld [vmem:[%s3 + $0x40] sm:$0xff]
      %v4135 = vld [vmem:[%s3 + $0x48] sm:$0xff]
      %v4136 = vld [vmem:[%s3 + $0x50] sm:$0xff]
      %v4137 = vld [vmem:[%s3 + $0x58] sm:$0xff]
      %v4138 = vld [vmem:[%s3 + $0x60] sm:$0xff]
      %v4139 = vld [vmem:[%s3 + $0x68] sm:$0xff]
      %v4140 = vld [vmem:[%s3 + $0x70] sm:$0xff]
      %v4141 = vld [vmem:[%s3 + $0x78] sm:$0xff]
      %v4142 = vld [vmem:[%s3 + $0x80] sm:$0xff]
      %v4143 = vld [vmem:[%s3 + $0x88] sm:$0xff]
      %v4144 = vld [vmem:[%s3 + $0x90] sm:$0xff]
      %v4145 = vld [vmem:[%s3 + $0x98] sm:$0xff]
      %v4146 = vld [vmem:[%s3 + $0xa0] sm:$0xff]
      %v4147 = vld [vmem:[%s3 + $0xa8] sm:$0xff]
      %v4148 = vld [vmem:[%s3 + $0xb0] sm:$0xff]
      %v4149 = vld [vmem:[%s3 + $0xb8] sm:$0xff]
      %v4150 = vld [vmem:[%s3 + $0xc0] sm:$0xff]
      %v4151 = vld [vmem:[%s3 + $0xc8] sm:$0xff]
      %v4152 = vld [vmem:[%s3 + $0xd0] sm:$0xff]
      %v4153 = vld [vmem:[%s3 + $0xd8] sm:$0xff]
      %v4154 = vld [vmem:[%s3 + $0xe0] sm:$0xff]
      %v4155 = vld [vmem:[%s3 + $0xe8] sm:$0xff]
      %v4156 = vld [vmem:[%s3 + $0xf0] sm:$0xff]
      %v4157 = vld [vmem:[%s3 + $0xf8] sm:$0xff]
      %v4158 = vld [vmem:[%s3 + $0x100] sm:$0xff]
      %v4159 = vld [vmem:[%s3 + $0x108] sm:$0xff]
      %v4160 = vld [vmem:[%s3 + $0x110] sm:$0xff]
      %v4161 = vld [vmem:[%s3 + $0x118] sm:$0xff]
      %v4162 = vsel %vm253, %v3643, 0
      %v4164 = vsel %vm253, %v3644, 0
      %v4166 = vsel %vm253, %v3645, 0
      %v4168 = vsel %vm253, %v3646, 0
      %v4170 = vsel %vm253, %v3647, 0
      %v4172 = vsel %vm253, %v3648, 0
      %v4174 = vsel %vm253, %v3649, 0
      %v4177 = vsel %vm253, %v3706, 0
      %v4180 = vsel %vm253, %v3707, 0
      %v4183 = vsel %vm253, %v3708, 0
      %v4186 = vsel %vm253, %v3709, 0
      %v4189 = vsel %vm253, %v3710, 0
      %v4192 = vsel %vm253, %v3711, 0
      %v4195 = vsel %vm253, %v3712, 0
      %4197 = vmatpush.msra.mxu0 %v4141
      %4198 = vmatpush.msra.mxu0 %v4140
      %4199 = vmatpush.msra.mxu0 %v4139
      %4200 = vmatpush.msra.mxu0 %v4138
      %4201 = vmatpush.msra.mxu0 %v4137
      %4202 = vmatpush.msra.mxu0 %v4136
      %4203 = vmatpush.msra.mxu0 %v4135
      %4204 = vmatpush.msra.mxu0 %v4134
      %4205 = vmatpush.msra.mxu0 %v4133
      %4206 = vmatpush.msra.mxu0 %v4132
      %4207 = vmatpush.msra.mxu0 %v4131
      %4208 = vmatpush.msra.mxu0 %v4130
      %4209 = vmatpush.msra.mxu0 %v4129
      %4210 = vmatpush.msra.mxu0 %v4128
      %4211 = vmatpush.msra.mxu0 %v4127
      %4212 = vmatpush.msra.mxu0 %v4126
      %4213 = vmatmul.f32.gmra.mxu0 %v4070
      %v4214 = vpop.f32.mrf.mxu0
      %v4215 = vadd.f32 %v231, %v4214
      %4216 = vmatmul.f32.gmra.mxu0 %v4071
      %v4217 = vpop.f32.mrf.mxu0
      %v4218 = vadd.f32 %v231, %v4217
      %4219 = vmatmul.f32.gmra.mxu0 %v4072
      %v4220 = vpop.f32.mrf.mxu0
      %v4221 = vadd.f32 %v231, %v4220
      %4222 = vmatmul.f32.gmra.mxu0 %v4073
      %v4223 = vpop.f32.mrf.mxu0
      %v4224 = vadd.f32 %v231, %v4223
      %4225 = vmatmul.f32.gmra.mxu0 %v4074
      %v4226 = vpop.f32.mrf.mxu0
      %v4227 = vadd.f32 %v231, %v4226
      %4228 = vmatmul.f32.gmra.mxu0 %v4075
      %v4229 = vpop.f32.mrf.mxu0
      %v4230 = vadd.f32 %v231, %v4229
      %4231 = vmatmul.f32.gmra.mxu0 %v4076
      %v4232 = vpop.f32.mrf.mxu0
      %v4233 = vadd.f32 %v231, %v4232
      %4234 = vmatmul.f32.gmra.mxu0 %v4077
      %v4235 = vpop.f32.mrf.mxu0
      %v4236 = vadd.f32 %v231, %v4235
      %4237 = vmatmul.f32.gmra.mxu0 %v4078
      %v4238 = vpop.f32.mrf.mxu0
      %v4239 = vadd.f32 %v231, %v4238
      %4240 = vmatmul.f32.gmra.mxu0 %v4079
      %v4241 = vpop.f32.mrf.mxu0
      %v4242 = vadd.f32 %v231, %v4241
      %4243 = vmatmul.f32.gmra.mxu0 %v4080
      %v4244 = vpop.f32.mrf.mxu0
      %v4245 = vadd.f32 %v231, %v4244
      %4246 = vmatmul.f32.gmra.mxu0 %v4081
      %v4247 = vpop.f32.mrf.mxu0
      %v4248 = vadd.f32 %v231, %v4247
      %4249 = vmatmul.f32.gmra.mxu0 %v4082
      %v4250 = vpop.f32.mrf.mxu0
      %v4251 = vadd.f32 %v231, %v4250
      %4252 = vmatmul.f32.gmra.mxu0 %v4083
      %v4253 = vpop.f32.mrf.mxu0
      %v4254 = vadd.f32 %v231, %v4253
      %4255 = vdwg.mxu0
      %4256 = vmatpush.msra.mxu0 %v4157
      %4257 = vmatpush.msra.mxu0 %v4156
      %4258 = vmatpush.msra.mxu0 %v4155
      %4259 = vmatpush.msra.mxu0 %v4154
      %4260 = vmatpush.msra.mxu0 %v4153
      %4261 = vmatpush.msra.mxu0 %v4152
      %4262 = vmatpush.msra.mxu0 %v4151
      %4263 = vmatpush.msra.mxu0 %v4150
      %4264 = vmatpush.msra.mxu0 %v4149
      %4265 = vmatpush.msra.mxu0 %v4148
      %4266 = vmatpush.msra.mxu0 %v4147
      %4267 = vmatpush.msra.mxu0 %v4146
      %4268 = vmatpush.msra.mxu0 %v4145
      %4269 = vmatpush.msra.mxu0 %v4144
      %4270 = vmatpush.msra.mxu0 %v4143
      %4271 = vmatpush.msra.mxu0 %v4142
      %4272 = vmatmul.f32.gmra.mxu0 %v4112
      %v4273 = vpop.f32.mrf.mxu0
      %v4274 = vadd.f32 %v4215, %v4273
      %4275 = vmatmul.f32.gmra.mxu0 %v4113
      %v4276 = vpop.f32.mrf.mxu0
      %v4277 = vadd.f32 %v4218, %v4276
      %4278 = vmatmul.f32.gmra.mxu0 %v4114
      %v4279 = vpop.f32.mrf.mxu0
      %v4280 = vadd.f32 %v4221, %v4279
      %4281 = vmatmul.f32.gmra.mxu0 %v4115
      %v4282 = vpop.f32.mrf.mxu0
      %v4283 = vadd.f32 %v4224, %v4282
      %4284 = vmatmul.f32.gmra.mxu0 %v4116
      %v4285 = vpop.f32.mrf.mxu0
      %v4286 = vadd.f32 %v4227, %v4285
      %4287 = vmatmul.f32.gmra.mxu0 %v4117
      %v4288 = vpop.f32.mrf.mxu0
      %v4289 = vadd.f32 %v4230, %v4288
      %4290 = vmatmul.f32.gmra.mxu0 %v4118
      %v4291 = vpop.f32.mrf.mxu0
      %v4292 = vadd.f32 %v4233, %v4291
      %4293 = vmatmul.f32.gmra.mxu0 %v4119
      %v4294 = vpop.f32.mrf.mxu0
      %v4295 = vadd.f32 %v4236, %v4294
      %4296 = vmatmul.f32.gmra.mxu0 %v4120
      %v4297 = vpop.f32.mrf.mxu0
      %v4298 = vadd.f32 %v4239, %v4297
      %4299 = vmatmul.f32.gmra.mxu0 %v4121
      %v4300 = vpop.f32.mrf.mxu0
      %v4301 = vadd.f32 %v4242, %v4300
      %4302 = vmatmul.f32.gmra.mxu0 %v4122
      %v4303 = vpop.f32.mrf.mxu0
      %v4304 = vadd.f32 %v4245, %v4303
      %4305 = vmatmul.f32.gmra.mxu0 %v4123
      %v4306 = vpop.f32.mrf.mxu0
      %v4307 = vadd.f32 %v4248, %v4306
      %4308 = vmatmul.f32.gmra.mxu0 %v4124
      %v4309 = vpop.f32.mrf.mxu0
      %v4310 = vadd.f32 %v4251, %v4309
      %4311 = vmatmul.f32.gmra.mxu0 %v4125
      %v4312 = vpop.f32.mrf.mxu0
      %v4313 = vadd.f32 %v4254, %v4312
      %4314 = vdwg.mxu0
      %4315 = vmatpush.msra.mxu0 0.0
      %4316 = vmatpush.msra.mxu0 0.0
      %4317 = vmatpush.msra.mxu0 0.0
      %4318 = vmatpush.msra.mxu0 0.0
      %4319 = vmatpush.msra.mxu0 0.0
      %4320 = vmatpush.msra.mxu0 0.0
      %4321 = vmatpush.msra.mxu0 0.0
      %4322 = vmatpush.msra.mxu0 0.0
      %4323 = vmatpush.msra.mxu0 0.0
      %4324 = vmatpush.msra.mxu0 0.0
      %4325 = vmatpush.msra.mxu0 0.0
      %4326 = vmatpush.msra.mxu0 0.0
      %4327 = vmatpush.msra.mxu0 %v4161
      %4328 = vmatpush.msra.mxu0 %v4160
      %4329 = vmatpush.msra.mxu0 %v4159
      %4330 = vmatpush.msra.mxu0 %v4158
      %4331 = vmatmul.f32.gmra.mxu0 %v4162
      %v4332 = vpop.f32.mrf.mxu0
      %v4333 = vadd.f32 %v4274, %v4332
      %4334 = vmatmul.f32.gmra.mxu0 %v4164
      %v4335 = vpop.f32.mrf.mxu0
      %v4336 = vadd.f32 %v4277, %v4335
      %4337 = vmatmul.f32.gmra.mxu0 %v4166
      %v4338 = vpop.f32.mrf.mxu0
      %v4339 = vadd.f32 %v4280, %v4338
      %4340 = vmatmul.f32.gmra.mxu0 %v4168
      %v4341 = vpop.f32.mrf.mxu0
      %v4342 = vadd.f32 %v4283, %v4341
      %4343 = vmatmul.f32.gmra.mxu0 %v4170
      %v4344 = vpop.f32.mrf.mxu0
      %v4345 = vadd.f32 %v4286, %v4344
      %4346 = vmatmul.f32.gmra.mxu0 %v4172
      %v4347 = vpop.f32.mrf.mxu0
      %v4348 = vadd.f32 %v4289, %v4347
      %4349 = vmatmul.f32.gmra.mxu0 %v4174
      %v4350 = vpop.f32.mrf.mxu0
      %v4351 = vadd.f32 %v4292, %v4350
      %4352 = vmatmul.f32.gmra.mxu0 %v4177
      %v4353 = vpop.f32.mrf.mxu0
      %v4354 = vadd.f32 %v4295, %v4353
      %4355 = vmatmul.f32.gmra.mxu0 %v4180
      %v4356 = vpop.f32.mrf.mxu0
      %v4357 = vadd.f32 %v4298, %v4356
      %4358 = vmatmul.f32.gmra.mxu0 %v4183
      %v4359 = vpop.f32.mrf.mxu0
      %v4360 = vadd.f32 %v4301, %v4359
      %4361 = vmatmul.f32.gmra.mxu0 %v4186
      %v4362 = vpop.f32.mrf.mxu0
      %v4363 = vadd.f32 %v4304, %v4362
      %4364 = vmatmul.f32.gmra.mxu0 %v4189
      %v4365 = vpop.f32.mrf.mxu0
      %v4366 = vadd.f32 %v4307, %v4365
      %4367 = vmatmul.f32.gmra.mxu0 %v4192
      %v4368 = vpop.f32.mrf.mxu0
      %v4369 = vadd.f32 %v4310, %v4368
      %4370 = vmatmul.f32.gmra.mxu0 %v4195
      %v4371 = vpop.f32.mrf.mxu0
      %v4372 = vadd.f32 %v4313, %v4371
      %4373 = vdwg.mxu0
      %v4374 = vmax.f32 %v4333, 0.0
      %v4375 = vmax.f32 %v4336, 0.0
      %v4376 = vmax.f32 %v4339, 0.0
      %v4377 = vmax.f32 %v4342, 0.0
      %v4378 = vmax.f32 %v4345, 0.0
      %v4379 = vmax.f32 %v4348, 0.0
      %v4380 = vmax.f32 %v4351, 0.0
      %v4381 = vmax.f32 %v4354, 0.0
      %v4382 = vmax.f32 %v4357, 0.0
      %v4383 = vmax.f32 %v4360, 0.0
      %v4384 = vmax.f32 %v4363, 0.0
      %v4385 = vmax.f32 %v4366, 0.0
      %v4386 = vmax.f32 %v4369, 0.0
      %v4387 = vmax.f32 %v4372, 0.0
      %4388 = vst.msk [vmem:[#allocation3 + $0x150] sm:$0xff] %vm1672, %v4374
      %4389 = vst.msk [vmem:[#allocation3 + $0x158] sm:$0xff] %vm1672, %v4375
      %4390 = vst.msk [vmem:[#allocation3 + $0x160] sm:$0xff] %vm1672, %v4376
      %4391 = vst.msk [vmem:[#allocation3 + $0x168] sm:$0xff] %vm1672, %v4377
      %4392 = vst.msk [vmem:[#allocation3 + $0x170] sm:$0xff] %vm1672, %v4378
      %4393 = vst.msk [vmem:[#allocation3 + $0x178] sm:$0xff] %vm1672, %v4379
      %4394 = vst.msk [vmem:[#allocation3 + $0x180] sm:$0xff] %vm1672, %v4380
      %4395 = vst.msk [vmem:[#allocation3 + $0x188] sm:$0xff] %vm1672, %v4381
      %4396 = vst.msk [vmem:[#allocation3 + $0x190] sm:$0xff] %vm1672, %v4382
      %4397 = vst.msk [vmem:[#allocation3 + $0x198] sm:$0xff] %vm1672, %v4383
      %4398 = vst.msk [vmem:[#allocation3 + $0x1a0] sm:$0xff] %vm1672, %v4384
      %4399 = vst.msk [vmem:[#allocation3 + $0x1a8] sm:$0xff] %vm1672, %v4385
      %4400 = vst.msk [vmem:[#allocation3 + $0x1b0] sm:$0xff] %vm1672, %v4386
      %4401 = vst.msk [vmem:[#allocation3 + $0x1b8] sm:$0xff] %vm1672, %v4387
      %v4402 = vld [vmem:[#allocation2 + $0x1c0] sm:$0xff]
      %v4403 = vld [vmem:[#allocation2 + $0x1c8] sm:$0xff]
      %v4404 = vld [vmem:[#allocation2 + $0x1d0] sm:$0xff]
      %v4405 = vld [vmem:[#allocation2 + $0x1d8] sm:$0xff]
      %v4406 = vld [vmem:[#allocation2 + $0x1e0] sm:$0xff]
      %v4407 = vld [vmem:[#allocation2 + $0x1e8] sm:$0xff]
      %v4408 = vld [vmem:[#allocation2 + $0x1f0] sm:$0xff]
      %v4409 = vld [vmem:[#allocation2 + $0x1f8] sm:$0xff]
      %v4410 = vld [vmem:[#allocation2 + $0x200] sm:$0xff]
      %v4411 = vld [vmem:[#allocation2 + $0x208] sm:$0xff]
      %v4412 = vld [vmem:[#allocation2 + $0x210] sm:$0xff]
      %v4413 = vld [vmem:[#allocation2 + $0x218] sm:$0xff]
      %v4414 = vld [vmem:[#allocation2 + $0x220] sm:$0xff]
      %v4415 = vld [vmem:[#allocation2 + $0x228] sm:$0xff]
      %v4416 = vld [vmem:[#allocation2 + $0x1c1] sm:$0xff]
      %v4417 = vld [vmem:[#allocation2 + $0x1c9] sm:$0xff]
      %v4418 = vld [vmem:[#allocation2 + $0x1d1] sm:$0xff]
      %v4419 = vld [vmem:[#allocation2 + $0x1d9] sm:$0xff]
      %v4420 = vld [vmem:[#allocation2 + $0x1e1] sm:$0xff]
      %v4421 = vld [vmem:[#allocation2 + $0x1e9] sm:$0xff]
      %v4422 = vld [vmem:[#allocation2 + $0x1f1] sm:$0xff]
      %v4423 = vld [vmem:[#allocation2 + $0x1f9] sm:$0xff]
      %v4424 = vld [vmem:[#allocation2 + $0x201] sm:$0xff]
      %v4425 = vld [vmem:[#allocation2 + $0x209] sm:$0xff]
      %v4426 = vld [vmem:[#allocation2 + $0x211] sm:$0xff]
      %v4427 = vld [vmem:[#allocation2 + $0x219] sm:$0xff]
      %v4428 = vld [vmem:[#allocation2 + $0x221] sm:$0xff]
      %v4429 = vld [vmem:[#allocation2 + $0x229] sm:$0xff]
      %v4430 = vld [vmem:[#allocation2 + $0x1c2] sm:$0xff]
      %v4431 = vld [vmem:[#allocation2 + $0x1ca] sm:$0xff]
      %v4432 = vld [vmem:[#allocation2 + $0x1d2] sm:$0xff]
      %v4433 = vld [vmem:[#allocation2 + $0x1da] sm:$0xff]
      %v4434 = vld [vmem:[#allocation2 + $0x1e2] sm:$0xff]
      %v4435 = vld [vmem:[#allocation2 + $0x1ea] sm:$0xff]
      %v4436 = vld [vmem:[#allocation2 + $0x1f2] sm:$0xff]
      %v4437 = vld [vmem:[#allocation2 + $0x1fa] sm:$0xff]
      %v4438 = vld [vmem:[#allocation2 + $0x202] sm:$0xff]
      %v4439 = vld [vmem:[#allocation2 + $0x20a] sm:$0xff]
      %v4440 = vld [vmem:[#allocation2 + $0x212] sm:$0xff]
      %v4441 = vld [vmem:[#allocation2 + $0x21a] sm:$0xff]
      %v4442 = vld [vmem:[#allocation2 + $0x222] sm:$0xff]
      %v4443 = vld [vmem:[#allocation2 + $0x22a] sm:$0xff]
      %v4444 = vld [vmem:[#allocation2 + $0x1dc] sm:$0xff]
      %v4445 = vld [vmem:[#allocation2 + $0x1e4] sm:$0xff]
      %v4446 = vld [vmem:[#allocation2 + $0x1ec] sm:$0xff]
      %v4447 = vld [vmem:[#allocation2 + $0x1f4] sm:$0xff]
      %v4448 = vld [vmem:[#allocation2 + $0x1fc] sm:$0xff]
      %v4449 = vld [vmem:[#allocation2 + $0x204] sm:$0xff]
      %v4450 = vld [vmem:[#allocation2 + $0x20c] sm:$0xff]
      %v4451 = vld [vmem:[#allocation2 + $0x214] sm:$0xff]
      %v4452 = vld [vmem:[#allocation2 + $0x21c] sm:$0xff]
      %v4453 = vld [vmem:[#allocation2 + $0x224] sm:$0xff]
      %v4454 = vld [vmem:[#allocation2 + $0x22c] sm:$0xff]
      %v4455 = vld [vmem:[#allocation2 + $0x234] sm:$0xff]
      %v4456 = vld [vmem:[#allocation2 + $0x23c] sm:$0xff]
      %v4457 = vld [vmem:[#allocation2 + $0x244] sm:$0xff]
      %v4458 = vld [vmem:[#allocation2 + $0x1dd] sm:$0xff]
      %v4459 = vld [vmem:[#allocation2 + $0x1e5] sm:$0xff]
      %v4460 = vld [vmem:[#allocation2 + $0x1ed] sm:$0xff]
      %v4461 = vld [vmem:[#allocation2 + $0x1f5] sm:$0xff]
      %v4462 = vld [vmem:[#allocation2 + $0x1fd] sm:$0xff]
      %v4463 = vld [vmem:[#allocation2 + $0x205] sm:$0xff]
      %v4464 = vld [vmem:[#allocation2 + $0x20d] sm:$0xff]
      %v4465 = vld [vmem:[#allocation2 + $0x215] sm:$0xff]
      %v4466 = vld [vmem:[#allocation2 + $0x21d] sm:$0xff]
      %v4467 = vld [vmem:[#allocation2 + $0x225] sm:$0xff]
      %v4468 = vld [vmem:[#allocation2 + $0x22d] sm:$0xff]
      %v4469 = vld [vmem:[#allocation2 + $0x235] sm:$0xff]
      %v4470 = vld [vmem:[#allocation2 + $0x23d] sm:$0xff]
      %v4471 = vld [vmem:[#allocation2 + $0x245] sm:$0xff]
      %v4472 = vld [vmem:[#allocation2 + $0x1de] sm:$0xff]
      %v4473 = vld [vmem:[#allocation2 + $0x1e6] sm:$0xff]
      %v4474 = vld [vmem:[#allocation2 + $0x1ee] sm:$0xff]
      %v4475 = vld [vmem:[#allocation2 + $0x1f6] sm:$0xff]
      %v4476 = vld [vmem:[#allocation2 + $0x1fe] sm:$0xff]
      %v4477 = vld [vmem:[#allocation2 + $0x206] sm:$0xff]
      %v4478 = vld [vmem:[#allocation2 + $0x20e] sm:$0xff]
      %v4479 = vld [vmem:[#allocation2 + $0x216] sm:$0xff]
      %v4480 = vld [vmem:[#allocation2 + $0x21e] sm:$0xff]
      %v4481 = vld [vmem:[#allocation2 + $0x226] sm:$0xff]
      %v4482 = vld [vmem:[#allocation2 + $0x22e] sm:$0xff]
      %v4483 = vld [vmem:[#allocation2 + $0x236] sm:$0xff]
      %v4484 = vld [vmem:[#allocation2 + $0x23e] sm:$0xff]
      %v4485 = vld [vmem:[#allocation2 + $0x246] sm:$0xff]
      %v4486 = vld [vmem:[#allocation2 + $0x230] sm:$0xff]
      %v4487 = vld [vmem:[#allocation2 + $0x238] sm:$0xff]
      %v4488 = vld [vmem:[#allocation2 + $0x240] sm:$0xff]
      %v4489 = vld [vmem:[#allocation2 + $0x248] sm:$0xff]
      %v4490 = vld [vmem:[#allocation2 + $0x250] sm:$0xff]
      %v4491 = vld [vmem:[#allocation2 + $0x258] sm:$0xff]
      %v4492 = vld [vmem:[#allocation2 + $0x260] sm:$0xff]
      %v4493 = vld [vmem:[#allocation2 + $0x231] sm:$0xff]
      %v4494 = vld [vmem:[#allocation2 + $0x239] sm:$0xff]
      %v4495 = vld [vmem:[#allocation2 + $0x241] sm:$0xff]
      %v4496 = vld [vmem:[#allocation2 + $0x249] sm:$0xff]
      %v4497 = vld [vmem:[#allocation2 + $0x251] sm:$0xff]
      %v4498 = vld [vmem:[#allocation2 + $0x259] sm:$0xff]
      %v4499 = vld [vmem:[#allocation2 + $0x261] sm:$0xff]
      %v4500 = vld [vmem:[#allocation2 + $0x232] sm:$0xff]
      %v4501 = vld [vmem:[#allocation2 + $0x23a] sm:$0xff]
      %v4502 = vld [vmem:[#allocation2 + $0x242] sm:$0xff]
      %v4503 = vld [vmem:[#allocation2 + $0x24a] sm:$0xff]
      %v4504 = vld [vmem:[#allocation2 + $0x252] sm:$0xff]
      %v4505 = vld [vmem:[#allocation2 + $0x25a] sm:$0xff]
      %v4506 = vld [vmem:[#allocation2 + $0x262] sm:$0xff]
      %4521 = vrot.lane.b32.xlu0 %v4416, 32
      %v4522 = vpop.permute.xlu0 %4521
      %4523 = vrot.lane.b32.xlu0 %v4417, 32
      %v4524 = vpop.permute.xlu0 %4523
      %4525 = vrot.lane.b32.xlu0 %v4418, 32
      %v4526 = vpop.permute.xlu0 %4525
      %4527 = vrot.lane.b32.xlu0 %v4419, 32
      %v4528 = vpop.permute.xlu0 %4527
      %4529 = vrot.lane.b32.xlu0 %v4420, 32
      %v4530 = vpop.permute.xlu0 %4529
      %4531 = vrot.lane.b32.xlu0 %v4421, 32
      %v4532 = vpop.permute.xlu0 %4531
      %4533 = vrot.lane.b32.xlu0 %v4422, 32
      %v4534 = vpop.permute.xlu0 %4533
      %4535 = vrot.lane.b32.xlu0 %v4423, 32
      %v4536 = vpop.permute.xlu0 %4535
      %4537 = vrot.lane.b32.xlu0 %v4424, 32
      %v4538 = vpop.permute.xlu0 %4537
      %4539 = vrot.lane.b32.xlu0 %v4425, 32
      %v4540 = vpop.permute.xlu0 %4539
      %4541 = vrot.lane.b32.xlu0 %v4426, 32
      %v4542 = vpop.permute.xlu0 %4541
      %4543 = vrot.lane.b32.xlu0 %v4427, 32
      %v4544 = vpop.permute.xlu0 %4543
      %4545 = vrot.lane.b32.xlu0 %v4428, 32
      %v4546 = vpop.permute.xlu0 %4545
      %4547 = vrot.lane.b32.xlu0 %v4429, 32
      %v4548 = vpop.permute.xlu0 %4547
      %4577 = vrot.lane.b32.xlu0 %v4430, 64
      %v4578 = vpop.permute.xlu0 %4577
      %4579 = vrot.lane.b32.xlu0 %v4431, 64
      %v4580 = vpop.permute.xlu0 %4579
      %4581 = vrot.lane.b32.xlu0 %v4432, 64
      %v4582 = vpop.permute.xlu0 %4581
      %4583 = vrot.lane.b32.xlu0 %v4433, 64
      %v4584 = vpop.permute.xlu0 %4583
      %4585 = vrot.lane.b32.xlu0 %v4434, 64
      %v4586 = vpop.permute.xlu0 %4585
      %4587 = vrot.lane.b32.xlu0 %v4435, 64
      %v4588 = vpop.permute.xlu0 %4587
      %4589 = vrot.lane.b32.xlu0 %v4436, 64
      %v4590 = vpop.permute.xlu0 %4589
      %4591 = vrot.lane.b32.xlu0 %v4437, 64
      %v4592 = vpop.permute.xlu0 %4591
      %4593 = vrot.lane.b32.xlu0 %v4438, 64
      %v4594 = vpop.permute.xlu0 %4593
      %4595 = vrot.lane.b32.xlu0 %v4439, 64
      %v4596 = vpop.permute.xlu0 %4595
      %4597 = vrot.lane.b32.xlu0 %v4440, 64
      %v4598 = vpop.permute.xlu0 %4597
      %4599 = vrot.lane.b32.xlu0 %v4441, 64
      %v4600 = vpop.permute.xlu0 %4599
      %4601 = vrot.lane.b32.xlu0 %v4442, 64
      %v4602 = vpop.permute.xlu0 %4601
      %4603 = vrot.lane.b32.xlu0 %v4443, 64
      %v4604 = vpop.permute.xlu0 %4603
      %4633 = vrot.lane.b32.xlu0 %v4444, 96
      %v4634 = vpop.permute.xlu0 %4633
      %4635 = vrot.lane.b32.xlu0 %v4445, 96
      %v4636 = vpop.permute.xlu0 %4635
      %4637 = vrot.lane.b32.xlu0 %v4446, 96
      %v4638 = vpop.permute.xlu0 %4637
      %4639 = vrot.lane.b32.xlu0 %v4447, 96
      %v4640 = vpop.permute.xlu0 %4639
      %4641 = vrot.lane.b32.xlu0 %v4448, 96
      %v4642 = vpop.permute.xlu0 %4641
      %4643 = vrot.lane.b32.xlu0 %v4449, 96
      %v4644 = vpop.permute.xlu0 %4643
      %4645 = vrot.lane.b32.xlu0 %v4450, 96
      %v4646 = vpop.permute.xlu0 %4645
      %4647 = vrot.lane.b32.xlu0 %v4451, 96
      %v4648 = vpop.permute.xlu0 %4647
      %4649 = vrot.lane.b32.xlu0 %v4452, 96
      %v4650 = vpop.permute.xlu0 %4649
      %4651 = vrot.lane.b32.xlu0 %v4453, 96
      %v4652 = vpop.permute.xlu0 %4651
      %4653 = vrot.lane.b32.xlu0 %v4454, 96
      %v4654 = vpop.permute.xlu0 %4653
      %4655 = vrot.lane.b32.xlu0 %v4455, 96
      %v4656 = vpop.permute.xlu0 %4655
      %4657 = vrot.lane.b32.xlu0 %v4456, 96
      %v4658 = vpop.permute.xlu0 %4657
      %4659 = vrot.lane.b32.xlu0 %v4457, 96
      %v4660 = vpop.permute.xlu0 %4659
      %4689 = vrot.lane.b32.xlu0 %v4472, 32
      %v4690 = vpop.permute.xlu0 %4689
      %4691 = vrot.lane.b32.xlu0 %v4473, 32
      %v4692 = vpop.permute.xlu0 %4691
      %4693 = vrot.lane.b32.xlu0 %v4474, 32
      %v4694 = vpop.permute.xlu0 %4693
      %4695 = vrot.lane.b32.xlu0 %v4475, 32
      %v4696 = vpop.permute.xlu0 %4695
      %4697 = vrot.lane.b32.xlu0 %v4476, 32
      %v4698 = vpop.permute.xlu0 %4697
      %4699 = vrot.lane.b32.xlu0 %v4477, 32
      %v4700 = vpop.permute.xlu0 %4699
      %4701 = vrot.lane.b32.xlu0 %v4478, 32
      %v4702 = vpop.permute.xlu0 %4701
      %4703 = vrot.lane.b32.xlu0 %v4479, 32
      %v4704 = vpop.permute.xlu0 %4703
      %4705 = vrot.lane.b32.xlu0 %v4480, 32
      %v4706 = vpop.permute.xlu0 %4705
      %4707 = vrot.lane.b32.xlu0 %v4481, 32
      %v4708 = vpop.permute.xlu0 %4707
      %4709 = vrot.lane.b32.xlu0 %v4482, 32
      %v4710 = vpop.permute.xlu0 %4709
      %4711 = vrot.lane.b32.xlu0 %v4483, 32
      %v4712 = vpop.permute.xlu0 %4711
      %4713 = vrot.lane.b32.xlu0 %v4484, 32
      %v4714 = vpop.permute.xlu0 %4713
      %4715 = vrot.lane.b32.xlu0 %v4485, 32
      %v4716 = vpop.permute.xlu0 %4715
      %4745 = vrot.lane.b32.xlu0 %v4409, 64
      %v4746 = vpop.permute.xlu0 %4745
      %4747 = vrot.lane.b32.xlu0 %v4410, 64
      %v4748 = vpop.permute.xlu0 %4747
      %4749 = vrot.lane.b32.xlu0 %v4411, 64
      %v4750 = vpop.permute.xlu0 %4749
      %4751 = vrot.lane.b32.xlu0 %v4412, 64
      %v4752 = vpop.permute.xlu0 %4751
      %4753 = vrot.lane.b32.xlu0 %v4413, 64
      %v4754 = vpop.permute.xlu0 %4753
      %4755 = vrot.lane.b32.xlu0 %v4414, 64
      %v4756 = vpop.permute.xlu0 %4755
      %4757 = vrot.lane.b32.xlu0 %v4415, 64
      %v4758 = vpop.permute.xlu0 %4757
      %4759 = vrot.lane.b32.xlu0 %v4486, 64
      %v4760 = vpop.permute.xlu0 %4759
      %4761 = vrot.lane.b32.xlu0 %v4487, 64
      %v4762 = vpop.permute.xlu0 %4761
      %4763 = vrot.lane.b32.xlu0 %v4488, 64
      %v4764 = vpop.permute.xlu0 %4763
      %4765 = vrot.lane.b32.xlu0 %v4489, 64
      %v4766 = vpop.permute.xlu0 %4765
      %4767 = vrot.lane.b32.xlu0 %v4490, 64
      %v4768 = vpop.permute.xlu0 %4767
      %4769 = vrot.lane.b32.xlu0 %v4491, 64
      %v4770 = vpop.permute.xlu0 %4769
      %4771 = vrot.lane.b32.xlu0 %v4492, 64
      %v4772 = vpop.permute.xlu0 %4771
      %4794 = vrot.lane.b32.xlu0 %v4423, 96
      %v4795 = vpop.permute.xlu0 %4794
      %4796 = vrot.lane.b32.xlu0 %v4424, 96
      %v4797 = vpop.permute.xlu0 %4796
      %4798 = vrot.lane.b32.xlu0 %v4425, 96
      %v4799 = vpop.permute.xlu0 %4798
      %4800 = vrot.lane.b32.xlu0 %v4426, 96
      %v4801 = vpop.permute.xlu0 %4800
      %4802 = vrot.lane.b32.xlu0 %v4427, 96
      %v4803 = vpop.permute.xlu0 %4802
      %4804 = vrot.lane.b32.xlu0 %v4428, 96
      %v4805 = vpop.permute.xlu0 %4804
      %4806 = vrot.lane.b32.xlu0 %v4429, 96
      %v4807 = vpop.permute.xlu0 %4806
      %4808 = vrot.lane.b32.xlu0 %v4493, 96
      %v4809 = vpop.permute.xlu0 %4808
      %4810 = vrot.lane.b32.xlu0 %v4494, 96
      %v4811 = vpop.permute.xlu0 %4810
      %4812 = vrot.lane.b32.xlu0 %v4495, 96
      %v4813 = vpop.permute.xlu0 %4812
      %4814 = vrot.lane.b32.xlu0 %v4496, 96
      %v4815 = vpop.permute.xlu0 %4814
      %4816 = vrot.lane.b32.xlu0 %v4497, 96
      %v4817 = vpop.permute.xlu0 %4816
      %4818 = vrot.lane.b32.xlu0 %v4498, 96
      %v4819 = vpop.permute.xlu0 %4818
      %4820 = vrot.lane.b32.xlu0 %v4499, 96
      %v4821 = vpop.permute.xlu0 %4820
      %v4836 = vsel %vm253, %v4402, %v4522
      %v4837 = vsel %vm253, %v4403, %v4524
      %v4838 = vsel %vm253, %v4404, %v4526
      %v4839 = vsel %vm253, %v4405, %v4528
      %v4840 = vsel %vm253, %v4406, %v4530
      %v4841 = vsel %vm253, %v4407, %v4532
      %v4842 = vsel %vm253, %v4408, %v4534
      %v4843 = vsel %vm253, %v4409, %v4536
      %v4844 = vsel %vm253, %v4410, %v4538
      %v4845 = vsel %vm253, %v4411, %v4540
      %v4846 = vsel %vm253, %v4412, %v4542
      %v4847 = vsel %vm253, %v4413, %v4544
      %v4848 = vsel %vm253, %v4414, %v4546
      %v4849 = vsel %vm253, %v4415, %v4548
      %v4850 = vsel %vm1672, %v4836, %v4578
      %v4851 = vsel %vm1672, %v4837, %v4580
      %v4852 = vsel %vm1672, %v4838, %v4582
      %v4853 = vsel %vm1672, %v4839, %v4584
      %v4854 = vsel %vm1672, %v4840, %v4586
      %v4855 = vsel %vm1672, %v4841, %v4588
      %v4856 = vsel %vm1672, %v4842, %v4590
      %v4857 = vsel %vm1672, %v4843, %v4592
      %v4858 = vsel %vm1672, %v4844, %v4594
      %v4859 = vsel %vm1672, %v4845, %v4596
      %v4860 = vsel %vm1672, %v4846, %v4598
      %v4861 = vsel %vm1672, %v4847, %v4600
      %v4862 = vsel %vm1672, %v4848, %v4602
      %v4863 = vsel %vm1672, %v4849, %v4604
      %v4864 = vsel %vm1687, %v4850, %v4634
      %v4865 = vsel %vm1687, %v4851, %v4636
      %v4866 = vsel %vm1687, %v4852, %v4638
      %v4867 = vsel %vm1687, %v4853, %v4640
      %v4868 = vsel %vm1687, %v4854, %v4642
      %v4869 = vsel %vm1687, %v4855, %v4644
      %v4870 = vsel %vm1687, %v4856, %v4646
      %v4871 = vsel %vm1687, %v4857, %v4648
      %v4872 = vsel %vm1687, %v4858, %v4650
      %v4873 = vsel %vm1687, %v4859, %v4652
      %v4874 = vsel %vm1687, %v4860, %v4654
      %v4875 = vsel %vm1687, %v4861, %v4656
      %v4876 = vsel %vm1687, %v4862, %v4658
      %v4877 = vsel %vm1687, %v4863, %v4660
      %v4878 = vsel %vm253, %v4458, %v4690
      %v4879 = vsel %vm253, %v4459, %v4692
      %v4880 = vsel %vm253, %v4460, %v4694
      %v4881 = vsel %vm253, %v4461, %v4696
      %v4882 = vsel %vm253, %v4462, %v4698
      %v4883 = vsel %vm253, %v4463, %v4700
      %v4884 = vsel %vm253, %v4464, %v4702
      %v4885 = vsel %vm253, %v4465, %v4704
      %v4886 = vsel %vm253, %v4466, %v4706
      %v4887 = vsel %vm253, %v4467, %v4708
      %v4888 = vsel %vm253, %v4468, %v4710
      %v4889 = vsel %vm253, %v4469, %v4712
      %v4890 = vsel %vm253, %v4470, %v4714
      %v4891 = vsel %vm253, %v4471, %v4716
      %v4892 = vsel %vm1672, %v4878, %v4746
      %v4893 = vsel %vm1672, %v4879, %v4748
      %v4894 = vsel %vm1672, %v4880, %v4750
      %v4895 = vsel %vm1672, %v4881, %v4752
      %v4896 = vsel %vm1672, %v4882, %v4754
      %v4897 = vsel %vm1672, %v4883, %v4756
      %v4898 = vsel %vm1672, %v4884, %v4758
      %v4899 = vsel %vm1672, %v4885, %v4760
      %v4900 = vsel %vm1672, %v4886, %v4762
      %v4901 = vsel %vm1672, %v4887, %v4764
      %v4902 = vsel %vm1672, %v4888, %v4766
      %v4903 = vsel %vm1672, %v4889, %v4768
      %v4904 = vsel %vm1672, %v4890, %v4770
      %v4905 = vsel %vm1672, %v4891, %v4772
      %v4906 = vsel %vm1687, %v4892, %v4795
      %v4907 = vsel %vm1687, %v4893, %v4797
      %v4908 = vsel %vm1687, %v4894, %v4799
      %v4909 = vsel %vm1687, %v4895, %v4801
      %v4910 = vsel %vm1687, %v4896, %v4803
      %v4911 = vsel %vm1687, %v4897, %v4805
      %v4912 = vsel %vm1687, %v4898, %v4807
      %v4913 = vsel %vm1687, %v4899, %v4809
      %v4914 = vsel %vm1687, %v4900, %v4811
      %v4915 = vsel %vm1687, %v4901, %v4813
      %v4916 = vsel %vm1687, %v4902, %v4815
      %v4917 = vsel %vm1687, %v4903, %v4817
      %v4918 = vsel %vm1687, %v4904, %v4819
      %v4919 = vsel %vm1687, %v4905, %v4821
      %v4920 = vld [vmem:[%s3] sm:$0xff]
      %v4921 = vld [vmem:[%s3 + $0x8] sm:$0xff]
      %v4922 = vld [vmem:[%s3 + $0x10] sm:$0xff]
      %v4923 = vld [vmem:[%s3 + $0x18] sm:$0xff]
      %v4924 = vld [vmem:[%s3 + $0x20] sm:$0xff]
      %v4925 = vld [vmem:[%s3 + $0x28] sm:$0xff]
      %v4926 = vld [vmem:[%s3 + $0x30] sm:$0xff]
      %v4927 = vld [vmem:[%s3 + $0x38] sm:$0xff]
      %v4928 = vld [vmem:[%s3 + $0x40] sm:$0xff]
      %v4929 = vld [vmem:[%s3 + $0x48] sm:$0xff]
      %v4930 = vld [vmem:[%s3 + $0x50] sm:$0xff]
      %v4931 = vld [vmem:[%s3 + $0x58] sm:$0xff]
      %v4932 = vld [vmem:[%s3 + $0x60] sm:$0xff]
      %v4933 = vld [vmem:[%s3 + $0x68] sm:$0xff]
      %v4934 = vld [vmem:[%s3 + $0x70] sm:$0xff]
      %v4935 = vld [vmem:[%s3 + $0x78] sm:$0xff]
      %v4936 = vld [vmem:[%s3 + $0x80] sm:$0xff]
      %v4937 = vld [vmem:[%s3 + $0x88] sm:$0xff]
      %v4938 = vld [vmem:[%s3 + $0x90] sm:$0xff]
      %v4939 = vld [vmem:[%s3 + $0x98] sm:$0xff]
      %v4940 = vld [vmem:[%s3 + $0xa0] sm:$0xff]
      %v4941 = vld [vmem:[%s3 + $0xa8] sm:$0xff]
      %v4942 = vld [vmem:[%s3 + $0xb0] sm:$0xff]
      %v4943 = vld [vmem:[%s3 + $0xb8] sm:$0xff]
      %v4944 = vld [vmem:[%s3 + $0xc0] sm:$0xff]
      %v4945 = vld [vmem:[%s3 + $0xc8] sm:$0xff]
      %v4946 = vld [vmem:[%s3 + $0xd0] sm:$0xff]
      %v4947 = vld [vmem:[%s3 + $0xd8] sm:$0xff]
      %v4948 = vld [vmem:[%s3 + $0xe0] sm:$0xff]
      %v4949 = vld [vmem:[%s3 + $0xe8] sm:$0xff]
      %v4950 = vld [vmem:[%s3 + $0xf0] sm:$0xff]
      %v4951 = vld [vmem:[%s3 + $0xf8] sm:$0xff]
      %v4952 = vld [vmem:[%s3 + $0x100] sm:$0xff]
      %v4953 = vld [vmem:[%s3 + $0x108] sm:$0xff]
      %v4954 = vld [vmem:[%s3 + $0x110] sm:$0xff]
      %v4955 = vld [vmem:[%s3 + $0x118] sm:$0xff]
      %v4956 = vsel %vm253, %v4437, 0
      %v4958 = vsel %vm253, %v4438, 0
      %v4960 = vsel %vm253, %v4439, 0
      %v4962 = vsel %vm253, %v4440, 0
      %v4964 = vsel %vm253, %v4441, 0
      %v4966 = vsel %vm253, %v4442, 0
      %v4968 = vsel %vm253, %v4443, 0
      %v4971 = vsel %vm253, %v4500, 0
      %v4974 = vsel %vm253, %v4501, 0
      %v4977 = vsel %vm253, %v4502, 0
      %v4980 = vsel %vm253, %v4503, 0
      %v4983 = vsel %vm253, %v4504, 0
      %v4986 = vsel %vm253, %v4505, 0
      %v4989 = vsel %vm253, %v4506, 0
      %4991 = vmatpush.msra.mxu0 %v4935
      %4992 = vmatpush.msra.mxu0 %v4934
      %4993 = vmatpush.msra.mxu0 %v4933
      %4994 = vmatpush.msra.mxu0 %v4932
      %4995 = vmatpush.msra.mxu0 %v4931
      %4996 = vmatpush.msra.mxu0 %v4930
      %4997 = vmatpush.msra.mxu0 %v4929
      %4998 = vmatpush.msra.mxu0 %v4928
      %4999 = vmatpush.msra.mxu0 %v4927
      %5000 = vmatpush.msra.mxu0 %v4926
      %5001 = vmatpush.msra.mxu0 %v4925
      %5002 = vmatpush.msra.mxu0 %v4924
      %5003 = vmatpush.msra.mxu0 %v4923
      %5004 = vmatpush.msra.mxu0 %v4922
      %5005 = vmatpush.msra.mxu0 %v4921
      %5006 = vmatpush.msra.mxu0 %v4920
      %5007 = vmatmul.f32.gmra.mxu0 %v4864
      %v5008 = vpop.f32.mrf.mxu0
      %v5009 = vadd.f32 %v231, %v5008
      %5010 = vmatmul.f32.gmra.mxu0 %v4865
      %v5011 = vpop.f32.mrf.mxu0
      %v5012 = vadd.f32 %v231, %v5011
      %5013 = vmatmul.f32.gmra.mxu0 %v4866
      %v5014 = vpop.f32.mrf.mxu0
      %v5015 = vadd.f32 %v231, %v5014
      %5016 = vmatmul.f32.gmra.mxu0 %v4867
      %v5017 = vpop.f32.mrf.mxu0
      %v5018 = vadd.f32 %v231, %v5017
      %5019 = vmatmul.f32.gmra.mxu0 %v4868
      %v5020 = vpop.f32.mrf.mxu0
      %v5021 = vadd.f32 %v231, %v5020
      %5022 = vmatmul.f32.gmra.mxu0 %v4869
      %v5023 = vpop.f32.mrf.mxu0
      %v5024 = vadd.f32 %v231, %v5023
      %5025 = vmatmul.f32.gmra.mxu0 %v4870
      %v5026 = vpop.f32.mrf.mxu0
      %v5027 = vadd.f32 %v231, %v5026
      %5028 = vmatmul.f32.gmra.mxu0 %v4871
      %v5029 = vpop.f32.mrf.mxu0
      %v5030 = vadd.f32 %v231, %v5029
      %5031 = vmatmul.f32.gmra.mxu0 %v4872
      %v5032 = vpop.f32.mrf.mxu0
      %v5033 = vadd.f32 %v231, %v5032
      %5034 = vmatmul.f32.gmra.mxu0 %v4873
      %v5035 = vpop.f32.mrf.mxu0
      %v5036 = vadd.f32 %v231, %v5035
      %5037 = vmatmul.f32.gmra.mxu0 %v4874
      %v5038 = vpop.f32.mrf.mxu0
      %v5039 = vadd.f32 %v231, %v5038
      %5040 = vmatmul.f32.gmra.mxu0 %v4875
      %v5041 = vpop.f32.mrf.mxu0
      %v5042 = vadd.f32 %v231, %v5041
      %5043 = vmatmul.f32.gmra.mxu0 %v4876
      %v5044 = vpop.f32.mrf.mxu0
      %v5045 = vadd.f32 %v231, %v5044
      %5046 = vmatmul.f32.gmra.mxu0 %v4877
      %v5047 = vpop.f32.mrf.mxu0
      %v5048 = vadd.f32 %v231, %v5047
      %5049 = vdwg.mxu0
      %5050 = vmatpush.msra.mxu0 %v4951
      %5051 = vmatpush.msra.mxu0 %v4950
      %5052 = vmatpush.msra.mxu0 %v4949
      %5053 = vmatpush.msra.mxu0 %v4948
      %5054 = vmatpush.msra.mxu0 %v4947
      %5055 = vmatpush.msra.mxu0 %v4946
      %5056 = vmatpush.msra.mxu0 %v4945
      %5057 = vmatpush.msra.mxu0 %v4944
      %5058 = vmatpush.msra.mxu0 %v4943
      %5059 = vmatpush.msra.mxu0 %v4942
      %5060 = vmatpush.msra.mxu0 %v4941
      %5061 = vmatpush.msra.mxu0 %v4940
      %5062 = vmatpush.msra.mxu0 %v4939
      %5063 = vmatpush.msra.mxu0 %v4938
      %5064 = vmatpush.msra.mxu0 %v4937
      %5065 = vmatpush.msra.mxu0 %v4936
      %5066 = vmatmul.f32.gmra.mxu0 %v4906
      %v5067 = vpop.f32.mrf.mxu0
      %v5068 = vadd.f32 %v5009, %v5067
      %5069 = vmatmul.f32.gmra.mxu0 %v4907
      %v5070 = vpop.f32.mrf.mxu0
      %v5071 = vadd.f32 %v5012, %v5070
      %5072 = vmatmul.f32.gmra.mxu0 %v4908
      %v5073 = vpop.f32.mrf.mxu0
      %v5074 = vadd.f32 %v5015, %v5073
      %5075 = vmatmul.f32.gmra.mxu0 %v4909
      %v5076 = vpop.f32.mrf.mxu0
      %v5077 = vadd.f32 %v5018, %v5076
      %5078 = vmatmul.f32.gmra.mxu0 %v4910
      %v5079 = vpop.f32.mrf.mxu0
      %v5080 = vadd.f32 %v5021, %v5079
      %5081 = vmatmul.f32.gmra.mxu0 %v4911
      %v5082 = vpop.f32.mrf.mxu0
      %v5083 = vadd.f32 %v5024, %v5082
      %5084 = vmatmul.f32.gmra.mxu0 %v4912
      %v5085 = vpop.f32.mrf.mxu0
      %v5086 = vadd.f32 %v5027, %v5085
      %5087 = vmatmul.f32.gmra.mxu0 %v4913
      %v5088 = vpop.f32.mrf.mxu0
      %v5089 = vadd.f32 %v5030, %v5088
      %5090 = vmatmul.f32.gmra.mxu0 %v4914
      %v5091 = vpop.f32.mrf.mxu0
      %v5092 = vadd.f32 %v5033, %v5091
      %5093 = vmatmul.f32.gmra.mxu0 %v4915
      %v5094 = vpop.f32.mrf.mxu0
      %v5095 = vadd.f32 %v5036, %v5094
      %5096 = vmatmul.f32.gmra.mxu0 %v4916
      %v5097 = vpop.f32.mrf.mxu0
      %v5098 = vadd.f32 %v5039, %v5097
      %5099 = vmatmul.f32.gmra.mxu0 %v4917
      %v5100 = vpop.f32.mrf.mxu0
      %v5101 = vadd.f32 %v5042, %v5100
      %5102 = vmatmul.f32.gmra.mxu0 %v4918
      %v5103 = vpop.f32.mrf.mxu0
      %v5104 = vadd.f32 %v5045, %v5103
      %5105 = vmatmul.f32.gmra.mxu0 %v4919
      %v5106 = vpop.f32.mrf.mxu0
      %v5107 = vadd.f32 %v5048, %v5106
      %5108 = vdwg.mxu0
      %5109 = vmatpush.msra.mxu0 0.0
      %5110 = vmatpush.msra.mxu0 0.0
      %5111 = vmatpush.msra.mxu0 0.0
      %5112 = vmatpush.msra.mxu0 0.0
      %5113 = vmatpush.msra.mxu0 0.0
      %5114 = vmatpush.msra.mxu0 0.0
      %5115 = vmatpush.msra.mxu0 0.0
      %5116 = vmatpush.msra.mxu0 0.0
      %5117 = vmatpush.msra.mxu0 0.0
      %5118 = vmatpush.msra.mxu0 0.0
      %5119 = vmatpush.msra.mxu0 0.0
      %5120 = vmatpush.msra.mxu0 0.0
      %5121 = vmatpush.msra.mxu0 %v4955
      %5122 = vmatpush.msra.mxu0 %v4954
      %5123 = vmatpush.msra.mxu0 %v4953
      %5124 = vmatpush.msra.mxu0 %v4952
      %5125 = vmatmul.f32.gmra.mxu0 %v4956
      %v5126 = vpop.f32.mrf.mxu0
      %v5127 = vadd.f32 %v5068, %v5126
      %5128 = vmatmul.f32.gmra.mxu0 %v4958
      %v5129 = vpop.f32.mrf.mxu0
      %v5130 = vadd.f32 %v5071, %v5129
      %5131 = vmatmul.f32.gmra.mxu0 %v4960
      %v5132 = vpop.f32.mrf.mxu0
      %v5133 = vadd.f32 %v5074, %v5132
      %5134 = vmatmul.f32.gmra.mxu0 %v4962
      %v5135 = vpop.f32.mrf.mxu0
      %v5136 = vadd.f32 %v5077, %v5135
      %5137 = vmatmul.f32.gmra.mxu0 %v4964
      %v5138 = vpop.f32.mrf.mxu0
      %v5139 = vadd.f32 %v5080, %v5138
      %5140 = vmatmul.f32.gmra.mxu0 %v4966
      %v5141 = vpop.f32.mrf.mxu0
      %v5142 = vadd.f32 %v5083, %v5141
      %5143 = vmatmul.f32.gmra.mxu0 %v4968
      %v5144 = vpop.f32.mrf.mxu0
      %v5145 = vadd.f32 %v5086, %v5144
      %5146 = vmatmul.f32.gmra.mxu0 %v4971
      %v5147 = vpop.f32.mrf.mxu0
      %v5148 = vadd.f32 %v5089, %v5147
      %5149 = vmatmul.f32.gmra.mxu0 %v4974
      %v5150 = vpop.f32.mrf.mxu0
      %v5151 = vadd.f32 %v5092, %v5150
      %5152 = vmatmul.f32.gmra.mxu0 %v4977
      %v5153 = vpop.f32.mrf.mxu0
      %v5154 = vadd.f32 %v5095, %v5153
      %5155 = vmatmul.f32.gmra.mxu0 %v4980
      %v5156 = vpop.f32.mrf.mxu0
      %v5157 = vadd.f32 %v5098, %v5156
      %5158 = vmatmul.f32.gmra.mxu0 %v4983
      %v5159 = vpop.f32.mrf.mxu0
      %v5160 = vadd.f32 %v5101, %v5159
      %5161 = vmatmul.f32.gmra.mxu0 %v4986
      %v5162 = vpop.f32.mrf.mxu0
      %v5163 = vadd.f32 %v5104, %v5162
      %5164 = vmatmul.f32.gmra.mxu0 %v4989
      %v5165 = vpop.f32.mrf.mxu0
      %v5166 = vadd.f32 %v5107, %v5165
      %5167 = vdwg.mxu0
      %v5168 = vmax.f32 %v5127, 0.0
      %v5169 = vmax.f32 %v5130, 0.0
      %v5170 = vmax.f32 %v5133, 0.0
      %v5171 = vmax.f32 %v5136, 0.0
      %v5172 = vmax.f32 %v5139, 0.0
      %v5173 = vmax.f32 %v5142, 0.0
      %v5174 = vmax.f32 %v5145, 0.0
      %v5175 = vmax.f32 %v5148, 0.0
      %v5176 = vmax.f32 %v5151, 0.0
      %v5177 = vmax.f32 %v5154, 0.0
      %v5178 = vmax.f32 %v5157, 0.0
      %v5179 = vmax.f32 %v5160, 0.0
      %v5180 = vmax.f32 %v5163, 0.0
      %v5181 = vmax.f32 %v5166, 0.0
      %5182 = vst.msk [vmem:[#allocation3 + $0x1c0] sm:$0xff] %vm1672, %v5168
      %5183 = vst.msk [vmem:[#allocation3 + $0x1c8] sm:$0xff] %vm1672, %v5169
      %5184 = vst.msk [vmem:[#allocation3 + $0x1d0] sm:$0xff] %vm1672, %v5170
      %5185 = vst.msk [vmem:[#allocation3 + $0x1d8] sm:$0xff] %vm1672, %v5171
      %5186 = vst.msk [vmem:[#allocation3 + $0x1e0] sm:$0xff] %vm1672, %v5172
      %5187 = vst.msk [vmem:[#allocation3 + $0x1e8] sm:$0xff] %vm1672, %v5173
      %5188 = vst.msk [vmem:[#allocation3 + $0x1f0] sm:$0xff] %vm1672, %v5174
      %5189 = vst.msk [vmem:[#allocation3 + $0x1f8] sm:$0xff] %vm1672, %v5175
      %5190 = vst.msk [vmem:[#allocation3 + $0x200] sm:$0xff] %vm1672, %v5176
      %5191 = vst.msk [vmem:[#allocation3 + $0x208] sm:$0xff] %vm1672, %v5177
      %5192 = vst.msk [vmem:[#allocation3 + $0x210] sm:$0xff] %vm1672, %v5178
      %5193 = vst.msk [vmem:[#allocation3 + $0x218] sm:$0xff] %vm1672, %v5179
      %5194 = vst.msk [vmem:[#allocation3 + $0x220] sm:$0xff] %vm1672, %v5180
      %5195 = vst.msk [vmem:[#allocation3 + $0x228] sm:$0xff] %vm1672, %v5181
      %v5196 = vld [vmem:[#allocation2 + $0x230] sm:$0xff]
      %v5197 = vld [vmem:[#allocation2 + $0x238] sm:$0xff]
      %v5198 = vld [vmem:[#allocation2 + $0x240] sm:$0xff]
      %v5199 = vld [vmem:[#allocation2 + $0x248] sm:$0xff]
      %v5200 = vld [vmem:[#allocation2 + $0x250] sm:$0xff]
      %v5201 = vld [vmem:[#allocation2 + $0x258] sm:$0xff]
      %v5202 = vld [vmem:[#allocation2 + $0x260] sm:$0xff]
      %v5203 = vld [vmem:[#allocation2 + $0x268] sm:$0xff]
      %v5204 = vld [vmem:[#allocation2 + $0x270] sm:$0xff]
      %v5205 = vld [vmem:[#allocation2 + $0x278] sm:$0xff]
      %v5206 = vld [vmem:[#allocation2 + $0x280] sm:$0xff]
      %v5207 = vld [vmem:[#allocation2 + $0x288] sm:$0xff]
      %v5208 = vld [vmem:[#allocation2 + $0x290] sm:$0xff]
      %v5209 = vld [vmem:[#allocation2 + $0x298] sm:$0xff]
      %v5210 = vld [vmem:[#allocation2 + $0x231] sm:$0xff]
      %v5211 = vld [vmem:[#allocation2 + $0x239] sm:$0xff]
      %v5212 = vld [vmem:[#allocation2 + $0x241] sm:$0xff]
      %v5213 = vld [vmem:[#allocation2 + $0x249] sm:$0xff]
      %v5214 = vld [vmem:[#allocation2 + $0x251] sm:$0xff]
      %v5215 = vld [vmem:[#allocation2 + $0x259] sm:$0xff]
      %v5216 = vld [vmem:[#allocation2 + $0x261] sm:$0xff]
      %v5217 = vld [vmem:[#allocation2 + $0x269] sm:$0xff]
      %v5218 = vld [vmem:[#allocation2 + $0x271] sm:$0xff]
      %v5219 = vld [vmem:[#allocation2 + $0x279] sm:$0xff]
      %v5220 = vld [vmem:[#allocation2 + $0x281] sm:$0xff]
      %v5221 = vld [vmem:[#allocation2 + $0x289] sm:$0xff]
      %v5222 = vld [vmem:[#allocation2 + $0x291] sm:$0xff]
      %v5223 = vld [vmem:[#allocation2 + $0x299] sm:$0xff]
      %v5224 = vld [vmem:[#allocation2 + $0x232] sm:$0xff]
      %v5225 = vld [vmem:[#allocation2 + $0x23a] sm:$0xff]
      %v5226 = vld [vmem:[#allocation2 + $0x242] sm:$0xff]
      %v5227 = vld [vmem:[#allocation2 + $0x24a] sm:$0xff]
      %v5228 = vld [vmem:[#allocation2 + $0x252] sm:$0xff]
      %v5229 = vld [vmem:[#allocation2 + $0x25a] sm:$0xff]
      %v5230 = vld [vmem:[#allocation2 + $0x262] sm:$0xff]
      %v5231 = vld [vmem:[#allocation2 + $0x26a] sm:$0xff]
      %v5232 = vld [vmem:[#allocation2 + $0x272] sm:$0xff]
      %v5233 = vld [vmem:[#allocation2 + $0x27a] sm:$0xff]
      %v5234 = vld [vmem:[#allocation2 + $0x282] sm:$0xff]
      %v5235 = vld [vmem:[#allocation2 + $0x28a] sm:$0xff]
      %v5236 = vld [vmem:[#allocation2 + $0x292] sm:$0xff]
      %v5237 = vld [vmem:[#allocation2 + $0x29a] sm:$0xff]
      %v5238 = vld [vmem:[#allocation2 + $0x24c] sm:$0xff]
      %v5239 = vld [vmem:[#allocation2 + $0x254] sm:$0xff]
      %v5240 = vld [vmem:[#allocation2 + $0x25c] sm:$0xff]
      %v5241 = vld [vmem:[#allocation2 + $0x264] sm:$0xff]
      %v5242 = vld [vmem:[#allocation2 + $0x26c] sm:$0xff]
      %v5243 = vld [vmem:[#allocation2 + $0x274] sm:$0xff]
      %v5244 = vld [vmem:[#allocation2 + $0x27c] sm:$0xff]
      %v5245 = vld [vmem:[#allocation2 + $0x284] sm:$0xff]
      %v5246 = vld [vmem:[#allocation2 + $0x28c] sm:$0xff]
      %v5247 = vld [vmem:[#allocation2 + $0x294] sm:$0xff]
      %v5248 = vld [vmem:[#allocation2 + $0x29c] sm:$0xff]
      %v5249 = vld [vmem:[#allocation2 + $0x2a4] sm:$0xff]
      %v5250 = vld [vmem:[#allocation2 + $0x2ac] sm:$0xff]
      %v5251 = vld [vmem:[#allocation2 + $0x2b4] sm:$0xff]
      %v5252 = vld [vmem:[#allocation2 + $0x24d] sm:$0xff]
      %v5253 = vld [vmem:[#allocation2 + $0x255] sm:$0xff]
      %v5254 = vld [vmem:[#allocation2 + $0x25d] sm:$0xff]
      %v5255 = vld [vmem:[#allocation2 + $0x265] sm:$0xff]
      %v5256 = vld [vmem:[#allocation2 + $0x26d] sm:$0xff]
      %v5257 = vld [vmem:[#allocation2 + $0x275] sm:$0xff]
      %v5258 = vld [vmem:[#allocation2 + $0x27d] sm:$0xff]
      %v5259 = vld [vmem:[#allocation2 + $0x285] sm:$0xff]
      %v5260 = vld [vmem:[#allocation2 + $0x28d] sm:$0xff]
      %v5261 = vld [vmem:[#allocation2 + $0x295] sm:$0xff]
      %v5262 = vld [vmem:[#allocation2 + $0x29d] sm:$0xff]
      %v5263 = vld [vmem:[#allocation2 + $0x2a5] sm:$0xff]
      %v5264 = vld [vmem:[#allocation2 + $0x2ad] sm:$0xff]
      %v5265 = vld [vmem:[#allocation2 + $0x2b5] sm:$0xff]
      %v5266 = vld [vmem:[#allocation2 + $0x24e] sm:$0xff]
      %v5267 = vld [vmem:[#allocation2 + $0x256] sm:$0xff]
      %v5268 = vld [vmem:[#allocation2 + $0x25e] sm:$0xff]
      %v5269 = vld [vmem:[#allocation2 + $0x266] sm:$0xff]
      %v5270 = vld [vmem:[#allocation2 + $0x26e] sm:$0xff]
      %v5271 = vld [vmem:[#allocation2 + $0x276] sm:$0xff]
      %v5272 = vld [vmem:[#allocation2 + $0x27e] sm:$0xff]
      %v5273 = vld [vmem:[#allocation2 + $0x286] sm:$0xff]
      %v5274 = vld [vmem:[#allocation2 + $0x28e] sm:$0xff]
      %v5275 = vld [vmem:[#allocation2 + $0x296] sm:$0xff]
      %v5276 = vld [vmem:[#allocation2 + $0x29e] sm:$0xff]
      %v5277 = vld [vmem:[#allocation2 + $0x2a6] sm:$0xff]
      %v5278 = vld [vmem:[#allocation2 + $0x2ae] sm:$0xff]
      %v5279 = vld [vmem:[#allocation2 + $0x2b6] sm:$0xff]
      %v5280 = vld [vmem:[#allocation2 + $0x2a0] sm:$0xff]
      %v5281 = vld [vmem:[#allocation2 + $0x2a8] sm:$0xff]
      %v5282 = vld [vmem:[#allocation2 + $0x2b0] sm:$0xff]
      %v5283 = vld [vmem:[#allocation2 + $0x2b8] sm:$0xff]
      %v5284 = vld [vmem:[#allocation2 + $0x2c0] sm:$0xff]
      %v5285 = vld [vmem:[#allocation2 + $0x2c8] sm:$0xff]
      %v5286 = vld [vmem:[#allocation2 + $0x2d0] sm:$0xff]
      %v5287 = vld [vmem:[#allocation2 + $0x2a1] sm:$0xff]
      %v5288 = vld [vmem:[#allocation2 + $0x2a9] sm:$0xff]
      %v5289 = vld [vmem:[#allocation2 + $0x2b1] sm:$0xff]
      %v5290 = vld [vmem:[#allocation2 + $0x2b9] sm:$0xff]
      %v5291 = vld [vmem:[#allocation2 + $0x2c1] sm:$0xff]
      %v5292 = vld [vmem:[#allocation2 + $0x2c9] sm:$0xff]
      %v5293 = vld [vmem:[#allocation2 + $0x2d1] sm:$0xff]
      %v5294 = vld [vmem:[#allocation2 + $0x2a2] sm:$0xff]
      %v5295 = vld [vmem:[#allocation2 + $0x2aa] sm:$0xff]
      %v5296 = vld [vmem:[#allocation2 + $0x2b2] sm:$0xff]
      %v5297 = vld [vmem:[#allocation2 + $0x2ba] sm:$0xff]
      %v5298 = vld [vmem:[#allocation2 + $0x2c2] sm:$0xff]
      %v5299 = vld [vmem:[#allocation2 + $0x2ca] sm:$0xff]
      %v5300 = vld [vmem:[#allocation2 + $0x2d2] sm:$0xff]
      %5315 = vrot.lane.b32.xlu0 %v5210, 32
      %v5316 = vpop.permute.xlu0 %5315
      %5317 = vrot.lane.b32.xlu0 %v5211, 32
      %v5318 = vpop.permute.xlu0 %5317
      %5319 = vrot.lane.b32.xlu0 %v5212, 32
      %v5320 = vpop.permute.xlu0 %5319
      %5321 = vrot.lane.b32.xlu0 %v5213, 32
      %v5322 = vpop.permute.xlu0 %5321
      %5323 = vrot.lane.b32.xlu0 %v5214, 32
      %v5324 = vpop.permute.xlu0 %5323
      %5325 = vrot.lane.b32.xlu0 %v5215, 32
      %v5326 = vpop.permute.xlu0 %5325
      %5327 = vrot.lane.b32.xlu0 %v5216, 32
      %v5328 = vpop.permute.xlu0 %5327
      %5329 = vrot.lane.b32.xlu0 %v5217, 32
      %v5330 = vpop.permute.xlu0 %5329
      %5331 = vrot.lane.b32.xlu0 %v5218, 32
      %v5332 = vpop.permute.xlu0 %5331
      %5333 = vrot.lane.b32.xlu0 %v5219, 32
      %v5334 = vpop.permute.xlu0 %5333
      %5335 = vrot.lane.b32.xlu0 %v5220, 32
      %v5336 = vpop.permute.xlu0 %5335
      %5337 = vrot.lane.b32.xlu0 %v5221, 32
      %v5338 = vpop.permute.xlu0 %5337
      %5339 = vrot.lane.b32.xlu0 %v5222, 32
      %v5340 = vpop.permute.xlu0 %5339
      %5341 = vrot.lane.b32.xlu0 %v5223, 32
      %v5342 = vpop.permute.xlu0 %5341
      %5371 = vrot.lane.b32.xlu0 %v5224, 64
      %v5372 = vpop.permute.xlu0 %5371
      %5373 = vrot.lane.b32.xlu0 %v5225, 64
      %v5374 = vpop.permute.xlu0 %5373
      %5375 = vrot.lane.b32.xlu0 %v5226, 64
      %v5376 = vpop.permute.xlu0 %5375
      %5377 = vrot.lane.b32.xlu0 %v5227, 64
      %v5378 = vpop.permute.xlu0 %5377
      %5379 = vrot.lane.b32.xlu0 %v5228, 64
      %v5380 = vpop.permute.xlu0 %5379
      %5381 = vrot.lane.b32.xlu0 %v5229, 64
      %v5382 = vpop.permute.xlu0 %5381
      %5383 = vrot.lane.b32.xlu0 %v5230, 64
      %v5384 = vpop.permute.xlu0 %5383
      %5385 = vrot.lane.b32.xlu0 %v5231, 64
      %v5386 = vpop.permute.xlu0 %5385
      %5387 = vrot.lane.b32.xlu0 %v5232, 64
      %v5388 = vpop.permute.xlu0 %5387
      %5389 = vrot.lane.b32.xlu0 %v5233, 64
      %v5390 = vpop.permute.xlu0 %5389
      %5391 = vrot.lane.b32.xlu0 %v5234, 64
      %v5392 = vpop.permute.xlu0 %5391
      %5393 = vrot.lane.b32.xlu0 %v5235, 64
      %v5394 = vpop.permute.xlu0 %5393
      %5395 = vrot.lane.b32.xlu0 %v5236, 64
      %v5396 = vpop.permute.xlu0 %5395
      %5397 = vrot.lane.b32.xlu0 %v5237, 64
      %v5398 = vpop.permute.xlu0 %5397
      %5427 = vrot.lane.b32.xlu0 %v5238, 96
      %v5428 = vpop.permute.xlu0 %5427
      %5429 = vrot.lane.b32.xlu0 %v5239, 96
      %v5430 = vpop.permute.xlu0 %5429
      %5431 = vrot.lane.b32.xlu0 %v5240, 96
      %v5432 = vpop.permute.xlu0 %5431
      %5433 = vrot.lane.b32.xlu0 %v5241, 96
      %v5434 = vpop.permute.xlu0 %5433
      %5435 = vrot.lane.b32.xlu0 %v5242, 96
      %v5436 = vpop.permute.xlu0 %5435
      %5437 = vrot.lane.b32.xlu0 %v5243, 96
      %v5438 = vpop.permute.xlu0 %5437
      %5439 = vrot.lane.b32.xlu0 %v5244, 96
      %v5440 = vpop.permute.xlu0 %5439
      %5441 = vrot.lane.b32.xlu0 %v5245, 96
      %v5442 = vpop.permute.xlu0 %5441
      %5443 = vrot.lane.b32.xlu0 %v5246, 96
      %v5444 = vpop.permute.xlu0 %5443
      %5445 = vrot.lane.b32.xlu0 %v5247, 96
      %v5446 = vpop.permute.xlu0 %5445
      %5447 = vrot.lane.b32.xlu0 %v5248, 96
      %v5448 = vpop.permute.xlu0 %5447
      %5449 = vrot.lane.b32.xlu0 %v5249, 96
      %v5450 = vpop.permute.xlu0 %5449
      %5451 = vrot.lane.b32.xlu0 %v5250, 96
      %v5452 = vpop.permute.xlu0 %5451
      %5453 = vrot.lane.b32.xlu0 %v5251, 96
      %v5454 = vpop.permute.xlu0 %5453
      %5483 = vrot.lane.b32.xlu0 %v5266, 32
      %v5484 = vpop.permute.xlu0 %5483
      %5485 = vrot.lane.b32.xlu0 %v5267, 32
      %v5486 = vpop.permute.xlu0 %5485
      %5487 = vrot.lane.b32.xlu0 %v5268, 32
      %v5488 = vpop.permute.xlu0 %5487
      %5489 = vrot.lane.b32.xlu0 %v5269, 32
      %v5490 = vpop.permute.xlu0 %5489
      %5491 = vrot.lane.b32.xlu0 %v5270, 32
      %v5492 = vpop.permute.xlu0 %5491
      %5493 = vrot.lane.b32.xlu0 %v5271, 32
      %v5494 = vpop.permute.xlu0 %5493
      %5495 = vrot.lane.b32.xlu0 %v5272, 32
      %v5496 = vpop.permute.xlu0 %5495
      %5497 = vrot.lane.b32.xlu0 %v5273, 32
      %v5498 = vpop.permute.xlu0 %5497
      %5499 = vrot.lane.b32.xlu0 %v5274, 32
      %v5500 = vpop.permute.xlu0 %5499
      %5501 = vrot.lane.b32.xlu0 %v5275, 32
      %v5502 = vpop.permute.xlu0 %5501
      %5503 = vrot.lane.b32.xlu0 %v5276, 32
      %v5504 = vpop.permute.xlu0 %5503
      %5505 = vrot.lane.b32.xlu0 %v5277, 32
      %v5506 = vpop.permute.xlu0 %5505
      %5507 = vrot.lane.b32.xlu0 %v5278, 32
      %v5508 = vpop.permute.xlu0 %5507
      %5509 = vrot.lane.b32.xlu0 %v5279, 32
      %v5510 = vpop.permute.xlu0 %5509
      %5539 = vrot.lane.b32.xlu0 %v5203, 64
      %v5540 = vpop.permute.xlu0 %5539
      %5541 = vrot.lane.b32.xlu0 %v5204, 64
      %v5542 = vpop.permute.xlu0 %5541
      %5543 = vrot.lane.b32.xlu0 %v5205, 64
      %v5544 = vpop.permute.xlu0 %5543
      %5545 = vrot.lane.b32.xlu0 %v5206, 64
      %v5546 = vpop.permute.xlu0 %5545
      %5547 = vrot.lane.b32.xlu0 %v5207, 64
      %v5548 = vpop.permute.xlu0 %5547
      %5549 = vrot.lane.b32.xlu0 %v5208, 64
      %v5550 = vpop.permute.xlu0 %5549
      %5551 = vrot.lane.b32.xlu0 %v5209, 64
      %v5552 = vpop.permute.xlu0 %5551
      %5553 = vrot.lane.b32.xlu0 %v5280, 64
      %v5554 = vpop.permute.xlu0 %5553
      %5555 = vrot.lane.b32.xlu0 %v5281, 64
      %v5556 = vpop.permute.xlu0 %5555
      %5557 = vrot.lane.b32.xlu0 %v5282, 64
      %v5558 = vpop.permute.xlu0 %5557
      %5559 = vrot.lane.b32.xlu0 %v5283, 64
      %v5560 = vpop.permute.xlu0 %5559
      %5561 = vrot.lane.b32.xlu0 %v5284, 64
      %v5562 = vpop.permute.xlu0 %5561
      %5563 = vrot.lane.b32.xlu0 %v5285, 64
      %v5564 = vpop.permute.xlu0 %5563
      %5565 = vrot.lane.b32.xlu0 %v5286, 64
      %v5566 = vpop.permute.xlu0 %5565
      %5588 = vrot.lane.b32.xlu0 %v5217, 96
      %v5589 = vpop.permute.xlu0 %5588
      %5590 = vrot.lane.b32.xlu0 %v5218, 96
      %v5591 = vpop.permute.xlu0 %5590
      %5592 = vrot.lane.b32.xlu0 %v5219, 96
      %v5593 = vpop.permute.xlu0 %5592
      %5594 = vrot.lane.b32.xlu0 %v5220, 96
      %v5595 = vpop.permute.xlu0 %5594
      %5596 = vrot.lane.b32.xlu0 %v5221, 96
      %v5597 = vpop.permute.xlu0 %5596
      %5598 = vrot.lane.b32.xlu0 %v5222, 96
      %v5599 = vpop.permute.xlu0 %5598
      %5600 = vrot.lane.b32.xlu0 %v5223, 96
      %v5601 = vpop.permute.xlu0 %5600
      %5602 = vrot.lane.b32.xlu0 %v5287, 96
      %v5603 = vpop.permute.xlu0 %5602
      %5604 = vrot.lane.b32.xlu0 %v5288, 96
      %v5605 = vpop.permute.xlu0 %5604
      %5606 = vrot.lane.b32.xlu0 %v5289, 96
      %v5607 = vpop.permute.xlu0 %5606
      %5608 = vrot.lane.b32.xlu0 %v5290, 96
      %v5609 = vpop.permute.xlu0 %5608
      %5610 = vrot.lane.b32.xlu0 %v5291, 96
      %v5611 = vpop.permute.xlu0 %5610
      %5612 = vrot.lane.b32.xlu0 %v5292, 96
      %v5613 = vpop.permute.xlu0 %5612
      %5614 = vrot.lane.b32.xlu0 %v5293, 96
      %v5615 = vpop.permute.xlu0 %5614
      %v5630 = vsel %vm253, %v5196, %v5316
      %v5631 = vsel %vm253, %v5197, %v5318
      %v5632 = vsel %vm253, %v5198, %v5320
      %v5633 = vsel %vm253, %v5199, %v5322
      %v5634 = vsel %vm253, %v5200, %v5324
      %v5635 = vsel %vm253, %v5201, %v5326
      %v5636 = vsel %vm253, %v5202, %v5328
      %v5637 = vsel %vm253, %v5203, %v5330
      %v5638 = vsel %vm253, %v5204, %v5332
      %v5639 = vsel %vm253, %v5205, %v5334
      %v5640 = vsel %vm253, %v5206, %v5336
      %v5641 = vsel %vm253, %v5207, %v5338
      %v5642 = vsel %vm253, %v5208, %v5340
      %v5643 = vsel %vm253, %v5209, %v5342
      %v5644 = vsel %vm1672, %v5630, %v5372
      %v5645 = vsel %vm1672, %v5631, %v5374
      %v5646 = vsel %vm1672, %v5632, %v5376
      %v5647 = vsel %vm1672, %v5633, %v5378
      %v5648 = vsel %vm1672, %v5634, %v5380
      %v5649 = vsel %vm1672, %v5635, %v5382
      %v5650 = vsel %vm1672, %v5636, %v5384
      %v5651 = vsel %vm1672, %v5637, %v5386
      %v5652 = vsel %vm1672, %v5638, %v5388
      %v5653 = vsel %vm1672, %v5639, %v5390
      %v5654 = vsel %vm1672, %v5640, %v5392
      %v5655 = vsel %vm1672, %v5641, %v5394
      %v5656 = vsel %vm1672, %v5642, %v5396
      %v5657 = vsel %vm1672, %v5643, %v5398
      %v5658 = vsel %vm1687, %v5644, %v5428
      %v5659 = vsel %vm1687, %v5645, %v5430
      %v5660 = vsel %vm1687, %v5646, %v5432
      %v5661 = vsel %vm1687, %v5647, %v5434
      %v5662 = vsel %vm1687, %v5648, %v5436
      %v5663 = vsel %vm1687, %v5649, %v5438
      %v5664 = vsel %vm1687, %v5650, %v5440
      %v5665 = vsel %vm1687, %v5651, %v5442
      %v5666 = vsel %vm1687, %v5652, %v5444
      %v5667 = vsel %vm1687, %v5653, %v5446
      %v5668 = vsel %vm1687, %v5654, %v5448
      %v5669 = vsel %vm1687, %v5655, %v5450
      %v5670 = vsel %vm1687, %v5656, %v5452
      %v5671 = vsel %vm1687, %v5657, %v5454
      %v5672 = vsel %vm253, %v5252, %v5484
      %v5673 = vsel %vm253, %v5253, %v5486
      %v5674 = vsel %vm253, %v5254, %v5488
      %v5675 = vsel %vm253, %v5255, %v5490
      %v5676 = vsel %vm253, %v5256, %v5492
      %v5677 = vsel %vm253, %v5257, %v5494
      %v5678 = vsel %vm253, %v5258, %v5496
      %v5679 = vsel %vm253, %v5259, %v5498
      %v5680 = vsel %vm253, %v5260, %v5500
      %v5681 = vsel %vm253, %v5261, %v5502
      %v5682 = vsel %vm253, %v5262, %v5504
      %v5683 = vsel %vm253, %v5263, %v5506
      %v5684 = vsel %vm253, %v5264, %v5508
      %v5685 = vsel %vm253, %v5265, %v5510
      %v5686 = vsel %vm1672, %v5672, %v5540
      %v5687 = vsel %vm1672, %v5673, %v5542
      %v5688 = vsel %vm1672, %v5674, %v5544
      %v5689 = vsel %vm1672, %v5675, %v5546
      %v5690 = vsel %vm1672, %v5676, %v5548
      %v5691 = vsel %vm1672, %v5677, %v5550
      %v5692 = vsel %vm1672, %v5678, %v5552
      %v5693 = vsel %vm1672, %v5679, %v5554
      %v5694 = vsel %vm1672, %v5680, %v5556
      %v5695 = vsel %vm1672, %v5681, %v5558
      %v5696 = vsel %vm1672, %v5682, %v5560
      %v5697 = vsel %vm1672, %v5683, %v5562
      %v5698 = vsel %vm1672, %v5684, %v5564
      %v5699 = vsel %vm1672, %v5685, %v5566
      %v5700 = vsel %vm1687, %v5686, %v5589
      %v5701 = vsel %vm1687, %v5687, %v5591
      %v5702 = vsel %vm1687, %v5688, %v5593
      %v5703 = vsel %vm1687, %v5689, %v5595
      %v5704 = vsel %vm1687, %v5690, %v5597
      %v5705 = vsel %vm1687, %v5691, %v5599
      %v5706 = vsel %vm1687, %v5692, %v5601
      %v5707 = vsel %vm1687, %v5693, %v5603
      %v5708 = vsel %vm1687, %v5694, %v5605
      %v5709 = vsel %vm1687, %v5695, %v5607
      %v5710 = vsel %vm1687, %v5696, %v5609
      %v5711 = vsel %vm1687, %v5697, %v5611
      %v5712 = vsel %vm1687, %v5698, %v5613
      %v5713 = vsel %vm1687, %v5699, %v5615
      %v5714 = vld [vmem:[%s3] sm:$0xff]
      %v5715 = vld [vmem:[%s3 + $0x8] sm:$0xff]
      %v5716 = vld [vmem:[%s3 + $0x10] sm:$0xff]
      %v5717 = vld [vmem:[%s3 + $0x18] sm:$0xff]
      %v5718 = vld [vmem:[%s3 + $0x20] sm:$0xff]
      %v5719 = vld [vmem:[%s3 + $0x28] sm:$0xff]
      %v5720 = vld [vmem:[%s3 + $0x30] sm:$0xff]
      %v5721 = vld [vmem:[%s3 + $0x38] sm:$0xff]
      %v5722 = vld [vmem:[%s3 + $0x40] sm:$0xff]
      %v5723 = vld [vmem:[%s3 + $0x48] sm:$0xff]
      %v5724 = vld [vmem:[%s3 + $0x50] sm:$0xff]
      %v5725 = vld [vmem:[%s3 + $0x58] sm:$0xff]
      %v5726 = vld [vmem:[%s3 + $0x60] sm:$0xff]
      %v5727 = vld [vmem:[%s3 + $0x68] sm:$0xff]
      %v5728 = vld [vmem:[%s3 + $0x70] sm:$0xff]
      %v5729 = vld [vmem:[%s3 + $0x78] sm:$0xff]
      %v5730 = vld [vmem:[%s3 + $0x80] sm:$0xff]
      %v5731 = vld [vmem:[%s3 + $0x88] sm:$0xff]
      %v5732 = vld [vmem:[%s3 + $0x90] sm:$0xff]
      %v5733 = vld [vmem:[%s3 + $0x98] sm:$0xff]
      %v5734 = vld [vmem:[%s3 + $0xa0] sm:$0xff]
      %v5735 = vld [vmem:[%s3 + $0xa8] sm:$0xff]
      %v5736 = vld [vmem:[%s3 + $0xb0] sm:$0xff]
      %v5737 = vld [vmem:[%s3 + $0xb8] sm:$0xff]
      %v5738 = vld [vmem:[%s3 + $0xc0] sm:$0xff]
      %v5739 = vld [vmem:[%s3 + $0xc8] sm:$0xff]
      %v5740 = vld [vmem:[%s3 + $0xd0] sm:$0xff]
      %v5741 = vld [vmem:[%s3 + $0xd8] sm:$0xff]
      %v5742 = vld [vmem:[%s3 + $0xe0] sm:$0xff]
      %v5743 = vld [vmem:[%s3 + $0xe8] sm:$0xff]
      %v5744 = vld [vmem:[%s3 + $0xf0] sm:$0xff]
      %v5745 = vld [vmem:[%s3 + $0xf8] sm:$0xff]
      %v5746 = vld [vmem:[%s3 + $0x100] sm:$0xff]
      %v5747 = vld [vmem:[%s3 + $0x108] sm:$0xff]
      %v5748 = vld [vmem:[%s3 + $0x110] sm:$0xff]
      %v5749 = vld [vmem:[%s3 + $0x118] sm:$0xff]
      %v5750 = vsel %vm253, %v5231, 0
      %v5752 = vsel %vm253, %v5232, 0
      %v5754 = vsel %vm253, %v5233, 0
      %v5756 = vsel %vm253, %v5234, 0
      %v5758 = vsel %vm253, %v5235, 0
      %v5760 = vsel %vm253, %v5236, 0
      %v5762 = vsel %vm253, %v5237, 0
      %v5765 = vsel %vm253, %v5294, 0
      %v5768 = vsel %vm253, %v5295, 0
      %v5771 = vsel %vm253, %v5296, 0
      %v5774 = vsel %vm253, %v5297, 0
      %v5777 = vsel %vm253, %v5298, 0
      %v5780 = vsel %vm253, %v5299, 0
      %v5783 = vsel %vm253, %v5300, 0
      %5785 = vmatpush.msra.mxu0 %v5729
      %5786 = vmatpush.msra.mxu0 %v5728
      %5787 = vmatpush.msra.mxu0 %v5727
      %5788 = vmatpush.msra.mxu0 %v5726
      %5789 = vmatpush.msra.mxu0 %v5725
      %5790 = vmatpush.msra.mxu0 %v5724
      %5791 = vmatpush.msra.mxu0 %v5723
      %5792 = vmatpush.msra.mxu0 %v5722
      %5793 = vmatpush.msra.mxu0 %v5721
      %5794 = vmatpush.msra.mxu0 %v5720
      %5795 = vmatpush.msra.mxu0 %v5719
      %5796 = vmatpush.msra.mxu0 %v5718
      %5797 = vmatpush.msra.mxu0 %v5717
      %5798 = vmatpush.msra.mxu0 %v5716
      %5799 = vmatpush.msra.mxu0 %v5715
      %5800 = vmatpush.msra.mxu0 %v5714
      %5801 = vmatmul.f32.gmra.mxu0 %v5658
      %v5802 = vpop.f32.mrf.mxu0
      %v5803 = vadd.f32 %v231, %v5802
      %5804 = vmatmul.f32.gmra.mxu0 %v5659
      %v5805 = vpop.f32.mrf.mxu0
      %v5806 = vadd.f32 %v231, %v5805
      %5807 = vmatmul.f32.gmra.mxu0 %v5660
      %v5808 = vpop.f32.mrf.mxu0
      %v5809 = vadd.f32 %v231, %v5808
      %5810 = vmatmul.f32.gmra.mxu0 %v5661
      %v5811 = vpop.f32.mrf.mxu0
      %v5812 = vadd.f32 %v231, %v5811
      %5813 = vmatmul.f32.gmra.mxu0 %v5662
      %v5814 = vpop.f32.mrf.mxu0
      %v5815 = vadd.f32 %v231, %v5814
      %5816 = vmatmul.f32.gmra.mxu0 %v5663
      %v5817 = vpop.f32.mrf.mxu0
      %v5818 = vadd.f32 %v231, %v5817
      %5819 = vmatmul.f32.gmra.mxu0 %v5664
      %v5820 = vpop.f32.mrf.mxu0
      %v5821 = vadd.f32 %v231, %v5820
      %5822 = vmatmul.f32.gmra.mxu0 %v5665
      %v5823 = vpop.f32.mrf.mxu0
      %v5824 = vadd.f32 %v231, %v5823
      %5825 = vmatmul.f32.gmra.mxu0 %v5666
      %v5826 = vpop.f32.mrf.mxu0
      %v5827 = vadd.f32 %v231, %v5826
      %5828 = vmatmul.f32.gmra.mxu0 %v5667
      %v5829 = vpop.f32.mrf.mxu0
      %v5830 = vadd.f32 %v231, %v5829
      %5831 = vmatmul.f32.gmra.mxu0 %v5668
      %v5832 = vpop.f32.mrf.mxu0
      %v5833 = vadd.f32 %v231, %v5832
      %5834 = vmatmul.f32.gmra.mxu0 %v5669
      %v5835 = vpop.f32.mrf.mxu0
      %v5836 = vadd.f32 %v231, %v5835
      %5837 = vmatmul.f32.gmra.mxu0 %v5670
      %v5838 = vpop.f32.mrf.mxu0
      %v5839 = vadd.f32 %v231, %v5838
      %5840 = vmatmul.f32.gmra.mxu0 %v5671
      %v5841 = vpop.f32.mrf.mxu0
      %v5842 = vadd.f32 %v231, %v5841
      %5843 = vdwg.mxu0
      %5844 = vmatpush.msra.mxu0 %v5745
      %5845 = vmatpush.msra.mxu0 %v5744
      %5846 = vmatpush.msra.mxu0 %v5743
      %5847 = vmatpush.msra.mxu0 %v5742
      %5848 = vmatpush.msra.mxu0 %v5741
      %5849 = vmatpush.msra.mxu0 %v5740
      %5850 = vmatpush.msra.mxu0 %v5739
      %5851 = vmatpush.msra.mxu0 %v5738
      %5852 = vmatpush.msra.mxu0 %v5737
      %5853 = vmatpush.msra.mxu0 %v5736
      %5854 = vmatpush.msra.mxu0 %v5735
      %5855 = vmatpush.msra.mxu0 %v5734
      %5856 = vmatpush.msra.mxu0 %v5733
      %5857 = vmatpush.msra.mxu0 %v5732
      %5858 = vmatpush.msra.mxu0 %v5731
      %5859 = vmatpush.msra.mxu0 %v5730
      %5860 = vmatmul.f32.gmra.mxu0 %v5700
      %v5861 = vpop.f32.mrf.mxu0
      %v5862 = vadd.f32 %v5803, %v5861
      %5863 = vmatmul.f32.gmra.mxu0 %v5701
      %v5864 = vpop.f32.mrf.mxu0
      %v5865 = vadd.f32 %v5806, %v5864
      %5866 = vmatmul.f32.gmra.mxu0 %v5702
      %v5867 = vpop.f32.mrf.mxu0
      %v5868 = vadd.f32 %v5809, %v5867
      %5869 = vmatmul.f32.gmra.mxu0 %v5703
      %v5870 = vpop.f32.mrf.mxu0
      %v5871 = vadd.f32 %v5812, %v5870
      %5872 = vmatmul.f32.gmra.mxu0 %v5704
      %v5873 = vpop.f32.mrf.mxu0
      %v5874 = vadd.f32 %v5815, %v5873
      %5875 = vmatmul.f32.gmra.mxu0 %v5705
      %v5876 = vpop.f32.mrf.mxu0
      %v5877 = vadd.f32 %v5818, %v5876
      %5878 = vmatmul.f32.gmra.mxu0 %v5706
      %v5879 = vpop.f32.mrf.mxu0
      %v5880 = vadd.f32 %v5821, %v5879
      %5881 = vmatmul.f32.gmra.mxu0 %v5707
      %v5882 = vpop.f32.mrf.mxu0
      %v5883 = vadd.f32 %v5824, %v5882
      %5884 = vmatmul.f32.gmra.mxu0 %v5708
      %v5885 = vpop.f32.mrf.mxu0
      %v5886 = vadd.f32 %v5827, %v5885
      %5887 = vmatmul.f32.gmra.mxu0 %v5709
      %v5888 = vpop.f32.mrf.mxu0
      %v5889 = vadd.f32 %v5830, %v5888
      %5890 = vmatmul.f32.gmra.mxu0 %v5710
      %v5891 = vpop.f32.mrf.mxu0
      %v5892 = vadd.f32 %v5833, %v5891
      %5893 = vmatmul.f32.gmra.mxu0 %v5711
      %v5894 = vpop.f32.mrf.mxu0
      %v5895 = vadd.f32 %v5836, %v5894
      %5896 = vmatmul.f32.gmra.mxu0 %v5712
      %v5897 = vpop.f32.mrf.mxu0
      %v5898 = vadd.f32 %v5839, %v5897
      %5899 = vmatmul.f32.gmra.mxu0 %v5713
      %v5900 = vpop.f32.mrf.mxu0
      %v5901 = vadd.f32 %v5842, %v5900
      %5902 = vdwg.mxu0
      %5903 = vmatpush.msra.mxu0 0.0
      %5904 = vmatpush.msra.mxu0 0.0
      %5905 = vmatpush.msra.mxu0 0.0
      %5906 = vmatpush.msra.mxu0 0.0
      %5907 = vmatpush.msra.mxu0 0.0
      %5908 = vmatpush.msra.mxu0 0.0
      %5909 = vmatpush.msra.mxu0 0.0
      %5910 = vmatpush.msra.mxu0 0.0
      %5911 = vmatpush.msra.mxu0 0.0
      %5912 = vmatpush.msra.mxu0 0.0
      %5913 = vmatpush.msra.mxu0 0.0
      %5914 = vmatpush.msra.mxu0 0.0
      %5915 = vmatpush.msra.mxu0 %v5749
      %5916 = vmatpush.msra.mxu0 %v5748
      %5917 = vmatpush.msra.mxu0 %v5747
      %5918 = vmatpush.msra.mxu0 %v5746
      %5919 = vmatmul.f32.gmra.mxu0 %v5750
      %v5920 = vpop.f32.mrf.mxu0
      %v5921 = vadd.f32 %v5862, %v5920
      %5922 = vmatmul.f32.gmra.mxu0 %v5752
      %v5923 = vpop.f32.mrf.mxu0
      %v5924 = vadd.f32 %v5865, %v5923
      %5925 = vmatmul.f32.gmra.mxu0 %v5754
      %v5926 = vpop.f32.mrf.mxu0
      %v5927 = vadd.f32 %v5868, %v5926
      %5928 = vmatmul.f32.gmra.mxu0 %v5756
      %v5929 = vpop.f32.mrf.mxu0
      %v5930 = vadd.f32 %v5871, %v5929
      %5931 = vmatmul.f32.gmra.mxu0 %v5758
      %v5932 = vpop.f32.mrf.mxu0
      %v5933 = vadd.f32 %v5874, %v5932
      %5934 = vmatmul.f32.gmra.mxu0 %v5760
      %v5935 = vpop.f32.mrf.mxu0
      %v5936 = vadd.f32 %v5877, %v5935
      %5937 = vmatmul.f32.gmra.mxu0 %v5762
      %v5938 = vpop.f32.mrf.mxu0
      %v5939 = vadd.f32 %v5880, %v5938
      %5940 = vmatmul.f32.gmra.mxu0 %v5765
      %v5941 = vpop.f32.mrf.mxu0
      %v5942 = vadd.f32 %v5883, %v5941
      %5943 = vmatmul.f32.gmra.mxu0 %v5768
      %v5944 = vpop.f32.mrf.mxu0
      %v5945 = vadd.f32 %v5886, %v5944
      %5946 = vmatmul.f32.gmra.mxu0 %v5771
      %v5947 = vpop.f32.mrf.mxu0
      %v5948 = vadd.f32 %v5889, %v5947
      %5949 = vmatmul.f32.gmra.mxu0 %v5774
      %v5950 = vpop.f32.mrf.mxu0
      %v5951 = vadd.f32 %v5892, %v5950
      %5952 = vmatmul.f32.gmra.mxu0 %v5777
      %v5953 = vpop.f32.mrf.mxu0
      %v5954 = vadd.f32 %v5895, %v5953
      %5955 = vmatmul.f32.gmra.mxu0 %v5780
      %v5956 = vpop.f32.mrf.mxu0
      %v5957 = vadd.f32 %v5898, %v5956
      %5958 = vmatmul.f32.gmra.mxu0 %v5783
      %v5959 = vpop.f32.mrf.mxu0
      %v5960 = vadd.f32 %v5901, %v5959
      %5961 = vdwg.mxu0
      %v5962 = vmax.f32 %v5921, 0.0
      %v5963 = vmax.f32 %v5924, 0.0
      %v5964 = vmax.f32 %v5927, 0.0
      %v5965 = vmax.f32 %v5930, 0.0
      %v5966 = vmax.f32 %v5933, 0.0
      %v5967 = vmax.f32 %v5936, 0.0
      %v5968 = vmax.f32 %v5939, 0.0
      %v5969 = vmax.f32 %v5942, 0.0
      %v5970 = vmax.f32 %v5945, 0.0
      %v5971 = vmax.f32 %v5948, 0.0
      %v5972 = vmax.f32 %v5951, 0.0
      %v5973 = vmax.f32 %v5954, 0.0
      %v5974 = vmax.f32 %v5957, 0.0
      %v5975 = vmax.f32 %v5960, 0.0
      %5976 = vst.msk [vmem:[#allocation3 + $0x230] sm:$0xff] %vm1672, %v5962
      %5977 = vst.msk [vmem:[#allocation3 + $0x238] sm:$0xff] %vm1672, %v5963
      %5978 = vst.msk [vmem:[#allocation3 + $0x240] sm:$0xff] %vm1672, %v5964
      %5979 = vst.msk [vmem:[#allocation3 + $0x248] sm:$0xff] %vm1672, %v5965
      %5980 = vst.msk [vmem:[#allocation3 + $0x250] sm:$0xff] %vm1672, %v5966
      %5981 = vst.msk [vmem:[#allocation3 + $0x258] sm:$0xff] %vm1672, %v5967
      %5982 = vst.msk [vmem:[#allocation3 + $0x260] sm:$0xff] %vm1672, %v5968
      %5983 = vst.msk [vmem:[#allocation3 + $0x268] sm:$0xff] %vm1672, %v5969
      %5984 = vst.msk [vmem:[#allocation3 + $0x270] sm:$0xff] %vm1672, %v5970
      %5985 = vst.msk [vmem:[#allocation3 + $0x278] sm:$0xff] %vm1672, %v5971
      %5986 = vst.msk [vmem:[#allocation3 + $0x280] sm:$0xff] %vm1672, %v5972
      %5987 = vst.msk [vmem:[#allocation3 + $0x288] sm:$0xff] %vm1672, %v5973
      %5988 = vst.msk [vmem:[#allocation3 + $0x290] sm:$0xff] %vm1672, %v5974
      %5989 = vst.msk [vmem:[#allocation3 + $0x298] sm:$0xff] %vm1672, %v5975
      %v5990 = vld [vmem:[#allocation3] ss:$4 sm:$0x3f]
      %s5991 = scalar_lea.vmem [#allocation3], 1
      %v5992 = vld [vmem:[%s5991] ss:$4 sm:$0x3f]
      %v5993 = vmax.f32 %v5990, %v5992
      %s5994 = scalar_lea.vmem [#allocation3], 28
      %v5995 = vld [vmem:[%s5994] ss:$4 sm:$0x3f]
      %s5996 = scalar_lea.vmem [#allocation3], 29
      %v5997 = vld [vmem:[%s5996] ss:$4 sm:$0x3f]
      %v5998 = vmax.f32 %v5995, %v5997
      %v5999 = vmax.f32 %v5993, %v5998
      %s6000 = scalar_lea.vmem [#allocation3], 2
      %v6001 = vld [vmem:[%s6000] ss:$4 sm:$0x3f]
      %s6002 = scalar_lea.vmem [#allocation3], 3
      %v6003 = vld [vmem:[%s6002] ss:$4 sm:$0x3f]
      %v6004 = vmax.f32 %v6001, %v6003
      %s6005 = scalar_lea.vmem [#allocation3], 30
      %v6006 = vld [vmem:[%s6005] ss:$4 sm:$0x3f]
      %s6007 = scalar_lea.vmem [#allocation3], 31
      %v6008 = vld [vmem:[%s6007] ss:$4 sm:$0x3f]
      %v6009 = vmax.f32 %v6006, %v6008
      %v6010 = vmax.f32 %v6004, %v6009
      %6012 = vrot.lane.b32.xlu0 %v6010, 64
      %v6013 = vpop.permute.xlu0 %6012
      %v6015 = vsel %vm1672, %v5999, %v6013
      %6016 = vst [vmem:[%s224] sm:$0x3f] %v6015
      %s6017 = scalar_lea.vmem [#allocation3], 56
      %v6018 = vld [vmem:[%s6017] ss:$4 sm:$0x3f]
      %s6019 = scalar_lea.vmem [#allocation3], 57
      %v6020 = vld [vmem:[%s6019] ss:$4 sm:$0x3f]
      %v6021 = vmax.f32 %v6018, %v6020
      %s6022 = scalar_lea.vmem [#allocation3], 84
      %v6023 = vld [vmem:[%s6022] ss:$4 sm:$0x3f]
      %s6024 = scalar_lea.vmem [#allocation3], 85
      %v6025 = vld [vmem:[%s6024] ss:$4 sm:$0x3f]
      %v6026 = vmax.f32 %v6023, %v6025
      %v6027 = vmax.f32 %v6021, %v6026
      %s6028 = scalar_lea.vmem [#allocation3], 58
      %v6029 = vld [vmem:[%s6028] ss:$4 sm:$0x3f]
      %s6030 = scalar_lea.vmem [#allocation3], 59
      %v6031 = vld [vmem:[%s6030] ss:$4 sm:$0x3f]
      %v6032 = vmax.f32 %v6029, %v6031
      %s6033 = scalar_lea.vmem [#allocation3], 86
      %v6034 = vld [vmem:[%s6033] ss:$4 sm:$0x3f]
      %s6035 = scalar_lea.vmem [#allocation3], 87
      %v6036 = vld [vmem:[%s6035] ss:$4 sm:$0x3f]
      %v6037 = vmax.f32 %v6034, %v6036
      %v6038 = vmax.f32 %v6032, %v6037
      %6040 = vrot.lane.b32.xlu0 %v6038, 64
      %v6041 = vpop.permute.xlu0 %6040
      %v6043 = vsel %vm1672, %v6027, %v6041
      %6044 = vst [vmem:[%s224 + $0x6] sm:$0x3f] %v6043
      %s6045 = scalar_lea.vmem [#allocation3], 112
      %v6046 = vld [vmem:[%s6045] ss:$4 sm:$0x3f]
      %s6047 = scalar_lea.vmem [#allocation3], 113
      %v6048 = vld [vmem:[%s6047] ss:$4 sm:$0x3f]
      %v6049 = vmax.f32 %v6046, %v6048
      %s6050 = scalar_lea.vmem [#allocation3], 140
      %v6051 = vld [vmem:[%s6050] ss:$4 sm:$0x3f]
      %s6052 = scalar_lea.vmem [#allocation3], 141
      %v6053 = vld [vmem:[%s6052] ss:$4 sm:$0x3f]
      %v6054 = vmax.f32 %v6051, %v6053
      %v6055 = vmax.f32 %v6049, %v6054
      %s6056 = scalar_lea.vmem [#allocation3], 114
      %v6057 = vld [vmem:[%s6056] ss:$4 sm:$0x3f]
      %s6058 = scalar_lea.vmem [#allocation3], 115
      %v6059 = vld [vmem:[%s6058] ss:$4 sm:$0x3f]
      %v6060 = vmax.f32 %v6057, %v6059
      %s6061 = scalar_lea.vmem [#allocation3], 142
      %v6062 = vld [vmem:[%s6061] ss:$4 sm:$0x3f]
      %s6063 = scalar_lea.vmem [#allocation3], 143
      %v6064 = vld [vmem:[%s6063] ss:$4 sm:$0x3f]
      %v6065 = vmax.f32 %v6062, %v6064
      %v6066 = vmax.f32 %v6060, %v6065
      %6068 = vrot.lane.b32.xlu0 %v6066, 64
      %v6069 = vpop.permute.xlu0 %6068
      %v6071 = vsel %vm1672, %v6055, %v6069
      %6072 = vst [vmem:[%s224 + $0xc] sm:$0x3f] %v6071
      %s6073 = scalar_lea.vmem [#allocation3], 168
      %v6074 = vld [vmem:[%s6073] ss:$4 sm:$0x3f]
      %s6075 = scalar_lea.vmem [#allocation3], 169
      %v6076 = vld [vmem:[%s6075] ss:$4 sm:$0x3f]
      %v6077 = vmax.f32 %v6074, %v6076
      %s6078 = scalar_lea.vmem [#allocation3], 196
      %v6079 = vld [vmem:[%s6078] ss:$4 sm:$0x3f]
      %s6080 = scalar_lea.vmem [#allocation3], 197
      %v6081 = vld [vmem:[%s6080] ss:$4 sm:$0x3f]
      %v6082 = vmax.f32 %v6079, %v6081
      %v6083 = vmax.f32 %v6077, %v6082
      %s6084 = scalar_lea.vmem [#allocation3], 170
      %v6085 = vld [vmem:[%s6084] ss:$4 sm:$0x3f]
      %s6086 = scalar_lea.vmem [#allocation3], 171
      %v6087 = vld [vmem:[%s6086] ss:$4 sm:$0x3f]
      %v6088 = vmax.f32 %v6085, %v6087
      %s6089 = scalar_lea.vmem [#allocation3], 198
      %v6090 = vld [vmem:[%s6089] ss:$4 sm:$0x3f]
      %s6091 = scalar_lea.vmem [#allocation3], 199
      %v6092 = vld [vmem:[%s6091] ss:$4 sm:$0x3f]
      %v6093 = vmax.f32 %v6090, %v6092
      %v6094 = vmax.f32 %v6088, %v6093
      %6096 = vrot.lane.b32.xlu0 %v6094, 64
      %v6097 = vpop.permute.xlu0 %6096
      %v6099 = vsel %vm1672, %v6083, %v6097
      %6100 = vst [vmem:[%s224 + $0x12] sm:$0x3f] %v6099
      %s6101 = scalar_lea.vmem [#allocation3], 224
      %v6102 = vld [vmem:[%s6101] ss:$4 sm:$0x3f]
      %s6103 = scalar_lea.vmem [#allocation3], 225
      %v6104 = vld [vmem:[%s6103] ss:$4 sm:$0x3f]
      %v6105 = vmax.f32 %v6102, %v6104
      %s6106 = scalar_lea.vmem [#allocation3], 252
      %v6107 = vld [vmem:[%s6106] ss:$4 sm:$0x3f]
      %s6108 = scalar_lea.vmem [#allocation3], 253
      %v6109 = vld [vmem:[%s6108] ss:$4 sm:$0x3f]
      %v6110 = vmax.f32 %v6107, %v6109
      %v6111 = vmax.f32 %v6105, %v6110
      %s6112 = scalar_lea.vmem [#allocation3], 226
      %v6113 = vld [vmem:[%s6112] ss:$4 sm:$0x3f]
      %s6114 = scalar_lea.vmem [#allocation3], 227
      %v6115 = vld [vmem:[%s6114] ss:$4 sm:$0x3f]
      %v6116 = vmax.f32 %v6113, %v6115
      %s6117 = scalar_lea.vmem [#allocation3], 254
      %v6118 = vld [vmem:[%s6117] ss:$4 sm:$0x3f]
      %s6119 = scalar_lea.vmem [#allocation3], 255
      %v6120 = vld [vmem:[%s6119] ss:$4 sm:$0x3f]
      %v6121 = vmax.f32 %v6118, %v6120
      %v6122 = vmax.f32 %v6116, %v6121
      %6124 = vrot.lane.b32.xlu0 %v6122, 64
      %v6125 = vpop.permute.xlu0 %6124
      %v6127 = vsel %vm1672, %v6111, %v6125
      %6128 = vst [vmem:[%s224 + $0x18] sm:$0x3f] %v6127
      %s6129 = scalar_lea.vmem [#allocation3], 280
      %v6130 = vld [vmem:[%s6129] ss:$4 sm:$0x3f]
      %s6131 = scalar_lea.vmem [#allocation3], 281
      %v6132 = vld [vmem:[%s6131] ss:$4 sm:$0x3f]
      %v6133 = vmax.f32 %v6130, %v6132
      %s6134 = scalar_lea.vmem [#allocation3], 308
      %v6135 = vld [vmem:[%s6134] ss:$4 sm:$0x3f]
      %s6136 = scalar_lea.vmem [#allocation3], 309
      %v6137 = vld [vmem:[%s6136] ss:$4 sm:$0x3f]
      %v6138 = vmax.f32 %v6135, %v6137
      %v6139 = vmax.f32 %v6133, %v6138
      %s6140 = scalar_lea.vmem [#allocation3], 282
      %v6141 = vld [vmem:[%s6140] ss:$4 sm:$0x3f]
      %s6142 = scalar_lea.vmem [#allocation3], 283
      %v6143 = vld [vmem:[%s6142] ss:$4 sm:$0x3f]
      %v6144 = vmax.f32 %v6141, %v6143
      %s6145 = scalar_lea.vmem [#allocation3], 310
      %v6146 = vld [vmem:[%s6145] ss:$4 sm:$0x3f]
      %s6147 = scalar_lea.vmem [#allocation3], 311
      %v6148 = vld [vmem:[%s6147] ss:$4 sm:$0x3f]
      %v6149 = vmax.f32 %v6146, %v6148
      %v6150 = vmax.f32 %v6144, %v6149
      %6152 = vrot.lane.b32.xlu0 %v6150, 64
      %v6153 = vpop.permute.xlu0 %6152
      %v6155 = vsel %vm1672, %v6139, %v6153
      %6156 = vst [vmem:[%s224 + $0x1e] sm:$0x3f] %v6155
      %s6157 = scalar_lea.vmem [#allocation3], 336
      %v6158 = vld [vmem:[%s6157] ss:$4 sm:$0x3f]
      %s6159 = scalar_lea.vmem [#allocation3], 337
      %v6160 = vld [vmem:[%s6159] ss:$4 sm:$0x3f]
      %v6161 = vmax.f32 %v6158, %v6160
      %s6162 = scalar_lea.vmem [#allocation3], 364
      %v6163 = vld [vmem:[%s6162] ss:$4 sm:$0x3f]
      %s6164 = scalar_lea.vmem [#allocation3], 365
      %v6165 = vld [vmem:[%s6164] ss:$4 sm:$0x3f]
      %v6166 = vmax.f32 %v6163, %v6165
      %v6167 = vmax.f32 %v6161, %v6166
      %s6168 = scalar_lea.vmem [#allocation3], 338
      %v6169 = vld [vmem:[%s6168] ss:$4 sm:$0x3f]
      %s6170 = scalar_lea.vmem [#allocation3], 339
      %v6171 = vld [vmem:[%s6170] ss:$4 sm:$0x3f]
      %v6172 = vmax.f32 %v6169, %v6171
      %s6173 = scalar_lea.vmem [#allocation3], 366
      %v6174 = vld [vmem:[%s6173] ss:$4 sm:$0x3f]
      %s6175 = scalar_lea.vmem [#allocation3], 367
      %v6176 = vld [vmem:[%s6175] ss:$4 sm:$0x3f]
      %v6177 = vmax.f32 %v6174, %v6176
      %v6178 = vmax.f32 %v6172, %v6177
      %6180 = vrot.lane.b32.xlu0 %v6178, 64
      %v6181 = vpop.permute.xlu0 %6180
      %v6183 = vsel %vm1672, %v6167, %v6181
      %6184 = vst [vmem:[%s224 + $0x24] sm:$0x3f] %v6183
      %s6185 = scalar_lea.vmem [#allocation3], 392
      %v6186 = vld [vmem:[%s6185] ss:$4 sm:$0x3f]
      %s6187 = scalar_lea.vmem [#allocation3], 393
      %v6188 = vld [vmem:[%s6187] ss:$4 sm:$0x3f]
      %v6189 = vmax.f32 %v6186, %v6188
      %s6190 = scalar_lea.vmem [#allocation3], 420
      %v6191 = vld [vmem:[%s6190] ss:$4 sm:$0x3f]
      %s6192 = scalar_lea.vmem [#allocation3], 421
      %v6193 = vld [vmem:[%s6192] ss:$4 sm:$0x3f]
      %v6194 = vmax.f32 %v6191, %v6193
      %v6195 = vmax.f32 %v6189, %v6194
      %s6196 = scalar_lea.vmem [#allocation3], 394
      %v6197 = vld [vmem:[%s6196] ss:$4 sm:$0x3f]
      %s6198 = scalar_lea.vmem [#allocation3], 395
      %v6199 = vld [vmem:[%s6198] ss:$4 sm:$0x3f]
      %v6200 = vmax.f32 %v6197, %v6199
      %s6201 = scalar_lea.vmem [#allocation3], 422
      %v6202 = vld [vmem:[%s6201] ss:$4 sm:$0x3f]
      %s6203 = scalar_lea.vmem [#allocation3], 423
      %v6204 = vld [vmem:[%s6203] ss:$4 sm:$0x3f]
      %v6205 = vmax.f32 %v6202, %v6204
      %v6206 = vmax.f32 %v6200, %v6205
      %6208 = vrot.lane.b32.xlu0 %v6206, 64
      %v6209 = vpop.permute.xlu0 %6208
      %v6211 = vsel %vm1672, %v6195, %v6209
      %6212 = vst [vmem:[%s224 + $0x2a] sm:$0x3f] %v6211
      %s6213 = scalar_lea.vmem [#allocation3], 448
      %v6214 = vld [vmem:[%s6213] ss:$4 sm:$0x3f]
      %s6215 = scalar_lea.vmem [#allocation3], 449
      %v6216 = vld [vmem:[%s6215] ss:$4 sm:$0x3f]
      %v6217 = vmax.f32 %v6214, %v6216
      %s6218 = scalar_lea.vmem [#allocation3], 476
      %v6219 = vld [vmem:[%s6218] ss:$4 sm:$0x3f]
      %s6220 = scalar_lea.vmem [#allocation3], 477
      %v6221 = vld [vmem:[%s6220] ss:$4 sm:$0x3f]
      %v6222 = vmax.f32 %v6219, %v6221
      %v6223 = vmax.f32 %v6217, %v6222
      %s6224 = scalar_lea.vmem [#allocation3], 450
      %v6225 = vld [vmem:[%s6224] ss:$4 sm:$0x3f]
      %s6226 = scalar_lea.vmem [#allocation3], 451
      %v6227 = vld [vmem:[%s6226] ss:$4 sm:$0x3f]
      %v6228 = vmax.f32 %v6225, %v6227
      %s6229 = scalar_lea.vmem [#allocation3], 478
      %v6230 = vld [vmem:[%s6229] ss:$4 sm:$0x3f]
      %s6231 = scalar_lea.vmem [#allocation3], 479
      %v6232 = vld [vmem:[%s6231] ss:$4 sm:$0x3f]
      %v6233 = vmax.f32 %v6230, %v6232
      %v6234 = vmax.f32 %v6228, %v6233
      %6236 = vrot.lane.b32.xlu0 %v6234, 64
      %v6237 = vpop.permute.xlu0 %6236
      %v6239 = vsel %vm1672, %v6223, %v6237
      %6240 = vst [vmem:[%s224 + $0x30] sm:$0x3f] %v6239
      %s6241 = scalar_lea.vmem [#allocation3], 504
      %v6242 = vld [vmem:[%s6241] ss:$4 sm:$0x3f]
      %s6243 = scalar_lea.vmem [#allocation3], 505
      %v6244 = vld [vmem:[%s6243] ss:$4 sm:$0x3f]
      %v6245 = vmax.f32 %v6242, %v6244
      %s6246 = scalar_lea.vmem [#allocation3], 532
      %v6247 = vld [vmem:[%s6246] ss:$4 sm:$0x3f]
      %s6248 = scalar_lea.vmem [#allocation3], 533
      %v6249 = vld [vmem:[%s6248] ss:$4 sm:$0x3f]
      %v6250 = vmax.f32 %v6247, %v6249
      %v6251 = vmax.f32 %v6245, %v6250
      %s6252 = scalar_lea.vmem [#allocation3], 506
      %v6253 = vld [vmem:[%s6252] ss:$4 sm:$0x3f]
      %s6254 = scalar_lea.vmem [#allocation3], 507
      %v6255 = vld [vmem:[%s6254] ss:$4 sm:$0x3f]
      %v6256 = vmax.f32 %v6253, %v6255
      %s6257 = scalar_lea.vmem [#allocation3], 534
      %v6258 = vld [vmem:[%s6257] ss:$4 sm:$0x3f]
      %s6259 = scalar_lea.vmem [#allocation3], 535
      %v6260 = vld [vmem:[%s6259] ss:$4 sm:$0x3f]
      %v6261 = vmax.f32 %v6258, %v6260
      %v6262 = vmax.f32 %v6256, %v6261
      %6264 = vrot.lane.b32.xlu0 %v6262, 64
      %v6265 = vpop.permute.xlu0 %6264
      %v6267 = vsel %vm1672, %v6251, %v6265
      %6268 = vst [vmem:[%s224 + $0x36] sm:$0x3f] %v6267
      %s6269 = scalar_lea.vmem [#allocation3], 560
      %v6270 = vld [vmem:[%s6269] ss:$4 sm:$0x3f]
      %s6271 = scalar_lea.vmem [#allocation3], 561
      %v6272 = vld [vmem:[%s6271] ss:$4 sm:$0x3f]
      %v6273 = vmax.f32 %v6270, %v6272
      %s6274 = scalar_lea.vmem [#allocation3], 588
      %v6275 = vld [vmem:[%s6274] ss:$4 sm:$0x3f]
      %s6276 = scalar_lea.vmem [#allocation3], 589
      %v6277 = vld [vmem:[%s6276] ss:$4 sm:$0x3f]
      %v6278 = vmax.f32 %v6275, %v6277
      %v6279 = vmax.f32 %v6273, %v6278
      %s6280 = scalar_lea.vmem [#allocation3], 562
      %v6281 = vld [vmem:[%s6280] ss:$4 sm:$0x3f]
      %s6282 = scalar_lea.vmem [#allocation3], 563
      %v6283 = vld [vmem:[%s6282] ss:$4 sm:$0x3f]
      %v6284 = vmax.f32 %v6281, %v6283
      %s6285 = scalar_lea.vmem [#allocation3], 590
      %v6286 = vld [vmem:[%s6285] ss:$4 sm:$0x3f]
      %s6287 = scalar_lea.vmem [#allocation3], 591
      %v6288 = vld [vmem:[%s6287] ss:$4 sm:$0x3f]
      %v6289 = vmax.f32 %v6286, %v6288
      %v6290 = vmax.f32 %v6284, %v6289
      %6292 = vrot.lane.b32.xlu0 %v6290, 64
      %v6293 = vpop.permute.xlu0 %6292
      %v6295 = vsel %vm1672, %v6279, %v6293
      %6296 = vst [vmem:[%s224 + $0x3c] sm:$0x3f] %v6295
      %s6297 = scalar_lea.vmem [#allocation3], 616
      %v6298 = vld [vmem:[%s6297] ss:$4 sm:$0x3f]
      %s6299 = scalar_lea.vmem [#allocation3], 617
      %v6300 = vld [vmem:[%s6299] ss:$4 sm:$0x3f]
      %v6301 = vmax.f32 %v6298, %v6300
      %s6302 = scalar_lea.vmem [#allocation3], 644
      %v6303 = vld [vmem:[%s6302] ss:$4 sm:$0x3f]
      %s6304 = scalar_lea.vmem [#allocation3], 645
      %v6305 = vld [vmem:[%s6304] ss:$4 sm:$0x3f]
      %v6306 = vmax.f32 %v6303, %v6305
      %v6307 = vmax.f32 %v6301, %v6306
      %s6308 = scalar_lea.vmem [#allocation3], 618
      %v6309 = vld [vmem:[%s6308] ss:$4 sm:$0x3f]
      %s6310 = scalar_lea.vmem [#allocation3], 619
      %v6311 = vld [vmem:[%s6310] ss:$4 sm:$0x3f]
      %v6312 = vmax.f32 %v6309, %v6311
      %s6313 = scalar_lea.vmem [#allocation3], 646
      %v6314 = vld [vmem:[%s6313] ss:$4 sm:$0x3f]
      %s6315 = scalar_lea.vmem [#allocation3], 647
      %v6316 = vld [vmem:[%s6315] ss:$4 sm:$0x3f]
      %v6317 = vmax.f32 %v6314, %v6316
      %v6318 = vmax.f32 %v6312, %v6317
      %6320 = vrot.lane.b32.xlu0 %v6318, 64
      %v6321 = vpop.permute.xlu0 %6320
      %v6323 = vsel %vm1672, %v6307, %v6321
      %6324 = vst [vmem:[%s224 + $0x42] sm:$0x3f] %v6323
      %p6325 = scmp.lt.s32.totalorder %s16, 1
      %s6326 = scalar_select %p6325, %s16, 1
      %s6327 = smul.addr %s6326, 9
      %s6328 = smul.addr %s6327, 8
      %s6329 = scalar_lea.vmem %s5, %s6328
      // Predicated region
      $region41: #{net2layer_forward.2} parent=39 // pred_check
        %p6330 = pneg %p144
      $region42: #{net2layer_forward.2} parent=39 // pred_check_branch
        %6332 = sbr.rel (%p6330) target = $region44
      $region43: #{net2layer_forward.2} parent=39 // pred_region
        _
      $region44: #{net2layer_forward.2} parent=39 // pred_fallthru
        _
    $region40: #{net2layer_forward.2} parent=5 // pred_fallthru
      _
    %p6333 = scmp.le.s32.totalorder 2, %s11
    // Predicated region
    $region45: #{net2layer_forward.2} parent=5 // pred_check
      %p6334 = pneg %p6333
    $region46: #{net2layer_forward.2} parent=5 // pred_check_branch
      %6336 = sbr.rel (%p6334) target = $region48
    $region47: #{net2layer_forward.2} parent=5 // pred_region
      %s6337 = ssub.s32 %s11, 2
      // Predicated region
      $region49: #{net2layer_forward.2} parent=47 // pred_check
        %p6338 = pneg %p150
      $region50: #{net2layer_forward.2} parent=47 // pred_check_branch
        %6340 = sbr.rel (%p6338) target = $region52
      $region51: #{net2layer_forward.2} parent=47 // pred_region
        %p6341 = scmp.lt.s32.totalorder %s17, 1
        %s6342 = scalar_select %p6341, %s17, 1
        %s6343 = smul.addr %s6342, 9
        %s6344 = smul.addr %s6343, 8
        %s6345 = scalar_lea.vmem %s5, %s6344
      $region52: #{net2layer_forward.2} parent=47 // pred_fallthru
        _
    $region48: #{net2layer_forward.2} parent=5 // pred_fallthru
      _
  $region6: #{net2layer_forward.2} parent=0 // loop_footer
    %s15 = sadd.s32 1, %s11
  $region7: #{net2layer_forward.2} parent=0 // loop_footer_branch
    %10 = sbr.rel target = $region3
  $region8: #{net2layer_forward.2} parent=0 // loop_exit
    _

</llo_original>
